<compile_context>
chip_gen: v7x
topology: tpu7x:2x2x1
jax: 0.10.0
libtpu: 0.0.40
codegen_flags: <defaults>
</compile_context>

<pallas_src>
import functools

import jax
import jax.numpy as jnp
from jax import lax
from jax.experimental import pallas as pl
from jax.experimental.pallas import tpu as pltpu

EPS = 1e-5


def _bn(y, gamma, beta):
    """Training-mode BatchNorm over rows of a (M, C) matrix.

    Two-pass form (mean, then centered variance) to avoid the
    E[x^2] - mean^2 cancellation flagged in review.  Biased variance,
    eps=1e-5.  gamma/beta are (1, C).  All math in f32.
    """
    inv_m = 1.0 / y.shape[0]
    mean = jnp.sum(y, axis=0, keepdims=True) * inv_m
    c = y - mean
    var = jnp.sum(c * c, axis=0, keepdims=True) * inv_m
    scale = gamma * lax.rsqrt(var + EPS)
    return c * scale + beta


def bottleneck_kernel(stride, use_im2col,
                      x_ref,
                      w1_ref, g1_ref, b1_ref,
                      w2_ref, g2_ref, b2_ref,
                      w3_ref, g3_ref, b3_ref,
                      ws_ref, gs_ref, bs_ref,
                      out_ref,
                      hp_ref):
    N, H, W, Cin = x_ref.shape
    P = w1_ref.shape[1]
    Pout = w3_ref.shape[1]
    Ho = (H + 2 - 3) // stride + 1
    Wo = (W + 2 - 3) // stride + 1
    M1 = N * H * W
    M2 = N * Ho * Wo

    # ---- conv1 (1x1) + bn1 + relu ---------------------------------------
    # x is only ever an MXU operand -> cast once to the matmul dtype and
    # reuse the same value for the shortcut (hoisted cast).
    x2d = x_ref[...].reshape(M1, Cin).astype(w1_ref.dtype)
    h1 = jnp.dot(x2d, w1_ref[...], preferred_element_type=jnp.float32)
    h1 = jnp.maximum(_bn(h1, g1_ref[...], b1_ref[...]), 0.0)

    # ---- conv2 (3x3, pad=1, stride) ---------------------------------------
    # Padded h1 lives in a VMEM scratch ref (zero border of width 1); taps are
    # read as static ref slices instead of unaligned value slices.
    # TODO(synk): on v7x, keep this scratch in bf16 to halve resident VMEM.
    hp_ref[...] = jnp.zeros(hp_ref.shape, hp_ref.dtype)
    hp_ref[:, 1:H + 1, 1:W + 1, :] = (
        h1.reshape(N, H, W, P).astype(hp_ref.dtype))

    def tap(di, dj):
        if stride == 1:
            win = hp_ref[:, di:di + Ho, dj:dj + Wo, :]
        else:
            win = hp_ref[:, pl.ds(di, Ho, stride=stride),
                            pl.ds(dj, Wo, stride=stride), :]
        return win.reshape(M2, P).astype(w2_ref.dtype)

    if use_im2col:
        # Toy channel counts only (9*P < 128): one lane-dense K=9*P matmul.
        patches = jnp.concatenate(
            [tap(di, dj) for di in range(3) for dj in range(3)], axis=1)
        h2 = jnp.dot(patches, w2_ref[...].reshape(9 * P, P),
                     preferred_element_type=jnp.float32)
    else:
        # Production path: 9 per-tap matmuls (K = P) accumulated in f32.
        # ~9x less conv2 activation VMEM than a materialized im2col; on v7x
        # the MRB accumulates these in-place in the MXU result buffer.
        h2 = jnp.zeros((M2, P), jnp.float32)
        k = 0
        for di in range(3):
            for dj in range(3):
                h2 = h2 + jnp.dot(tap(di, dj), w2_ref[k],
                                  preferred_element_type=jnp.float32)
                k += 1
    h2 = jnp.maximum(_bn(h2, g2_ref[...], b2_ref[...]), 0.0)

    # ---- conv3 (1x1) + bn3 -------------------------------------------------
    h3 = jnp.dot(h2.astype(w3_ref.dtype), w3_ref[...],
                 preferred_element_type=jnp.float32)
    h3 = _bn(h3, g3_ref[...], b3_ref[...])

    # ---- projection shortcut (1x1, stride) + bn_s ---------------------------
    if stride == 1:
        xs2d = x2d                                    # reuse hoisted cast
    else:
        xs = x_ref[:, pl.ds(0, Ho, stride=stride),
                      pl.ds(0, Wo, stride=stride), :]  # ref-level strided read
        xs2d = xs.reshape(M2, Cin).astype(ws_ref.dtype)
    sc = jnp.dot(xs2d, ws_ref[...], preferred_element_type=jnp.float32)
    sc = _bn(sc, gs_ref[...], bs_ref[...])

    out = jnp.maximum(h3 + sc, 0.0)                   # (M2, Pout), f32

    # ---- writeback -----------------------------------------------------------
    if out_ref.shape == (M2, Pout):
        # Production Pout (>=128): already lane-dense, store directly.
        out_ref[...] = out.astype(out_ref.dtype)
    else:
        # Toy Pout < 128: pack into a lane-dense (N*Ho, Wo*Pout) slab so the
        # stores use full 128-lane vst instead of masked partial stores.
        out3 = out.reshape(N * Ho, Wo, Pout)
        slab = jnp.concatenate([out3[:, wo, :] for wo in range(Wo)], axis=1)
        out_ref[...] = slab.astype(out_ref.dtype)


def bottleneck_forward(x, params, stride=1, matmul_dtype=jnp.float32,
                       conv2_9tap=None):
    """Bottleneck forward.  x: NHWC.

    matmul_dtype: MXU operand dtype.  jnp.bfloat16 is the recommended setting
    on v6e/v7x (f32 accumulation and f32 BN/ReLU are kept); the default stays
    f32 so the strict numerical check in __main__ is meaningful and so v5e
    (no bf16 VPU/EUP) keeps its elementwise path clean.
    conv2_9tap: None = auto (per-tap accumulation when 9*P >= 128, single
    im2col matmul for toy channel counts); True/False forces a path.
    """
    N, H, W, Cin = x.shape
    P = params["w1"].shape[1]
    Pout = params["w3"].shape[1]
    Ho = (H + 2 - 3) // stride + 1
    Wo = (W + 2 - 3) // stride + 1
    M1, M2 = N * H * W, N * Ho * Wo

    if conv2_9tap is None:
        conv2_9tap = (9 * P >= 128)
    use_im2col = not conv2_9tap

    lane_dense_out = Pout >= 128
    if lane_dense_out:
        out_shape = jax.ShapeDtypeStruct((M2, Pout), jnp.float32)
    else:
        out_shape = jax.ShapeDtypeStruct((N * Ho, Wo * Pout), jnp.float32)

    # Advisory cost estimate for XLA scheduling around the custom call.
    flops = 2 * (M1 * Cin * P + M2 * 9 * P * P + M2 * P * Pout + M2 * Cin * Pout)
    bytes_accessed = 4 * (x.size + M2 * Pout
                          + Cin * P + 9 * P * P + P * Pout + Cin * Pout
                          + 4 * (P + P + Pout + Pout))
    cost = pl.CostEstimate(flops=int(flops),
                           transcendentals=int(2 * P + 2 * Pout),
                           bytes_accessed=int(bytes_accessed))

    kernel = functools.partial(bottleneck_kernel, stride, use_im2col)
    # Single grid point: the whole (toy-sized) problem is VMEM-resident and BN
    # needs whole-batch statistics.  See TODO(synk) at the top for the
    # production tiling plan (row-block grid + two-pass BN + v7x sizing).
    out2d = pl.pallas_call(
        kernel,
        out_shape=out_shape,
        scratch_shapes=[pltpu.VMEM((N, H + 2, W + 2, P), jnp.float32)],
        compiler_params=pltpu.CompilerParams(
            vmem_limit_bytes=32 * 1024 * 1024),
        cost_estimate=cost,
    )(x,
      params["w1"].astype(matmul_dtype), params["g1"], params["b1"],
      params["w2"].astype(matmul_dtype), params["g2"], params["b2"],
      params["w3"].astype(matmul_dtype), params["g3"], params["b3"],
      params["ws"].astype(matmul_dtype), params["gs"], params["bs"])
    return out2d.reshape(N, Ho, Wo, Pout)


# ---------------- pure-JAX reference (same math, lax.conv) -------------------
def reference_forward(x, p, stride=1):
    def conv1x1(h, w):
        return jnp.einsum("nhwc,cd->nhwd", h, w)

    def bn(h, g, b):
        m = jnp.mean(h, axis=(0, 1, 2), keepdims=True)
        v = jnp.mean(jnp.square(h - m), axis=(0, 1, 2), keepdims=True)
        return (h - m) * lax.rsqrt(v + EPS) * g.reshape(1, 1, 1, -1) + b.reshape(1, 1, 1, -1)

    P = p["w1"].shape[1]
    h = jax.nn.relu(bn(conv1x1(x, p["w1"]), p["g1"], p["b1"]))
    w2 = p["w2"].reshape(3, 3, P, P)  # HWIO
    h = lax.conv_general_dilated(h, w2, (stride, stride), ((1, 1), (1, 1)),
                                 dimension_numbers=("NHWC", "HWIO", "NHWC"))
    h = jax.nn.relu(bn(h, p["g2"], p["b2"]))
    h = bn(conv1x1(h, p["w3"]), p["g3"], p["b3"])
    xs = x[:, ::stride, ::stride, :]
    sc = bn(conv1x1(xs, p["ws"]), p["gs"], p["bs"])
    return jax.nn.relu(h + sc)


if __name__ == "__main__":
    # Bottleneck(in_planes=4, planes=4, stride=1): expansion=4 -> out channels
    # 16, in_planes(4) != 16 so the projection shortcut (1x1 conv + bn) exists.
    # NOTE: at these toy channel counts (C=4) only 4/128 lanes are active; the
    # kernel structure (per-tap conv2, un-fused conv3/shortcut, bf16 operands)
    # is chosen for production channel counts (>=128) per the perf review.
    N, H, W = 2, 16, 16
    Cin, P, stride = 4, 4, 1
    Pout = 4 * P

    key = jax.random.PRNGKey(0)
    ks = jax.random.split(key, 13)
    params = {
        # conv weights (PyTorch OIHW -> matmul / HWIO-flattened layouts)
        "w1": 0.5 * jax.random.normal(ks[0], (Cin, P), jnp.float32),
        "w2": 0.2 * jax.random.normal(ks[1], (9, P, P), jnp.float32),
        "w3": 0.3 * jax.random.normal(ks[2], (P, Pout), jnp.float32),
        "ws": 0.3 * jax.random.normal(ks[3], (Cin, Pout), jnp.float32),
        # BatchNorm affine params (gamma, beta), stored as (1, C)
        "g1": 1.0 + 0.1 * jax.random.normal(ks[4], (1, P), jnp.float32),
        "b1": 0.1 * jax.random.normal(ks[5], (1, P), jnp.float32),
        "g2": 1.0 + 0.1 * jax.random.normal(ks[6], (1, P), jnp.float32),
        "b2": 0.1 * jax.random.normal(ks[7], (1, P), jnp.float32),
        "g3": 1.0 + 0.1 * jax.random.normal(ks[8], (1, Pout), jnp.float32),
        "b3": 0.1 * jax.random.normal(ks[9], (1, Pout), jnp.float32),
        "gs": 1.0 + 0.1 * jax.random.normal(ks[10], (1, Pout), jnp.float32),
        "bs": 0.1 * jax.random.normal(ks[11], (1, Pout), jnp.float32),
    }
    x = jax.random.normal(ks[12], (N, H, W, Cin), jnp.float32)

    ref = jax.block_until_ready(reference_forward(x, params, stride=stride))

    # 1) default: f32 MXU operands, auto conv2 path (im2col here since 9*P<128).
    out = jax.block_until_ready(bottleneck_forward(x, params, stride=stride))
    assert out.shape == (N, H, W, Pout)
    assert jnp.allclose(out, ref, atol=1e-4, rtol=1e-4), \
        float(jnp.max(jnp.abs(out - ref)))

    # 2) force the production per-tap-accumulation conv2 path (what runs when
    #    9*P >= 128) and validate it at the same tight tolerance.
    out9 = jax.block_until_ready(
        bottleneck_forward(x, params, stride=stride, conv2_9tap=True))
    assert jnp.allclose(out9, ref, atol=1e-4, rtol=1e-4), \
        float(jnp.max(jnp.abs(out9 - ref)))

    # 3) bf16 MXU operands (the v6e/v7x recommendation), f32 accumulation and
    #    f32 BN/ReLU -> looser tolerance for the bf16 operand rounding.
    outb = jax.block_until_ready(
        bottleneck_forward(x, params, stride=stride, conv2_9tap=True,
                           matmul_dtype=jnp.bfloat16))
    assert jnp.allclose(outb, ref, atol=1e-1, rtol=1e-1), \
        float(jnp.max(jnp.abs(outb - ref)))

    print("KERNEL_OK")
</pallas_src>

<mosaic_0001>
module attributes {stable_mosaic.version = 11 : i64} {
  func.func @bottleneck_kernel(%arg0: memref<2x16x16x4xf32, #tpu.memory_space<vmem>>, %arg1: memref<4x4xf32, #tpu.memory_space<vmem>>, %arg2: memref<1x4xf32, #tpu.memory_space<vmem>>, %arg3: memref<1x4xf32, #tpu.memory_space<vmem>>, %arg4: memref<9x4x4xf32, #tpu.memory_space<vmem>>, %arg5: memref<1x4xf32, #tpu.memory_space<vmem>>, %arg6: memref<1x4xf32, #tpu.memory_space<vmem>>, %arg7: memref<4x16xf32, #tpu.memory_space<vmem>>, %arg8: memref<1x16xf32, #tpu.memory_space<vmem>>, %arg9: memref<1x16xf32, #tpu.memory_space<vmem>>, %arg10: memref<4x16xf32, #tpu.memory_space<vmem>>, %arg11: memref<1x16xf32, #tpu.memory_space<vmem>>, %arg12: memref<1x16xf32, #tpu.memory_space<vmem>>, %arg13: memref<32x256xf32, #tpu.memory_space<vmem>>, %arg14: memref<2x18x18x4xf32, #tpu.memory_space<vmem>>) attributes {dimension_semantics = [], scalar_prefetch = 0 : i64, scratch_operands = 1 : i64, tpu.core_type = #tpu.core_type<tc>} {
    %c0 = arith.constant 0 : index
    %c0_0 = arith.constant 0 : index
    %c0_1 = arith.constant 0 : index
    %c0_2 = arith.constant 0 : index
    %0 = vector.load %arg0[%c0, %c0_0, %c0_1, %c0_2] : memref<2x16x16x4xf32, #tpu.memory_space<vmem>>, vector<2x16x16x4xf32>
    %1 = vector.shape_cast %0 : vector<2x16x16x4xf32> to vector<512x4xf32>
    %c0_3 = arith.constant 0 : index
    %c0_4 = arith.constant 0 : index
    %2 = vector.load %arg1[%c0_3, %c0_4] : memref<4x4xf32, #tpu.memory_space<vmem>>, vector<4x4xf32>
    %cst = arith.constant dense<0.000000e+00> : vector<512x4xf32>
    %3 = tpu.matmul %1, %2, %cst {dimension_numbers = #tpu.dot_dimension_numbers<[1], [0], [0], [1], [0, 0, 1, 1], [], []>} : vector<512x4xf32>, vector<4x4xf32>, vector<512x4xf32> -> vector<512x4xf32>
    %c0_5 = arith.constant 0 : index
    %c0_6 = arith.constant 0 : index
    %4 = vector.load %arg2[%c0_5, %c0_6] : memref<1x4xf32, #tpu.memory_space<vmem>>, vector<1x4xf32>
    %c0_7 = arith.constant 0 : index
    %c0_8 = arith.constant 0 : index
    %5 = vector.load %arg3[%c0_7, %c0_8] : memref<1x4xf32, #tpu.memory_space<vmem>>, vector<1x4xf32>
    %cst_9 = arith.constant dense<0.000000e+00> : vector<4xf32>
    %6 = vector.multi_reduction <add>, %3, %cst_9 [0] : vector<512x4xf32> to vector<4xf32>
    %7 = vector.shape_cast %6 : vector<4xf32> to vector<1x4xf32>
    %cst_10 = arith.constant 0.001953125 : f32
    %8 = vector.broadcast %cst_10 : f32 to vector<1x4xf32>
    %9 = arith.mulf %7, %8 : vector<1x4xf32>
    %10 = vector.broadcast %9 : vector<1x4xf32> to vector<512x4xf32>
    %11 = arith.subf %3, %10 : vector<512x4xf32>
    %12 = arith.mulf %11, %11 : vector<512x4xf32>
    %cst_11 = arith.constant dense<0.000000e+00> : vector<4xf32>
    %13 = vector.multi_reduction <add>, %12, %cst_11 [0] : vector<512x4xf32> to vector<4xf32>
    %14 = vector.shape_cast %13 : vector<4xf32> to vector<1x4xf32>
    %cst_12 = arith.constant 0.001953125 : f32
    %15 = vector.broadcast %cst_12 : f32 to vector<1x4xf32>
    %16 = arith.mulf %14, %15 : vector<1x4xf32>
    %cst_13 = arith.constant 9.99999974E-6 : f32
    %17 = vector.broadcast %cst_13 : f32 to vector<1x4xf32>
    %18 = arith.addf %16, %17 : vector<1x4xf32>
    %19 = math.rsqrt %18 : vector<1x4xf32>
    %20 = arith.mulf %4, %19 : vector<1x4xf32>
    %21 = vector.broadcast %20 : vector<1x4xf32> to vector<512x4xf32>
    %22 = arith.mulf %11, %21 : vector<512x4xf32>
    %23 = vector.broadcast %5 : vector<1x4xf32> to vector<512x4xf32>
    %24 = arith.addf %22, %23 : vector<512x4xf32>
    %cst_14 = arith.constant 0.000000e+00 : f32
    %25 = vector.broadcast %cst_14 : f32 to vector<512x4xf32>
    %26 = arith.maximumf %24, %25 : vector<512x4xf32>
    %cst_15 = arith.constant 0.000000e+00 : f32
    %27 = vector.broadcast %cst_15 : f32 to vector<2x18x18x4xf32>
    %c0_16 = arith.constant 0 : index
    %c0_17 = arith.constant 0 : index
    %c0_18 = arith.constant 0 : index
    %c0_19 = arith.constant 0 : index
    %28 = vector.load %arg14[%c0_16, %c0_17, %c0_18, %c0_19] : memref<2x18x18x4xf32, #tpu.memory_space<vmem>>, vector<2x18x18x4xf32>
    tpu.vector_store %arg14[%c0_16, %c0_17, %c0_18, %c0_19], %27 {strides = array<i32>} : memref<2x18x18x4xf32, #tpu.memory_space<vmem>>, vector<2x18x18x4xf32>,
    %29 = vector.shape_cast %26 : vector<512x4xf32> to vector<2x16x16x4xf32>
    %c0_20 = arith.constant 0 : index
    %c1 = arith.constant 1 : index
    %c1_21 = arith.constant 1 : index
    %c0_22 = arith.constant 0 : index
    %30 = vector.load %arg14[%c0_20, %c1, %c1_21, %c0_22] : memref<2x18x18x4xf32, #tpu.memory_space<vmem>>, vector<2x16x16x4xf32>
    tpu.vector_store %arg14[%c0_20, %c1, %c1_21, %c0_22], %29 {strides = array<i32>} : memref<2x18x18x4xf32, #tpu.memory_space<vmem>>, vector<2x16x16x4xf32>,
    %c0_23 = arith.constant 0 : index
    %c0_24 = arith.constant 0 : index
    %c0_25 = arith.constant 0 : index
    %c0_26 = arith.constant 0 : index
    %31 = vector.load %arg14[%c0_23, %c0_24, %c0_25, %c0_26] : memref<2x18x18x4xf32, #tpu.memory_space<vmem>>, vector<2x16x16x4xf32>
    %32 = vector.shape_cast %31 : vector<2x16x16x4xf32> to vector<512x4xf32>
    %c0_27 = arith.constant 0 : index
    %c0_28 = arith.constant 0 : index
    %c1_29 = arith.constant 1 : index
    %c0_30 = arith.constant 0 : index
    %33 = vector.load %arg14[%c0_27, %c0_28, %c1_29, %c0_30] : memref<2x18x18x4xf32, #tpu.memory_space<vmem>>, vector<2x16x16x4xf32>
    %34 = vector.shape_cast %33 : vector<2x16x16x4xf32> to vector<512x4xf32>
    %c0_31 = arith.constant 0 : index
    %c0_32 = arith.constant 0 : index
    %c2 = arith.constant 2 : index
    %c0_33 = arith.constant 0 : index
    %35 = vector.load %arg14[%c0_31, %c0_32, %c2, %c0_33] : memref<2x18x18x4xf32, #tpu.memory_space<vmem>>, vector<2x16x16x4xf32>
    %36 = vector.shape_cast %35 : vector<2x16x16x4xf32> to vector<512x4xf32>
    %c0_34 = arith.constant 0 : index
    %c1_35 = arith.constant 1 : index
    %c0_36 = arith.constant 0 : index
    %c0_37 = arith.constant 0 : index
    %37 = vector.load %arg14[%c0_34, %c1_35, %c0_36, %c0_37] : memref<2x18x18x4xf32, #tpu.memory_space<vmem>>, vector<2x16x16x4xf32>
    %38 = vector.shape_cast %37 : vector<2x16x16x4xf32> to vector<512x4xf32>
    %c0_38 = arith.constant 0 : index
    %c1_39 = arith.constant 1 : index
    %c1_40 = arith.constant 1 : index
    %c0_41 = arith.constant 0 : index
    %39 = vector.load %arg14[%c0_38, %c1_39, %c1_40, %c0_41] : memref<2x18x18x4xf32, #tpu.memory_space<vmem>>, vector<2x16x16x4xf32>
    %40 = vector.shape_cast %39 : vector<2x16x16x4xf32> to vector<512x4xf32>
    %c0_42 = arith.constant 0 : index
    %c1_43 = arith.constant 1 : index
    %c2_44 = arith.constant 2 : index
    %c0_45 = arith.constant 0 : index
    %41 = vector.load %arg14[%c0_42, %c1_43, %c2_44, %c0_45] : memref<2x18x18x4xf32, #tpu.memory_space<vmem>>, vector<2x16x16x4xf32>
    %42 = vector.shape_cast %41 : vector<2x16x16x4xf32> to vector<512x4xf32>
    %c0_46 = arith.constant 0 : index
    %c2_47 = arith.constant 2 : index
    %c0_48 = arith.constant 0 : index
    %c0_49 = arith.constant 0 : index
    %43 = vector.load %arg14[%c0_46, %c2_47, %c0_48, %c0_49] : memref<2x18x18x4xf32, #tpu.memory_space<vmem>>, vector<2x16x16x4xf32>
    %44 = vector.shape_cast %43 : vector<2x16x16x4xf32> to vector<512x4xf32>
    %c0_50 = arith.constant 0 : index
    %c2_51 = arith.constant 2 : index
    %c1_52 = arith.constant 1 : index
    %c0_53 = arith.constant 0 : index
    %45 = vector.load %arg14[%c0_50, %c2_51, %c1_52, %c0_53] : memref<2x18x18x4xf32, #tpu.memory_space<vmem>>, vector<2x16x16x4xf32>
    %46 = vector.shape_cast %45 : vector<2x16x16x4xf32> to vector<512x4xf32>
    %c0_54 = arith.constant 0 : index
    %c2_55 = arith.constant 2 : index
    %c2_56 = arith.constant 2 : index
    %c0_57 = arith.constant 0 : index
    %47 = vector.load %arg14[%c0_54, %c2_55, %c2_56, %c0_57] : memref<2x18x18x4xf32, #tpu.memory_space<vmem>>, vector<2x16x16x4xf32>
    %48 = vector.shape_cast %47 : vector<2x16x16x4xf32> to vector<512x4xf32>
    %49 = tpu.concatenate %32, %34, %36, %38, %40, %42, %44, %46, %48 in 1 : vector<512x4xf32>, vector<512x4xf32>, vector<512x4xf32>, vector<512x4xf32>, vector<512x4xf32>, vector<512x4xf32>, vector<512x4xf32>, vector<512x4xf32>, vector<512x4xf32> -> vector<512x36xf32>
    %c0_58 = arith.constant 0 : index
    %c0_59 = arith.constant 0 : index
    %c0_60 = arith.constant 0 : index
    %50 = vector.load %arg4[%c0_58, %c0_59, %c0_60] : memref<9x4x4xf32, #tpu.memory_space<vmem>>, vector<9x4x4xf32>
    %51 = vector.shape_cast %50 : vector<9x4x4xf32> to vector<36x4xf32>
    %cst_61 = arith.constant dense<0.000000e+00> : vector<512x4xf32>
    %52 = tpu.matmul %49, %51, %cst_61 {dimension_numbers = #tpu.dot_dimension_numbers<[1], [0], [0], [1], [0, 0, 1, 1], [], []>} : vector<512x36xf32>, vector<36x4xf32>, vector<512x4xf32> -> vector<512x4xf32>
    %c0_62 = arith.constant 0 : index
    %c0_63 = arith.constant 0 : index
    %53 = vector.load %arg5[%c0_62, %c0_63] : memref<1x4xf32, #tpu.memory_space<vmem>>, vector<1x4xf32>
    %c0_64 = arith.constant 0 : index
    %c0_65 = arith.constant 0 : index
    %54 = vector.load %arg6[%c0_64, %c0_65] : memref<1x4xf32, #tpu.memory_space<vmem>>, vector<1x4xf32>
    %cst_66 = arith.constant dense<0.000000e+00> : vector<4xf32>
    %55 = vector.multi_reduction <add>, %52, %cst_66 [0] : vector<512x4xf32> to vector<4xf32>
    %56 = vector.shape_cast %55 : vector<4xf32> to vector<1x4xf32>
    %cst_67 = arith.constant 0.001953125 : f32
    %57 = vector.broadcast %cst_67 : f32 to vector<1x4xf32>
    %58 = arith.mulf %56, %57 : vector<1x4xf32>
    %59 = vector.broadcast %58 : vector<1x4xf32> to vector<512x4xf32>
    %60 = arith.subf %52, %59 : vector<512x4xf32>
    %61 = arith.mulf %60, %60 : vector<512x4xf32>
    %cst_68 = arith.constant dense<0.000000e+00> : vector<4xf32>
    %62 = vector.multi_reduction <add>, %61, %cst_68 [0] : vector<512x4xf32> to vector<4xf32>
    %63 = vector.shape_cast %62 : vector<4xf32> to vector<1x4xf32>
    %cst_69 = arith.constant 0.001953125 : f32
    %64 = vector.broadcast %cst_69 : f32 to vector<1x4xf32>
    %65 = arith.mulf %63, %64 : vector<1x4xf32>
    %cst_70 = arith.constant 9.99999974E-6 : f32
    %66 = vector.broadcast %cst_70 : f32 to vector<1x4xf32>
    %67 = arith.addf %65, %66 : vector<1x4xf32>
    %68 = math.rsqrt %67 : vector<1x4xf32>
    %69 = arith.mulf %53, %68 : vector<1x4xf32>
    %70 = vector.broadcast %69 : vector<1x4xf32> to vector<512x4xf32>
    %71 = arith.mulf %60, %70 : vector<512x4xf32>
    %72 = vector.broadcast %54 : vector<1x4xf32> to vector<512x4xf32>
    %73 = arith.addf %71, %72 : vector<512x4xf32>
    %cst_71 = arith.constant 0.000000e+00 : f32
    %74 = vector.broadcast %cst_71 : f32 to vector<512x4xf32>
    %75 = arith.maximumf %73, %74 : vector<512x4xf32>
    %c0_72 = arith.constant 0 : index
    %c0_73 = arith.constant 0 : index
    %76 = vector.load %arg7[%c0_72, %c0_73] : memref<4x16xf32, #tpu.memory_space<vmem>>, vector<4x16xf32>
    %cst_74 = arith.constant dense<0.000000e+00> : vector<512x16xf32>
    %77 = tpu.matmul %75, %76, %cst_74 {dimension_numbers = #tpu.dot_dimension_numbers<[1], [0], [0], [1], [0, 0, 1, 1], [], []>} : vector<512x4xf32>, vector<4x16xf32>, vector<512x16xf32> -> vector<512x16xf32>
    %c0_75 = arith.constant 0 : index
    %c0_76 = arith.constant 0 : index
    %78 = vector.load %arg8[%c0_75, %c0_76] : memref<1x16xf32, #tpu.memory_space<vmem>>, vector<1x16xf32>
    %c0_77 = arith.constant 0 : index
    %c0_78 = arith.constant 0 : index
    %79 = vector.load %arg9[%c0_77, %c0_78] : memref<1x16xf32, #tpu.memory_space<vmem>>, vector<1x16xf32>
    %cst_79 = arith.constant dense<0.000000e+00> : vector<16xf32>
    %80 = vector.multi_reduction <add>, %77, %cst_79 [0] : vector<512x16xf32> to vector<16xf32>
    %81 = vector.shape_cast %80 : vector<16xf32> to vector<1x16xf32>
    %cst_80 = arith.constant 0.001953125 : f32
    %82 = vector.broadcast %cst_80 : f32 to vector<1x16xf32>
    %83 = arith.mulf %81, %82 : vector<1x16xf32>
    %84 = vector.broadcast %83 : vector<1x16xf32> to vector<512x16xf32>
    %85 = arith.subf %77, %84 : vector<512x16xf32>
    %86 = arith.mulf %85, %85 : vector<512x16xf32>
    %cst_81 = arith.constant dense<0.000000e+00> : vector<16xf32>
    %87 = vector.multi_reduction <add>, %86, %cst_81 [0] : vector<512x16xf32> to vector<16xf32>
    %88 = vector.shape_cast %87 : vector<16xf32> to vector<1x16xf32>
    %cst_82 = arith.constant 0.001953125 : f32
    %89 = vector.broadcast %cst_82 : f32 to vector<1x16xf32>
    %90 = arith.mulf %88, %89 : vector<1x16xf32>
    %cst_83 = arith.constant 9.99999974E-6 : f32
    %91 = vector.broadcast %cst_83 : f32 to vector<1x16xf32>
    %92 = arith.addf %90, %91 : vector<1x16xf32>
    %93 = math.rsqrt %92 : vector<1x16xf32>
    %94 = arith.mulf %78, %93 : vector<1x16xf32>
    %95 = vector.broadcast %94 : vector<1x16xf32> to vector<512x16xf32>
    %96 = arith.mulf %85, %95 : vector<512x16xf32>
    %97 = vector.broadcast %79 : vector<1x16xf32> to vector<512x16xf32>
    %98 = arith.addf %96, %97 : vector<512x16xf32>
    %c0_84 = arith.constant 0 : index
    %c0_85 = arith.constant 0 : index
    %99 = vector.load %arg10[%c0_84, %c0_85] : memref<4x16xf32, #tpu.memory_space<vmem>>, vector<4x16xf32>
    %cst_86 = arith.constant dense<0.000000e+00> : vector<512x16xf32>
    %100 = tpu.matmul %1, %99, %cst_86 {dimension_numbers = #tpu.dot_dimension_numbers<[1], [0], [0], [1], [0, 0, 1, 1], [], []>} : vector<512x4xf32>, vector<4x16xf32>, vector<512x16xf32> -> vector<512x16xf32>
    %c0_87 = arith.constant 0 : index
    %c0_88 = arith.constant 0 : index
    %101 = vector.load %arg11[%c0_87, %c0_88] : memref<1x16xf32, #tpu.memory_space<vmem>>, vector<1x16xf32>
    %c0_89 = arith.constant 0 : index
    %c0_90 = arith.constant 0 : index
    %102 = vector.load %arg12[%c0_89, %c0_90] : memref<1x16xf32, #tpu.memory_space<vmem>>, vector<1x16xf32>
    %cst_91 = arith.constant dense<0.000000e+00> : vector<16xf32>
    %103 = vector.multi_reduction <add>, %100, %cst_91 [0] : vector<512x16xf32> to vector<16xf32>
    %104 = vector.shape_cast %103 : vector<16xf32> to vector<1x16xf32>
    %cst_92 = arith.constant 0.001953125 : f32
    %105 = vector.broadcast %cst_92 : f32 to vector<1x16xf32>
    %106 = arith.mulf %104, %105 : vector<1x16xf32>
    %107 = vector.broadcast %106 : vector<1x16xf32> to vector<512x16xf32>
    %108 = arith.subf %100, %107 : vector<512x16xf32>
    %109 = arith.mulf %108, %108 : vector<512x16xf32>
    %cst_93 = arith.constant dense<0.000000e+00> : vector<16xf32>
    %110 = vector.multi_reduction <add>, %109, %cst_93 [0] : vector<512x16xf32> to vector<16xf32>
    %111 = vector.shape_cast %110 : vector<16xf32> to vector<1x16xf32>
    %cst_94 = arith.constant 0.001953125 : f32
    %112 = vector.broadcast %cst_94 : f32 to vector<1x16xf32>
    %113 = arith.mulf %111, %112 : vector<1x16xf32>
    %cst_95 = arith.constant 9.99999974E-6 : f32
    %114 = vector.broadcast %cst_95 : f32 to vector<1x16xf32>
    %115 = arith.addf %113, %114 : vector<1x16xf32>
    %116 = math.rsqrt %115 : vector<1x16xf32>
    %117 = arith.mulf %101, %116 : vector<1x16xf32>
    %118 = vector.broadcast %117 : vector<1x16xf32> to vector<512x16xf32>
    %119 = arith.mulf %108, %118 : vector<512x16xf32>
    %120 = vector.broadcast %102 : vector<1x16xf32> to vector<512x16xf32>
    %121 = arith.addf %119, %120 : vector<512x16xf32>
    %122 = arith.addf %98, %121 : vector<512x16xf32>
    %cst_96 = arith.constant 0.000000e+00 : f32
    %123 = vector.broadcast %cst_96 : f32 to vector<512x16xf32>
    %124 = arith.maximumf %122, %123 : vector<512x16xf32>
    %125 = vector.shape_cast %124 : vector<512x16xf32> to vector<32x16x16xf32>
    %126 = vector.extract_strided_slice %125 {offsets = [0, 0, 0], sizes = [32, 1, 16], strides = [1, 1, 1]} : vector<32x16x16xf32> to vector<32x1x16xf32>
    %127 = vector.shape_cast %126 : vector<32x1x16xf32> to vector<32x16xf32>
    %128 = vector.extract_strided_slice %125 {offsets = [0, 1, 0], sizes = [32, 1, 16], strides = [1, 1, 1]} : vector<32x16x16xf32> to vector<32x1x16xf32>
    %129 = vector.shape_cast %128 : vector<32x1x16xf32> to vector<32x16xf32>
    %130 = vector.extract_strided_slice %125 {offsets = [0, 2, 0], sizes = [32, 1, 16], strides = [1, 1, 1]} : vector<32x16x16xf32> to vector<32x1x16xf32>
    %131 = vector.shape_cast %130 : vector<32x1x16xf32> to vector<32x16xf32>
    %132 = vector.extract_strided_slice %125 {offsets = [0, 3, 0], sizes = [32, 1, 16], strides = [1, 1, 1]} : vector<32x16x16xf32> to vector<32x1x16xf32>
    %133 = vector.shape_cast %132 : vector<32x1x16xf32> to vector<32x16xf32>
    %134 = vector.extract_strided_slice %125 {offsets = [0, 4, 0], sizes = [32, 1, 16], strides = [1, 1, 1]} : vector<32x16x16xf32> to vector<32x1x16xf32>
    %135 = vector.shape_cast %134 : vector<32x1x16xf32> to vector<32x16xf32>
    %136 = vector.extract_strided_slice %125 {offsets = [0, 5, 0], sizes = [32, 1, 16], strides = [1, 1, 1]} : vector<32x16x16xf32> to vector<32x1x16xf32>
    %137 = vector.shape_cast %136 : vector<32x1x16xf32> to vector<32x16xf32>
    %138 = vector.extract_strided_slice %125 {offsets = [0, 6, 0], sizes = [32, 1, 16], strides = [1, 1, 1]} : vector<32x16x16xf32> to vector<32x1x16xf32>
    %139 = vector.shape_cast %138 : vector<32x1x16xf32> to vector<32x16xf32>
    %140 = vector.extract_strided_slice %125 {offsets = [0, 7, 0], sizes = [32, 1, 16], strides = [1, 1, 1]} : vector<32x16x16xf32> to vector<32x1x16xf32>
    %141 = vector.shape_cast %140 : vector<32x1x16xf32> to vector<32x16xf32>
    %142 = vector.extract_strided_slice %125 {offsets = [0, 8, 0], sizes = [32, 1, 16], strides = [1, 1, 1]} : vector<32x16x16xf32> to vector<32x1x16xf32>
    %143 = vector.shape_cast %142 : vector<32x1x16xf32> to vector<32x16xf32>
    %144 = vector.extract_strided_slice %125 {offsets = [0, 9, 0], sizes = [32, 1, 16], strides = [1, 1, 1]} : vector<32x16x16xf32> to vector<32x1x16xf32>
    %145 = vector.shape_cast %144 : vector<32x1x16xf32> to vector<32x16xf32>
    %146 = vector.extract_strided_slice %125 {offsets = [0, 10, 0], sizes = [32, 1, 16], strides = [1, 1, 1]} : vector<32x16x16xf32> to vector<32x1x16xf32>
    %147 = vector.shape_cast %146 : vector<32x1x16xf32> to vector<32x16xf32>
    %148 = vector.extract_strided_slice %125 {offsets = [0, 11, 0], sizes = [32, 1, 16], strides = [1, 1, 1]} : vector<32x16x16xf32> to vector<32x1x16xf32>
    %149 = vector.shape_cast %148 : vector<32x1x16xf32> to vector<32x16xf32>
    %150 = vector.extract_strided_slice %125 {offsets = [0, 12, 0], sizes = [32, 1, 16], strides = [1, 1, 1]} : vector<32x16x16xf32> to vector<32x1x16xf32>
    %151 = vector.shape_cast %150 : vector<32x1x16xf32> to vector<32x16xf32>
    %152 = vector.extract_strided_slice %125 {offsets = [0, 13, 0], sizes = [32, 1, 16], strides = [1, 1, 1]} : vector<32x16x16xf32> to vector<32x1x16xf32>
    %153 = vector.shape_cast %152 : vector<32x1x16xf32> to vector<32x16xf32>
    %154 = vector.extract_strided_slice %125 {offsets = [0, 14, 0], sizes = [32, 1, 16], strides = [1, 1, 1]} : vector<32x16x16xf32> to vector<32x1x16xf32>
    %155 = vector.shape_cast %154 : vector<32x1x16xf32> to vector<32x16xf32>
    %156 = vector.extract_strided_slice %125 {offsets = [0, 15, 0], sizes = [32, 1, 16], strides = [1, 1, 1]} : vector<32x16x16xf32> to vector<32x1x16xf32>
    %157 = vector.shape_cast %156 : vector<32x1x16xf32> to vector<32x16xf32>
    %158 = tpu.concatenate %127, %129, %131, %133, %135, %137, %139, %141, %143, %145, %147, %149, %151, %153, %155, %157 in 1 : vector<32x16xf32>, vector<32x16xf32>, vector<32x16xf32>, vector<32x16xf32>, vector<32x16xf32>, vector<32x16xf32>, vector<32x16xf32>, vector<32x16xf32>, vector<32x16xf32>, vector<32x16xf32>, vector<32x16xf32>, vector<32x16xf32>, vector<32x16xf32>, vector<32x16xf32>, vector<32x16xf32>, vector<32x16xf32> -> vector<32x256xf32>
    %c0_97 = arith.constant 0 : index
    %c0_98 = arith.constant 0 : index
    %159 = vector.load %arg13[%c0_97, %c0_98] : memref<32x256xf32, #tpu.memory_space<vmem>>, vector<32x256xf32>
    tpu.vector_store %arg13[%c0_97, %c0_98], %158 {strides = array<i32>} : memref<32x256xf32, #tpu.memory_space<vmem>>, vector<32x256xf32>,
    return
  }
}

</mosaic_0001>

<llo_original>
// kernel: tpu_custom_call.1
$region0: #{tpu_custom_call.1}
  #allocation0 [shape = 'u32[]', space=smem, size = 0x4, offset = 0x4, fixed_abs, tag = 'smem constant byte address 0x4 - core index']
  #allocation1 [shape = 'u32[144,128]{1,0:T(1,128)}', space=vmem, size = 0x12000, scoped, tag = 'internal scratch']
  #allocation2 [shape = 'f32[2,18,18,4]{3,2,1,0:T(8,128)}', space=vmem, size = 0x6c000, scoped, tag = 'scratch operand']
  %s0 = inlined_call_operand.vmem [shape: f32[2,16,16,4], index: 0, kind: input, shape index: {}]
  %s1 = inlined_call_operand.vmem [shape: f32[4,4], index: 1, kind: input, shape index: {}]
  %s2 = inlined_call_operand.vmem [shape: f32[1,4], index: 2, kind: input, shape index: {}]
  %s3 = inlined_call_operand.vmem [shape: f32[1,4], index: 3, kind: input, shape index: {}]
  %s4 = inlined_call_operand.vmem [shape: f32[9,4,4], index: 4, kind: input, shape index: {}]
  %s5 = inlined_call_operand.vmem [shape: f32[1,4], index: 5, kind: input, shape index: {}]
  %s6 = inlined_call_operand.vmem [shape: f32[1,4], index: 6, kind: input, shape index: {}]
  %s7 = inlined_call_operand.vmem [shape: f32[4,16], index: 7, kind: input, shape index: {}]
  %s8 = inlined_call_operand.vmem [shape: f32[1,16], index: 8, kind: input, shape index: {}]
  %s9 = inlined_call_operand.vmem [shape: f32[1,16], index: 9, kind: input, shape index: {}]
  %s10 = inlined_call_operand.vmem [shape: f32[4,16], index: 10, kind: input, shape index: {}]
  %s11 = inlined_call_operand.vmem [shape: f32[1,16], index: 11, kind: input, shape index: {}]
  %s12 = inlined_call_operand.vmem [shape: f32[1,16], index: 12, kind: input, shape index: {}]
  %s13 = inlined_call_operand.hbm [shape: f32[32,256], index: 13, kind: output, shape index: {}]
  %s14 = sld [smem:[#allocation0]]
  $region62: #{tpu_custom_call.1} parent=0
    _
  %s16 = ssub.s32 1, %s14
  %s17 = scalar_select 0, %s16, %s14
  $region1: #{tpu_custom_call.1} parent=0
    #allocation3 [shape = 'u8[32768]{0}', space=vmem, size = 0x8000, scoped, tag = 'output window, operand 0, single buffered']
    #allocation4 [shape = 's32[1]{0}', space=sflag, size = 0x4, scoped, tag = 'scoped memory for tpu_custom_call.1']
    %18 = vsyncpa [#allocation4], 0
    // Predicated region
    $region2: #{tpu_custom_call.1} parent=1 // pred_check
      _
    $region3: #{tpu_custom_call.1} parent=1 // pred_check_branch
      %20 = sbr.rel (0) target = $region5
    $region4: #{tpu_custom_call.1} parent=1 // pred_region
      _
    $region5: #{tpu_custom_call.1} parent=1 // pred_fallthru
      _
    // Predicated region
    $region6: #{tpu_custom_call.1} parent=1 // pred_check
      _
    $region7: #{tpu_custom_call.1} parent=1 // pred_check_branch
      %22 = sbr.rel (0) target = $region9
    $region8: #{tpu_custom_call.1} parent=1 // pred_region
      _
    $region9: #{tpu_custom_call.1} parent=1 // pred_fallthru
      _
    // Predicated region
    $region10: #{tpu_custom_call.1} parent=1 // pred_check
      _
    $region11: #{tpu_custom_call.1} parent=1 // pred_check_branch
      %24 = sbr.rel (0) target = $region13
    $region12: #{tpu_custom_call.1} parent=1 // pred_region
      _
    $region13: #{tpu_custom_call.1} parent=1 // pred_fallthru
      _
    // Predicated region
    $region14: #{tpu_custom_call.1} parent=1 // pred_check
      _
    $region15: #{tpu_custom_call.1} parent=1 // pred_check_branch
      %26 = sbr.rel (0) target = $region17
    $region16: #{tpu_custom_call.1} parent=1 // pred_region
      _
    $region17: #{tpu_custom_call.1} parent=1 // pred_fallthru
      _
    // Predicated region
    $region18: #{tpu_custom_call.1} parent=1 // pred_check
      _
    $region19: #{tpu_custom_call.1} parent=1 // pred_check_branch
      %28 = sbr.rel (0) target = $region21
    $region20: #{tpu_custom_call.1} parent=1 // pred_region
      _
    $region21: #{tpu_custom_call.1} parent=1 // pred_fallthru
      _
    // Predicated region
    $region22: #{tpu_custom_call.1} parent=1 // pred_check
      _
    $region23: #{tpu_custom_call.1} parent=1 // pred_check_branch
      %30 = sbr.rel (0) target = $region25
    $region24: #{tpu_custom_call.1} parent=1 // pred_region
      _
    $region25: #{tpu_custom_call.1} parent=1 // pred_fallthru
      _
    // Predicated region
    $region26: #{tpu_custom_call.1} parent=1 // pred_check
      _
    $region27: #{tpu_custom_call.1} parent=1 // pred_check_branch
      %32 = sbr.rel (0) target = $region29
    $region28: #{tpu_custom_call.1} parent=1 // pred_region
      _
    $region29: #{tpu_custom_call.1} parent=1 // pred_fallthru
      _
    // Predicated region
    $region30: #{tpu_custom_call.1} parent=1 // pred_check
      _
    $region31: #{tpu_custom_call.1} parent=1 // pred_check_branch
      %34 = sbr.rel (0) target = $region33
    $region32: #{tpu_custom_call.1} parent=1 // pred_region
      _
    $region33: #{tpu_custom_call.1} parent=1 // pred_fallthru
      _
    // Predicated region
    $region34: #{tpu_custom_call.1} parent=1 // pred_check
      _
    $region35: #{tpu_custom_call.1} parent=1 // pred_check_branch
      %36 = sbr.rel (0) target = $region37
    $region36: #{tpu_custom_call.1} parent=1 // pred_region
      _
    $region37: #{tpu_custom_call.1} parent=1 // pred_fallthru
      _
    // Predicated region
    $region38: #{tpu_custom_call.1} parent=1 // pred_check
      _
    $region39: #{tpu_custom_call.1} parent=1 // pred_check_branch
      %38 = sbr.rel (0) target = $region41
    $region40: #{tpu_custom_call.1} parent=1 // pred_region
      _
    $region41: #{tpu_custom_call.1} parent=1 // pred_fallthru
      _
    // Predicated region
    $region42: #{tpu_custom_call.1} parent=1 // pred_check
      _
    $region43: #{tpu_custom_call.1} parent=1 // pred_check_branch
      %40 = sbr.rel (0) target = $region45
    $region44: #{tpu_custom_call.1} parent=1 // pred_region
      _
    $region45: #{tpu_custom_call.1} parent=1 // pred_fallthru
      _
    // Predicated region
    $region46: #{tpu_custom_call.1} parent=1 // pred_check
      _
    $region47: #{tpu_custom_call.1} parent=1 // pred_check_branch
      %42 = sbr.rel (0) target = $region49
    $region48: #{tpu_custom_call.1} parent=1 // pred_region
      _
    $region49: #{tpu_custom_call.1} parent=1 // pred_fallthru
      _
    // Predicated region
    $region50: #{tpu_custom_call.1} parent=1 // pred_check
      _
    $region51: #{tpu_custom_call.1} parent=1 // pred_check_branch
      %44 = sbr.rel (0) target = $region53
    $region52: #{tpu_custom_call.1} parent=1 // pred_region
      _
    $region53: #{tpu_custom_call.1} parent=1 // pred_fallthru
      _
    %v45 = vld [vmem:[%s0] sm:$0xff]
    %v46 = vld [vmem:[%s0 + $0x8] sm:$0xff]
    %v47 = vld [vmem:[%s0 + $0x10] sm:$0xff]
    %v48 = vld [vmem:[%s0 + $0x18] sm:$0xff]
    %v49 = vld [vmem:[%s0 + $0x20] sm:$0xff]
    %v50 = vld [vmem:[%s0 + $0x28] sm:$0xff]
    %v51 = vld [vmem:[%s0 + $0x30] sm:$0xff]
    %v52 = vld [vmem:[%s0 + $0x38] sm:$0xff]
    %v53 = vld [vmem:[%s0 + $0x40] sm:$0xff]
    %v54 = vld [vmem:[%s0 + $0x48] sm:$0xff]
    %v55 = vld [vmem:[%s0 + $0x50] sm:$0xff]
    %v56 = vld [vmem:[%s0 + $0x58] sm:$0xff]
    %v57 = vld [vmem:[%s0 + $0x60] sm:$0xff]
    %v58 = vld [vmem:[%s0 + $0x68] sm:$0xff]
    %v59 = vld [vmem:[%s0 + $0x70] sm:$0xff]
    %v60 = vld [vmem:[%s0 + $0x78] sm:$0xff]
    %v61 = vld [vmem:[%s0 + $0x80] sm:$0xff]
    %v62 = vld [vmem:[%s0 + $0x88] sm:$0xff]
    %v63 = vld [vmem:[%s0 + $0x90] sm:$0xff]
    %v64 = vld [vmem:[%s0 + $0x98] sm:$0xff]
    %v65 = vld [vmem:[%s0 + $0xa0] sm:$0xff]
    %v66 = vld [vmem:[%s0 + $0xa8] sm:$0xff]
    %v67 = vld [vmem:[%s0 + $0xb0] sm:$0xff]
    %v68 = vld [vmem:[%s0 + $0xb8] sm:$0xff]
    %v69 = vld [vmem:[%s0 + $0xc0] sm:$0xff]
    %v70 = vld [vmem:[%s0 + $0xc8] sm:$0xff]
    %v71 = vld [vmem:[%s0 + $0xd0] sm:$0xff]
    %v72 = vld [vmem:[%s0 + $0xd8] sm:$0xff]
    %v73 = vld [vmem:[%s0 + $0xe0] sm:$0xff]
    %v74 = vld [vmem:[%s0 + $0xe8] sm:$0xff]
    %v75 = vld [vmem:[%s0 + $0xf0] sm:$0xff]
    %v76 = vld [vmem:[%s0 + $0xf8] sm:$0xff]
    %v77 = vld [vmem:[%s0 + $0x100] sm:$0xff]
    %v78 = vld [vmem:[%s0 + $0x108] sm:$0xff]
    %v79 = vld [vmem:[%s0 + $0x110] sm:$0xff]
    %v80 = vld [vmem:[%s0 + $0x118] sm:$0xff]
    %v81 = vld [vmem:[%s0 + $0x120] sm:$0xff]
    %v82 = vld [vmem:[%s0 + $0x128] sm:$0xff]
    %v83 = vld [vmem:[%s0 + $0x130] sm:$0xff]
    %v84 = vld [vmem:[%s0 + $0x138] sm:$0xff]
    %v85 = vld [vmem:[%s0 + $0x140] sm:$0xff]
    %v86 = vld [vmem:[%s0 + $0x148] sm:$0xff]
    %v87 = vld [vmem:[%s0 + $0x150] sm:$0xff]
    %v88 = vld [vmem:[%s0 + $0x158] sm:$0xff]
    %v89 = vld [vmem:[%s0 + $0x160] sm:$0xff]
    %v90 = vld [vmem:[%s0 + $0x168] sm:$0xff]
    %v91 = vld [vmem:[%s0 + $0x170] sm:$0xff]
    %v92 = vld [vmem:[%s0 + $0x178] sm:$0xff]
    %v93 = vld [vmem:[%s0 + $0x180] sm:$0xff]
    %v94 = vld [vmem:[%s0 + $0x188] sm:$0xff]
    %v95 = vld [vmem:[%s0 + $0x190] sm:$0xff]
    %v96 = vld [vmem:[%s0 + $0x198] sm:$0xff]
    %v97 = vld [vmem:[%s0 + $0x1a0] sm:$0xff]
    %v98 = vld [vmem:[%s0 + $0x1a8] sm:$0xff]
    %v99 = vld [vmem:[%s0 + $0x1b0] sm:$0xff]
    %v100 = vld [vmem:[%s0 + $0x1b8] sm:$0xff]
    %v101 = vld [vmem:[%s0 + $0x1c0] sm:$0xff]
    %v102 = vld [vmem:[%s0 + $0x1c8] sm:$0xff]
    %v103 = vld [vmem:[%s0 + $0x1d0] sm:$0xff]
    %v104 = vld [vmem:[%s0 + $0x1d8] sm:$0xff]
    %v105 = vld [vmem:[%s0 + $0x1e0] sm:$0xff]
    %v106 = vld [vmem:[%s0 + $0x1e8] sm:$0xff]
    %v107 = vld [vmem:[%s0 + $0x1f0] sm:$0xff]
    %v108 = vld [vmem:[%s0 + $0x1f8] sm:$0xff]
    %v109 = vld [vmem:[%s1] sm:$0xf]
    %vm110 = vcmask 31744
    %v112 = vsel %vm110, %v45, 0
    %v115 = vsel %vm110, %v46, 0
    %v118 = vsel %vm110, %v47, 0
    %v121 = vsel %vm110, %v48, 0
    %v124 = vsel %vm110, %v49, 0
    %v127 = vsel %vm110, %v50, 0
    %v130 = vsel %vm110, %v51, 0
    %v133 = vsel %vm110, %v52, 0
    %v136 = vsel %vm110, %v53, 0
    %v139 = vsel %vm110, %v54, 0
    %v142 = vsel %vm110, %v55, 0
    %v145 = vsel %vm110, %v56, 0
    %v148 = vsel %vm110, %v57, 0
    %v151 = vsel %vm110, %v58, 0
    %v154 = vsel %vm110, %v59, 0
    %v157 = vsel %vm110, %v60, 0
    %v160 = vsel %vm110, %v61, 0
    %v163 = vsel %vm110, %v62, 0
    %v166 = vsel %vm110, %v63, 0
    %v169 = vsel %vm110, %v64, 0
    %v172 = vsel %vm110, %v65, 0
    %v175 = vsel %vm110, %v66, 0
    %v178 = vsel %vm110, %v67, 0
    %v181 = vsel %vm110, %v68, 0
    %v184 = vsel %vm110, %v69, 0
    %v187 = vsel %vm110, %v70, 0
    %v190 = vsel %vm110, %v71, 0
    %v193 = vsel %vm110, %v72, 0
    %v196 = vsel %vm110, %v73, 0
    %v199 = vsel %vm110, %v74, 0
    %v202 = vsel %vm110, %v75, 0
    %v205 = vsel %vm110, %v76, 0
    %v208 = vsel %vm110, %v77, 0
    %v211 = vsel %vm110, %v78, 0
    %v214 = vsel %vm110, %v79, 0
    %v217 = vsel %vm110, %v80, 0
    %v220 = vsel %vm110, %v81, 0
    %v223 = vsel %vm110, %v82, 0
    %v226 = vsel %vm110, %v83, 0
    %v229 = vsel %vm110, %v84, 0
    %v232 = vsel %vm110, %v85, 0
    %v235 = vsel %vm110, %v86, 0
    %v238 = vsel %vm110, %v87, 0
    %v241 = vsel %vm110, %v88, 0
    %v244 = vsel %vm110, %v89, 0
    %v247 = vsel %vm110, %v90, 0
    %v250 = vsel %vm110, %v91, 0
    %v253 = vsel %vm110, %v92, 0
    %v256 = vsel %vm110, %v93, 0
    %v259 = vsel %vm110, %v94, 0
    %v262 = vsel %vm110, %v95, 0
    %v265 = vsel %vm110, %v96, 0
    %v268 = vsel %vm110, %v97, 0
    %v271 = vsel %vm110, %v98, 0
    %v274 = vsel %vm110, %v99, 0
    %v277 = vsel %vm110, %v100, 0
    %v280 = vsel %vm110, %v101, 0
    %v283 = vsel %vm110, %v102, 0
    %v286 = vsel %vm110, %v103, 0
    %v289 = vsel %vm110, %v104, 0
    %v292 = vsel %vm110, %v105, 0
    %v295 = vsel %vm110, %v106, 0
    %v298 = vsel %vm110, %v107, 0
    %v301 = vsel %vm110, %v108, 0
    %vm303 = vcmask 1043456
    %v305 = vsel %vm303, %v109, 0
    %307 = vmatprep.subr.mxu0 0.0
    %308 = vmatpush1.msra.mxu0 %v305
    %309 = vmatprep.subr.mxu0 0.0
    %310 = vmatpush1.msra.mxu0 0.0
    %311 = vmatprep.subr.mxu0 0.0
    %312 = vmatpush1.msra.mxu0 0.0
    %313 = vmatprep.subr.mxu0 0.0
    %314 = vmatpush1.msra.mxu0 0.0
    %315 = vmatprep.subr.mxu0 0.0
    %316 = vmatpush1.msra.mxu0 0.0
    %317 = vmatprep.subr.mxu0 0.0
    %318 = vmatpush1.msra.mxu0 0.0
    %319 = vmatprep.subr.mxu0 0.0
    %320 = vmatpush1.msra.mxu0 0.0
    %321 = vmatprep.subr.mxu0 0.0
    %322 = vmatpush1.msra.mxu0 0.0
    %323 = vmatprep.subr.mxu0 0.0
    %324 = vmatpush1.msra.mxu0 0.0
    %325 = vmatprep.subr.mxu0 0.0
    %326 = vmatpush1.msra.mxu0 0.0
    %327 = vmatprep.subr.mxu0 0.0
    %328 = vmatpush1.msra.mxu0 0.0
    %329 = vmatprep.subr.mxu0 0.0
    %330 = vmatpush1.msra.mxu0 0.0
    %331 = vmatprep.subr.mxu0 0.0
    %332 = vmatpush1.msra.mxu0 0.0
    %333 = vmatprep.subr.mxu0 0.0
    %334 = vmatpush1.msra.mxu0 0.0
    %335 = vmatprep.subr.mxu0 0.0
    %336 = vmatpush1.msra.mxu0 0.0
    %337 = vmatprep.subr.mxu0 0.0
    %338 = vmatpush1.msra.mxu0 0.0
    %339 = vmatprep.subr.mxu0 0.0
    %340 = vmatpush1.msra.mxu0 0.0
    %341 = vmatprep.subr.mxu0 0.0
    %342 = vmatpush1.msra.mxu0 0.0
    %343 = vmatprep.subr.mxu0 0.0
    %344 = vmatpush1.msra.mxu0 0.0
    %345 = vmatprep.subr.mxu0 0.0
    %346 = vmatpush1.msra.mxu0 0.0
    %347 = vmatprep.subr.mxu0 0.0
    %348 = vmatpush1.msra.mxu0 0.0
    %349 = vmatprep.subr.mxu0 0.0
    %350 = vmatpush1.msra.mxu0 0.0
    %351 = vmatprep.subr.mxu0 0.0
    %352 = vmatpush1.msra.mxu0 0.0
    %353 = vmatprep.subr.mxu0 0.0
    %354 = vmatpush1.msra.mxu0 0.0
    %355 = vmatprep.subr.mxu0 0.0
    %356 = vmatpush1.msra.mxu0 0.0
    %357 = vmatprep.subr.mxu0 0.0
    %358 = vmatpush1.msra.mxu0 0.0
    %359 = vmatprep.subr.mxu0 0.0
    %360 = vmatpush1.msra.mxu0 0.0
    %361 = vmatprep.subr.mxu0 0.0
    %362 = vmatpush1.msra.mxu0 0.0
    %363 = vmatprep.subr.mxu0 0.0
    %364 = vmatpush1.msra.mxu0 0.0
    %365 = vmatprep.subr.mxu0 0.0
    %366 = vmatpush1.msra.mxu0 0.0
    %367 = vmatprep.subr.mxu0 0.0
    %368 = vmatpush1.msra.mxu0 0.0
    %369 = vmatprep.subr.mxu0 0.0
    %370 = vmatpush1.msra.mxu0 0.0
    %371 = vmatprep.mubr.f32.mxu0 0.0
    %372 = vmatmul.mubr.f32.gmra.mrb[0].mxu0 %v112
    %v373 = vpop.f32.mrb[0].mxu0
    %v374 = vadd.f32 0.0, %v373
    %v375 = vpop.f32.mrb[0].mxu0
    %376 = vmatprep.mubr.f32.mxu0 0.0
    %377 = vmatmul.mubr.f32.gmra.mrb[0].mxu0 %v115
    %v378 = vpop.f32.mrb[0].mxu0
    %v379 = vadd.f32 0.0, %v378
    %v380 = vpop.f32.mrb[0].mxu0
    %381 = vmatprep.mubr.f32.mxu0 0.0
    %382 = vmatmul.mubr.f32.gmra.mrb[0].mxu0 %v118
    %v383 = vpop.f32.mrb[0].mxu0
    %v384 = vadd.f32 0.0, %v383
    %v385 = vpop.f32.mrb[0].mxu0
    %386 = vmatprep.mubr.f32.mxu0 0.0
    %387 = vmatmul.mubr.f32.gmra.mrb[0].mxu0 %v121
    %v388 = vpop.f32.mrb[0].mxu0
    %v389 = vadd.f32 0.0, %v388
    %v390 = vpop.f32.mrb[0].mxu0
    %391 = vmatprep.mubr.f32.mxu0 0.0
    %392 = vmatmul.mubr.f32.gmra.mrb[0].mxu0 %v124
    %v393 = vpop.f32.mrb[0].mxu0
    %v394 = vadd.f32 0.0, %v393
    %v395 = vpop.f32.mrb[0].mxu0
    %396 = vmatprep.mubr.f32.mxu0 0.0
    %397 = vmatmul.mubr.f32.gmra.mrb[0].mxu0 %v127
    %v398 = vpop.f32.mrb[0].mxu0
    %v399 = vadd.f32 0.0, %v398
    %v400 = vpop.f32.mrb[0].mxu0
    %401 = vmatprep.mubr.f32.mxu0 0.0
    %402 = vmatmul.mubr.f32.gmra.mrb[0].mxu0 %v130
    %v403 = vpop.f32.mrb[0].mxu0
    %v404 = vadd.f32 0.0, %v403
    %v405 = vpop.f32.mrb[0].mxu0
    %406 = vmatprep.mubr.f32.mxu0 0.0
    %407 = vmatmul.mubr.f32.gmra.mrb[0].mxu0 %v133
    %v408 = vpop.f32.mrb[0].mxu0
    %v409 = vadd.f32 0.0, %v408
    %v410 = vpop.f32.mrb[0].mxu0
    %411 = vmatprep.mubr.f32.mxu0 0.0
    %412 = vmatmul.mubr.f32.gmra.mrb[0].mxu0 %v136
    %v413 = vpop.f32.mrb[0].mxu0
    %v414 = vadd.f32 0.0, %v413
    %v415 = vpop.f32.mrb[0].mxu0
    %416 = vmatprep.mubr.f32.mxu0 0.0
    %417 = vmatmul.mubr.f32.gmra.mrb[0].mxu0 %v139
    %v418 = vpop.f32.mrb[0].mxu0
    %v419 = vadd.f32 0.0, %v418
    %v420 = vpop.f32.mrb[0].mxu0
    %421 = vmatprep.mubr.f32.mxu0 0.0
    %422 = vmatmul.mubr.f32.gmra.mrb[0].mxu0 %v142
    %v423 = vpop.f32.mrb[0].mxu0
    %v424 = vadd.f32 0.0, %v423
    %v425 = vpop.f32.mrb[0].mxu0
    %426 = vmatprep.mubr.f32.mxu0 0.0
    %427 = vmatmul.mubr.f32.gmra.mrb[0].mxu0 %v145
    %v428 = vpop.f32.mrb[0].mxu0
    %v429 = vadd.f32 0.0, %v428
    %v430 = vpop.f32.mrb[0].mxu0
    %431 = vmatprep.mubr.f32.mxu0 0.0
    %432 = vmatmul.mubr.f32.gmra.mrb[0].mxu0 %v148
    %v433 = vpop.f32.mrb[0].mxu0
    %v434 = vadd.f32 0.0, %v433
    %v435 = vpop.f32.mrb[0].mxu0
    %436 = vmatprep.mubr.f32.mxu0 0.0
    %437 = vmatmul.mubr.f32.gmra.mrb[0].mxu0 %v151
    %v438 = vpop.f32.mrb[0].mxu0
    %v439 = vadd.f32 0.0, %v438
    %v440 = vpop.f32.mrb[0].mxu0
    %441 = vmatprep.mubr.f32.mxu0 0.0
    %442 = vmatmul.mubr.f32.gmra.mrb[0].mxu0 %v154
    %v443 = vpop.f32.mrb[0].mxu0
    %v444 = vadd.f32 0.0, %v443
    %v445 = vpop.f32.mrb[0].mxu0
    %446 = vmatprep.mubr.f32.mxu0 0.0
    %447 = vmatmul.mubr.f32.gmra.mrb[0].mxu0 %v157
    %v448 = vpop.f32.mrb[0].mxu0
    %v449 = vadd.f32 0.0, %v448
    %v450 = vpop.f32.mrb[0].mxu0
    %451 = vmatprep.mubr.f32.mxu0 0.0
    %452 = vmatmul.mubr.f32.gmra.mrb[0].mxu0 %v160
    %v453 = vpop.f32.mrb[0].mxu0
    %v454 = vadd.f32 0.0, %v453
    %v455 = vpop.f32.mrb[0].mxu0
    %456 = vmatprep.mubr.f32.mxu0 0.0
    %457 = vmatmul.mubr.f32.gmra.mrb[0].mxu0 %v163
    %v458 = vpop.f32.mrb[0].mxu0
    %v459 = vadd.f32 0.0, %v458
    %v460 = vpop.f32.mrb[0].mxu0
    %461 = vmatprep.mubr.f32.mxu0 0.0
    %462 = vmatmul.mubr.f32.gmra.mrb[0].mxu0 %v166
    %v463 = vpop.f32.mrb[0].mxu0
    %v464 = vadd.f32 0.0, %v463
    %v465 = vpop.f32.mrb[0].mxu0
    %466 = vmatprep.mubr.f32.mxu0 0.0
    %467 = vmatmul.mubr.f32.gmra.mrb[0].mxu0 %v169
    %v468 = vpop.f32.mrb[0].mxu0
    %v469 = vadd.f32 0.0, %v468
    %v470 = vpop.f32.mrb[0].mxu0
    %471 = vmatprep.mubr.f32.mxu0 0.0
    %472 = vmatmul.mubr.f32.gmra.mrb[0].mxu0 %v172
    %v473 = vpop.f32.mrb[0].mxu0
    %v474 = vadd.f32 0.0, %v473
    %v475 = vpop.f32.mrb[0].mxu0
    %476 = vmatprep.mubr.f32.mxu0 0.0
    %477 = vmatmul.mubr.f32.gmra.mrb[0].mxu0 %v175
    %v478 = vpop.f32.mrb[0].mxu0
    %v479 = vadd.f32 0.0, %v478
    %v480 = vpop.f32.mrb[0].mxu0
    %481 = vmatprep.mubr.f32.mxu0 0.0
    %482 = vmatmul.mubr.f32.gmra.mrb[0].mxu0 %v178
    %v483 = vpop.f32.mrb[0].mxu0
    %v484 = vadd.f32 0.0, %v483
    %v485 = vpop.f32.mrb[0].mxu0
    %486 = vmatprep.mubr.f32.mxu0 0.0
    %487 = vmatmul.mubr.f32.gmra.mrb[0].mxu0 %v181
    %v488 = vpop.f32.mrb[0].mxu0
    %v489 = vadd.f32 0.0, %v488
    %v490 = vpop.f32.mrb[0].mxu0
    %491 = vmatprep.mubr.f32.mxu0 0.0
    %492 = vmatmul.mubr.f32.gmra.mrb[0].mxu0 %v184
    %v493 = vpop.f32.mrb[0].mxu0
    %v494 = vadd.f32 0.0, %v493
    %v495 = vpop.f32.mrb[0].mxu0
    %496 = vmatprep.mubr.f32.mxu0 0.0
    %497 = vmatmul.mubr.f32.gmra.mrb[0].mxu0 %v187
    %v498 = vpop.f32.mrb[0].mxu0
    %v499 = vadd.f32 0.0, %v498
    %v500 = vpop.f32.mrb[0].mxu0
    %501 = vmatprep.mubr.f32.mxu0 0.0
    %502 = vmatmul.mubr.f32.gmra.mrb[0].mxu0 %v190
    %v503 = vpop.f32.mrb[0].mxu0
    %v504 = vadd.f32 0.0, %v503
    %v505 = vpop.f32.mrb[0].mxu0
    %506 = vmatprep.mubr.f32.mxu0 0.0
    %507 = vmatmul.mubr.f32.gmra.mrb[0].mxu0 %v193
    %v508 = vpop.f32.mrb[0].mxu0
    %v509 = vadd.f32 0.0, %v508
    %v510 = vpop.f32.mrb[0].mxu0
    %511 = vmatprep.mubr.f32.mxu0 0.0
    %512 = vmatmul.mubr.f32.gmra.mrb[0].mxu0 %v196
    %v513 = vpop.f32.mrb[0].mxu0
    %v514 = vadd.f32 0.0, %v513
    %v515 = vpop.f32.mrb[0].mxu0
    %516 = vmatprep.mubr.f32.mxu0 0.0
    %517 = vmatmul.mubr.f32.gmra.mrb[0].mxu0 %v199
    %v518 = vpop.f32.mrb[0].mxu0
    %v519 = vadd.f32 0.0, %v518
    %v520 = vpop.f32.mrb[0].mxu0
    %521 = vmatprep.mubr.f32.mxu0 0.0
    %522 = vmatmul.mubr.f32.gmra.mrb[0].mxu0 %v202
    %v523 = vpop.f32.mrb[0].mxu0
    %v524 = vadd.f32 0.0, %v523
    %v525 = vpop.f32.mrb[0].mxu0
    %526 = vmatprep.mubr.f32.mxu0 0.0
    %527 = vmatmul.mubr.f32.gmra.mrb[0].mxu0 %v205
    %v528 = vpop.f32.mrb[0].mxu0
    %v529 = vadd.f32 0.0, %v528
    %v530 = vpop.f32.mrb[0].mxu0
    %531 = vmatprep.mubr.f32.mxu0 0.0
    %532 = vmatmul.mubr.f32.gmra.mrb[0].mxu0 %v208
    %v533 = vpop.f32.mrb[0].mxu0
    %v534 = vadd.f32 0.0, %v533
    %v535 = vpop.f32.mrb[0].mxu0
    %536 = vmatprep.mubr.f32.mxu0 0.0
    %537 = vmatmul.mubr.f32.gmra.mrb[0].mxu0 %v211
    %v538 = vpop.f32.mrb[0].mxu0
    %v539 = vadd.f32 0.0, %v538
    %v540 = vpop.f32.mrb[0].mxu0
    %541 = vmatprep.mubr.f32.mxu0 0.0
    %542 = vmatmul.mubr.f32.gmra.mrb[0].mxu0 %v214
    %v543 = vpop.f32.mrb[0].mxu0
    %v544 = vadd.f32 0.0, %v543
    %v545 = vpop.f32.mrb[0].mxu0
    %546 = vmatprep.mubr.f32.mxu0 0.0
    %547 = vmatmul.mubr.f32.gmra.mrb[0].mxu0 %v217
    %v548 = vpop.f32.mrb[0].mxu0
    %v549 = vadd.f32 0.0, %v548
    %v550 = vpop.f32.mrb[0].mxu0
    %551 = vmatprep.mubr.f32.mxu0 0.0
    %552 = vmatmul.mubr.f32.gmra.mrb[0].mxu0 %v220
    %v553 = vpop.f32.mrb[0].mxu0
    %v554 = vadd.f32 0.0, %v553
    %v555 = vpop.f32.mrb[0].mxu0
    %556 = vmatprep.mubr.f32.mxu0 0.0
    %557 = vmatmul.mubr.f32.gmra.mrb[0].mxu0 %v223
    %v558 = vpop.f32.mrb[0].mxu0
    %v559 = vadd.f32 0.0, %v558
    %v560 = vpop.f32.mrb[0].mxu0
    %561 = vmatprep.mubr.f32.mxu0 0.0
    %562 = vmatmul.mubr.f32.gmra.mrb[0].mxu0 %v226
    %v563 = vpop.f32.mrb[0].mxu0
    %v564 = vadd.f32 0.0, %v563
    %v565 = vpop.f32.mrb[0].mxu0
    %566 = vmatprep.mubr.f32.mxu0 0.0
    %567 = vmatmul.mubr.f32.gmra.mrb[0].mxu0 %v229
    %v568 = vpop.f32.mrb[0].mxu0
    %v569 = vadd.f32 0.0, %v568
    %v570 = vpop.f32.mrb[0].mxu0
    %571 = vmatprep.mubr.f32.mxu0 0.0
    %572 = vmatmul.mubr.f32.gmra.mrb[0].mxu0 %v232
    %v573 = vpop.f32.mrb[0].mxu0
    %v574 = vadd.f32 0.0, %v573
    %v575 = vpop.f32.mrb[0].mxu0
    %576 = vmatprep.mubr.f32.mxu0 0.0
    %577 = vmatmul.mubr.f32.gmra.mrb[0].mxu0 %v235
    %v578 = vpop.f32.mrb[0].mxu0
    %v579 = vadd.f32 0.0, %v578
    %v580 = vpop.f32.mrb[0].mxu0
    %581 = vmatprep.mubr.f32.mxu0 0.0
    %582 = vmatmul.mubr.f32.gmra.mrb[0].mxu0 %v238
    %v583 = vpop.f32.mrb[0].mxu0
    %v584 = vadd.f32 0.0, %v583
    %v585 = vpop.f32.mrb[0].mxu0
    %586 = vmatprep.mubr.f32.mxu0 0.0
    %587 = vmatmul.mubr.f32.gmra.mrb[0].mxu0 %v241
    %v588 = vpop.f32.mrb[0].mxu0
    %v589 = vadd.f32 0.0, %v588
    %v590 = vpop.f32.mrb[0].mxu0
    %591 = vmatprep.mubr.f32.mxu0 0.0
    %592 = vmatmul.mubr.f32.gmra.mrb[0].mxu0 %v244
    %v593 = vpop.f32.mrb[0].mxu0
    %v594 = vadd.f32 0.0, %v593
    %v595 = vpop.f32.mrb[0].mxu0
    %596 = vmatprep.mubr.f32.mxu0 0.0
    %597 = vmatmul.mubr.f32.gmra.mrb[0].mxu0 %v247
    %v598 = vpop.f32.mrb[0].mxu0
    %v599 = vadd.f32 0.0, %v598
    %v600 = vpop.f32.mrb[0].mxu0
    %601 = vmatprep.mubr.f32.mxu0 0.0
    %602 = vmatmul.mubr.f32.gmra.mrb[0].mxu0 %v250
    %v603 = vpop.f32.mrb[0].mxu0
    %v604 = vadd.f32 0.0, %v603
    %v605 = vpop.f32.mrb[0].mxu0
    %606 = vmatprep.mubr.f32.mxu0 0.0
    %607 = vmatmul.mubr.f32.gmra.mrb[0].mxu0 %v253
    %v608 = vpop.f32.mrb[0].mxu0
    %v609 = vadd.f32 0.0, %v608
    %v610 = vpop.f32.mrb[0].mxu0
    %611 = vmatprep.mubr.f32.mxu0 0.0
    %612 = vmatmul.mubr.f32.gmra.mrb[0].mxu0 %v256
    %v613 = vpop.f32.mrb[0].mxu0
    %v614 = vadd.f32 0.0, %v613
    %v615 = vpop.f32.mrb[0].mxu0
    %616 = vmatprep.mubr.f32.mxu0 0.0
    %617 = vmatmul.mubr.f32.gmra.mrb[0].mxu0 %v259
    %v618 = vpop.f32.mrb[0].mxu0
    %v619 = vadd.f32 0.0, %v618
    %v620 = vpop.f32.mrb[0].mxu0
    %621 = vmatprep.mubr.f32.mxu0 0.0
    %622 = vmatmul.mubr.f32.gmra.mrb[0].mxu0 %v262
    %v623 = vpop.f32.mrb[0].mxu0
    %v624 = vadd.f32 0.0, %v623
    %v625 = vpop.f32.mrb[0].mxu0
    %626 = vmatprep.mubr.f32.mxu0 0.0
    %627 = vmatmul.mubr.f32.gmra.mrb[0].mxu0 %v265
    %v628 = vpop.f32.mrb[0].mxu0
    %v629 = vadd.f32 0.0, %v628
    %v630 = vpop.f32.mrb[0].mxu0
    %631 = vmatprep.mubr.f32.mxu0 0.0
    %632 = vmatmul.mubr.f32.gmra.mrb[0].mxu0 %v268
    %v633 = vpop.f32.mrb[0].mxu0
    %v634 = vadd.f32 0.0, %v633
    %v635 = vpop.f32.mrb[0].mxu0
    %636 = vmatprep.mubr.f32.mxu0 0.0
    %637 = vmatmul.mubr.f32.gmra.mrb[0].mxu0 %v271
    %v638 = vpop.f32.mrb[0].mxu0
    %v639 = vadd.f32 0.0, %v638
    %v640 = vpop.f32.mrb[0].mxu0
    %641 = vmatprep.mubr.f32.mxu0 0.0
    %642 = vmatmul.mubr.f32.gmra.mrb[0].mxu0 %v274
    %v643 = vpop.f32.mrb[0].mxu0
    %v644 = vadd.f32 0.0, %v643
    %v645 = vpop.f32.mrb[0].mxu0
    %646 = vmatprep.mubr.f32.mxu0 0.0
    %647 = vmatmul.mubr.f32.gmra.mrb[0].mxu0 %v277
    %v648 = vpop.f32.mrb[0].mxu0
    %v649 = vadd.f32 0.0, %v648
    %v650 = vpop.f32.mrb[0].mxu0
    %651 = vmatprep.mubr.f32.mxu0 0.0
    %652 = vmatmul.mubr.f32.gmra.mrb[0].mxu0 %v280
    %v653 = vpop.f32.mrb[0].mxu0
    %v654 = vadd.f32 0.0, %v653
    %v655 = vpop.f32.mrb[0].mxu0
    %656 = vmatprep.mubr.f32.mxu0 0.0
    %657 = vmatmul.mubr.f32.gmra.mrb[0].mxu0 %v283
    %v658 = vpop.f32.mrb[0].mxu0
    %v659 = vadd.f32 0.0, %v658
    %v660 = vpop.f32.mrb[0].mxu0
    %661 = vmatprep.mubr.f32.mxu0 0.0
    %662 = vmatmul.mubr.f32.gmra.mrb[0].mxu0 %v286
    %v663 = vpop.f32.mrb[0].mxu0
    %v664 = vadd.f32 0.0, %v663
    %v665 = vpop.f32.mrb[0].mxu0
    %666 = vmatprep.mubr.f32.mxu0 0.0
    %667 = vmatmul.mubr.f32.gmra.mrb[0].mxu0 %v289
    %v668 = vpop.f32.mrb[0].mxu0
    %v669 = vadd.f32 0.0, %v668
    %v670 = vpop.f32.mrb[0].mxu0
    %671 = vmatprep.mubr.f32.mxu0 0.0
    %672 = vmatmul.mubr.f32.gmra.mrb[0].mxu0 %v292
    %v673 = vpop.f32.mrb[0].mxu0
    %v674 = vadd.f32 0.0, %v673
    %v675 = vpop.f32.mrb[0].mxu0
    %676 = vmatprep.mubr.f32.mxu0 0.0
    %677 = vmatmul.mubr.f32.gmra.mrb[0].mxu0 %v295
    %v678 = vpop.f32.mrb[0].mxu0
    %v679 = vadd.f32 0.0, %v678
    %v680 = vpop.f32.mrb[0].mxu0
    %681 = vmatprep.mubr.f32.mxu0 0.0
    %682 = vmatmul.mubr.f32.gmra.mrb[0].mxu0 %v298
    %v683 = vpop.f32.mrb[0].mxu0
    %v684 = vadd.f32 0.0, %v683
    %v685 = vpop.f32.mrb[0].mxu0
    %686 = vmatprep.mubr.f32.mxu0 0.0
    %687 = vmatmul.mubr.f32.gmra.mrb[0].mxu0 %v301
    %v688 = vpop.f32.mrb[0].mxu0
    %v689 = vadd.f32 0.0, %v688
    %v690 = vpop.f32.mrb[0].mxu0
    %691 = vdwg.mxu0
    %v692 = vld [vmem:[%s2] sm:$0x1]
    %v693 = vld [vmem:[%s3] sm:$0x1]
    %v694 = vsel %vm110, %v374, 0.0
    %v695 = vsel %vm110, %v379, 0.0
    %v696 = vadd.f32 %v694, %v695
    %v697 = vsel %vm110, %v384, 0.0
    %v698 = vadd.f32 %v696, %v697
    %v699 = vsel %vm110, %v389, 0.0
    %v700 = vadd.f32 %v698, %v699
    %v701 = vsel %vm110, %v394, 0.0
    %v702 = vadd.f32 %v700, %v701
    %v703 = vsel %vm110, %v399, 0.0
    %v704 = vadd.f32 %v702, %v703
    %v705 = vsel %vm110, %v404, 0.0
    %v706 = vadd.f32 %v704, %v705
    %v707 = vsel %vm110, %v409, 0.0
    %v708 = vadd.f32 %v706, %v707
    %v709 = vsel %vm110, %v414, 0.0
    %v710 = vadd.f32 %v708, %v709
    %v711 = vsel %vm110, %v419, 0.0
    %v712 = vadd.f32 %v710, %v711
    %v713 = vsel %vm110, %v424, 0.0
    %v714 = vadd.f32 %v712, %v713
    %v715 = vsel %vm110, %v429, 0.0
    %v716 = vadd.f32 %v714, %v715
    %v717 = vsel %vm110, %v434, 0.0
    %v718 = vadd.f32 %v716, %v717
    %v719 = vsel %vm110, %v439, 0.0
    %v720 = vadd.f32 %v718, %v719
    %v721 = vsel %vm110, %v444, 0.0
    %v722 = vadd.f32 %v720, %v721
    %v723 = vsel %vm110, %v449, 0.0
    %v724 = vadd.f32 %v722, %v723
    %v725 = vsel %vm110, %v454, 0.0
    %v726 = vadd.f32 %v724, %v725
    %v727 = vsel %vm110, %v459, 0.0
    %v728 = vadd.f32 %v726, %v727
    %v729 = vsel %vm110, %v464, 0.0
    %v730 = vadd.f32 %v728, %v729
    %v731 = vsel %vm110, %v469, 0.0
    %v732 = vadd.f32 %v730, %v731
    %v733 = vsel %vm110, %v474, 0.0
    %v734 = vadd.f32 %v732, %v733
    %v735 = vsel %vm110, %v479, 0.0
    %v736 = vadd.f32 %v734, %v735
    %v737 = vsel %vm110, %v484, 0.0
    %v738 = vadd.f32 %v736, %v737
    %v739 = vsel %vm110, %v489, 0.0
    %v740 = vadd.f32 %v738, %v739
    %v741 = vsel %vm110, %v494, 0.0
    %v742 = vadd.f32 %v740, %v741
    %v743 = vsel %vm110, %v499, 0.0
    %v744 = vadd.f32 %v742, %v743
    %v745 = vsel %vm110, %v504, 0.0
    %v746 = vadd.f32 %v744, %v745
    %v747 = vsel %vm110, %v509, 0.0
    %v748 = vadd.f32 %v746, %v747
    %v749 = vsel %vm110, %v514, 0.0
    %v750 = vadd.f32 %v748, %v749
    %v751 = vsel %vm110, %v519, 0.0
    %v752 = vadd.f32 %v750, %v751
    %v753 = vsel %vm110, %v524, 0.0
    %v754 = vadd.f32 %v752, %v753
    %v755 = vsel %vm110, %v529, 0.0
    %v756 = vadd.f32 %v754, %v755
    %v757 = vsel %vm110, %v534, 0.0
    %v758 = vadd.f32 %v756, %v757
    %v759 = vsel %vm110, %v539, 0.0
    %v760 = vadd.f32 %v758, %v759
    %v761 = vsel %vm110, %v544, 0.0
    %v762 = vadd.f32 %v760, %v761
    %v763 = vsel %vm110, %v549, 0.0
    %v764 = vadd.f32 %v762, %v763
    %v765 = vsel %vm110, %v554, 0.0
    %v766 = vadd.f32 %v764, %v765
    %v767 = vsel %vm110, %v559, 0.0
    %v768 = vadd.f32 %v766, %v767
    %v769 = vsel %vm110, %v564, 0.0
    %v770 = vadd.f32 %v768, %v769
    %v771 = vsel %vm110, %v569, 0.0
    %v772 = vadd.f32 %v770, %v771
    %v773 = vsel %vm110, %v574, 0.0
    %v774 = vadd.f32 %v772, %v773
    %v775 = vsel %vm110, %v579, 0.0
    %v776 = vadd.f32 %v774, %v775
    %v777 = vsel %vm110, %v584, 0.0
    %v778 = vadd.f32 %v776, %v777
    %v779 = vsel %vm110, %v589, 0.0
    %v780 = vadd.f32 %v778, %v779
    %v781 = vsel %vm110, %v594, 0.0
    %v782 = vadd.f32 %v780, %v781
    %v783 = vsel %vm110, %v599, 0.0
    %v784 = vadd.f32 %v782, %v783
    %v785 = vsel %vm110, %v604, 0.0
    %v786 = vadd.f32 %v784, %v785
    %v787 = vsel %vm110, %v609, 0.0
    %v788 = vadd.f32 %v786, %v787
    %v789 = vsel %vm110, %v614, 0.0
    %v790 = vadd.f32 %v788, %v789
    %v791 = vsel %vm110, %v619, 0.0
    %v792 = vadd.f32 %v790, %v791
    %v793 = vsel %vm110, %v624, 0.0
    %v794 = vadd.f32 %v792, %v793
    %v795 = vsel %vm110, %v629, 0.0
    %v796 = vadd.f32 %v794, %v795
    %v797 = vsel %vm110, %v634, 0.0
    %v798 = vadd.f32 %v796, %v797
    %v799 = vsel %vm110, %v639, 0.0
    %v800 = vadd.f32 %v798, %v799
    %v801 = vsel %vm110, %v644, 0.0
    %v802 = vadd.f32 %v800, %v801
    %v803 = vsel %vm110, %v649, 0.0
    %v804 = vadd.f32 %v802, %v803
    %v805 = vsel %vm110, %v654, 0.0
    %v806 = vadd.f32 %v804, %v805
    %v807 = vsel %vm110, %v659, 0.0
    %v808 = vadd.f32 %v806, %v807
    %v809 = vsel %vm110, %v664, 0.0
    %v810 = vadd.f32 %v808, %v809
    %v811 = vsel %vm110, %v669, 0.0
    %v812 = vadd.f32 %v810, %v811
    %v813 = vsel %vm110, %v674, 0.0
    %v814 = vadd.f32 %v812, %v813
    %v815 = vsel %vm110, %v679, 0.0
    %v816 = vadd.f32 %v814, %v815
    %v817 = vsel %vm110, %v684, 0.0
    %v818 = vadd.f32 %v816, %v817
    %v819 = vsel %vm110, %v689, 0.0
    %v820 = vadd.f32 %v818, %v819
    %v821 = vrot.slane %v820, 4
    %v822 = vadd.f32 %v820, %v821
    %v823 = vrot.slane %v822, 2
    %v824 = vadd.f32 %v822, %v823
    %v825 = vrot.slane %v824, 1
    %v826 = vadd.f32 %v824, %v825
    %v827 = vmul.f32 %v826, 0.001953125
    %v828 = vsub.f32 %v374, %v827
    %v829 = vsub.f32 %v379, %v827
    %v830 = vsub.f32 %v384, %v827
    %v831 = vsub.f32 %v389, %v827
    %v832 = vsub.f32 %v394, %v827
    %v833 = vsub.f32 %v399, %v827
    %v834 = vsub.f32 %v404, %v827
    %v835 = vsub.f32 %v409, %v827
    %v836 = vsub.f32 %v414, %v827
    %v837 = vsub.f32 %v419, %v827
    %v838 = vsub.f32 %v424, %v827
    %v839 = vsub.f32 %v429, %v827
    %v840 = vsub.f32 %v434, %v827
    %v841 = vsub.f32 %v439, %v827
    %v842 = vsub.f32 %v444, %v827
    %v843 = vsub.f32 %v449, %v827
    %v844 = vsub.f32 %v454, %v827
    %v845 = vsub.f32 %v459, %v827
    %v846 = vsub.f32 %v464, %v827
    %v847 = vsub.f32 %v469, %v827
    %v848 = vsub.f32 %v474, %v827
    %v849 = vsub.f32 %v479, %v827
    %v850 = vsub.f32 %v484, %v827
    %v851 = vsub.f32 %v489, %v827
    %v852 = vsub.f32 %v494, %v827
    %v853 = vsub.f32 %v499, %v827
    %v854 = vsub.f32 %v504, %v827
    %v855 = vsub.f32 %v509, %v827
    %v856 = vsub.f32 %v514, %v827
    %v857 = vsub.f32 %v519, %v827
    %v858 = vsub.f32 %v524, %v827
    %v859 = vsub.f32 %v529, %v827
    %v860 = vsub.f32 %v534, %v827
    %v861 = vsub.f32 %v539, %v827
    %v862 = vsub.f32 %v544, %v827
    %v863 = vsub.f32 %v549, %v827
    %v864 = vsub.f32 %v554, %v827
    %v865 = vsub.f32 %v559, %v827
    %v866 = vsub.f32 %v564, %v827
    %v867 = vsub.f32 %v569, %v827
    %v868 = vsub.f32 %v574, %v827
    %v869 = vsub.f32 %v579, %v827
    %v870 = vsub.f32 %v584, %v827
    %v871 = vsub.f32 %v589, %v827
    %v872 = vsub.f32 %v594, %v827
    %v873 = vsub.f32 %v599, %v827
    %v874 = vsub.f32 %v604, %v827
    %v875 = vsub.f32 %v609, %v827
    %v876 = vsub.f32 %v614, %v827
    %v877 = vsub.f32 %v619, %v827
    %v878 = vsub.f32 %v624, %v827
    %v879 = vsub.f32 %v629, %v827
    %v880 = vsub.f32 %v634, %v827
    %v881 = vsub.f32 %v639, %v827
    %v882 = vsub.f32 %v644, %v827
    %v883 = vsub.f32 %v649, %v827
    %v884 = vsub.f32 %v654, %v827
    %v885 = vsub.f32 %v659, %v827
    %v886 = vsub.f32 %v664, %v827
    %v887 = vsub.f32 %v669, %v827
    %v888 = vsub.f32 %v674, %v827
    %v889 = vsub.f32 %v679, %v827
    %v890 = vsub.f32 %v684, %v827
    %v891 = vsub.f32 %v689, %v827
    %v892 = vmul.f32 %v828, %v828
    %v893 = vmul.f32 %v829, %v829
    %v894 = vmul.f32 %v830, %v830
    %v895 = vmul.f32 %v831, %v831
    %v896 = vmul.f32 %v832, %v832
    %v897 = vmul.f32 %v833, %v833
    %v898 = vmul.f32 %v834, %v834
    %v899 = vmul.f32 %v835, %v835
    %v900 = vmul.f32 %v836, %v836
    %v901 = vmul.f32 %v837, %v837
    %v902 = vmul.f32 %v838, %v838
    %v903 = vmul.f32 %v839, %v839
    %v904 = vmul.f32 %v840, %v840
    %v905 = vmul.f32 %v841, %v841
    %v906 = vmul.f32 %v842, %v842
    %v907 = vmul.f32 %v843, %v843
    %v908 = vmul.f32 %v844, %v844
    %v909 = vmul.f32 %v845, %v845
    %v910 = vmul.f32 %v846, %v846
    %v911 = vmul.f32 %v847, %v847
    %v912 = vmul.f32 %v848, %v848
    %v913 = vmul.f32 %v849, %v849
    %v914 = vmul.f32 %v850, %v850
    %v915 = vmul.f32 %v851, %v851
    %v916 = vmul.f32 %v852, %v852
    %v917 = vmul.f32 %v853, %v853
    %v918 = vmul.f32 %v854, %v854
    %v919 = vmul.f32 %v855, %v855
    %v920 = vmul.f32 %v856, %v856
    %v921 = vmul.f32 %v857, %v857
    %v922 = vmul.f32 %v858, %v858
    %v923 = vmul.f32 %v859, %v859
    %v924 = vmul.f32 %v860, %v860
    %v925 = vmul.f32 %v861, %v861
    %v926 = vmul.f32 %v862, %v862
    %v927 = vmul.f32 %v863, %v863
    %v928 = vmul.f32 %v864, %v864
    %v929 = vmul.f32 %v865, %v865
    %v930 = vmul.f32 %v866, %v866
    %v931 = vmul.f32 %v867, %v867
    %v932 = vmul.f32 %v868, %v868
    %v933 = vmul.f32 %v869, %v869
    %v934 = vmul.f32 %v870, %v870
    %v935 = vmul.f32 %v871, %v871
    %v936 = vmul.f32 %v872, %v872
    %v937 = vmul.f32 %v873, %v873
    %v938 = vmul.f32 %v874, %v874
    %v939 = vmul.f32 %v875, %v875
    %v940 = vmul.f32 %v876, %v876
    %v941 = vmul.f32 %v877, %v877
    %v942 = vmul.f32 %v878, %v878
    %v943 = vmul.f32 %v879, %v879
    %v944 = vmul.f32 %v880, %v880
    %v945 = vmul.f32 %v881, %v881
    %v946 = vmul.f32 %v882, %v882
    %v947 = vmul.f32 %v883, %v883
    %v948 = vmul.f32 %v884, %v884
    %v949 = vmul.f32 %v885, %v885
    %v950 = vmul.f32 %v886, %v886
    %v951 = vmul.f32 %v887, %v887
    %v952 = vmul.f32 %v888, %v888
    %v953 = vmul.f32 %v889, %v889
    %v954 = vmul.f32 %v890, %v890
    %v955 = vmul.f32 %v891, %v891
    %v956 = vsel %vm110, %v892, 0.0
    %v957 = vsel %vm110, %v893, 0.0
    %v958 = vadd.f32 %v956, %v957
    %v959 = vsel %vm110, %v894, 0.0
    %v960 = vadd.f32 %v958, %v959
    %v961 = vsel %vm110, %v895, 0.0
    %v962 = vadd.f32 %v960, %v961
    %v963 = vsel %vm110, %v896, 0.0
    %v964 = vadd.f32 %v962, %v963
    %v965 = vsel %vm110, %v897, 0.0
    %v966 = vadd.f32 %v964, %v965
    %v967 = vsel %vm110, %v898, 0.0
    %v968 = vadd.f32 %v966, %v967
    %v969 = vsel %vm110, %v899, 0.0
    %v970 = vadd.f32 %v968, %v969
    %v971 = vsel %vm110, %v900, 0.0
    %v972 = vadd.f32 %v970, %v971
    %v973 = vsel %vm110, %v901, 0.0
    %v974 = vadd.f32 %v972, %v973
    %v975 = vsel %vm110, %v902, 0.0
    %v976 = vadd.f32 %v974, %v975
    %v977 = vsel %vm110, %v903, 0.0
    %v978 = vadd.f32 %v976, %v977
    %v979 = vsel %vm110, %v904, 0.0
    %v980 = vadd.f32 %v978, %v979
    %v981 = vsel %vm110, %v905, 0.0
    %v982 = vadd.f32 %v980, %v981
    %v983 = vsel %vm110, %v906, 0.0
    %v984 = vadd.f32 %v982, %v983
    %v985 = vsel %vm110, %v907, 0.0
    %v986 = vadd.f32 %v984, %v985
    %v987 = vsel %vm110, %v908, 0.0
    %v988 = vadd.f32 %v986, %v987
    %v989 = vsel %vm110, %v909, 0.0
    %v990 = vadd.f32 %v988, %v989
    %v991 = vsel %vm110, %v910, 0.0
    %v992 = vadd.f32 %v990, %v991
    %v993 = vsel %vm110, %v911, 0.0
    %v994 = vadd.f32 %v992, %v993
    %v995 = vsel %vm110, %v912, 0.0
    %v996 = vadd.f32 %v994, %v995
    %v997 = vsel %vm110, %v913, 0.0
    %v998 = vadd.f32 %v996, %v997
    %v999 = vsel %vm110, %v914, 0.0
    %v1000 = vadd.f32 %v998, %v999
    %v1001 = vsel %vm110, %v915, 0.0
    %v1002 = vadd.f32 %v1000, %v1001
    %v1003 = vsel %vm110, %v916, 0.0
    %v1004 = vadd.f32 %v1002, %v1003
    %v1005 = vsel %vm110, %v917, 0.0
    %v1006 = vadd.f32 %v1004, %v1005
    %v1007 = vsel %vm110, %v918, 0.0
    %v1008 = vadd.f32 %v1006, %v1007
    %v1009 = vsel %vm110, %v919, 0.0
    %v1010 = vadd.f32 %v1008, %v1009
    %v1011 = vsel %vm110, %v920, 0.0
    %v1012 = vadd.f32 %v1010, %v1011
    %v1013 = vsel %vm110, %v921, 0.0
    %v1014 = vadd.f32 %v1012, %v1013
    %v1015 = vsel %vm110, %v922, 0.0
    %v1016 = vadd.f32 %v1014, %v1015
    %v1017 = vsel %vm110, %v923, 0.0
    %v1018 = vadd.f32 %v1016, %v1017
    %v1019 = vsel %vm110, %v924, 0.0
    %v1020 = vadd.f32 %v1018, %v1019
    %v1021 = vsel %vm110, %v925, 0.0
    %v1022 = vadd.f32 %v1020, %v1021
    %v1023 = vsel %vm110, %v926, 0.0
    %v1024 = vadd.f32 %v1022, %v1023
    %v1025 = vsel %vm110, %v927, 0.0
    %v1026 = vadd.f32 %v1024, %v1025
    %v1027 = vsel %vm110, %v928, 0.0
    %v1028 = vadd.f32 %v1026, %v1027
    %v1029 = vsel %vm110, %v929, 0.0
    %v1030 = vadd.f32 %v1028, %v1029
    %v1031 = vsel %vm110, %v930, 0.0
    %v1032 = vadd.f32 %v1030, %v1031
    %v1033 = vsel %vm110, %v931, 0.0
    %v1034 = vadd.f32 %v1032, %v1033
    %v1035 = vsel %vm110, %v932, 0.0
    %v1036 = vadd.f32 %v1034, %v1035
    %v1037 = vsel %vm110, %v933, 0.0
    %v1038 = vadd.f32 %v1036, %v1037
    %v1039 = vsel %vm110, %v934, 0.0
    %v1040 = vadd.f32 %v1038, %v1039
    %v1041 = vsel %vm110, %v935, 0.0
    %v1042 = vadd.f32 %v1040, %v1041
    %v1043 = vsel %vm110, %v936, 0.0
    %v1044 = vadd.f32 %v1042, %v1043
    %v1045 = vsel %vm110, %v937, 0.0
    %v1046 = vadd.f32 %v1044, %v1045
    %v1047 = vsel %vm110, %v938, 0.0
    %v1048 = vadd.f32 %v1046, %v1047
    %v1049 = vsel %vm110, %v939, 0.0
    %v1050 = vadd.f32 %v1048, %v1049
    %v1051 = vsel %vm110, %v940, 0.0
    %v1052 = vadd.f32 %v1050, %v1051
    %v1053 = vsel %vm110, %v941, 0.0
    %v1054 = vadd.f32 %v1052, %v1053
    %v1055 = vsel %vm110, %v942, 0.0
    %v1056 = vadd.f32 %v1054, %v1055
    %v1057 = vsel %vm110, %v943, 0.0
    %v1058 = vadd.f32 %v1056, %v1057
    %v1059 = vsel %vm110, %v944, 0.0
    %v1060 = vadd.f32 %v1058, %v1059
    %v1061 = vsel %vm110, %v945, 0.0
    %v1062 = vadd.f32 %v1060, %v1061
    %v1063 = vsel %vm110, %v946, 0.0
    %v1064 = vadd.f32 %v1062, %v1063
    %v1065 = vsel %vm110, %v947, 0.0
    %v1066 = vadd.f32 %v1064, %v1065
    %v1067 = vsel %vm110, %v948, 0.0
    %v1068 = vadd.f32 %v1066, %v1067
    %v1069 = vsel %vm110, %v949, 0.0
    %v1070 = vadd.f32 %v1068, %v1069
    %v1071 = vsel %vm110, %v950, 0.0
    %v1072 = vadd.f32 %v1070, %v1071
    %v1073 = vsel %vm110, %v951, 0.0
    %v1074 = vadd.f32 %v1072, %v1073
    %v1075 = vsel %vm110, %v952, 0.0
    %v1076 = vadd.f32 %v1074, %v1075
    %v1077 = vsel %vm110, %v953, 0.0
    %v1078 = vadd.f32 %v1076, %v1077
    %v1079 = vsel %vm110, %v954, 0.0
    %v1080 = vadd.f32 %v1078, %v1079
    %v1081 = vsel %vm110, %v955, 0.0
    %v1082 = vadd.f32 %v1080, %v1081
    %v1083 = vrot.slane %v1082, 4
    %v1084 = vadd.f32 %v1082, %v1083
    %v1085 = vrot.slane %v1084, 2
    %v1086 = vadd.f32 %v1084, %v1085
    %v1087 = vrot.slane %v1086, 1
    %v1088 = vadd.f32 %v1086, %v1087
    %v1089 = vmul.f32 %v1088, 0.001953125
    %v1090 = vadd.f32 %v1089, 1e-05
    %v1091 = vrsqrt.pop %v1090
    %v1092 = vmul.f32 %v692, %v1091
    %v1094 = vlaneseq
    %v1095 = vshrl.u32 %v1094, 7
    %v1096 = vsub.s32 0, %v1095
    %v1097 = vrot.slane %v1092, %v1096
    %v1099 = vmul.f32 %v828, %v1097
    %v1100 = vmul.f32 %v829, %v1097
    %v1101 = vmul.f32 %v830, %v1097
    %v1102 = vmul.f32 %v831, %v1097
    %v1103 = vmul.f32 %v832, %v1097
    %v1104 = vmul.f32 %v833, %v1097
    %v1105 = vmul.f32 %v834, %v1097
    %v1106 = vmul.f32 %v835, %v1097
    %v1107 = vmul.f32 %v836, %v1097
    %v1108 = vmul.f32 %v837, %v1097
    %v1109 = vmul.f32 %v838, %v1097
    %v1110 = vmul.f32 %v839, %v1097
    %v1111 = vmul.f32 %v840, %v1097
    %v1112 = vmul.f32 %v841, %v1097
    %v1113 = vmul.f32 %v842, %v1097
    %v1114 = vmul.f32 %v843, %v1097
    %v1115 = vmul.f32 %v844, %v1097
    %v1116 = vmul.f32 %v845, %v1097
    %v1117 = vmul.f32 %v846, %v1097
    %v1118 = vmul.f32 %v847, %v1097
    %v1119 = vmul.f32 %v848, %v1097
    %v1120 = vmul.f32 %v849, %v1097
    %v1121 = vmul.f32 %v850, %v1097
    %v1122 = vmul.f32 %v851, %v1097
    %v1123 = vmul.f32 %v852, %v1097
    %v1124 = vmul.f32 %v853, %v1097
    %v1125 = vmul.f32 %v854, %v1097
    %v1126 = vmul.f32 %v855, %v1097
    %v1127 = vmul.f32 %v856, %v1097
    %v1128 = vmul.f32 %v857, %v1097
    %v1129 = vmul.f32 %v858, %v1097
    %v1130 = vmul.f32 %v859, %v1097
    %v1131 = vmul.f32 %v860, %v1097
    %v1132 = vmul.f32 %v861, %v1097
    %v1133 = vmul.f32 %v862, %v1097
    %v1134 = vmul.f32 %v863, %v1097
    %v1135 = vmul.f32 %v864, %v1097
    %v1136 = vmul.f32 %v865, %v1097
    %v1137 = vmul.f32 %v866, %v1097
    %v1138 = vmul.f32 %v867, %v1097
    %v1139 = vmul.f32 %v868, %v1097
    %v1140 = vmul.f32 %v869, %v1097
    %v1141 = vmul.f32 %v870, %v1097
    %v1142 = vmul.f32 %v871, %v1097
    %v1143 = vmul.f32 %v872, %v1097
    %v1144 = vmul.f32 %v873, %v1097
    %v1145 = vmul.f32 %v874, %v1097
    %v1146 = vmul.f32 %v875, %v1097
    %v1147 = vmul.f32 %v876, %v1097
    %v1148 = vmul.f32 %v877, %v1097
    %v1149 = vmul.f32 %v878, %v1097
    %v1150 = vmul.f32 %v879, %v1097
    %v1151 = vmul.f32 %v880, %v1097
    %v1152 = vmul.f32 %v881, %v1097
    %v1153 = vmul.f32 %v882, %v1097
    %v1154 = vmul.f32 %v883, %v1097
    %v1155 = vmul.f32 %v884, %v1097
    %v1156 = vmul.f32 %v885, %v1097
    %v1157 = vmul.f32 %v886, %v1097
    %v1158 = vmul.f32 %v887, %v1097
    %v1159 = vmul.f32 %v888, %v1097
    %v1160 = vmul.f32 %v889, %v1097
    %v1161 = vmul.f32 %v890, %v1097
    %v1162 = vmul.f32 %v891, %v1097
    %v1164 = vlaneseq
    %v1165 = vshrl.u32 %v1164, 7
    %v1166 = vsub.s32 0, %v1165
    %v1167 = vrot.slane %v693, %v1166
    %v1169 = vadd.f32 %v1099, %v1167
    %v1170 = vadd.f32 %v1100, %v1167
    %v1171 = vadd.f32 %v1101, %v1167
    %v1172 = vadd.f32 %v1102, %v1167
    %v1173 = vadd.f32 %v1103, %v1167
    %v1174 = vadd.f32 %v1104, %v1167
    %v1175 = vadd.f32 %v1105, %v1167
    %v1176 = vadd.f32 %v1106, %v1167
    %v1177 = vadd.f32 %v1107, %v1167
    %v1178 = vadd.f32 %v1108, %v1167
    %v1179 = vadd.f32 %v1109, %v1167
    %v1180 = vadd.f32 %v1110, %v1167
    %v1181 = vadd.f32 %v1111, %v1167
    %v1182 = vadd.f32 %v1112, %v1167
    %v1183 = vadd.f32 %v1113, %v1167
    %v1184 = vadd.f32 %v1114, %v1167
    %v1185 = vadd.f32 %v1115, %v1167
    %v1186 = vadd.f32 %v1116, %v1167
    %v1187 = vadd.f32 %v1117, %v1167
    %v1188 = vadd.f32 %v1118, %v1167
    %v1189 = vadd.f32 %v1119, %v1167
    %v1190 = vadd.f32 %v1120, %v1167
    %v1191 = vadd.f32 %v1121, %v1167
    %v1192 = vadd.f32 %v1122, %v1167
    %v1193 = vadd.f32 %v1123, %v1167
    %v1194 = vadd.f32 %v1124, %v1167
    %v1195 = vadd.f32 %v1125, %v1167
    %v1196 = vadd.f32 %v1126, %v1167
    %v1197 = vadd.f32 %v1127, %v1167
    %v1198 = vadd.f32 %v1128, %v1167
    %v1199 = vadd.f32 %v1129, %v1167
    %v1200 = vadd.f32 %v1130, %v1167
    %v1201 = vadd.f32 %v1131, %v1167
    %v1202 = vadd.f32 %v1132, %v1167
    %v1203 = vadd.f32 %v1133, %v1167
    %v1204 = vadd.f32 %v1134, %v1167
    %v1205 = vadd.f32 %v1135, %v1167
    %v1206 = vadd.f32 %v1136, %v1167
    %v1207 = vadd.f32 %v1137, %v1167
    %v1208 = vadd.f32 %v1138, %v1167
    %v1209 = vadd.f32 %v1139, %v1167
    %v1210 = vadd.f32 %v1140, %v1167
    %v1211 = vadd.f32 %v1141, %v1167
    %v1212 = vadd.f32 %v1142, %v1167
    %v1213 = vadd.f32 %v1143, %v1167
    %v1214 = vadd.f32 %v1144, %v1167
    %v1215 = vadd.f32 %v1145, %v1167
    %v1216 = vadd.f32 %v1146, %v1167
    %v1217 = vadd.f32 %v1147, %v1167
    %v1218 = vadd.f32 %v1148, %v1167
    %v1219 = vadd.f32 %v1149, %v1167
    %v1220 = vadd.f32 %v1150, %v1167
    %v1221 = vadd.f32 %v1151, %v1167
    %v1222 = vadd.f32 %v1152, %v1167
    %v1223 = vadd.f32 %v1153, %v1167
    %v1224 = vadd.f32 %v1154, %v1167
    %v1225 = vadd.f32 %v1155, %v1167
    %v1226 = vadd.f32 %v1156, %v1167
    %v1227 = vadd.f32 %v1157, %v1167
    %v1228 = vadd.f32 %v1158, %v1167
    %v1229 = vadd.f32 %v1159, %v1167
    %v1230 = vadd.f32 %v1160, %v1167
    %v1231 = vadd.f32 %v1161, %v1167
    %v1232 = vadd.f32 %v1162, %v1167
    %v1233 = vmax.f32 %v1169, 0.0
    %v1234 = vmax.f32 %v1170, 0.0
    %v1235 = vmax.f32 %v1171, 0.0
    %v1236 = vmax.f32 %v1172, 0.0
    %v1237 = vmax.f32 %v1173, 0.0
    %v1238 = vmax.f32 %v1174, 0.0
    %v1239 = vmax.f32 %v1175, 0.0
    %v1240 = vmax.f32 %v1176, 0.0
    %v1241 = vmax.f32 %v1177, 0.0
    %v1242 = vmax.f32 %v1178, 0.0
    %v1243 = vmax.f32 %v1179, 0.0
    %v1244 = vmax.f32 %v1180, 0.0
    %v1245 = vmax.f32 %v1181, 0.0
    %v1246 = vmax.f32 %v1182, 0.0
    %v1247 = vmax.f32 %v1183, 0.0
    %v1248 = vmax.f32 %v1184, 0.0
    %v1249 = vmax.f32 %v1185, 0.0
    %v1250 = vmax.f32 %v1186, 0.0
    %v1251 = vmax.f32 %v1187, 0.0
    %v1252 = vmax.f32 %v1188, 0.0
    %v1253 = vmax.f32 %v1189, 0.0
    %v1254 = vmax.f32 %v1190, 0.0
    %v1255 = vmax.f32 %v1191, 0.0
    %v1256 = vmax.f32 %v1192, 0.0
    %v1257 = vmax.f32 %v1193, 0.0
    %v1258 = vmax.f32 %v1194, 0.0
    %v1259 = vmax.f32 %v1195, 0.0
    %v1260 = vmax.f32 %v1196, 0.0
    %v1261 = vmax.f32 %v1197, 0.0
    %v1262 = vmax.f32 %v1198, 0.0
    %v1263 = vmax.f32 %v1199, 0.0
    %v1264 = vmax.f32 %v1200, 0.0
    %v1265 = vmax.f32 %v1201, 0.0
    %v1266 = vmax.f32 %v1202, 0.0
    %v1267 = vmax.f32 %v1203, 0.0
    %v1268 = vmax.f32 %v1204, 0.0
    %v1269 = vmax.f32 %v1205, 0.0
    %v1270 = vmax.f32 %v1206, 0.0
    %v1271 = vmax.f32 %v1207, 0.0
    %v1272 = vmax.f32 %v1208, 0.0
    %v1273 = vmax.f32 %v1209, 0.0
    %v1274 = vmax.f32 %v1210, 0.0
    %v1275 = vmax.f32 %v1211, 0.0
    %v1276 = vmax.f32 %v1212, 0.0
    %v1277 = vmax.f32 %v1213, 0.0
    %v1278 = vmax.f32 %v1214, 0.0
    %v1279 = vmax.f32 %v1215, 0.0
    %v1280 = vmax.f32 %v1216, 0.0
    %v1281 = vmax.f32 %v1217, 0.0
    %v1282 = vmax.f32 %v1218, 0.0
    %v1283 = vmax.f32 %v1219, 0.0
    %v1284 = vmax.f32 %v1220, 0.0
    %v1285 = vmax.f32 %v1221, 0.0
    %v1286 = vmax.f32 %v1222, 0.0
    %v1287 = vmax.f32 %v1223, 0.0
    %v1288 = vmax.f32 %v1224, 0.0
    %v1289 = vmax.f32 %v1225, 0.0
    %v1290 = vmax.f32 %v1226, 0.0
    %v1291 = vmax.f32 %v1227, 0.0
    %v1292 = vmax.f32 %v1228, 0.0
    %v1293 = vmax.f32 %v1229, 0.0
    %v1294 = vmax.f32 %v1230, 0.0
    %v1295 = vmax.f32 %v1231, 0.0
    %v1296 = vmax.f32 %v1232, 0.0
    %1297 = vst.msk [vmem:[#allocation2] sm:$0xff] %vm110, 0.0
    %1298 = vst.msk [vmem:[#allocation2 + $0x8] sm:$0xff] %vm110, 0.0
    %vm1299 = vcmask 25600
    %1300 = vst.msk [vmem:[#allocation2 + $0x10] sm:$0x3] %vm1299, 0.0
    %1301 = vst.msk [vmem:[#allocation2 + $0x18] sm:$0xff] %vm110, 0.0
    %1302 = vst.msk [vmem:[#allocation2 + $0x20] sm:$0xff] %vm110, 0.0
    %1303 = vst.msk [vmem:[#allocation2 + $0x28] sm:$0x3] %vm1299, 0.0
    %1304 = vst.msk [vmem:[#allocation2 + $0x30] sm:$0xff] %vm110, 0.0
    %1305 = vst.msk [vmem:[#allocation2 + $0x38] sm:$0xff] %vm110, 0.0
    %1306 = vst.msk [vmem:[#allocation2 + $0x40] sm:$0x3] %vm1299, 0.0
    %1307 = vst.msk [vmem:[#allocation2 + $0x48] sm:$0xff] %vm110, 0.0
    %1308 = vst.msk [vmem:[#allocation2 + $0x50] sm:$0xff] %vm110, 0.0
    %1309 = vst.msk [vmem:[#allocation2 + $0x58] sm:$0x3] %vm1299, 0.0
    %1310 = vst.msk [vmem:[#allocation2 + $0x60] sm:$0xff] %vm110, 0.0
    %1311 = vst.msk [vmem:[#allocation2 + $0x68] sm:$0xff] %vm110, 0.0
    %1312 = vst.msk [vmem:[#allocation2 + $0x70] sm:$0x3] %vm1299, 0.0
    %1313 = vst.msk [vmem:[#allocation2 + $0x78] sm:$0xff] %vm110, 0.0
    %1314 = vst.msk [vmem:[#allocation2 + $0x80] sm:$0xff] %vm110, 0.0
    %1315 = vst.msk [vmem:[#allocation2 + $0x88] sm:$0x3] %vm1299, 0.0
    %1316 = vst.msk [vmem:[#allocation2 + $0x90] sm:$0xff] %vm110, 0.0
    %1317 = vst.msk [vmem:[#allocation2 + $0x98] sm:$0xff] %vm110, 0.0
    %1318 = vst.msk [vmem:[#allocation2 + $0xa0] sm:$0x3] %vm1299, 0.0
    %1319 = vst.msk [vmem:[#allocation2 + $0xa8] sm:$0xff] %vm110, 0.0
    %1320 = vst.msk [vmem:[#allocation2 + $0xb0] sm:$0xff] %vm110, 0.0
    %1321 = vst.msk [vmem:[#allocation2 + $0xb8] sm:$0x3] %vm1299, 0.0
    %1322 = vst.msk [vmem:[#allocation2 + $0xc0] sm:$0xff] %vm110, 0.0
    %1323 = vst.msk [vmem:[#allocation2 + $0xc8] sm:$0xff] %vm110, 0.0
    %1324 = vst.msk [vmem:[#allocation2 + $0xd0] sm:$0x3] %vm1299, 0.0
    %1325 = vst.msk [vmem:[#allocation2 + $0xd8] sm:$0xff] %vm110, 0.0
    %1326 = vst.msk [vmem:[#allocation2 + $0xe0] sm:$0xff] %vm110, 0.0
    %1327 = vst.msk [vmem:[#allocation2 + $0xe8] sm:$0x3] %vm1299, 0.0
    %1328 = vst.msk [vmem:[#allocation2 + $0xf0] sm:$0xff] %vm110, 0.0
    %1329 = vst.msk [vmem:[#allocation2 + $0xf8] sm:$0xff] %vm110, 0.0
    %1330 = vst.msk [vmem:[#allocation2 + $0x100] sm:$0x3] %vm1299, 0.0
    %1331 = vst.msk [vmem:[#allocation2 + $0x108] sm:$0xff] %vm110, 0.0
    %1332 = vst.msk [vmem:[#allocation2 + $0x110] sm:$0xff] %vm110, 0.0
    %1333 = vst.msk [vmem:[#allocation2 + $0x118] sm:$0x3] %vm1299, 0.0
    %1334 = vst.msk [vmem:[#allocation2 + $0x120] sm:$0xff] %vm110, 0.0
    %1335 = vst.msk [vmem:[#allocation2 + $0x128] sm:$0xff] %vm110, 0.0
    %1336 = vst.msk [vmem:[#allocation2 + $0x130] sm:$0x3] %vm1299, 0.0
    %1337 = vst.msk [vmem:[#allocation2 + $0x138] sm:$0xff] %vm110, 0.0
    %1338 = vst.msk [vmem:[#allocation2 + $0x140] sm:$0xff] %vm110, 0.0
    %1339 = vst.msk [vmem:[#allocation2 + $0x148] sm:$0x3] %vm1299, 0.0
    %1340 = vst.msk [vmem:[#allocation2 + $0x150] sm:$0xff] %vm110, 0.0
    %1341 = vst.msk [vmem:[#allocation2 + $0x158] sm:$0xff] %vm110, 0.0
    %1342 = vst.msk [vmem:[#allocation2 + $0x160] sm:$0x3] %vm1299, 0.0
    %1343 = vst.msk [vmem:[#allocation2 + $0x168] sm:$0xff] %vm110, 0.0
    %1344 = vst.msk [vmem:[#allocation2 + $0x170] sm:$0xff] %vm110, 0.0
    %1345 = vst.msk [vmem:[#allocation2 + $0x178] sm:$0x3] %vm1299, 0.0
    %1346 = vst.msk [vmem:[#allocation2 + $0x180] sm:$0xff] %vm110, 0.0
    %1347 = vst.msk [vmem:[#allocation2 + $0x188] sm:$0xff] %vm110, 0.0
    %1348 = vst.msk [vmem:[#allocation2 + $0x190] sm:$0x3] %vm1299, 0.0
    %1349 = vst.msk [vmem:[#allocation2 + $0x198] sm:$0xff] %vm110, 0.0
    %1350 = vst.msk [vmem:[#allocation2 + $0x1a0] sm:$0xff] %vm110, 0.0
    %1351 = vst.msk [vmem:[#allocation2 + $0x1a8] sm:$0x3] %vm1299, 0.0
    %1352 = vst.msk [vmem:[#allocation2 + $0x1b0] sm:$0xff] %vm110, 0.0
    %1353 = vst.msk [vmem:[#allocation2 + $0x1b8] sm:$0xff] %vm110, 0.0
    %1354 = vst.msk [vmem:[#allocation2 + $0x1c0] sm:$0x3] %vm1299, 0.0
    %1355 = vst.msk [vmem:[#allocation2 + $0x1c8] sm:$0xff] %vm110, 0.0
    %1356 = vst.msk [vmem:[#allocation2 + $0x1d0] sm:$0xff] %vm110, 0.0
    %1357 = vst.msk [vmem:[#allocation2 + $0x1d8] sm:$0x3] %vm1299, 0.0
    %1358 = vst.msk [vmem:[#allocation2 + $0x1e0] sm:$0xff] %vm110, 0.0
    %1359 = vst.msk [vmem:[#allocation2 + $0x1e8] sm:$0xff] %vm110, 0.0
    %1360 = vst.msk [vmem:[#allocation2 + $0x1f0] sm:$0x3] %vm1299, 0.0
    %1361 = vst.msk [vmem:[#allocation2 + $0x1f8] sm:$0xff] %vm110, 0.0
    %1362 = vst.msk [vmem:[#allocation2 + $0x200] sm:$0xff] %vm110, 0.0
    %1363 = vst.msk [vmem:[#allocation2 + $0x208] sm:$0x3] %vm1299, 0.0
    %1364 = vst.msk [vmem:[#allocation2 + $0x210] sm:$0xff] %vm110, 0.0
    %1365 = vst.msk [vmem:[#allocation2 + $0x218] sm:$0xff] %vm110, 0.0
    %1366 = vst.msk [vmem:[#allocation2 + $0x220] sm:$0x3] %vm1299, 0.0
    %1367 = vst.msk [vmem:[#allocation2 + $0x228] sm:$0xff] %vm110, 0.0
    %1368 = vst.msk [vmem:[#allocation2 + $0x230] sm:$0xff] %vm110, 0.0
    %1369 = vst.msk [vmem:[#allocation2 + $0x238] sm:$0x3] %vm1299, 0.0
    %1370 = vst.msk [vmem:[#allocation2 + $0x240] sm:$0xff] %vm110, 0.0
    %1371 = vst.msk [vmem:[#allocation2 + $0x248] sm:$0xff] %vm110, 0.0
    %1372 = vst.msk [vmem:[#allocation2 + $0x250] sm:$0x3] %vm1299, 0.0
    %1373 = vst.msk [vmem:[#allocation2 + $0x258] sm:$0xff] %vm110, 0.0
    %1374 = vst.msk [vmem:[#allocation2 + $0x260] sm:$0xff] %vm110, 0.0
    %1375 = vst.msk [vmem:[#allocation2 + $0x268] sm:$0x3] %vm1299, 0.0
    %1376 = vst.msk [vmem:[#allocation2 + $0x270] sm:$0xff] %vm110, 0.0
    %1377 = vst.msk [vmem:[#allocation2 + $0x278] sm:$0xff] %vm110, 0.0
    %1378 = vst.msk [vmem:[#allocation2 + $0x280] sm:$0x3] %vm1299, 0.0
    %1379 = vst.msk [vmem:[#allocation2 + $0x288] sm:$0xff] %vm110, 0.0
    %1380 = vst.msk [vmem:[#allocation2 + $0x290] sm:$0xff] %vm110, 0.0
    %1381 = vst.msk [vmem:[#allocation2 + $0x298] sm:$0x3] %vm1299, 0.0
    %1382 = vst.msk [vmem:[#allocation2 + $0x2a0] sm:$0xff] %vm110, 0.0
    %1383 = vst.msk [vmem:[#allocation2 + $0x2a8] sm:$0xff] %vm110, 0.0
    %1384 = vst.msk [vmem:[#allocation2 + $0x2b0] sm:$0x3] %vm1299, 0.0
    %1385 = vst.msk [vmem:[#allocation2 + $0x2b8] sm:$0xff] %vm110, 0.0
    %1386 = vst.msk [vmem:[#allocation2 + $0x2c0] sm:$0xff] %vm110, 0.0
    %1387 = vst.msk [vmem:[#allocation2 + $0x2c8] sm:$0x3] %vm1299, 0.0
    %1388 = vst.msk [vmem:[#allocation2 + $0x2d0] sm:$0xff] %vm110, 0.0
    %1389 = vst.msk [vmem:[#allocation2 + $0x2d8] sm:$0xff] %vm110, 0.0
    %1390 = vst.msk [vmem:[#allocation2 + $0x2e0] sm:$0x3] %vm1299, 0.0
    %1391 = vst.msk [vmem:[#allocation2 + $0x2e8] sm:$0xff] %vm110, 0.0
    %1392 = vst.msk [vmem:[#allocation2 + $0x2f0] sm:$0xff] %vm110, 0.0
    %1393 = vst.msk [vmem:[#allocation2 + $0x2f8] sm:$0x3] %vm1299, 0.0
    %1394 = vst.msk [vmem:[#allocation2 + $0x300] sm:$0xff] %vm110, 0.0
    %1395 = vst.msk [vmem:[#allocation2 + $0x308] sm:$0xff] %vm110, 0.0
    %1396 = vst.msk [vmem:[#allocation2 + $0x310] sm:$0x3] %vm1299, 0.0
    %1397 = vst.msk [vmem:[#allocation2 + $0x318] sm:$0xff] %vm110, 0.0
    %1398 = vst.msk [vmem:[#allocation2 + $0x320] sm:$0xff] %vm110, 0.0
    %1399 = vst.msk [vmem:[#allocation2 + $0x328] sm:$0x3] %vm1299, 0.0
    %1400 = vst.msk [vmem:[#allocation2 + $0x330] sm:$0xff] %vm110, 0.0
    %1401 = vst.msk [vmem:[#allocation2 + $0x338] sm:$0xff] %vm110, 0.0
    %1402 = vst.msk [vmem:[#allocation2 + $0x340] sm:$0x3] %vm1299, 0.0
    %1403 = vst.msk [vmem:[#allocation2 + $0x348] sm:$0xff] %vm110, 0.0
    %1404 = vst.msk [vmem:[#allocation2 + $0x350] sm:$0xff] %vm110, 0.0
    %1405 = vst.msk [vmem:[#allocation2 + $0x358] sm:$0x3] %vm1299, 0.0
    %s1406 = scalar_lea.vmem [#allocation2], 24
    %1407 = vst.msk [vmem:[%s1406 + $0x1] sm:$0xff] %vm110, %v1233
    %1408 = vst.msk [vmem:[%s1406 + $0x9] sm:$0xff] %vm110, %v1234
    %1409 = vst.msk [vmem:[%s1406 + $0x19] sm:$0xff] %vm110, %v1235
    %1410 = vst.msk [vmem:[%s1406 + $0x21] sm:$0xff] %vm110, %v1236
    %1411 = vst.msk [vmem:[%s1406 + $0x31] sm:$0xff] %vm110, %v1237
    %1412 = vst.msk [vmem:[%s1406 + $0x39] sm:$0xff] %vm110, %v1238
    %1413 = vst.msk [vmem:[%s1406 + $0x49] sm:$0xff] %vm110, %v1239
    %1414 = vst.msk [vmem:[%s1406 + $0x51] sm:$0xff] %vm110, %v1240
    %1415 = vst.msk [vmem:[%s1406 + $0x61] sm:$0xff] %vm110, %v1241
    %1416 = vst.msk [vmem:[%s1406 + $0x69] sm:$0xff] %vm110, %v1242
    %1417 = vst.msk [vmem:[%s1406 + $0x79] sm:$0xff] %vm110, %v1243
    %1418 = vst.msk [vmem:[%s1406 + $0x81] sm:$0xff] %vm110, %v1244
    %1419 = vst.msk [vmem:[%s1406 + $0x91] sm:$0xff] %vm110, %v1245
    %1420 = vst.msk [vmem:[%s1406 + $0x99] sm:$0xff] %vm110, %v1246
    %1421 = vst.msk [vmem:[%s1406 + $0xa9] sm:$0xff] %vm110, %v1247
    %1422 = vst.msk [vmem:[%s1406 + $0xb1] sm:$0xff] %vm110, %v1248
    %1423 = vst.msk [vmem:[%s1406 + $0xc1] sm:$0xff] %vm110, %v1249
    %1424 = vst.msk [vmem:[%s1406 + $0xc9] sm:$0xff] %vm110, %v1250
    %1425 = vst.msk [vmem:[%s1406 + $0xd9] sm:$0xff] %vm110, %v1251
    %1426 = vst.msk [vmem:[%s1406 + $0xe1] sm:$0xff] %vm110, %v1252
    %1427 = vst.msk [vmem:[%s1406 + $0xf1] sm:$0xff] %vm110, %v1253
    %1428 = vst.msk [vmem:[%s1406 + $0xf9] sm:$0xff] %vm110, %v1254
    %1429 = vst.msk [vmem:[%s1406 + $0x109] sm:$0xff] %vm110, %v1255
    %1430 = vst.msk [vmem:[%s1406 + $0x111] sm:$0xff] %vm110, %v1256
    %1431 = vst.msk [vmem:[%s1406 + $0x121] sm:$0xff] %vm110, %v1257
    %1432 = vst.msk [vmem:[%s1406 + $0x129] sm:$0xff] %vm110, %v1258
    %1433 = vst.msk [vmem:[%s1406 + $0x139] sm:$0xff] %vm110, %v1259
    %1434 = vst.msk [vmem:[%s1406 + $0x141] sm:$0xff] %vm110, %v1260
    %1435 = vst.msk [vmem:[%s1406 + $0x151] sm:$0xff] %vm110, %v1261
    %1436 = vst.msk [vmem:[%s1406 + $0x159] sm:$0xff] %vm110, %v1262
    %1437 = vst.msk [vmem:[%s1406 + $0x169] sm:$0xff] %vm110, %v1263
    %1438 = vst.msk [vmem:[%s1406 + $0x171] sm:$0xff] %vm110, %v1264
    %1439 = vst.msk [vmem:[%s1406 + $0x1b1] sm:$0xff] %vm110, %v1265
    %1440 = vst.msk [vmem:[%s1406 + $0x1b9] sm:$0xff] %vm110, %v1266
    %1441 = vst.msk [vmem:[%s1406 + $0x1c9] sm:$0xff] %vm110, %v1267
    %1442 = vst.msk [vmem:[%s1406 + $0x1d1] sm:$0xff] %vm110, %v1268
    %1443 = vst.msk [vmem:[%s1406 + $0x1e1] sm:$0xff] %vm110, %v1269
    %1444 = vst.msk [vmem:[%s1406 + $0x1e9] sm:$0xff] %vm110, %v1270
    %1445 = vst.msk [vmem:[%s1406 + $0x1f9] sm:$0xff] %vm110, %v1271
    %1446 = vst.msk [vmem:[%s1406 + $0x201] sm:$0xff] %vm110, %v1272
    %1447 = vst.msk [vmem:[%s1406 + $0x211] sm:$0xff] %vm110, %v1273
    %1448 = vst.msk [vmem:[%s1406 + $0x219] sm:$0xff] %vm110, %v1274
    %1449 = vst.msk [vmem:[%s1406 + $0x229] sm:$0xff] %vm110, %v1275
    %1450 = vst.msk [vmem:[%s1406 + $0x231] sm:$0xff] %vm110, %v1276
    %1451 = vst.msk [vmem:[%s1406 + $0x241] sm:$0xff] %vm110, %v1277
    %1452 = vst.msk [vmem:[%s1406 + $0x249] sm:$0xff] %vm110, %v1278
    %1453 = vst.msk [vmem:[%s1406 + $0x259] sm:$0xff] %vm110, %v1279
    %1454 = vst.msk [vmem:[%s1406 + $0x261] sm:$0xff] %vm110, %v1280
    %1455 = vst.msk [vmem:[%s1406 + $0x271] sm:$0xff] %vm110, %v1281
    %1456 = vst.msk [vmem:[%s1406 + $0x279] sm:$0xff] %vm110, %v1282
    %1457 = vst.msk [vmem:[%s1406 + $0x289] sm:$0xff] %vm110, %v1283
    %1458 = vst.msk [vmem:[%s1406 + $0x291] sm:$0xff] %vm110, %v1284
    %1459 = vst.msk [vmem:[%s1406 + $0x2a1] sm:$0xff] %vm110, %v1285
    %1460 = vst.msk [vmem:[%s1406 + $0x2a9] sm:$0xff] %vm110, %v1286
    %1461 = vst.msk [vmem:[%s1406 + $0x2b9] sm:$0xff] %vm110, %v1287
    %1462 = vst.msk [vmem:[%s1406 + $0x2c1] sm:$0xff] %vm110, %v1288
    %1463 = vst.msk [vmem:[%s1406 + $0x2d1] sm:$0xff] %vm110, %v1289
    %1464 = vst.msk [vmem:[%s1406 + $0x2d9] sm:$0xff] %vm110, %v1290
    %1465 = vst.msk [vmem:[%s1406 + $0x2e9] sm:$0xff] %vm110, %v1291
    %1466 = vst.msk [vmem:[%s1406 + $0x2f1] sm:$0xff] %vm110, %v1292
    %1467 = vst.msk [vmem:[%s1406 + $0x301] sm:$0xff] %vm110, %v1293
    %1468 = vst.msk [vmem:[%s1406 + $0x309] sm:$0xff] %vm110, %v1294
    %1469 = vst.msk [vmem:[%s1406 + $0x319] sm:$0xff] %vm110, %v1295
    %1470 = vst.msk [vmem:[%s1406 + $0x321] sm:$0xff] %vm110, %v1296
    %v1471 = vld [vmem:[#allocation2] sm:$0xff]
    %v1472 = vld [vmem:[#allocation2 + $0x8] sm:$0xff]
    %v1473 = vld [vmem:[#allocation2 + $0x18] sm:$0xff]
    %v1474 = vld [vmem:[#allocation2 + $0x20] sm:$0xff]
    %v1475 = vld [vmem:[#allocation2 + $0x30] sm:$0xff]
    %v1476 = vld [vmem:[#allocation2 + $0x38] sm:$0xff]
    %v1477 = vld [vmem:[#allocation2 + $0x48] sm:$0xff]
    %v1478 = vld [vmem:[#allocation2 + $0x50] sm:$0xff]
    %v1479 = vld [vmem:[#allocation2 + $0x60] sm:$0xff]
    %v1480 = vld [vmem:[#allocation2 + $0x68] sm:$0xff]
    %v1481 = vld [vmem:[#allocation2 + $0x78] sm:$0xff]
    %v1482 = vld [vmem:[#allocation2 + $0x80] sm:$0xff]
    %v1483 = vld [vmem:[#allocation2 + $0x90] sm:$0xff]
    %v1484 = vld [vmem:[#allocation2 + $0x98] sm:$0xff]
    %v1485 = vld [vmem:[#allocation2 + $0xa8] sm:$0xff]
    %v1486 = vld [vmem:[#allocation2 + $0xb0] sm:$0xff]
    %v1487 = vld [vmem:[#allocation2 + $0xc0] sm:$0xff]
    %v1488 = vld [vmem:[#allocation2 + $0xc8] sm:$0xff]
    %v1489 = vld [vmem:[#allocation2 + $0xd8] sm:$0xff]
    %v1490 = vld [vmem:[#allocation2 + $0xe0] sm:$0xff]
    %v1491 = vld [vmem:[#allocation2 + $0xf0] sm:$0xff]
    %v1492 = vld [vmem:[#allocation2 + $0xf8] sm:$0xff]
    %v1493 = vld [vmem:[#allocation2 + $0x108] sm:$0xff]
    %v1494 = vld [vmem:[#allocation2 + $0x110] sm:$0xff]
    %v1495 = vld [vmem:[#allocation2 + $0x120] sm:$0xff]
    %v1496 = vld [vmem:[#allocation2 + $0x128] sm:$0xff]
    %v1497 = vld [vmem:[#allocation2 + $0x138] sm:$0xff]
    %v1498 = vld [vmem:[#allocation2 + $0x140] sm:$0xff]
    %v1499 = vld [vmem:[#allocation2 + $0x150] sm:$0xff]
    %v1500 = vld [vmem:[#allocation2 + $0x158] sm:$0xff]
    %v1501 = vld [vmem:[#allocation2 + $0x168] sm:$0xff]
    %v1502 = vld [vmem:[#allocation2 + $0x170] sm:$0xff]
    %v1503 = vld [vmem:[#allocation2 + $0x1b0] sm:$0xff]
    %v1504 = vld [vmem:[#allocation2 + $0x1b8] sm:$0xff]
    %v1505 = vld [vmem:[#allocation2 + $0x1c8] sm:$0xff]
    %v1506 = vld [vmem:[#allocation2 + $0x1d0] sm:$0xff]
    %v1507 = vld [vmem:[#allocation2 + $0x1e0] sm:$0xff]
    %v1508 = vld [vmem:[#allocation2 + $0x1e8] sm:$0xff]
    %v1509 = vld [vmem:[#allocation2 + $0x1f8] sm:$0xff]
    %v1510 = vld [vmem:[#allocation2 + $0x200] sm:$0xff]
    %v1511 = vld [vmem:[#allocation2 + $0x210] sm:$0xff]
    %v1512 = vld [vmem:[#allocation2 + $0x218] sm:$0xff]
    %v1513 = vld [vmem:[#allocation2 + $0x228] sm:$0xff]
    %v1514 = vld [vmem:[#allocation2 + $0x230] sm:$0xff]
    %v1515 = vld [vmem:[#allocation2 + $0x240] sm:$0xff]
    %v1516 = vld [vmem:[#allocation2 + $0x248] sm:$0xff]
    %v1517 = vld [vmem:[#allocation2 + $0x258] sm:$0xff]
    %v1518 = vld [vmem:[#allocation2 + $0x260] sm:$0xff]
    %v1519 = vld [vmem:[#allocation2 + $0x270] sm:$0xff]
    %v1520 = vld [vmem:[#allocation2 + $0x278] sm:$0xff]
    %v1521 = vld [vmem:[#allocation2 + $0x288] sm:$0xff]
    %v1522 = vld [vmem:[#allocation2 + $0x290] sm:$0xff]
    %v1523 = vld [vmem:[#allocation2 + $0x2a0] sm:$0xff]
    %v1524 = vld [vmem:[#allocation2 + $0x2a8] sm:$0xff]
    %v1525 = vld [vmem:[#allocation2 + $0x2b8] sm:$0xff]
    %v1526 = vld [vmem:[#allocation2 + $0x2c0] sm:$0xff]
    %v1527 = vld [vmem:[#allocation2 + $0x2d0] sm:$0xff]
    %v1528 = vld [vmem:[#allocation2 + $0x2d8] sm:$0xff]
    %v1529 = vld [vmem:[#allocation2 + $0x2e8] sm:$0xff]
    %v1530 = vld [vmem:[#allocation2 + $0x2f0] sm:$0xff]
    %v1531 = vld [vmem:[#allocation2 + $0x300] sm:$0xff]
    %v1532 = vld [vmem:[#allocation2 + $0x308] sm:$0xff]
    %v1533 = vld [vmem:[#allocation2 + $0x318] sm:$0xff]
    %v1534 = vld [vmem:[#allocation2 + $0x320] sm:$0xff]
    %v1535 = vld [vmem:[#allocation2 + $0x1] sm:$0xff]
    %v1536 = vld [vmem:[#allocation2 + $0x9] sm:$0xff]
    %v1537 = vld [vmem:[#allocation2 + $0x19] sm:$0xff]
    %v1538 = vld [vmem:[#allocation2 + $0x21] sm:$0xff]
    %v1539 = vld [vmem:[#allocation2 + $0x31] sm:$0xff]
    %v1540 = vld [vmem:[#allocation2 + $0x39] sm:$0xff]
    %v1541 = vld [vmem:[#allocation2 + $0x49] sm:$0xff]
    %v1542 = vld [vmem:[#allocation2 + $0x51] sm:$0xff]
    %v1543 = vld [vmem:[#allocation2 + $0x61] sm:$0xff]
    %v1544 = vld [vmem:[#allocation2 + $0x69] sm:$0xff]
    %v1545 = vld [vmem:[#allocation2 + $0x79] sm:$0xff]
    %v1546 = vld [vmem:[#allocation2 + $0x81] sm:$0xff]
    %v1547 = vld [vmem:[#allocation2 + $0x91] sm:$0xff]
    %v1548 = vld [vmem:[#allocation2 + $0x99] sm:$0xff]
    %v1549 = vld [vmem:[#allocation2 + $0xa9] sm:$0xff]
    %v1550 = vld [vmem:[#allocation2 + $0xb1] sm:$0xff]
    %v1551 = vld [vmem:[#allocation2 + $0xc1] sm:$0xff]
    %v1552 = vld [vmem:[#allocation2 + $0xc9] sm:$0xff]
    %v1553 = vld [vmem:[#allocation2 + $0xd9] sm:$0xff]
    %v1554 = vld [vmem:[#allocation2 + $0xe1] sm:$0xff]
    %v1555 = vld [vmem:[#allocation2 + $0xf1] sm:$0xff]
    %v1556 = vld [vmem:[#allocation2 + $0xf9] sm:$0xff]
    %v1557 = vld [vmem:[#allocation2 + $0x109] sm:$0xff]
    %v1558 = vld [vmem:[#allocation2 + $0x111] sm:$0xff]
    %v1559 = vld [vmem:[#allocation2 + $0x121] sm:$0xff]
    %v1560 = vld [vmem:[#allocation2 + $0x129] sm:$0xff]
    %v1561 = vld [vmem:[#allocation2 + $0x139] sm:$0xff]
    %v1562 = vld [vmem:[#allocation2 + $0x141] sm:$0xff]
    %v1563 = vld [vmem:[#allocation2 + $0x151] sm:$0xff]
    %v1564 = vld [vmem:[#allocation2 + $0x159] sm:$0xff]
    %v1565 = vld [vmem:[#allocation2 + $0x169] sm:$0xff]
    %v1566 = vld [vmem:[#allocation2 + $0x171] sm:$0xff]
    %v1567 = vld [vmem:[#allocation2 + $0x1b1] sm:$0xff]
    %v1568 = vld [vmem:[#allocation2 + $0x1b9] sm:$0xff]
    %v1569 = vld [vmem:[#allocation2 + $0x1c9] sm:$0xff]
    %v1570 = vld [vmem:[#allocation2 + $0x1d1] sm:$0xff]
    %v1571 = vld [vmem:[#allocation2 + $0x1e1] sm:$0xff]
    %v1572 = vld [vmem:[#allocation2 + $0x1e9] sm:$0xff]
    %v1573 = vld [vmem:[#allocation2 + $0x1f9] sm:$0xff]
    %v1574 = vld [vmem:[#allocation2 + $0x201] sm:$0xff]
    %v1575 = vld [vmem:[#allocation2 + $0x211] sm:$0xff]
    %v1576 = vld [vmem:[#allocation2 + $0x219] sm:$0xff]
    %v1577 = vld [vmem:[#allocation2 + $0x229] sm:$0xff]
    %v1578 = vld [vmem:[#allocation2 + $0x231] sm:$0xff]
    %v1579 = vld [vmem:[#allocation2 + $0x241] sm:$0xff]
    %v1580 = vld [vmem:[#allocation2 + $0x249] sm:$0xff]
    %v1581 = vld [vmem:[#allocation2 + $0x259] sm:$0xff]
    %v1582 = vld [vmem:[#allocation2 + $0x261] sm:$0xff]
    %v1583 = vld [vmem:[#allocation2 + $0x271] sm:$0xff]
    %v1584 = vld [vmem:[#allocation2 + $0x279] sm:$0xff]
    %v1585 = vld [vmem:[#allocation2 + $0x289] sm:$0xff]
    %v1586 = vld [vmem:[#allocation2 + $0x291] sm:$0xff]
    %v1587 = vld [vmem:[#allocation2 + $0x2a1] sm:$0xff]
    %v1588 = vld [vmem:[#allocation2 + $0x2a9] sm:$0xff]
    %v1589 = vld [vmem:[#allocation2 + $0x2b9] sm:$0xff]
    %v1590 = vld [vmem:[#allocation2 + $0x2c1] sm:$0xff]
    %v1591 = vld [vmem:[#allocation2 + $0x2d1] sm:$0xff]
    %v1592 = vld [vmem:[#allocation2 + $0x2d9] sm:$0xff]
    %v1593 = vld [vmem:[#allocation2 + $0x2e9] sm:$0xff]
    %v1594 = vld [vmem:[#allocation2 + $0x2f1] sm:$0xff]
    %v1595 = vld [vmem:[#allocation2 + $0x301] sm:$0xff]
    %v1596 = vld [vmem:[#allocation2 + $0x309] sm:$0xff]
    %v1597 = vld [vmem:[#allocation2 + $0x319] sm:$0xff]
    %v1598 = vld [vmem:[#allocation2 + $0x321] sm:$0xff]
    %v1599 = vld [vmem:[#allocation2 + $0x2] sm:$0xff]
    %v1600 = vld [vmem:[#allocation2 + $0xa] sm:$0xff]
    %v1601 = vld [vmem:[#allocation2 + $0x1a] sm:$0xff]
    %v1602 = vld [vmem:[#allocation2 + $0x22] sm:$0xff]
    %v1603 = vld [vmem:[#allocation2 + $0x32] sm:$0xff]
    %v1604 = vld [vmem:[#allocation2 + $0x3a] sm:$0xff]
    %v1605 = vld [vmem:[#allocation2 + $0x4a] sm:$0xff]
    %v1606 = vld [vmem:[#allocation2 + $0x52] sm:$0xff]
    %v1607 = vld [vmem:[#allocation2 + $0x62] sm:$0xff]
    %v1608 = vld [vmem:[#allocation2 + $0x6a] sm:$0xff]
    %v1609 = vld [vmem:[#allocation2 + $0x7a] sm:$0xff]
    %v1610 = vld [vmem:[#allocation2 + $0x82] sm:$0xff]
    %v1611 = vld [vmem:[#allocation2 + $0x92] sm:$0xff]
    %v1612 = vld [vmem:[#allocation2 + $0x9a] sm:$0xff]
    %v1613 = vld [vmem:[#allocation2 + $0xaa] sm:$0xff]
    %v1614 = vld [vmem:[#allocation2 + $0xb2] sm:$0xff]
    %v1615 = vld [vmem:[#allocation2 + $0xc2] sm:$0xff]
    %v1616 = vld [vmem:[#allocation2 + $0xca] sm:$0xff]
    %v1617 = vld [vmem:[#allocation2 + $0xda] sm:$0xff]
    %v1618 = vld [vmem:[#allocation2 + $0xe2] sm:$0xff]
    %v1619 = vld [vmem:[#allocation2 + $0xf2] sm:$0xff]
    %v1620 = vld [vmem:[#allocation2 + $0xfa] sm:$0xff]
    %v1621 = vld [vmem:[#allocation2 + $0x10a] sm:$0xff]
    %v1622 = vld [vmem:[#allocation2 + $0x112] sm:$0xff]
    %v1623 = vld [vmem:[#allocation2 + $0x122] sm:$0xff]
    %v1624 = vld [vmem:[#allocation2 + $0x12a] sm:$0xff]
    %v1625 = vld [vmem:[#allocation2 + $0x13a] sm:$0xff]
    %v1626 = vld [vmem:[#allocation2 + $0x142] sm:$0xff]
    %v1627 = vld [vmem:[#allocation2 + $0x152] sm:$0xff]
    %v1628 = vld [vmem:[#allocation2 + $0x15a] sm:$0xff]
    %v1629 = vld [vmem:[#allocation2 + $0x16a] sm:$0xff]
    %v1630 = vld [vmem:[#allocation2 + $0x172] sm:$0xff]
    %v1631 = vld [vmem:[#allocation2 + $0x1b2] sm:$0xff]
    %v1632 = vld [vmem:[#allocation2 + $0x1ba] sm:$0xff]
    %v1633 = vld [vmem:[#allocation2 + $0x1ca] sm:$0xff]
    %v1634 = vld [vmem:[#allocation2 + $0x1d2] sm:$0xff]
    %v1635 = vld [vmem:[#allocation2 + $0x1e2] sm:$0xff]
    %v1636 = vld [vmem:[#allocation2 + $0x1ea] sm:$0xff]
    %v1637 = vld [vmem:[#allocation2 + $0x1fa] sm:$0xff]
    %v1638 = vld [vmem:[#allocation2 + $0x202] sm:$0xff]
    %v1639 = vld [vmem:[#allocation2 + $0x212] sm:$0xff]
    %v1640 = vld [vmem:[#allocation2 + $0x21a] sm:$0xff]
    %v1641 = vld [vmem:[#allocation2 + $0x22a] sm:$0xff]
    %v1642 = vld [vmem:[#allocation2 + $0x232] sm:$0xff]
    %v1643 = vld [vmem:[#allocation2 + $0x242] sm:$0xff]
    %v1644 = vld [vmem:[#allocation2 + $0x24a] sm:$0xff]
    %v1645 = vld [vmem:[#allocation2 + $0x25a] sm:$0xff]
    %v1646 = vld [vmem:[#allocation2 + $0x262] sm:$0xff]
    %v1647 = vld [vmem:[#allocation2 + $0x272] sm:$0xff]
    %v1648 = vld [vmem:[#allocation2 + $0x27a] sm:$0xff]
    %v1649 = vld [vmem:[#allocation2 + $0x28a] sm:$0xff]
    %v1650 = vld [vmem:[#allocation2 + $0x292] sm:$0xff]
    %v1651 = vld [vmem:[#allocation2 + $0x2a2] sm:$0xff]
    %v1652 = vld [vmem:[#allocation2 + $0x2aa] sm:$0xff]
    %v1653 = vld [vmem:[#allocation2 + $0x2ba] sm:$0xff]
    %v1654 = vld [vmem:[#allocation2 + $0x2c2] sm:$0xff]
    %v1655 = vld [vmem:[#allocation2 + $0x2d2] sm:$0xff]
    %v1656 = vld [vmem:[#allocation2 + $0x2da] sm:$0xff]
    %v1657 = vld [vmem:[#allocation2 + $0x2ea] sm:$0xff]
    %v1658 = vld [vmem:[#allocation2 + $0x2f2] sm:$0xff]
    %v1659 = vld [vmem:[#allocation2 + $0x302] sm:$0xff]
    %v1660 = vld [vmem:[#allocation2 + $0x30a] sm:$0xff]
    %v1661 = vld [vmem:[#allocation2 + $0x31a] sm:$0xff]
    %v1662 = vld [vmem:[#allocation2 + $0x322] sm:$0xff]
    %v1663 = vld [vmem:[%s1406] sm:$0xff]
    %v1664 = vld [vmem:[%s1406 + $0x8] sm:$0xff]
    %v1665 = vld [vmem:[%s1406 + $0x18] sm:$0xff]
    %v1666 = vld [vmem:[%s1406 + $0x20] sm:$0xff]
    %v1667 = vld [vmem:[%s1406 + $0x30] sm:$0xff]
    %v1668 = vld [vmem:[%s1406 + $0x38] sm:$0xff]
    %v1669 = vld [vmem:[%s1406 + $0x48] sm:$0xff]
    %v1670 = vld [vmem:[%s1406 + $0x50] sm:$0xff]
    %v1671 = vld [vmem:[%s1406 + $0x60] sm:$0xff]
    %v1672 = vld [vmem:[%s1406 + $0x68] sm:$0xff]
    %v1673 = vld [vmem:[%s1406 + $0x78] sm:$0xff]
    %v1674 = vld [vmem:[%s1406 + $0x80] sm:$0xff]
    %v1675 = vld [vmem:[%s1406 + $0x90] sm:$0xff]
    %v1676 = vld [vmem:[%s1406 + $0x98] sm:$0xff]
    %v1677 = vld [vmem:[%s1406 + $0xa8] sm:$0xff]
    %v1678 = vld [vmem:[%s1406 + $0xb0] sm:$0xff]
    %v1679 = vld [vmem:[%s1406 + $0xc0] sm:$0xff]
    %v1680 = vld [vmem:[%s1406 + $0xc8] sm:$0xff]
    %v1681 = vld [vmem:[%s1406 + $0xd8] sm:$0xff]
    %v1682 = vld [vmem:[%s1406 + $0xe0] sm:$0xff]
    %v1683 = vld [vmem:[%s1406 + $0xf0] sm:$0xff]
    %v1684 = vld [vmem:[%s1406 + $0xf8] sm:$0xff]
    %v1685 = vld [vmem:[%s1406 + $0x108] sm:$0xff]
    %v1686 = vld [vmem:[%s1406 + $0x110] sm:$0xff]
    %v1687 = vld [vmem:[%s1406 + $0x120] sm:$0xff]
    %v1688 = vld [vmem:[%s1406 + $0x128] sm:$0xff]
    %v1689 = vld [vmem:[%s1406 + $0x138] sm:$0xff]
    %v1690 = vld [vmem:[%s1406 + $0x140] sm:$0xff]
    %v1691 = vld [vmem:[%s1406 + $0x150] sm:$0xff]
    %v1692 = vld [vmem:[%s1406 + $0x158] sm:$0xff]
    %v1693 = vld [vmem:[%s1406 + $0x168] sm:$0xff]
    %v1694 = vld [vmem:[%s1406 + $0x170] sm:$0xff]
    %v1695 = vld [vmem:[%s1406 + $0x1b0] sm:$0xff]
    %v1696 = vld [vmem:[%s1406 + $0x1b8] sm:$0xff]
    %v1697 = vld [vmem:[%s1406 + $0x1c8] sm:$0xff]
    %v1698 = vld [vmem:[%s1406 + $0x1d0] sm:$0xff]
    %v1699 = vld [vmem:[%s1406 + $0x1e0] sm:$0xff]
    %v1700 = vld [vmem:[%s1406 + $0x1e8] sm:$0xff]
    %v1701 = vld [vmem:[%s1406 + $0x1f8] sm:$0xff]
    %v1702 = vld [vmem:[%s1406 + $0x200] sm:$0xff]
    %v1703 = vld [vmem:[%s1406 + $0x210] sm:$0xff]
    %v1704 = vld [vmem:[%s1406 + $0x218] sm:$0xff]
    %v1705 = vld [vmem:[%s1406 + $0x228] sm:$0xff]
    %v1706 = vld [vmem:[%s1406 + $0x230] sm:$0xff]
    %v1707 = vld [vmem:[%s1406 + $0x240] sm:$0xff]
    %v1708 = vld [vmem:[%s1406 + $0x248] sm:$0xff]
    %v1709 = vld [vmem:[%s1406 + $0x258] sm:$0xff]
    %v1710 = vld [vmem:[%s1406 + $0x260] sm:$0xff]
    %v1711 = vld [vmem:[%s1406 + $0x270] sm:$0xff]
    %v1712 = vld [vmem:[%s1406 + $0x278] sm:$0xff]
    %v1713 = vld [vmem:[%s1406 + $0x288] sm:$0xff]
    %v1714 = vld [vmem:[%s1406 + $0x290] sm:$0xff]
    %v1715 = vld [vmem:[%s1406 + $0x2a0] sm:$0xff]
    %v1716 = vld [vmem:[%s1406 + $0x2a8] sm:$0xff]
    %v1717 = vld [vmem:[%s1406 + $0x2b8] sm:$0xff]
    %v1718 = vld [vmem:[%s1406 + $0x2c0] sm:$0xff]
    %v1719 = vld [vmem:[%s1406 + $0x2d0] sm:$0xff]
    %v1720 = vld [vmem:[%s1406 + $0x2d8] sm:$0xff]
    %v1721 = vld [vmem:[%s1406 + $0x2e8] sm:$0xff]
    %v1722 = vld [vmem:[%s1406 + $0x2f0] sm:$0xff]
    %v1723 = vld [vmem:[%s1406 + $0x300] sm:$0xff]
    %v1724 = vld [vmem:[%s1406 + $0x308] sm:$0xff]
    %v1725 = vld [vmem:[%s1406 + $0x318] sm:$0xff]
    %v1726 = vld [vmem:[%s1406 + $0x320] sm:$0xff]
    %v1727 = vld [vmem:[%s1406 + $0x1] sm:$0xff]
    %v1728 = vld [vmem:[%s1406 + $0x9] sm:$0xff]
    %v1729 = vld [vmem:[%s1406 + $0x19] sm:$0xff]
    %v1730 = vld [vmem:[%s1406 + $0x21] sm:$0xff]
    %v1731 = vld [vmem:[%s1406 + $0x31] sm:$0xff]
    %v1732 = vld [vmem:[%s1406 + $0x39] sm:$0xff]
    %v1733 = vld [vmem:[%s1406 + $0x49] sm:$0xff]
    %v1734 = vld [vmem:[%s1406 + $0x51] sm:$0xff]
    %v1735 = vld [vmem:[%s1406 + $0x61] sm:$0xff]
    %v1736 = vld [vmem:[%s1406 + $0x69] sm:$0xff]
    %v1737 = vld [vmem:[%s1406 + $0x79] sm:$0xff]
    %v1738 = vld [vmem:[%s1406 + $0x81] sm:$0xff]
    %v1739 = vld [vmem:[%s1406 + $0x91] sm:$0xff]
    %v1740 = vld [vmem:[%s1406 + $0x99] sm:$0xff]
    %v1741 = vld [vmem:[%s1406 + $0xa9] sm:$0xff]
    %v1742 = vld [vmem:[%s1406 + $0xb1] sm:$0xff]
    %v1743 = vld [vmem:[%s1406 + $0xc1] sm:$0xff]
    %v1744 = vld [vmem:[%s1406 + $0xc9] sm:$0xff]
    %v1745 = vld [vmem:[%s1406 + $0xd9] sm:$0xff]
    %v1746 = vld [vmem:[%s1406 + $0xe1] sm:$0xff]
    %v1747 = vld [vmem:[%s1406 + $0xf1] sm:$0xff]
    %v1748 = vld [vmem:[%s1406 + $0xf9] sm:$0xff]
    %v1749 = vld [vmem:[%s1406 + $0x109] sm:$0xff]
    %v1750 = vld [vmem:[%s1406 + $0x111] sm:$0xff]
    %v1751 = vld [vmem:[%s1406 + $0x121] sm:$0xff]
    %v1752 = vld [vmem:[%s1406 + $0x129] sm:$0xff]
    %v1753 = vld [vmem:[%s1406 + $0x139] sm:$0xff]
    %v1754 = vld [vmem:[%s1406 + $0x141] sm:$0xff]
    %v1755 = vld [vmem:[%s1406 + $0x151] sm:$0xff]
    %v1756 = vld [vmem:[%s1406 + $0x159] sm:$0xff]
    %v1757 = vld [vmem:[%s1406 + $0x169] sm:$0xff]
    %v1758 = vld [vmem:[%s1406 + $0x171] sm:$0xff]
    %v1759 = vld [vmem:[%s1406 + $0x1b1] sm:$0xff]
    %v1760 = vld [vmem:[%s1406 + $0x1b9] sm:$0xff]
    %v1761 = vld [vmem:[%s1406 + $0x1c9] sm:$0xff]
    %v1762 = vld [vmem:[%s1406 + $0x1d1] sm:$0xff]
    %v1763 = vld [vmem:[%s1406 + $0x1e1] sm:$0xff]
    %v1764 = vld [vmem:[%s1406 + $0x1e9] sm:$0xff]
    %v1765 = vld [vmem:[%s1406 + $0x1f9] sm:$0xff]
    %v1766 = vld [vmem:[%s1406 + $0x201] sm:$0xff]
    %v1767 = vld [vmem:[%s1406 + $0x211] sm:$0xff]
    %v1768 = vld [vmem:[%s1406 + $0x219] sm:$0xff]
    %v1769 = vld [vmem:[%s1406 + $0x229] sm:$0xff]
    %v1770 = vld [vmem:[%s1406 + $0x231] sm:$0xff]
    %v1771 = vld [vmem:[%s1406 + $0x241] sm:$0xff]
    %v1772 = vld [vmem:[%s1406 + $0x249] sm:$0xff]
    %v1773 = vld [vmem:[%s1406 + $0x259] sm:$0xff]
    %v1774 = vld [vmem:[%s1406 + $0x261] sm:$0xff]
    %v1775 = vld [vmem:[%s1406 + $0x271] sm:$0xff]
    %v1776 = vld [vmem:[%s1406 + $0x279] sm:$0xff]
    %v1777 = vld [vmem:[%s1406 + $0x289] sm:$0xff]
    %v1778 = vld [vmem:[%s1406 + $0x291] sm:$0xff]
    %v1779 = vld [vmem:[%s1406 + $0x2a1] sm:$0xff]
    %v1780 = vld [vmem:[%s1406 + $0x2a9] sm:$0xff]
    %v1781 = vld [vmem:[%s1406 + $0x2b9] sm:$0xff]
    %v1782 = vld [vmem:[%s1406 + $0x2c1] sm:$0xff]
    %v1783 = vld [vmem:[%s1406 + $0x2d1] sm:$0xff]
    %v1784 = vld [vmem:[%s1406 + $0x2d9] sm:$0xff]
    %v1785 = vld [vmem:[%s1406 + $0x2e9] sm:$0xff]
    %v1786 = vld [vmem:[%s1406 + $0x2f1] sm:$0xff]
    %v1787 = vld [vmem:[%s1406 + $0x301] sm:$0xff]
    %v1788 = vld [vmem:[%s1406 + $0x309] sm:$0xff]
    %v1789 = vld [vmem:[%s1406 + $0x319] sm:$0xff]
    %v1790 = vld [vmem:[%s1406 + $0x321] sm:$0xff]
    %v1791 = vld [vmem:[%s1406 + $0x2] sm:$0xff]
    %v1792 = vld [vmem:[%s1406 + $0xa] sm:$0xff]
    %v1793 = vld [vmem:[%s1406 + $0x1a] sm:$0xff]
    %v1794 = vld [vmem:[%s1406 + $0x22] sm:$0xff]
    %v1795 = vld [vmem:[%s1406 + $0x32] sm:$0xff]
    %v1796 = vld [vmem:[%s1406 + $0x3a] sm:$0xff]
    %v1797 = vld [vmem:[%s1406 + $0x4a] sm:$0xff]
    %v1798 = vld [vmem:[%s1406 + $0x52] sm:$0xff]
    %v1799 = vld [vmem:[%s1406 + $0x62] sm:$0xff]
    %v1800 = vld [vmem:[%s1406 + $0x6a] sm:$0xff]
    %v1801 = vld [vmem:[%s1406 + $0x7a] sm:$0xff]
    %v1802 = vld [vmem:[%s1406 + $0x82] sm:$0xff]
    %v1803 = vld [vmem:[%s1406 + $0x92] sm:$0xff]
    %v1804 = vld [vmem:[%s1406 + $0x9a] sm:$0xff]
    %v1805 = vld [vmem:[%s1406 + $0xaa] sm:$0xff]
    %v1806 = vld [vmem:[%s1406 + $0xb2] sm:$0xff]
    %v1807 = vld [vmem:[%s1406 + $0xc2] sm:$0xff]
    %v1808 = vld [vmem:[%s1406 + $0xca] sm:$0xff]
    %v1809 = vld [vmem:[%s1406 + $0xda] sm:$0xff]
    %v1810 = vld [vmem:[%s1406 + $0xe2] sm:$0xff]
    %v1811 = vld [vmem:[%s1406 + $0xf2] sm:$0xff]
    %v1812 = vld [vmem:[%s1406 + $0xfa] sm:$0xff]
    %v1813 = vld [vmem:[%s1406 + $0x10a] sm:$0xff]
    %v1814 = vld [vmem:[%s1406 + $0x112] sm:$0xff]
    %v1815 = vld [vmem:[%s1406 + $0x122] sm:$0xff]
    %v1816 = vld [vmem:[%s1406 + $0x12a] sm:$0xff]
    %v1817 = vld [vmem:[%s1406 + $0x13a] sm:$0xff]
    %v1818 = vld [vmem:[%s1406 + $0x142] sm:$0xff]
    %v1819 = vld [vmem:[%s1406 + $0x152] sm:$0xff]
    %v1820 = vld [vmem:[%s1406 + $0x15a] sm:$0xff]
    %v1821 = vld [vmem:[%s1406 + $0x16a] sm:$0xff]
    %v1822 = vld [vmem:[%s1406 + $0x172] sm:$0xff]
    %v1823 = vld [vmem:[%s1406 + $0x1b2] sm:$0xff]
    %v1824 = vld [vmem:[%s1406 + $0x1ba] sm:$0xff]
    %v1825 = vld [vmem:[%s1406 + $0x1ca] sm:$0xff]
    %v1826 = vld [vmem:[%s1406 + $0x1d2] sm:$0xff]
    %v1827 = vld [vmem:[%s1406 + $0x1e2] sm:$0xff]
    %v1828 = vld [vmem:[%s1406 + $0x1ea] sm:$0xff]
    %v1829 = vld [vmem:[%s1406 + $0x1fa] sm:$0xff]
    %v1830 = vld [vmem:[%s1406 + $0x202] sm:$0xff]
    %v1831 = vld [vmem:[%s1406 + $0x212] sm:$0xff]
    %v1832 = vld [vmem:[%s1406 + $0x21a] sm:$0xff]
    %v1833 = vld [vmem:[%s1406 + $0x22a] sm:$0xff]
    %v1834 = vld [vmem:[%s1406 + $0x232] sm:$0xff]
    %v1835 = vld [vmem:[%s1406 + $0x242] sm:$0xff]
    %v1836 = vld [vmem:[%s1406 + $0x24a] sm:$0xff]
    %v1837 = vld [vmem:[%s1406 + $0x25a] sm:$0xff]
    %v1838 = vld [vmem:[%s1406 + $0x262] sm:$0xff]
    %v1839 = vld [vmem:[%s1406 + $0x272] sm:$0xff]
    %v1840 = vld [vmem:[%s1406 + $0x27a] sm:$0xff]
    %v1841 = vld [vmem:[%s1406 + $0x28a] sm:$0xff]
    %v1842 = vld [vmem:[%s1406 + $0x292] sm:$0xff]
    %v1843 = vld [vmem:[%s1406 + $0x2a2] sm:$0xff]
    %v1844 = vld [vmem:[%s1406 + $0x2aa] sm:$0xff]
    %v1845 = vld [vmem:[%s1406 + $0x2ba] sm:$0xff]
    %v1846 = vld [vmem:[%s1406 + $0x2c2] sm:$0xff]
    %v1847 = vld [vmem:[%s1406 + $0x2d2] sm:$0xff]
    %v1848 = vld [vmem:[%s1406 + $0x2da] sm:$0xff]
    %v1849 = vld [vmem:[%s1406 + $0x2ea] sm:$0xff]
    %v1850 = vld [vmem:[%s1406 + $0x2f2] sm:$0xff]
    %v1851 = vld [vmem:[%s1406 + $0x302] sm:$0xff]
    %v1852 = vld [vmem:[%s1406 + $0x30a] sm:$0xff]
    %v1853 = vld [vmem:[%s1406 + $0x31a] sm:$0xff]
    %v1854 = vld [vmem:[%s1406 + $0x322] sm:$0xff]
    %s1855 = scalar_lea.vmem [#allocation2], 48
    %v1856 = vld [vmem:[%s1855] sm:$0xff]
    %v1857 = vld [vmem:[%s1855 + $0x8] sm:$0xff]
    %v1858 = vld [vmem:[%s1855 + $0x18] sm:$0xff]
    %v1859 = vld [vmem:[%s1855 + $0x20] sm:$0xff]
    %v1860 = vld [vmem:[%s1855 + $0x30] sm:$0xff]
    %v1861 = vld [vmem:[%s1855 + $0x38] sm:$0xff]
    %v1862 = vld [vmem:[%s1855 + $0x48] sm:$0xff]
    %v1863 = vld [vmem:[%s1855 + $0x50] sm:$0xff]
    %v1864 = vld [vmem:[%s1855 + $0x60] sm:$0xff]
    %v1865 = vld [vmem:[%s1855 + $0x68] sm:$0xff]
    %v1866 = vld [vmem:[%s1855 + $0x78] sm:$0xff]
    %v1867 = vld [vmem:[%s1855 + $0x80] sm:$0xff]
    %v1868 = vld [vmem:[%s1855 + $0x90] sm:$0xff]
    %v1869 = vld [vmem:[%s1855 + $0x98] sm:$0xff]
    %v1870 = vld [vmem:[%s1855 + $0xa8] sm:$0xff]
    %v1871 = vld [vmem:[%s1855 + $0xb0] sm:$0xff]
    %v1872 = vld [vmem:[%s1855 + $0xc0] sm:$0xff]
    %v1873 = vld [vmem:[%s1855 + $0xc8] sm:$0xff]
    %v1874 = vld [vmem:[%s1855 + $0xd8] sm:$0xff]
    %v1875 = vld [vmem:[%s1855 + $0xe0] sm:$0xff]
    %v1876 = vld [vmem:[%s1855 + $0xf0] sm:$0xff]
    %v1877 = vld [vmem:[%s1855 + $0xf8] sm:$0xff]
    %v1878 = vld [vmem:[%s1855 + $0x108] sm:$0xff]
    %v1879 = vld [vmem:[%s1855 + $0x110] sm:$0xff]
    %v1880 = vld [vmem:[%s1855 + $0x120] sm:$0xff]
    %v1881 = vld [vmem:[%s1855 + $0x128] sm:$0xff]
    %v1882 = vld [vmem:[%s1855 + $0x138] sm:$0xff]
    %v1883 = vld [vmem:[%s1855 + $0x140] sm:$0xff]
    %v1884 = vld [vmem:[%s1855 + $0x150] sm:$0xff]
    %v1885 = vld [vmem:[%s1855 + $0x158] sm:$0xff]
    %v1886 = vld [vmem:[%s1855 + $0x168] sm:$0xff]
    %v1887 = vld [vmem:[%s1855 + $0x170] sm:$0xff]
    %v1888 = vld [vmem:[%s1855 + $0x1b0] sm:$0xff]
    %v1889 = vld [vmem:[%s1855 + $0x1b8] sm:$0xff]
    %v1890 = vld [vmem:[%s1855 + $0x1c8] sm:$0xff]
    %v1891 = vld [vmem:[%s1855 + $0x1d0] sm:$0xff]
    %v1892 = vld [vmem:[%s1855 + $0x1e0] sm:$0xff]
    %v1893 = vld [vmem:[%s1855 + $0x1e8] sm:$0xff]
    %v1894 = vld [vmem:[%s1855 + $0x1f8] sm:$0xff]
    %v1895 = vld [vmem:[%s1855 + $0x200] sm:$0xff]
    %v1896 = vld [vmem:[%s1855 + $0x210] sm:$0xff]
    %v1897 = vld [vmem:[%s1855 + $0x218] sm:$0xff]
    %v1898 = vld [vmem:[%s1855 + $0x228] sm:$0xff]
    %v1899 = vld [vmem:[%s1855 + $0x230] sm:$0xff]
    %v1900 = vld [vmem:[%s1855 + $0x240] sm:$0xff]
    %v1901 = vld [vmem:[%s1855 + $0x248] sm:$0xff]
    %v1902 = vld [vmem:[%s1855 + $0x258] sm:$0xff]
    %v1903 = vld [vmem:[%s1855 + $0x260] sm:$0xff]
    %v1904 = vld [vmem:[%s1855 + $0x270] sm:$0xff]
    %v1905 = vld [vmem:[%s1855 + $0x278] sm:$0xff]
    %v1906 = vld [vmem:[%s1855 + $0x288] sm:$0xff]
    %v1907 = vld [vmem:[%s1855 + $0x290] sm:$0xff]
    %v1908 = vld [vmem:[%s1855 + $0x2a0] sm:$0xff]
    %v1909 = vld [vmem:[%s1855 + $0x2a8] sm:$0xff]
    %v1910 = vld [vmem:[%s1855 + $0x2b8] sm:$0xff]
    %v1911 = vld [vmem:[%s1855 + $0x2c0] sm:$0xff]
    %v1912 = vld [vmem:[%s1855 + $0x2d0] sm:$0xff]
    %v1913 = vld [vmem:[%s1855 + $0x2d8] sm:$0xff]
    %v1914 = vld [vmem:[%s1855 + $0x2e8] sm:$0xff]
    %v1915 = vld [vmem:[%s1855 + $0x2f0] sm:$0xff]
    %v1916 = vld [vmem:[%s1855 + $0x300] sm:$0xff]
    %v1917 = vld [vmem:[%s1855 + $0x308] sm:$0xff]
    %v1918 = vld [vmem:[%s1855 + $0x318] sm:$0xff]
    %v1919 = vld [vmem:[%s1855 + $0x320] sm:$0xff]
    %v1920 = vld [vmem:[%s1855 + $0x1] sm:$0xff]
    %v1921 = vld [vmem:[%s1855 + $0x9] sm:$0xff]
    %v1922 = vld [vmem:[%s1855 + $0x19] sm:$0xff]
    %v1923 = vld [vmem:[%s1855 + $0x21] sm:$0xff]
    %v1924 = vld [vmem:[%s1855 + $0x31] sm:$0xff]
    %v1925 = vld [vmem:[%s1855 + $0x39] sm:$0xff]
    %v1926 = vld [vmem:[%s1855 + $0x49] sm:$0xff]
    %v1927 = vld [vmem:[%s1855 + $0x51] sm:$0xff]
    %v1928 = vld [vmem:[%s1855 + $0x61] sm:$0xff]
    %v1929 = vld [vmem:[%s1855 + $0x69] sm:$0xff]
    %v1930 = vld [vmem:[%s1855 + $0x79] sm:$0xff]
    %v1931 = vld [vmem:[%s1855 + $0x81] sm:$0xff]
    %v1932 = vld [vmem:[%s1855 + $0x91] sm:$0xff]
    %v1933 = vld [vmem:[%s1855 + $0x99] sm:$0xff]
    %v1934 = vld [vmem:[%s1855 + $0xa9] sm:$0xff]
    %v1935 = vld [vmem:[%s1855 + $0xb1] sm:$0xff]
    %v1936 = vld [vmem:[%s1855 + $0xc1] sm:$0xff]
    %v1937 = vld [vmem:[%s1855 + $0xc9] sm:$0xff]
    %v1938 = vld [vmem:[%s1855 + $0xd9] sm:$0xff]
    %v1939 = vld [vmem:[%s1855 + $0xe1] sm:$0xff]
    %v1940 = vld [vmem:[%s1855 + $0xf1] sm:$0xff]
    %v1941 = vld [vmem:[%s1855 + $0xf9] sm:$0xff]
    %v1942 = vld [vmem:[%s1855 + $0x109] sm:$0xff]
    %v1943 = vld [vmem:[%s1855 + $0x111] sm:$0xff]
    %v1944 = vld [vmem:[%s1855 + $0x121] sm:$0xff]
    %v1945 = vld [vmem:[%s1855 + $0x129] sm:$0xff]
    %v1946 = vld [vmem:[%s1855 + $0x139] sm:$0xff]
    %v1947 = vld [vmem:[%s1855 + $0x141] sm:$0xff]
    %v1948 = vld [vmem:[%s1855 + $0x151] sm:$0xff]
    %v1949 = vld [vmem:[%s1855 + $0x159] sm:$0xff]
    %v1950 = vld [vmem:[%s1855 + $0x169] sm:$0xff]
    %v1951 = vld [vmem:[%s1855 + $0x171] sm:$0xff]
    %v1952 = vld [vmem:[%s1855 + $0x1b1] sm:$0xff]
    %v1953 = vld [vmem:[%s1855 + $0x1b9] sm:$0xff]
    %v1954 = vld [vmem:[%s1855 + $0x1c9] sm:$0xff]
    %v1955 = vld [vmem:[%s1855 + $0x1d1] sm:$0xff]
    %v1956 = vld [vmem:[%s1855 + $0x1e1] sm:$0xff]
    %v1957 = vld [vmem:[%s1855 + $0x1e9] sm:$0xff]
    %v1958 = vld [vmem:[%s1855 + $0x1f9] sm:$0xff]
    %v1959 = vld [vmem:[%s1855 + $0x201] sm:$0xff]
    %v1960 = vld [vmem:[%s1855 + $0x211] sm:$0xff]
    %v1961 = vld [vmem:[%s1855 + $0x219] sm:$0xff]
    %v1962 = vld [vmem:[%s1855 + $0x229] sm:$0xff]
    %v1963 = vld [vmem:[%s1855 + $0x231] sm:$0xff]
    %v1964 = vld [vmem:[%s1855 + $0x241] sm:$0xff]
    %v1965 = vld [vmem:[%s1855 + $0x249] sm:$0xff]
    %v1966 = vld [vmem:[%s1855 + $0x259] sm:$0xff]
    %v1967 = vld [vmem:[%s1855 + $0x261] sm:$0xff]
    %v1968 = vld [vmem:[%s1855 + $0x271] sm:$0xff]
    %v1969 = vld [vmem:[%s1855 + $0x279] sm:$0xff]
    %v1970 = vld [vmem:[%s1855 + $0x289] sm:$0xff]
    %v1971 = vld [vmem:[%s1855 + $0x291] sm:$0xff]
    %v1972 = vld [vmem:[%s1855 + $0x2a1] sm:$0xff]
    %v1973 = vld [vmem:[%s1855 + $0x2a9] sm:$0xff]
    %v1974 = vld [vmem:[%s1855 + $0x2b9] sm:$0xff]
    %v1975 = vld [vmem:[%s1855 + $0x2c1] sm:$0xff]
    %v1976 = vld [vmem:[%s1855 + $0x2d1] sm:$0xff]
    %v1977 = vld [vmem:[%s1855 + $0x2d9] sm:$0xff]
    %v1978 = vld [vmem:[%s1855 + $0x2e9] sm:$0xff]
    %v1979 = vld [vmem:[%s1855 + $0x2f1] sm:$0xff]
    %v1980 = vld [vmem:[%s1855 + $0x301] sm:$0xff]
    %v1981 = vld [vmem:[%s1855 + $0x309] sm:$0xff]
    %v1982 = vld [vmem:[%s1855 + $0x319] sm:$0xff]
    %v1983 = vld [vmem:[%s1855 + $0x321] sm:$0xff]
    %v1984 = vld [vmem:[%s1855 + $0x2] sm:$0xff]
    %v1985 = vld [vmem:[%s1855 + $0xa] sm:$0xff]
    %v1986 = vld [vmem:[%s1855 + $0x1a] sm:$0xff]
    %v1987 = vld [vmem:[%s1855 + $0x22] sm:$0xff]
    %v1988 = vld [vmem:[%s1855 + $0x32] sm:$0xff]
    %v1989 = vld [vmem:[%s1855 + $0x3a] sm:$0xff]
    %v1990 = vld [vmem:[%s1855 + $0x4a] sm:$0xff]
    %v1991 = vld [vmem:[%s1855 + $0x52] sm:$0xff]
    %v1992 = vld [vmem:[%s1855 + $0x62] sm:$0xff]
    %v1993 = vld [vmem:[%s1855 + $0x6a] sm:$0xff]
    %v1994 = vld [vmem:[%s1855 + $0x7a] sm:$0xff]
    %v1995 = vld [vmem:[%s1855 + $0x82] sm:$0xff]
    %v1996 = vld [vmem:[%s1855 + $0x92] sm:$0xff]
    %v1997 = vld [vmem:[%s1855 + $0x9a] sm:$0xff]
    %v1998 = vld [vmem:[%s1855 + $0xaa] sm:$0xff]
    %v1999 = vld [vmem:[%s1855 + $0xb2] sm:$0xff]
    %v2000 = vld [vmem:[%s1855 + $0xc2] sm:$0xff]
    %v2001 = vld [vmem:[%s1855 + $0xca] sm:$0xff]
    %v2002 = vld [vmem:[%s1855 + $0xda] sm:$0xff]
    %v2003 = vld [vmem:[%s1855 + $0xe2] sm:$0xff]
    %v2004 = vld [vmem:[%s1855 + $0xf2] sm:$0xff]
    %v2005 = vld [vmem:[%s1855 + $0xfa] sm:$0xff]
    %v2006 = vld [vmem:[%s1855 + $0x10a] sm:$0xff]
    %v2007 = vld [vmem:[%s1855 + $0x112] sm:$0xff]
    %v2008 = vld [vmem:[%s1855 + $0x122] sm:$0xff]
    %v2009 = vld [vmem:[%s1855 + $0x12a] sm:$0xff]
    %v2010 = vld [vmem:[%s1855 + $0x13a] sm:$0xff]
    %v2011 = vld [vmem:[%s1855 + $0x142] sm:$0xff]
    %v2012 = vld [vmem:[%s1855 + $0x152] sm:$0xff]
    %v2013 = vld [vmem:[%s1855 + $0x15a] sm:$0xff]
    %v2014 = vld [vmem:[%s1855 + $0x16a] sm:$0xff]
    %v2015 = vld [vmem:[%s1855 + $0x172] sm:$0xff]
    %v2016 = vld [vmem:[%s1855 + $0x1b2] sm:$0xff]
    %v2017 = vld [vmem:[%s1855 + $0x1ba] sm:$0xff]
    %v2018 = vld [vmem:[%s1855 + $0x1ca] sm:$0xff]
    %v2019 = vld [vmem:[%s1855 + $0x1d2] sm:$0xff]
    %v2020 = vld [vmem:[%s1855 + $0x1e2] sm:$0xff]
    %v2021 = vld [vmem:[%s1855 + $0x1ea] sm:$0xff]
    %v2022 = vld [vmem:[%s1855 + $0x1fa] sm:$0xff]
    %v2023 = vld [vmem:[%s1855 + $0x202] sm:$0xff]
    %v2024 = vld [vmem:[%s1855 + $0x212] sm:$0xff]
    %v2025 = vld [vmem:[%s1855 + $0x21a] sm:$0xff]
    %v2026 = vld [vmem:[%s1855 + $0x22a] sm:$0xff]
    %v2027 = vld [vmem:[%s1855 + $0x232] sm:$0xff]
    %v2028 = vld [vmem:[%s1855 + $0x242] sm:$0xff]
    %v2029 = vld [vmem:[%s1855 + $0x24a] sm:$0xff]
    %v2030 = vld [vmem:[%s1855 + $0x25a] sm:$0xff]
    %v2031 = vld [vmem:[%s1855 + $0x262] sm:$0xff]
    %v2032 = vld [vmem:[%s1855 + $0x272] sm:$0xff]
    %v2033 = vld [vmem:[%s1855 + $0x27a] sm:$0xff]
    %v2034 = vld [vmem:[%s1855 + $0x28a] sm:$0xff]
    %v2035 = vld [vmem:[%s1855 + $0x292] sm:$0xff]
    %v2036 = vld [vmem:[%s1855 + $0x2a2] sm:$0xff]
    %v2037 = vld [vmem:[%s1855 + $0x2aa] sm:$0xff]
    %v2038 = vld [vmem:[%s1855 + $0x2ba] sm:$0xff]
    %v2039 = vld [vmem:[%s1855 + $0x2c2] sm:$0xff]
    %v2040 = vld [vmem:[%s1855 + $0x2d2] sm:$0xff]
    %v2041 = vld [vmem:[%s1855 + $0x2da] sm:$0xff]
    %v2042 = vld [vmem:[%s1855 + $0x2ea] sm:$0xff]
    %v2043 = vld [vmem:[%s1855 + $0x2f2] sm:$0xff]
    %v2044 = vld [vmem:[%s1855 + $0x302] sm:$0xff]
    %v2045 = vld [vmem:[%s1855 + $0x30a] sm:$0xff]
    %v2046 = vld [vmem:[%s1855 + $0x31a] sm:$0xff]
    %v2047 = vld [vmem:[%s1855 + $0x322] sm:$0xff]
    %2112 = vrot.lane.b32.xlu0 %v1535, 4
    %v2113 = vpop.permute.xlu0 %2112
    %2114 = vrot.lane.b32.xlu0 %v1536, 4
    %v2115 = vpop.permute.xlu0 %2114
    %2116 = vrot.lane.b32.xlu0 %v1537, 4
    %v2117 = vpop.permute.xlu0 %2116
    %2118 = vrot.lane.b32.xlu0 %v1538, 4
    %v2119 = vpop.permute.xlu0 %2118
    %2120 = vrot.lane.b32.xlu0 %v1539, 4
    %v2121 = vpop.permute.xlu0 %2120
    %2122 = vrot.lane.b32.xlu0 %v1540, 4
    %v2123 = vpop.permute.xlu0 %2122
    %2124 = vrot.lane.b32.xlu0 %v1541, 4
    %v2125 = vpop.permute.xlu0 %2124
    %2126 = vrot.lane.b32.xlu0 %v1542, 4
    %v2127 = vpop.permute.xlu0 %2126
    %2128 = vrot.lane.b32.xlu0 %v1543, 4
    %v2129 = vpop.permute.xlu0 %2128
    %2130 = vrot.lane.b32.xlu0 %v1544, 4
    %v2131 = vpop.permute.xlu0 %2130
    %2132 = vrot.lane.b32.xlu0 %v1545, 4
    %v2133 = vpop.permute.xlu0 %2132
    %2134 = vrot.lane.b32.xlu0 %v1546, 4
    %v2135 = vpop.permute.xlu0 %2134
    %2136 = vrot.lane.b32.xlu0 %v1547, 4
    %v2137 = vpop.permute.xlu0 %2136
    %2138 = vrot.lane.b32.xlu0 %v1548, 4
    %v2139 = vpop.permute.xlu0 %2138
    %2140 = vrot.lane.b32.xlu0 %v1549, 4
    %v2141 = vpop.permute.xlu0 %2140
    %2142 = vrot.lane.b32.xlu0 %v1550, 4
    %v2143 = vpop.permute.xlu0 %2142
    %2144 = vrot.lane.b32.xlu0 %v1551, 4
    %v2145 = vpop.permute.xlu0 %2144
    %2146 = vrot.lane.b32.xlu0 %v1552, 4
    %v2147 = vpop.permute.xlu0 %2146
    %2148 = vrot.lane.b32.xlu0 %v1553, 4
    %v2149 = vpop.permute.xlu0 %2148
    %2150 = vrot.lane.b32.xlu0 %v1554, 4
    %v2151 = vpop.permute.xlu0 %2150
    %2152 = vrot.lane.b32.xlu0 %v1555, 4
    %v2153 = vpop.permute.xlu0 %2152
    %2154 = vrot.lane.b32.xlu0 %v1556, 4
    %v2155 = vpop.permute.xlu0 %2154
    %2156 = vrot.lane.b32.xlu0 %v1557, 4
    %v2157 = vpop.permute.xlu0 %2156
    %2158 = vrot.lane.b32.xlu0 %v1558, 4
    %v2159 = vpop.permute.xlu0 %2158
    %2160 = vrot.lane.b32.xlu0 %v1559, 4
    %v2161 = vpop.permute.xlu0 %2160
    %2162 = vrot.lane.b32.xlu0 %v1560, 4
    %v2163 = vpop.permute.xlu0 %2162
    %2164 = vrot.lane.b32.xlu0 %v1561, 4
    %v2165 = vpop.permute.xlu0 %2164
    %2166 = vrot.lane.b32.xlu0 %v1562, 4
    %v2167 = vpop.permute.xlu0 %2166
    %2168 = vrot.lane.b32.xlu0 %v1563, 4
    %v2169 = vpop.permute.xlu0 %2168
    %2170 = vrot.lane.b32.xlu0 %v1564, 4
    %v2171 = vpop.permute.xlu0 %2170
    %2172 = vrot.lane.b32.xlu0 %v1565, 4
    %v2173 = vpop.permute.xlu0 %2172
    %2174 = vrot.lane.b32.xlu0 %v1566, 4
    %v2175 = vpop.permute.xlu0 %2174
    %2176 = vrot.lane.b32.xlu0 %v1567, 4
    %v2177 = vpop.permute.xlu0 %2176
    %2178 = vrot.lane.b32.xlu0 %v1568, 4
    %v2179 = vpop.permute.xlu0 %2178
    %2180 = vrot.lane.b32.xlu0 %v1569, 4
    %v2181 = vpop.permute.xlu0 %2180
    %2182 = vrot.lane.b32.xlu0 %v1570, 4
    %v2183 = vpop.permute.xlu0 %2182
    %2184 = vrot.lane.b32.xlu0 %v1571, 4
    %v2185 = vpop.permute.xlu0 %2184
    %2186 = vrot.lane.b32.xlu0 %v1572, 4
    %v2187 = vpop.permute.xlu0 %2186
    %2188 = vrot.lane.b32.xlu0 %v1573, 4
    %v2189 = vpop.permute.xlu0 %2188
    %2190 = vrot.lane.b32.xlu0 %v1574, 4
    %v2191 = vpop.permute.xlu0 %2190
    %2192 = vrot.lane.b32.xlu0 %v1575, 4
    %v2193 = vpop.permute.xlu0 %2192
    %2194 = vrot.lane.b32.xlu0 %v1576, 4
    %v2195 = vpop.permute.xlu0 %2194
    %2196 = vrot.lane.b32.xlu0 %v1577, 4
    %v2197 = vpop.permute.xlu0 %2196
    %2198 = vrot.lane.b32.xlu0 %v1578, 4
    %v2199 = vpop.permute.xlu0 %2198
    %2200 = vrot.lane.b32.xlu0 %v1579, 4
    %v2201 = vpop.permute.xlu0 %2200
    %2202 = vrot.lane.b32.xlu0 %v1580, 4
    %v2203 = vpop.permute.xlu0 %2202
    %2204 = vrot.lane.b32.xlu0 %v1581, 4
    %v2205 = vpop.permute.xlu0 %2204
    %2206 = vrot.lane.b32.xlu0 %v1582, 4
    %v2207 = vpop.permute.xlu0 %2206
    %2208 = vrot.lane.b32.xlu0 %v1583, 4
    %v2209 = vpop.permute.xlu0 %2208
    %2210 = vrot.lane.b32.xlu0 %v1584, 4
    %v2211 = vpop.permute.xlu0 %2210
    %2212 = vrot.lane.b32.xlu0 %v1585, 4
    %v2213 = vpop.permute.xlu0 %2212
    %2214 = vrot.lane.b32.xlu0 %v1586, 4
    %v2215 = vpop.permute.xlu0 %2214
    %2216 = vrot.lane.b32.xlu0 %v1587, 4
    %v2217 = vpop.permute.xlu0 %2216
    %2218 = vrot.lane.b32.xlu0 %v1588, 4
    %v2219 = vpop.permute.xlu0 %2218
    %2220 = vrot.lane.b32.xlu0 %v1589, 4
    %v2221 = vpop.permute.xlu0 %2220
    %2222 = vrot.lane.b32.xlu0 %v1590, 4
    %v2223 = vpop.permute.xlu0 %2222
    %2224 = vrot.lane.b32.xlu0 %v1591, 4
    %v2225 = vpop.permute.xlu0 %2224
    %2226 = vrot.lane.b32.xlu0 %v1592, 4
    %v2227 = vpop.permute.xlu0 %2226
    %2228 = vrot.lane.b32.xlu0 %v1593, 4
    %v2229 = vpop.permute.xlu0 %2228
    %2230 = vrot.lane.b32.xlu0 %v1594, 4
    %v2231 = vpop.permute.xlu0 %2230
    %2232 = vrot.lane.b32.xlu0 %v1595, 4
    %v2233 = vpop.permute.xlu0 %2232
    %2234 = vrot.lane.b32.xlu0 %v1596, 4
    %v2235 = vpop.permute.xlu0 %2234
    %2236 = vrot.lane.b32.xlu0 %v1597, 4
    %v2237 = vpop.permute.xlu0 %2236
    %2238 = vrot.lane.b32.xlu0 %v1598, 4
    %v2239 = vpop.permute.xlu0 %2238
    %2368 = vrot.lane.b32.xlu0 %v1599, 8
    %v2369 = vpop.permute.xlu0 %2368
    %2370 = vrot.lane.b32.xlu0 %v1600, 8
    %v2371 = vpop.permute.xlu0 %2370
    %2372 = vrot.lane.b32.xlu0 %v1601, 8
    %v2373 = vpop.permute.xlu0 %2372
    %2374 = vrot.lane.b32.xlu0 %v1602, 8
    %v2375 = vpop.permute.xlu0 %2374
    %2376 = vrot.lane.b32.xlu0 %v1603, 8
    %v2377 = vpop.permute.xlu0 %2376
    %2378 = vrot.lane.b32.xlu0 %v1604, 8
    %v2379 = vpop.permute.xlu0 %2378
    %2380 = vrot.lane.b32.xlu0 %v1605, 8
    %v2381 = vpop.permute.xlu0 %2380
    %2382 = vrot.lane.b32.xlu0 %v1606, 8
    %v2383 = vpop.permute.xlu0 %2382
    %2384 = vrot.lane.b32.xlu0 %v1607, 8
    %v2385 = vpop.permute.xlu0 %2384
    %2386 = vrot.lane.b32.xlu0 %v1608, 8
    %v2387 = vpop.permute.xlu0 %2386
    %2388 = vrot.lane.b32.xlu0 %v1609, 8
    %v2389 = vpop.permute.xlu0 %2388
    %2390 = vrot.lane.b32.xlu0 %v1610, 8
    %v2391 = vpop.permute.xlu0 %2390
    %2392 = vrot.lane.b32.xlu0 %v1611, 8
    %v2393 = vpop.permute.xlu0 %2392
    %2394 = vrot.lane.b32.xlu0 %v1612, 8
    %v2395 = vpop.permute.xlu0 %2394
    %2396 = vrot.lane.b32.xlu0 %v1613, 8
    %v2397 = vpop.permute.xlu0 %2396
    %2398 = vrot.lane.b32.xlu0 %v1614, 8
    %v2399 = vpop.permute.xlu0 %2398
    %2400 = vrot.lane.b32.xlu0 %v1615, 8
    %v2401 = vpop.permute.xlu0 %2400
    %2402 = vrot.lane.b32.xlu0 %v1616, 8
    %v2403 = vpop.permute.xlu0 %2402
    %2404 = vrot.lane.b32.xlu0 %v1617, 8
    %v2405 = vpop.permute.xlu0 %2404
    %2406 = vrot.lane.b32.xlu0 %v1618, 8
    %v2407 = vpop.permute.xlu0 %2406
    %2408 = vrot.lane.b32.xlu0 %v1619, 8
    %v2409 = vpop.permute.xlu0 %2408
    %2410 = vrot.lane.b32.xlu0 %v1620, 8
    %v2411 = vpop.permute.xlu0 %2410
    %2412 = vrot.lane.b32.xlu0 %v1621, 8
    %v2413 = vpop.permute.xlu0 %2412
    %2414 = vrot.lane.b32.xlu0 %v1622, 8
    %v2415 = vpop.permute.xlu0 %2414
    %2416 = vrot.lane.b32.xlu0 %v1623, 8
    %v2417 = vpop.permute.xlu0 %2416
    %2418 = vrot.lane.b32.xlu0 %v1624, 8
    %v2419 = vpop.permute.xlu0 %2418
    %2420 = vrot.lane.b32.xlu0 %v1625, 8
    %v2421 = vpop.permute.xlu0 %2420
    %2422 = vrot.lane.b32.xlu0 %v1626, 8
    %v2423 = vpop.permute.xlu0 %2422
    %2424 = vrot.lane.b32.xlu0 %v1627, 8
    %v2425 = vpop.permute.xlu0 %2424
    %2426 = vrot.lane.b32.xlu0 %v1628, 8
    %v2427 = vpop.permute.xlu0 %2426
    %2428 = vrot.lane.b32.xlu0 %v1629, 8
    %v2429 = vpop.permute.xlu0 %2428
    %2430 = vrot.lane.b32.xlu0 %v1630, 8
    %v2431 = vpop.permute.xlu0 %2430
    %2432 = vrot.lane.b32.xlu0 %v1631, 8
    %v2433 = vpop.permute.xlu0 %2432
    %2434 = vrot.lane.b32.xlu0 %v1632, 8
    %v2435 = vpop.permute.xlu0 %2434
    %2436 = vrot.lane.b32.xlu0 %v1633, 8
    %v2437 = vpop.permute.xlu0 %2436
    %2438 = vrot.lane.b32.xlu0 %v1634, 8
    %v2439 = vpop.permute.xlu0 %2438
    %2440 = vrot.lane.b32.xlu0 %v1635, 8
    %v2441 = vpop.permute.xlu0 %2440
    %2442 = vrot.lane.b32.xlu0 %v1636, 8
    %v2443 = vpop.permute.xlu0 %2442
    %2444 = vrot.lane.b32.xlu0 %v1637, 8
    %v2445 = vpop.permute.xlu0 %2444
    %2446 = vrot.lane.b32.xlu0 %v1638, 8
    %v2447 = vpop.permute.xlu0 %2446
    %2448 = vrot.lane.b32.xlu0 %v1639, 8
    %v2449 = vpop.permute.xlu0 %2448
    %2450 = vrot.lane.b32.xlu0 %v1640, 8
    %v2451 = vpop.permute.xlu0 %2450
    %2452 = vrot.lane.b32.xlu0 %v1641, 8
    %v2453 = vpop.permute.xlu0 %2452
    %2454 = vrot.lane.b32.xlu0 %v1642, 8
    %v2455 = vpop.permute.xlu0 %2454
    %2456 = vrot.lane.b32.xlu0 %v1643, 8
    %v2457 = vpop.permute.xlu0 %2456
    %2458 = vrot.lane.b32.xlu0 %v1644, 8
    %v2459 = vpop.permute.xlu0 %2458
    %2460 = vrot.lane.b32.xlu0 %v1645, 8
    %v2461 = vpop.permute.xlu0 %2460
    %2462 = vrot.lane.b32.xlu0 %v1646, 8
    %v2463 = vpop.permute.xlu0 %2462
    %2464 = vrot.lane.b32.xlu0 %v1647, 8
    %v2465 = vpop.permute.xlu0 %2464
    %2466 = vrot.lane.b32.xlu0 %v1648, 8
    %v2467 = vpop.permute.xlu0 %2466
    %2468 = vrot.lane.b32.xlu0 %v1649, 8
    %v2469 = vpop.permute.xlu0 %2468
    %2470 = vrot.lane.b32.xlu0 %v1650, 8
    %v2471 = vpop.permute.xlu0 %2470
    %2472 = vrot.lane.b32.xlu0 %v1651, 8
    %v2473 = vpop.permute.xlu0 %2472
    %2474 = vrot.lane.b32.xlu0 %v1652, 8
    %v2475 = vpop.permute.xlu0 %2474
    %2476 = vrot.lane.b32.xlu0 %v1653, 8
    %v2477 = vpop.permute.xlu0 %2476
    %2478 = vrot.lane.b32.xlu0 %v1654, 8
    %v2479 = vpop.permute.xlu0 %2478
    %2480 = vrot.lane.b32.xlu0 %v1655, 8
    %v2481 = vpop.permute.xlu0 %2480
    %2482 = vrot.lane.b32.xlu0 %v1656, 8
    %v2483 = vpop.permute.xlu0 %2482
    %2484 = vrot.lane.b32.xlu0 %v1657, 8
    %v2485 = vpop.permute.xlu0 %2484
    %2486 = vrot.lane.b32.xlu0 %v1658, 8
    %v2487 = vpop.permute.xlu0 %2486
    %2488 = vrot.lane.b32.xlu0 %v1659, 8
    %v2489 = vpop.permute.xlu0 %2488
    %2490 = vrot.lane.b32.xlu0 %v1660, 8
    %v2491 = vpop.permute.xlu0 %2490
    %2492 = vrot.lane.b32.xlu0 %v1661, 8
    %v2493 = vpop.permute.xlu0 %2492
    %2494 = vrot.lane.b32.xlu0 %v1662, 8
    %v2495 = vpop.permute.xlu0 %2494
    %2624 = vrot.lane.b32.xlu0 %v1663, 12
    %v2625 = vpop.permute.xlu0 %2624
    %2626 = vrot.lane.b32.xlu0 %v1664, 12
    %v2627 = vpop.permute.xlu0 %2626
    %2628 = vrot.lane.b32.xlu0 %v1665, 12
    %v2629 = vpop.permute.xlu0 %2628
    %2630 = vrot.lane.b32.xlu0 %v1666, 12
    %v2631 = vpop.permute.xlu0 %2630
    %2632 = vrot.lane.b32.xlu0 %v1667, 12
    %v2633 = vpop.permute.xlu0 %2632
    %2634 = vrot.lane.b32.xlu0 %v1668, 12
    %v2635 = vpop.permute.xlu0 %2634
    %2636 = vrot.lane.b32.xlu0 %v1669, 12
    %v2637 = vpop.permute.xlu0 %2636
    %2638 = vrot.lane.b32.xlu0 %v1670, 12
    %v2639 = vpop.permute.xlu0 %2638
    %2640 = vrot.lane.b32.xlu0 %v1671, 12
    %v2641 = vpop.permute.xlu0 %2640
    %2642 = vrot.lane.b32.xlu0 %v1672, 12
    %v2643 = vpop.permute.xlu0 %2642
    %2644 = vrot.lane.b32.xlu0 %v1673, 12
    %v2645 = vpop.permute.xlu0 %2644
    %2646 = vrot.lane.b32.xlu0 %v1674, 12
    %v2647 = vpop.permute.xlu0 %2646
    %2648 = vrot.lane.b32.xlu0 %v1675, 12
    %v2649 = vpop.permute.xlu0 %2648
    %2650 = vrot.lane.b32.xlu0 %v1676, 12
    %v2651 = vpop.permute.xlu0 %2650
    %2652 = vrot.lane.b32.xlu0 %v1677, 12
    %v2653 = vpop.permute.xlu0 %2652
    %2654 = vrot.lane.b32.xlu0 %v1678, 12
    %v2655 = vpop.permute.xlu0 %2654
    %2656 = vrot.lane.b32.xlu0 %v1679, 12
    %v2657 = vpop.permute.xlu0 %2656
    %2658 = vrot.lane.b32.xlu0 %v1680, 12
    %v2659 = vpop.permute.xlu0 %2658
    %2660 = vrot.lane.b32.xlu0 %v1681, 12
    %v2661 = vpop.permute.xlu0 %2660
    %2662 = vrot.lane.b32.xlu0 %v1682, 12
    %v2663 = vpop.permute.xlu0 %2662
    %2664 = vrot.lane.b32.xlu0 %v1683, 12
    %v2665 = vpop.permute.xlu0 %2664
    %2666 = vrot.lane.b32.xlu0 %v1684, 12
    %v2667 = vpop.permute.xlu0 %2666
    %2668 = vrot.lane.b32.xlu0 %v1685, 12
    %v2669 = vpop.permute.xlu0 %2668
    %2670 = vrot.lane.b32.xlu0 %v1686, 12
    %v2671 = vpop.permute.xlu0 %2670
    %2672 = vrot.lane.b32.xlu0 %v1687, 12
    %v2673 = vpop.permute.xlu0 %2672
    %2674 = vrot.lane.b32.xlu0 %v1688, 12
    %v2675 = vpop.permute.xlu0 %2674
    %2676 = vrot.lane.b32.xlu0 %v1689, 12
    %v2677 = vpop.permute.xlu0 %2676
    %2678 = vrot.lane.b32.xlu0 %v1690, 12
    %v2679 = vpop.permute.xlu0 %2678
    %2680 = vrot.lane.b32.xlu0 %v1691, 12
    %v2681 = vpop.permute.xlu0 %2680
    %2682 = vrot.lane.b32.xlu0 %v1692, 12
    %v2683 = vpop.permute.xlu0 %2682
    %2684 = vrot.lane.b32.xlu0 %v1693, 12
    %v2685 = vpop.permute.xlu0 %2684
    %2686 = vrot.lane.b32.xlu0 %v1694, 12
    %v2687 = vpop.permute.xlu0 %2686
    %2688 = vrot.lane.b32.xlu0 %v1695, 12
    %v2689 = vpop.permute.xlu0 %2688
    %2690 = vrot.lane.b32.xlu0 %v1696, 12
    %v2691 = vpop.permute.xlu0 %2690
    %2692 = vrot.lane.b32.xlu0 %v1697, 12
    %v2693 = vpop.permute.xlu0 %2692
    %2694 = vrot.lane.b32.xlu0 %v1698, 12
    %v2695 = vpop.permute.xlu0 %2694
    %2696 = vrot.lane.b32.xlu0 %v1699, 12
    %v2697 = vpop.permute.xlu0 %2696
    %2698 = vrot.lane.b32.xlu0 %v1700, 12
    %v2699 = vpop.permute.xlu0 %2698
    %2700 = vrot.lane.b32.xlu0 %v1701, 12
    %v2701 = vpop.permute.xlu0 %2700
    %2702 = vrot.lane.b32.xlu0 %v1702, 12
    %v2703 = vpop.permute.xlu0 %2702
    %2704 = vrot.lane.b32.xlu0 %v1703, 12
    %v2705 = vpop.permute.xlu0 %2704
    %2706 = vrot.lane.b32.xlu0 %v1704, 12
    %v2707 = vpop.permute.xlu0 %2706
    %2708 = vrot.lane.b32.xlu0 %v1705, 12
    %v2709 = vpop.permute.xlu0 %2708
    %2710 = vrot.lane.b32.xlu0 %v1706, 12
    %v2711 = vpop.permute.xlu0 %2710
    %2712 = vrot.lane.b32.xlu0 %v1707, 12
    %v2713 = vpop.permute.xlu0 %2712
    %2714 = vrot.lane.b32.xlu0 %v1708, 12
    %v2715 = vpop.permute.xlu0 %2714
    %2716 = vrot.lane.b32.xlu0 %v1709, 12
    %v2717 = vpop.permute.xlu0 %2716
    %2718 = vrot.lane.b32.xlu0 %v1710, 12
    %v2719 = vpop.permute.xlu0 %2718
    %2720 = vrot.lane.b32.xlu0 %v1711, 12
    %v2721 = vpop.permute.xlu0 %2720
    %2722 = vrot.lane.b32.xlu0 %v1712, 12
    %v2723 = vpop.permute.xlu0 %2722
    %2724 = vrot.lane.b32.xlu0 %v1713, 12
    %v2725 = vpop.permute.xlu0 %2724
    %2726 = vrot.lane.b32.xlu0 %v1714, 12
    %v2727 = vpop.permute.xlu0 %2726
    %2728 = vrot.lane.b32.xlu0 %v1715, 12
    %v2729 = vpop.permute.xlu0 %2728
    %2730 = vrot.lane.b32.xlu0 %v1716, 12
    %v2731 = vpop.permute.xlu0 %2730
    %2732 = vrot.lane.b32.xlu0 %v1717, 12
    %v2733 = vpop.permute.xlu0 %2732
    %2734 = vrot.lane.b32.xlu0 %v1718, 12
    %v2735 = vpop.permute.xlu0 %2734
    %2736 = vrot.lane.b32.xlu0 %v1719, 12
    %v2737 = vpop.permute.xlu0 %2736
    %2738 = vrot.lane.b32.xlu0 %v1720, 12
    %v2739 = vpop.permute.xlu0 %2738
    %2740 = vrot.lane.b32.xlu0 %v1721, 12
    %v2741 = vpop.permute.xlu0 %2740
    %2742 = vrot.lane.b32.xlu0 %v1722, 12
    %v2743 = vpop.permute.xlu0 %2742
    %2744 = vrot.lane.b32.xlu0 %v1723, 12
    %v2745 = vpop.permute.xlu0 %2744
    %2746 = vrot.lane.b32.xlu0 %v1724, 12
    %v2747 = vpop.permute.xlu0 %2746
    %2748 = vrot.lane.b32.xlu0 %v1725, 12
    %v2749 = vpop.permute.xlu0 %2748
    %2750 = vrot.lane.b32.xlu0 %v1726, 12
    %v2751 = vpop.permute.xlu0 %2750
    %2880 = vrot.lane.b32.xlu0 %v1727, 16
    %v2881 = vpop.permute.xlu0 %2880
    %2882 = vrot.lane.b32.xlu0 %v1728, 16
    %v2883 = vpop.permute.xlu0 %2882
    %2884 = vrot.lane.b32.xlu0 %v1729, 16
    %v2885 = vpop.permute.xlu0 %2884
    %2886 = vrot.lane.b32.xlu0 %v1730, 16
    %v2887 = vpop.permute.xlu0 %2886
    %2888 = vrot.lane.b32.xlu0 %v1731, 16
    %v2889 = vpop.permute.xlu0 %2888
    %2890 = vrot.lane.b32.xlu0 %v1732, 16
    %v2891 = vpop.permute.xlu0 %2890
    %2892 = vrot.lane.b32.xlu0 %v1733, 16
    %v2893 = vpop.permute.xlu0 %2892
    %2894 = vrot.lane.b32.xlu0 %v1734, 16
    %v2895 = vpop.permute.xlu0 %2894
    %2896 = vrot.lane.b32.xlu0 %v1735, 16
    %v2897 = vpop.permute.xlu0 %2896
    %2898 = vrot.lane.b32.xlu0 %v1736, 16
    %v2899 = vpop.permute.xlu0 %2898
    %2900 = vrot.lane.b32.xlu0 %v1737, 16
    %v2901 = vpop.permute.xlu0 %2900
    %2902 = vrot.lane.b32.xlu0 %v1738, 16
    %v2903 = vpop.permute.xlu0 %2902
    %2904 = vrot.lane.b32.xlu0 %v1739, 16
    %v2905 = vpop.permute.xlu0 %2904
    %2906 = vrot.lane.b32.xlu0 %v1740, 16
    %v2907 = vpop.permute.xlu0 %2906
    %2908 = vrot.lane.b32.xlu0 %v1741, 16
    %v2909 = vpop.permute.xlu0 %2908
    %2910 = vrot.lane.b32.xlu0 %v1742, 16
    %v2911 = vpop.permute.xlu0 %2910
    %2912 = vrot.lane.b32.xlu0 %v1743, 16
    %v2913 = vpop.permute.xlu0 %2912
    %2914 = vrot.lane.b32.xlu0 %v1744, 16
    %v2915 = vpop.permute.xlu0 %2914
    %2916 = vrot.lane.b32.xlu0 %v1745, 16
    %v2917 = vpop.permute.xlu0 %2916
    %2918 = vrot.lane.b32.xlu0 %v1746, 16
    %v2919 = vpop.permute.xlu0 %2918
    %2920 = vrot.lane.b32.xlu0 %v1747, 16
    %v2921 = vpop.permute.xlu0 %2920
    %2922 = vrot.lane.b32.xlu0 %v1748, 16
    %v2923 = vpop.permute.xlu0 %2922
    %2924 = vrot.lane.b32.xlu0 %v1749, 16
    %v2925 = vpop.permute.xlu0 %2924
    %2926 = vrot.lane.b32.xlu0 %v1750, 16
    %v2927 = vpop.permute.xlu0 %2926
    %2928 = vrot.lane.b32.xlu0 %v1751, 16
    %v2929 = vpop.permute.xlu0 %2928
    %2930 = vrot.lane.b32.xlu0 %v1752, 16
    %v2931 = vpop.permute.xlu0 %2930
    %2932 = vrot.lane.b32.xlu0 %v1753, 16
    %v2933 = vpop.permute.xlu0 %2932
    %2934 = vrot.lane.b32.xlu0 %v1754, 16
    %v2935 = vpop.permute.xlu0 %2934
    %2936 = vrot.lane.b32.xlu0 %v1755, 16
    %v2937 = vpop.permute.xlu0 %2936
    %2938 = vrot.lane.b32.xlu0 %v1756, 16
    %v2939 = vpop.permute.xlu0 %2938
    %2940 = vrot.lane.b32.xlu0 %v1757, 16
    %v2941 = vpop.permute.xlu0 %2940
    %2942 = vrot.lane.b32.xlu0 %v1758, 16
    %v2943 = vpop.permute.xlu0 %2942
    %2944 = vrot.lane.b32.xlu0 %v1759, 16
    %v2945 = vpop.permute.xlu0 %2944
    %2946 = vrot.lane.b32.xlu0 %v1760, 16
    %v2947 = vpop.permute.xlu0 %2946
    %2948 = vrot.lane.b32.xlu0 %v1761, 16
    %v2949 = vpop.permute.xlu0 %2948
    %2950 = vrot.lane.b32.xlu0 %v1762, 16
    %v2951 = vpop.permute.xlu0 %2950
    %2952 = vrot.lane.b32.xlu0 %v1763, 16
    %v2953 = vpop.permute.xlu0 %2952
    %2954 = vrot.lane.b32.xlu0 %v1764, 16
    %v2955 = vpop.permute.xlu0 %2954
    %2956 = vrot.lane.b32.xlu0 %v1765, 16
    %v2957 = vpop.permute.xlu0 %2956
    %2958 = vrot.lane.b32.xlu0 %v1766, 16
    %v2959 = vpop.permute.xlu0 %2958
    %2960 = vrot.lane.b32.xlu0 %v1767, 16
    %v2961 = vpop.permute.xlu0 %2960
    %2962 = vrot.lane.b32.xlu0 %v1768, 16
    %v2963 = vpop.permute.xlu0 %2962
    %2964 = vrot.lane.b32.xlu0 %v1769, 16
    %v2965 = vpop.permute.xlu0 %2964
    %2966 = vrot.lane.b32.xlu0 %v1770, 16
    %v2967 = vpop.permute.xlu0 %2966
    %2968 = vrot.lane.b32.xlu0 %v1771, 16
    %v2969 = vpop.permute.xlu0 %2968
    %2970 = vrot.lane.b32.xlu0 %v1772, 16
    %v2971 = vpop.permute.xlu0 %2970
    %2972 = vrot.lane.b32.xlu0 %v1773, 16
    %v2973 = vpop.permute.xlu0 %2972
    %2974 = vrot.lane.b32.xlu0 %v1774, 16
    %v2975 = vpop.permute.xlu0 %2974
    %2976 = vrot.lane.b32.xlu0 %v1775, 16
    %v2977 = vpop.permute.xlu0 %2976
    %2978 = vrot.lane.b32.xlu0 %v1776, 16
    %v2979 = vpop.permute.xlu0 %2978
    %2980 = vrot.lane.b32.xlu0 %v1777, 16
    %v2981 = vpop.permute.xlu0 %2980
    %2982 = vrot.lane.b32.xlu0 %v1778, 16
    %v2983 = vpop.permute.xlu0 %2982
    %2984 = vrot.lane.b32.xlu0 %v1779, 16
    %v2985 = vpop.permute.xlu0 %2984
    %2986 = vrot.lane.b32.xlu0 %v1780, 16
    %v2987 = vpop.permute.xlu0 %2986
    %2988 = vrot.lane.b32.xlu0 %v1781, 16
    %v2989 = vpop.permute.xlu0 %2988
    %2990 = vrot.lane.b32.xlu0 %v1782, 16
    %v2991 = vpop.permute.xlu0 %2990
    %2992 = vrot.lane.b32.xlu0 %v1783, 16
    %v2993 = vpop.permute.xlu0 %2992
    %2994 = vrot.lane.b32.xlu0 %v1784, 16
    %v2995 = vpop.permute.xlu0 %2994
    %2996 = vrot.lane.b32.xlu0 %v1785, 16
    %v2997 = vpop.permute.xlu0 %2996
    %2998 = vrot.lane.b32.xlu0 %v1786, 16
    %v2999 = vpop.permute.xlu0 %2998
    %3000 = vrot.lane.b32.xlu0 %v1787, 16
    %v3001 = vpop.permute.xlu0 %3000
    %3002 = vrot.lane.b32.xlu0 %v1788, 16
    %v3003 = vpop.permute.xlu0 %3002
    %3004 = vrot.lane.b32.xlu0 %v1789, 16
    %v3005 = vpop.permute.xlu0 %3004
    %3006 = vrot.lane.b32.xlu0 %v1790, 16
    %v3007 = vpop.permute.xlu0 %3006
    %3136 = vrot.lane.b32.xlu0 %v1791, 20
    %v3137 = vpop.permute.xlu0 %3136
    %3138 = vrot.lane.b32.xlu0 %v1792, 20
    %v3139 = vpop.permute.xlu0 %3138
    %3140 = vrot.lane.b32.xlu0 %v1793, 20
    %v3141 = vpop.permute.xlu0 %3140
    %3142 = vrot.lane.b32.xlu0 %v1794, 20
    %v3143 = vpop.permute.xlu0 %3142
    %3144 = vrot.lane.b32.xlu0 %v1795, 20
    %v3145 = vpop.permute.xlu0 %3144
    %3146 = vrot.lane.b32.xlu0 %v1796, 20
    %v3147 = vpop.permute.xlu0 %3146
    %3148 = vrot.lane.b32.xlu0 %v1797, 20
    %v3149 = vpop.permute.xlu0 %3148
    %3150 = vrot.lane.b32.xlu0 %v1798, 20
    %v3151 = vpop.permute.xlu0 %3150
    %3152 = vrot.lane.b32.xlu0 %v1799, 20
    %v3153 = vpop.permute.xlu0 %3152
    %3154 = vrot.lane.b32.xlu0 %v1800, 20
    %v3155 = vpop.permute.xlu0 %3154
    %3156 = vrot.lane.b32.xlu0 %v1801, 20
    %v3157 = vpop.permute.xlu0 %3156
    %3158 = vrot.lane.b32.xlu0 %v1802, 20
    %v3159 = vpop.permute.xlu0 %3158
    %3160 = vrot.lane.b32.xlu0 %v1803, 20
    %v3161 = vpop.permute.xlu0 %3160
    %3162 = vrot.lane.b32.xlu0 %v1804, 20
    %v3163 = vpop.permute.xlu0 %3162
    %3164 = vrot.lane.b32.xlu0 %v1805, 20
    %v3165 = vpop.permute.xlu0 %3164
    %3166 = vrot.lane.b32.xlu0 %v1806, 20
    %v3167 = vpop.permute.xlu0 %3166
    %3168 = vrot.lane.b32.xlu0 %v1807, 20
    %v3169 = vpop.permute.xlu0 %3168
    %3170 = vrot.lane.b32.xlu0 %v1808, 20
    %v3171 = vpop.permute.xlu0 %3170
    %3172 = vrot.lane.b32.xlu0 %v1809, 20
    %v3173 = vpop.permute.xlu0 %3172
    %3174 = vrot.lane.b32.xlu0 %v1810, 20
    %v3175 = vpop.permute.xlu0 %3174
    %3176 = vrot.lane.b32.xlu0 %v1811, 20
    %v3177 = vpop.permute.xlu0 %3176
    %3178 = vrot.lane.b32.xlu0 %v1812, 20
    %v3179 = vpop.permute.xlu0 %3178
    %3180 = vrot.lane.b32.xlu0 %v1813, 20
    %v3181 = vpop.permute.xlu0 %3180
    %3182 = vrot.lane.b32.xlu0 %v1814, 20
    %v3183 = vpop.permute.xlu0 %3182
    %3184 = vrot.lane.b32.xlu0 %v1815, 20
    %v3185 = vpop.permute.xlu0 %3184
    %3186 = vrot.lane.b32.xlu0 %v1816, 20
    %v3187 = vpop.permute.xlu0 %3186
    %3188 = vrot.lane.b32.xlu0 %v1817, 20
    %v3189 = vpop.permute.xlu0 %3188
    %3190 = vrot.lane.b32.xlu0 %v1818, 20
    %v3191 = vpop.permute.xlu0 %3190
    %3192 = vrot.lane.b32.xlu0 %v1819, 20
    %v3193 = vpop.permute.xlu0 %3192
    %3194 = vrot.lane.b32.xlu0 %v1820, 20
    %v3195 = vpop.permute.xlu0 %3194
    %3196 = vrot.lane.b32.xlu0 %v1821, 20
    %v3197 = vpop.permute.xlu0 %3196
    %3198 = vrot.lane.b32.xlu0 %v1822, 20
    %v3199 = vpop.permute.xlu0 %3198
    %3200 = vrot.lane.b32.xlu0 %v1823, 20
    %v3201 = vpop.permute.xlu0 %3200
    %3202 = vrot.lane.b32.xlu0 %v1824, 20
    %v3203 = vpop.permute.xlu0 %3202
    %3204 = vrot.lane.b32.xlu0 %v1825, 20
    %v3205 = vpop.permute.xlu0 %3204
    %3206 = vrot.lane.b32.xlu0 %v1826, 20
    %v3207 = vpop.permute.xlu0 %3206
    %3208 = vrot.lane.b32.xlu0 %v1827, 20
    %v3209 = vpop.permute.xlu0 %3208
    %3210 = vrot.lane.b32.xlu0 %v1828, 20
    %v3211 = vpop.permute.xlu0 %3210
    %3212 = vrot.lane.b32.xlu0 %v1829, 20
    %v3213 = vpop.permute.xlu0 %3212
    %3214 = vrot.lane.b32.xlu0 %v1830, 20
    %v3215 = vpop.permute.xlu0 %3214
    %3216 = vrot.lane.b32.xlu0 %v1831, 20
    %v3217 = vpop.permute.xlu0 %3216
    %3218 = vrot.lane.b32.xlu0 %v1832, 20
    %v3219 = vpop.permute.xlu0 %3218
    %3220 = vrot.lane.b32.xlu0 %v1833, 20
    %v3221 = vpop.permute.xlu0 %3220
    %3222 = vrot.lane.b32.xlu0 %v1834, 20
    %v3223 = vpop.permute.xlu0 %3222
    %3224 = vrot.lane.b32.xlu0 %v1835, 20
    %v3225 = vpop.permute.xlu0 %3224
    %3226 = vrot.lane.b32.xlu0 %v1836, 20
    %v3227 = vpop.permute.xlu0 %3226
    %3228 = vrot.lane.b32.xlu0 %v1837, 20
    %v3229 = vpop.permute.xlu0 %3228
    %3230 = vrot.lane.b32.xlu0 %v1838, 20
    %v3231 = vpop.permute.xlu0 %3230
    %3232 = vrot.lane.b32.xlu0 %v1839, 20
    %v3233 = vpop.permute.xlu0 %3232
    %3234 = vrot.lane.b32.xlu0 %v1840, 20
    %v3235 = vpop.permute.xlu0 %3234
    %3236 = vrot.lane.b32.xlu0 %v1841, 20
    %v3237 = vpop.permute.xlu0 %3236
    %3238 = vrot.lane.b32.xlu0 %v1842, 20
    %v3239 = vpop.permute.xlu0 %3238
    %3240 = vrot.lane.b32.xlu0 %v1843, 20
    %v3241 = vpop.permute.xlu0 %3240
    %3242 = vrot.lane.b32.xlu0 %v1844, 20
    %v3243 = vpop.permute.xlu0 %3242
    %3244 = vrot.lane.b32.xlu0 %v1845, 20
    %v3245 = vpop.permute.xlu0 %3244
    %3246 = vrot.lane.b32.xlu0 %v1846, 20
    %v3247 = vpop.permute.xlu0 %3246
    %3248 = vrot.lane.b32.xlu0 %v1847, 20
    %v3249 = vpop.permute.xlu0 %3248
    %3250 = vrot.lane.b32.xlu0 %v1848, 20
    %v3251 = vpop.permute.xlu0 %3250
    %3252 = vrot.lane.b32.xlu0 %v1849, 20
    %v3253 = vpop.permute.xlu0 %3252
    %3254 = vrot.lane.b32.xlu0 %v1850, 20
    %v3255 = vpop.permute.xlu0 %3254
    %3256 = vrot.lane.b32.xlu0 %v1851, 20
    %v3257 = vpop.permute.xlu0 %3256
    %3258 = vrot.lane.b32.xlu0 %v1852, 20
    %v3259 = vpop.permute.xlu0 %3258
    %3260 = vrot.lane.b32.xlu0 %v1853, 20
    %v3261 = vpop.permute.xlu0 %3260
    %3262 = vrot.lane.b32.xlu0 %v1854, 20
    %v3263 = vpop.permute.xlu0 %3262
    %3392 = vrot.lane.b32.xlu0 %v1856, 24
    %v3393 = vpop.permute.xlu0 %3392
    %3394 = vrot.lane.b32.xlu0 %v1857, 24
    %v3395 = vpop.permute.xlu0 %3394
    %3396 = vrot.lane.b32.xlu0 %v1858, 24
    %v3397 = vpop.permute.xlu0 %3396
    %3398 = vrot.lane.b32.xlu0 %v1859, 24
    %v3399 = vpop.permute.xlu0 %3398
    %3400 = vrot.lane.b32.xlu0 %v1860, 24
    %v3401 = vpop.permute.xlu0 %3400
    %3402 = vrot.lane.b32.xlu0 %v1861, 24
    %v3403 = vpop.permute.xlu0 %3402
    %3404 = vrot.lane.b32.xlu0 %v1862, 24
    %v3405 = vpop.permute.xlu0 %3404
    %3406 = vrot.lane.b32.xlu0 %v1863, 24
    %v3407 = vpop.permute.xlu0 %3406
    %3408 = vrot.lane.b32.xlu0 %v1864, 24
    %v3409 = vpop.permute.xlu0 %3408
    %3410 = vrot.lane.b32.xlu0 %v1865, 24
    %v3411 = vpop.permute.xlu0 %3410
    %3412 = vrot.lane.b32.xlu0 %v1866, 24
    %v3413 = vpop.permute.xlu0 %3412
    %3414 = vrot.lane.b32.xlu0 %v1867, 24
    %v3415 = vpop.permute.xlu0 %3414
    %3416 = vrot.lane.b32.xlu0 %v1868, 24
    %v3417 = vpop.permute.xlu0 %3416
    %3418 = vrot.lane.b32.xlu0 %v1869, 24
    %v3419 = vpop.permute.xlu0 %3418
    %3420 = vrot.lane.b32.xlu0 %v1870, 24
    %v3421 = vpop.permute.xlu0 %3420
    %3422 = vrot.lane.b32.xlu0 %v1871, 24
    %v3423 = vpop.permute.xlu0 %3422
    %3424 = vrot.lane.b32.xlu0 %v1872, 24
    %v3425 = vpop.permute.xlu0 %3424
    %3426 = vrot.lane.b32.xlu0 %v1873, 24
    %v3427 = vpop.permute.xlu0 %3426
    %3428 = vrot.lane.b32.xlu0 %v1874, 24
    %v3429 = vpop.permute.xlu0 %3428
    %3430 = vrot.lane.b32.xlu0 %v1875, 24
    %v3431 = vpop.permute.xlu0 %3430
    %3432 = vrot.lane.b32.xlu0 %v1876, 24
    %v3433 = vpop.permute.xlu0 %3432
    %3434 = vrot.lane.b32.xlu0 %v1877, 24
    %v3435 = vpop.permute.xlu0 %3434
    %3436 = vrot.lane.b32.xlu0 %v1878, 24
    %v3437 = vpop.permute.xlu0 %3436
    %3438 = vrot.lane.b32.xlu0 %v1879, 24
    %v3439 = vpop.permute.xlu0 %3438
    %3440 = vrot.lane.b32.xlu0 %v1880, 24
    %v3441 = vpop.permute.xlu0 %3440
    %3442 = vrot.lane.b32.xlu0 %v1881, 24
    %v3443 = vpop.permute.xlu0 %3442
    %3444 = vrot.lane.b32.xlu0 %v1882, 24
    %v3445 = vpop.permute.xlu0 %3444
    %3446 = vrot.lane.b32.xlu0 %v1883, 24
    %v3447 = vpop.permute.xlu0 %3446
    %3448 = vrot.lane.b32.xlu0 %v1884, 24
    %v3449 = vpop.permute.xlu0 %3448
    %3450 = vrot.lane.b32.xlu0 %v1885, 24
    %v3451 = vpop.permute.xlu0 %3450
    %3452 = vrot.lane.b32.xlu0 %v1886, 24
    %v3453 = vpop.permute.xlu0 %3452
    %3454 = vrot.lane.b32.xlu0 %v1887, 24
    %v3455 = vpop.permute.xlu0 %3454
    %3456 = vrot.lane.b32.xlu0 %v1888, 24
    %v3457 = vpop.permute.xlu0 %3456
    %3458 = vrot.lane.b32.xlu0 %v1889, 24
    %v3459 = vpop.permute.xlu0 %3458
    %3460 = vrot.lane.b32.xlu0 %v1890, 24
    %v3461 = vpop.permute.xlu0 %3460
    %3462 = vrot.lane.b32.xlu0 %v1891, 24
    %v3463 = vpop.permute.xlu0 %3462
    %3464 = vrot.lane.b32.xlu0 %v1892, 24
    %v3465 = vpop.permute.xlu0 %3464
    %3466 = vrot.lane.b32.xlu0 %v1893, 24
    %v3467 = vpop.permute.xlu0 %3466
    %3468 = vrot.lane.b32.xlu0 %v1894, 24
    %v3469 = vpop.permute.xlu0 %3468
    %3470 = vrot.lane.b32.xlu0 %v1895, 24
    %v3471 = vpop.permute.xlu0 %3470
    %3472 = vrot.lane.b32.xlu0 %v1896, 24
    %v3473 = vpop.permute.xlu0 %3472
    %3474 = vrot.lane.b32.xlu0 %v1897, 24
    %v3475 = vpop.permute.xlu0 %3474
    %3476 = vrot.lane.b32.xlu0 %v1898, 24
    %v3477 = vpop.permute.xlu0 %3476
    %3478 = vrot.lane.b32.xlu0 %v1899, 24
    %v3479 = vpop.permute.xlu0 %3478
    %3480 = vrot.lane.b32.xlu0 %v1900, 24
    %v3481 = vpop.permute.xlu0 %3480
    %3482 = vrot.lane.b32.xlu0 %v1901, 24
    %v3483 = vpop.permute.xlu0 %3482
    %3484 = vrot.lane.b32.xlu0 %v1902, 24
    %v3485 = vpop.permute.xlu0 %3484
    %3486 = vrot.lane.b32.xlu0 %v1903, 24
    %v3487 = vpop.permute.xlu0 %3486
    %3488 = vrot.lane.b32.xlu0 %v1904, 24
    %v3489 = vpop.permute.xlu0 %3488
    %3490 = vrot.lane.b32.xlu0 %v1905, 24
    %v3491 = vpop.permute.xlu0 %3490
    %3492 = vrot.lane.b32.xlu0 %v1906, 24
    %v3493 = vpop.permute.xlu0 %3492
    %3494 = vrot.lane.b32.xlu0 %v1907, 24
    %v3495 = vpop.permute.xlu0 %3494
    %3496 = vrot.lane.b32.xlu0 %v1908, 24
    %v3497 = vpop.permute.xlu0 %3496
    %3498 = vrot.lane.b32.xlu0 %v1909, 24
    %v3499 = vpop.permute.xlu0 %3498
    %3500 = vrot.lane.b32.xlu0 %v1910, 24
    %v3501 = vpop.permute.xlu0 %3500
    %3502 = vrot.lane.b32.xlu0 %v1911, 24
    %v3503 = vpop.permute.xlu0 %3502
    %3504 = vrot.lane.b32.xlu0 %v1912, 24
    %v3505 = vpop.permute.xlu0 %3504
    %3506 = vrot.lane.b32.xlu0 %v1913, 24
    %v3507 = vpop.permute.xlu0 %3506
    %3508 = vrot.lane.b32.xlu0 %v1914, 24
    %v3509 = vpop.permute.xlu0 %3508
    %3510 = vrot.lane.b32.xlu0 %v1915, 24
    %v3511 = vpop.permute.xlu0 %3510
    %3512 = vrot.lane.b32.xlu0 %v1916, 24
    %v3513 = vpop.permute.xlu0 %3512
    %3514 = vrot.lane.b32.xlu0 %v1917, 24
    %v3515 = vpop.permute.xlu0 %3514
    %3516 = vrot.lane.b32.xlu0 %v1918, 24
    %v3517 = vpop.permute.xlu0 %3516
    %3518 = vrot.lane.b32.xlu0 %v1919, 24
    %v3519 = vpop.permute.xlu0 %3518
    %3648 = vrot.lane.b32.xlu0 %v1920, 28
    %v3649 = vpop.permute.xlu0 %3648
    %3650 = vrot.lane.b32.xlu0 %v1921, 28
    %v3651 = vpop.permute.xlu0 %3650
    %3652 = vrot.lane.b32.xlu0 %v1922, 28
    %v3653 = vpop.permute.xlu0 %3652
    %3654 = vrot.lane.b32.xlu0 %v1923, 28
    %v3655 = vpop.permute.xlu0 %3654
    %3656 = vrot.lane.b32.xlu0 %v1924, 28
    %v3657 = vpop.permute.xlu0 %3656
    %3658 = vrot.lane.b32.xlu0 %v1925, 28
    %v3659 = vpop.permute.xlu0 %3658
    %3660 = vrot.lane.b32.xlu0 %v1926, 28
    %v3661 = vpop.permute.xlu0 %3660
    %3662 = vrot.lane.b32.xlu0 %v1927, 28
    %v3663 = vpop.permute.xlu0 %3662
    %3664 = vrot.lane.b32.xlu0 %v1928, 28
    %v3665 = vpop.permute.xlu0 %3664
    %3666 = vrot.lane.b32.xlu0 %v1929, 28
    %v3667 = vpop.permute.xlu0 %3666
    %3668 = vrot.lane.b32.xlu0 %v1930, 28
    %v3669 = vpop.permute.xlu0 %3668
    %3670 = vrot.lane.b32.xlu0 %v1931, 28
    %v3671 = vpop.permute.xlu0 %3670
    %3672 = vrot.lane.b32.xlu0 %v1932, 28
    %v3673 = vpop.permute.xlu0 %3672
    %3674 = vrot.lane.b32.xlu0 %v1933, 28
    %v3675 = vpop.permute.xlu0 %3674
    %3676 = vrot.lane.b32.xlu0 %v1934, 28
    %v3677 = vpop.permute.xlu0 %3676
    %3678 = vrot.lane.b32.xlu0 %v1935, 28
    %v3679 = vpop.permute.xlu0 %3678
    %3680 = vrot.lane.b32.xlu0 %v1936, 28
    %v3681 = vpop.permute.xlu0 %3680
    %3682 = vrot.lane.b32.xlu0 %v1937, 28
    %v3683 = vpop.permute.xlu0 %3682
    %3684 = vrot.lane.b32.xlu0 %v1938, 28
    %v3685 = vpop.permute.xlu0 %3684
    %3686 = vrot.lane.b32.xlu0 %v1939, 28
    %v3687 = vpop.permute.xlu0 %3686
    %3688 = vrot.lane.b32.xlu0 %v1940, 28
    %v3689 = vpop.permute.xlu0 %3688
    %3690 = vrot.lane.b32.xlu0 %v1941, 28
    %v3691 = vpop.permute.xlu0 %3690
    %3692 = vrot.lane.b32.xlu0 %v1942, 28
    %v3693 = vpop.permute.xlu0 %3692
    %3694 = vrot.lane.b32.xlu0 %v1943, 28
    %v3695 = vpop.permute.xlu0 %3694
    %3696 = vrot.lane.b32.xlu0 %v1944, 28
    %v3697 = vpop.permute.xlu0 %3696
    %3698 = vrot.lane.b32.xlu0 %v1945, 28
    %v3699 = vpop.permute.xlu0 %3698
    %3700 = vrot.lane.b32.xlu0 %v1946, 28
    %v3701 = vpop.permute.xlu0 %3700
    %3702 = vrot.lane.b32.xlu0 %v1947, 28
    %v3703 = vpop.permute.xlu0 %3702
    %3704 = vrot.lane.b32.xlu0 %v1948, 28
    %v3705 = vpop.permute.xlu0 %3704
    %3706 = vrot.lane.b32.xlu0 %v1949, 28
    %v3707 = vpop.permute.xlu0 %3706
    %3708 = vrot.lane.b32.xlu0 %v1950, 28
    %v3709 = vpop.permute.xlu0 %3708
    %3710 = vrot.lane.b32.xlu0 %v1951, 28
    %v3711 = vpop.permute.xlu0 %3710
    %3712 = vrot.lane.b32.xlu0 %v1952, 28
    %v3713 = vpop.permute.xlu0 %3712
    %3714 = vrot.lane.b32.xlu0 %v1953, 28
    %v3715 = vpop.permute.xlu0 %3714
    %3716 = vrot.lane.b32.xlu0 %v1954, 28
    %v3717 = vpop.permute.xlu0 %3716
    %3718 = vrot.lane.b32.xlu0 %v1955, 28
    %v3719 = vpop.permute.xlu0 %3718
    %3720 = vrot.lane.b32.xlu0 %v1956, 28
    %v3721 = vpop.permute.xlu0 %3720
    %3722 = vrot.lane.b32.xlu0 %v1957, 28
    %v3723 = vpop.permute.xlu0 %3722
    %3724 = vrot.lane.b32.xlu0 %v1958, 28
    %v3725 = vpop.permute.xlu0 %3724
    %3726 = vrot.lane.b32.xlu0 %v1959, 28
    %v3727 = vpop.permute.xlu0 %3726
    %3728 = vrot.lane.b32.xlu0 %v1960, 28
    %v3729 = vpop.permute.xlu0 %3728
    %3730 = vrot.lane.b32.xlu0 %v1961, 28
    %v3731 = vpop.permute.xlu0 %3730
    %3732 = vrot.lane.b32.xlu0 %v1962, 28
    %v3733 = vpop.permute.xlu0 %3732
    %3734 = vrot.lane.b32.xlu0 %v1963, 28
    %v3735 = vpop.permute.xlu0 %3734
    %3736 = vrot.lane.b32.xlu0 %v1964, 28
    %v3737 = vpop.permute.xlu0 %3736
    %3738 = vrot.lane.b32.xlu0 %v1965, 28
    %v3739 = vpop.permute.xlu0 %3738
    %3740 = vrot.lane.b32.xlu0 %v1966, 28
    %v3741 = vpop.permute.xlu0 %3740
    %3742 = vrot.lane.b32.xlu0 %v1967, 28
    %v3743 = vpop.permute.xlu0 %3742
    %3744 = vrot.lane.b32.xlu0 %v1968, 28
    %v3745 = vpop.permute.xlu0 %3744
    %3746 = vrot.lane.b32.xlu0 %v1969, 28
    %v3747 = vpop.permute.xlu0 %3746
    %3748 = vrot.lane.b32.xlu0 %v1970, 28
    %v3749 = vpop.permute.xlu0 %3748
    %3750 = vrot.lane.b32.xlu0 %v1971, 28
    %v3751 = vpop.permute.xlu0 %3750
    %3752 = vrot.lane.b32.xlu0 %v1972, 28
    %v3753 = vpop.permute.xlu0 %3752
    %3754 = vrot.lane.b32.xlu0 %v1973, 28
    %v3755 = vpop.permute.xlu0 %3754
    %3756 = vrot.lane.b32.xlu0 %v1974, 28
    %v3757 = vpop.permute.xlu0 %3756
    %3758 = vrot.lane.b32.xlu0 %v1975, 28
    %v3759 = vpop.permute.xlu0 %3758
    %3760 = vrot.lane.b32.xlu0 %v1976, 28
    %v3761 = vpop.permute.xlu0 %3760
    %3762 = vrot.lane.b32.xlu0 %v1977, 28
    %v3763 = vpop.permute.xlu0 %3762
    %3764 = vrot.lane.b32.xlu0 %v1978, 28
    %v3765 = vpop.permute.xlu0 %3764
    %3766 = vrot.lane.b32.xlu0 %v1979, 28
    %v3767 = vpop.permute.xlu0 %3766
    %3768 = vrot.lane.b32.xlu0 %v1980, 28
    %v3769 = vpop.permute.xlu0 %3768
    %3770 = vrot.lane.b32.xlu0 %v1981, 28
    %v3771 = vpop.permute.xlu0 %3770
    %3772 = vrot.lane.b32.xlu0 %v1982, 28
    %v3773 = vpop.permute.xlu0 %3772
    %3774 = vrot.lane.b32.xlu0 %v1983, 28
    %v3775 = vpop.permute.xlu0 %3774
    %3904 = vrot.lane.b32.xlu0 %v1984, 32
    %v3905 = vpop.permute.xlu0 %3904
    %3906 = vrot.lane.b32.xlu0 %v1985, 32
    %v3907 = vpop.permute.xlu0 %3906
    %3908 = vrot.lane.b32.xlu0 %v1986, 32
    %v3909 = vpop.permute.xlu0 %3908
    %3910 = vrot.lane.b32.xlu0 %v1987, 32
    %v3911 = vpop.permute.xlu0 %3910
    %3912 = vrot.lane.b32.xlu0 %v1988, 32
    %v3913 = vpop.permute.xlu0 %3912
    %3914 = vrot.lane.b32.xlu0 %v1989, 32
    %v3915 = vpop.permute.xlu0 %3914
    %3916 = vrot.lane.b32.xlu0 %v1990, 32
    %v3917 = vpop.permute.xlu0 %3916
    %3918 = vrot.lane.b32.xlu0 %v1991, 32
    %v3919 = vpop.permute.xlu0 %3918
    %3920 = vrot.lane.b32.xlu0 %v1992, 32
    %v3921 = vpop.permute.xlu0 %3920
    %3922 = vrot.lane.b32.xlu0 %v1993, 32
    %v3923 = vpop.permute.xlu0 %3922
    %3924 = vrot.lane.b32.xlu0 %v1994, 32
    %v3925 = vpop.permute.xlu0 %3924
    %3926 = vrot.lane.b32.xlu0 %v1995, 32
    %v3927 = vpop.permute.xlu0 %3926
    %3928 = vrot.lane.b32.xlu0 %v1996, 32
    %v3929 = vpop.permute.xlu0 %3928
    %3930 = vrot.lane.b32.xlu0 %v1997, 32
    %v3931 = vpop.permute.xlu0 %3930
    %3932 = vrot.lane.b32.xlu0 %v1998, 32
    %v3933 = vpop.permute.xlu0 %3932
    %3934 = vrot.lane.b32.xlu0 %v1999, 32
    %v3935 = vpop.permute.xlu0 %3934
    %3936 = vrot.lane.b32.xlu0 %v2000, 32
    %v3937 = vpop.permute.xlu0 %3936
    %3938 = vrot.lane.b32.xlu0 %v2001, 32
    %v3939 = vpop.permute.xlu0 %3938
    %3940 = vrot.lane.b32.xlu0 %v2002, 32
    %v3941 = vpop.permute.xlu0 %3940
    %3942 = vrot.lane.b32.xlu0 %v2003, 32
    %v3943 = vpop.permute.xlu0 %3942
    %3944 = vrot.lane.b32.xlu0 %v2004, 32
    %v3945 = vpop.permute.xlu0 %3944
    %3946 = vrot.lane.b32.xlu0 %v2005, 32
    %v3947 = vpop.permute.xlu0 %3946
    %3948 = vrot.lane.b32.xlu0 %v2006, 32
    %v3949 = vpop.permute.xlu0 %3948
    %3950 = vrot.lane.b32.xlu0 %v2007, 32
    %v3951 = vpop.permute.xlu0 %3950
    %3952 = vrot.lane.b32.xlu0 %v2008, 32
    %v3953 = vpop.permute.xlu0 %3952
    %3954 = vrot.lane.b32.xlu0 %v2009, 32
    %v3955 = vpop.permute.xlu0 %3954
    %3956 = vrot.lane.b32.xlu0 %v2010, 32
    %v3957 = vpop.permute.xlu0 %3956
    %3958 = vrot.lane.b32.xlu0 %v2011, 32
    %v3959 = vpop.permute.xlu0 %3958
    %3960 = vrot.lane.b32.xlu0 %v2012, 32
    %v3961 = vpop.permute.xlu0 %3960
    %3962 = vrot.lane.b32.xlu0 %v2013, 32
    %v3963 = vpop.permute.xlu0 %3962
    %3964 = vrot.lane.b32.xlu0 %v2014, 32
    %v3965 = vpop.permute.xlu0 %3964
    %3966 = vrot.lane.b32.xlu0 %v2015, 32
    %v3967 = vpop.permute.xlu0 %3966
    %3968 = vrot.lane.b32.xlu0 %v2016, 32
    %v3969 = vpop.permute.xlu0 %3968
    %3970 = vrot.lane.b32.xlu0 %v2017, 32
    %v3971 = vpop.permute.xlu0 %3970
    %3972 = vrot.lane.b32.xlu0 %v2018, 32
    %v3973 = vpop.permute.xlu0 %3972
    %3974 = vrot.lane.b32.xlu0 %v2019, 32
    %v3975 = vpop.permute.xlu0 %3974
    %3976 = vrot.lane.b32.xlu0 %v2020, 32
    %v3977 = vpop.permute.xlu0 %3976
    %3978 = vrot.lane.b32.xlu0 %v2021, 32
    %v3979 = vpop.permute.xlu0 %3978
    %3980 = vrot.lane.b32.xlu0 %v2022, 32
    %v3981 = vpop.permute.xlu0 %3980
    %3982 = vrot.lane.b32.xlu0 %v2023, 32
    %v3983 = vpop.permute.xlu0 %3982
    %3984 = vrot.lane.b32.xlu0 %v2024, 32
    %v3985 = vpop.permute.xlu0 %3984
    %3986 = vrot.lane.b32.xlu0 %v2025, 32
    %v3987 = vpop.permute.xlu0 %3986
    %3988 = vrot.lane.b32.xlu0 %v2026, 32
    %v3989 = vpop.permute.xlu0 %3988
    %3990 = vrot.lane.b32.xlu0 %v2027, 32
    %v3991 = vpop.permute.xlu0 %3990
    %3992 = vrot.lane.b32.xlu0 %v2028, 32
    %v3993 = vpop.permute.xlu0 %3992
    %3994 = vrot.lane.b32.xlu0 %v2029, 32
    %v3995 = vpop.permute.xlu0 %3994
    %3996 = vrot.lane.b32.xlu0 %v2030, 32
    %v3997 = vpop.permute.xlu0 %3996
    %3998 = vrot.lane.b32.xlu0 %v2031, 32
    %v3999 = vpop.permute.xlu0 %3998
    %4000 = vrot.lane.b32.xlu0 %v2032, 32
    %v4001 = vpop.permute.xlu0 %4000
    %4002 = vrot.lane.b32.xlu0 %v2033, 32
    %v4003 = vpop.permute.xlu0 %4002
    %4004 = vrot.lane.b32.xlu0 %v2034, 32
    %v4005 = vpop.permute.xlu0 %4004
    %4006 = vrot.lane.b32.xlu0 %v2035, 32
    %v4007 = vpop.permute.xlu0 %4006
    %4008 = vrot.lane.b32.xlu0 %v2036, 32
    %v4009 = vpop.permute.xlu0 %4008
    %4010 = vrot.lane.b32.xlu0 %v2037, 32
    %v4011 = vpop.permute.xlu0 %4010
    %4012 = vrot.lane.b32.xlu0 %v2038, 32
    %v4013 = vpop.permute.xlu0 %4012
    %4014 = vrot.lane.b32.xlu0 %v2039, 32
    %v4015 = vpop.permute.xlu0 %4014
    %4016 = vrot.lane.b32.xlu0 %v2040, 32
    %v4017 = vpop.permute.xlu0 %4016
    %4018 = vrot.lane.b32.xlu0 %v2041, 32
    %v4019 = vpop.permute.xlu0 %4018
    %4020 = vrot.lane.b32.xlu0 %v2042, 32
    %v4021 = vpop.permute.xlu0 %4020
    %4022 = vrot.lane.b32.xlu0 %v2043, 32
    %v4023 = vpop.permute.xlu0 %4022
    %4024 = vrot.lane.b32.xlu0 %v2044, 32
    %v4025 = vpop.permute.xlu0 %4024
    %4026 = vrot.lane.b32.xlu0 %v2045, 32
    %v4027 = vpop.permute.xlu0 %4026
    %4028 = vrot.lane.b32.xlu0 %v2046, 32
    %v4029 = vpop.permute.xlu0 %4028
    %4030 = vrot.lane.b32.xlu0 %v2047, 32
    %v4031 = vpop.permute.xlu0 %4030
    %v4096 = vsel %vm110, %v1471, %v2113
    %v4097 = vsel %vm110, %v1472, %v2115
    %v4098 = vsel %vm110, %v1473, %v2117
    %v4099 = vsel %vm110, %v1474, %v2119
    %v4100 = vsel %vm110, %v1475, %v2121
    %v4101 = vsel %vm110, %v1476, %v2123
    %v4102 = vsel %vm110, %v1477, %v2125
    %v4103 = vsel %vm110, %v1478, %v2127
    %v4104 = vsel %vm110, %v1479, %v2129
    %v4105 = vsel %vm110, %v1480, %v2131
    %v4106 = vsel %vm110, %v1481, %v2133
    %v4107 = vsel %vm110, %v1482, %v2135
    %v4108 = vsel %vm110, %v1483, %v2137
    %v4109 = vsel %vm110, %v1484, %v2139
    %v4110 = vsel %vm110, %v1485, %v2141
    %v4111 = vsel %vm110, %v1486, %v2143
    %v4112 = vsel %vm110, %v1487, %v2145
    %v4113 = vsel %vm110, %v1488, %v2147
    %v4114 = vsel %vm110, %v1489, %v2149
    %v4115 = vsel %vm110, %v1490, %v2151
    %v4116 = vsel %vm110, %v1491, %v2153
    %v4117 = vsel %vm110, %v1492, %v2155
    %v4118 = vsel %vm110, %v1493, %v2157
    %v4119 = vsel %vm110, %v1494, %v2159
    %v4120 = vsel %vm110, %v1495, %v2161
    %v4121 = vsel %vm110, %v1496, %v2163
    %v4122 = vsel %vm110, %v1497, %v2165
    %v4123 = vsel %vm110, %v1498, %v2167
    %v4124 = vsel %vm110, %v1499, %v2169
    %v4125 = vsel %vm110, %v1500, %v2171
    %v4126 = vsel %vm110, %v1501, %v2173
    %v4127 = vsel %vm110, %v1502, %v2175
    %v4128 = vsel %vm110, %v1503, %v2177
    %v4129 = vsel %vm110, %v1504, %v2179
    %v4130 = vsel %vm110, %v1505, %v2181
    %v4131 = vsel %vm110, %v1506, %v2183
    %v4132 = vsel %vm110, %v1507, %v2185
    %v4133 = vsel %vm110, %v1508, %v2187
    %v4134 = vsel %vm110, %v1509, %v2189
    %v4135 = vsel %vm110, %v1510, %v2191
    %v4136 = vsel %vm110, %v1511, %v2193
    %v4137 = vsel %vm110, %v1512, %v2195
    %v4138 = vsel %vm110, %v1513, %v2197
    %v4139 = vsel %vm110, %v1514, %v2199
    %v4140 = vsel %vm110, %v1515, %v2201
    %v4141 = vsel %vm110, %v1516, %v2203
    %v4142 = vsel %vm110, %v1517, %v2205
    %v4143 = vsel %vm110, %v1518, %v2207
    %v4144 = vsel %vm110, %v1519, %v2209
    %v4145 = vsel %vm110, %v1520, %v2211
    %v4146 = vsel %vm110, %v1521, %v2213
    %v4147 = vsel %vm110, %v1522, %v2215
    %v4148 = vsel %vm110, %v1523, %v2217
    %v4149 = vsel %vm110, %v1524, %v2219
    %v4150 = vsel %vm110, %v1525, %v2221
    %v4151 = vsel %vm110, %v1526, %v2223
    %v4152 = vsel %vm110, %v1527, %v2225
    %v4153 = vsel %vm110, %v1528, %v2227
    %v4154 = vsel %vm110, %v1529, %v2229
    %v4155 = vsel %vm110, %v1530, %v2231
    %v4156 = vsel %vm110, %v1531, %v2233
    %v4157 = vsel %vm110, %v1532, %v2235
    %v4158 = vsel %vm110, %v1533, %v2237
    %v4159 = vsel %vm110, %v1534, %v2239
    %vm4160 = vcmask 64512
    %v4161 = vsel %vm4160, %v4096, %v2369
    %v4162 = vsel %vm4160, %v4097, %v2371
    %v4163 = vsel %vm4160, %v4098, %v2373
    %v4164 = vsel %vm4160, %v4099, %v2375
    %v4165 = vsel %vm4160, %v4100, %v2377
    %v4166 = vsel %vm4160, %v4101, %v2379
    %v4167 = vsel %vm4160, %v4102, %v2381
    %v4168 = vsel %vm4160, %v4103, %v2383
    %v4169 = vsel %vm4160, %v4104, %v2385
    %v4170 = vsel %vm4160, %v4105, %v2387
    %v4171 = vsel %vm4160, %v4106, %v2389
    %v4172 = vsel %vm4160, %v4107, %v2391
    %v4173 = vsel %vm4160, %v4108, %v2393
    %v4174 = vsel %vm4160, %v4109, %v2395
    %v4175 = vsel %vm4160, %v4110, %v2397
    %v4176 = vsel %vm4160, %v4111, %v2399
    %v4177 = vsel %vm4160, %v4112, %v2401
    %v4178 = vsel %vm4160, %v4113, %v2403
    %v4179 = vsel %vm4160, %v4114, %v2405
    %v4180 = vsel %vm4160, %v4115, %v2407
    %v4181 = vsel %vm4160, %v4116, %v2409
    %v4182 = vsel %vm4160, %v4117, %v2411
    %v4183 = vsel %vm4160, %v4118, %v2413
    %v4184 = vsel %vm4160, %v4119, %v2415
    %v4185 = vsel %vm4160, %v4120, %v2417
    %v4186 = vsel %vm4160, %v4121, %v2419
    %v4187 = vsel %vm4160, %v4122, %v2421
    %v4188 = vsel %vm4160, %v4123, %v2423
    %v4189 = vsel %vm4160, %v4124, %v2425
    %v4190 = vsel %vm4160, %v4125, %v2427
    %v4191 = vsel %vm4160, %v4126, %v2429
    %v4192 = vsel %vm4160, %v4127, %v2431
    %v4193 = vsel %vm4160, %v4128, %v2433
    %v4194 = vsel %vm4160, %v4129, %v2435
    %v4195 = vsel %vm4160, %v4130, %v2437
    %v4196 = vsel %vm4160, %v4131, %v2439
    %v4197 = vsel %vm4160, %v4132, %v2441
    %v4198 = vsel %vm4160, %v4133, %v2443
    %v4199 = vsel %vm4160, %v4134, %v2445
    %v4200 = vsel %vm4160, %v4135, %v2447
    %v4201 = vsel %vm4160, %v4136, %v2449
    %v4202 = vsel %vm4160, %v4137, %v2451
    %v4203 = vsel %vm4160, %v4138, %v2453
    %v4204 = vsel %vm4160, %v4139, %v2455
    %v4205 = vsel %vm4160, %v4140, %v2457
    %v4206 = vsel %vm4160, %v4141, %v2459
    %v4207 = vsel %vm4160, %v4142, %v2461
    %v4208 = vsel %vm4160, %v4143, %v2463
    %v4209 = vsel %vm4160, %v4144, %v2465
    %v4210 = vsel %vm4160, %v4145, %v2467
    %v4211 = vsel %vm4160, %v4146, %v2469
    %v4212 = vsel %vm4160, %v4147, %v2471
    %v4213 = vsel %vm4160, %v4148, %v2473
    %v4214 = vsel %vm4160, %v4149, %v2475
    %v4215 = vsel %vm4160, %v4150, %v2477
    %v4216 = vsel %vm4160, %v4151, %v2479
    %v4217 = vsel %vm4160, %v4152, %v2481
    %v4218 = vsel %vm4160, %v4153, %v2483
    %v4219 = vsel %vm4160, %v4154, %v2485
    %v4220 = vsel %vm4160, %v4155, %v2487
    %v4221 = vsel %vm4160, %v4156, %v2489
    %v4222 = vsel %vm4160, %v4157, %v2491
    %v4223 = vsel %vm4160, %v4158, %v2493
    %v4224 = vsel %vm4160, %v4159, %v2495
    %vm4225 = vcmask 97280
    %v4226 = vsel %vm4225, %v4161, %v2625
    %v4227 = vsel %vm4225, %v4162, %v2627
    %v4228 = vsel %vm4225, %v4163, %v2629
    %v4229 = vsel %vm4225, %v4164, %v2631
    %v4230 = vsel %vm4225, %v4165, %v2633
    %v4231 = vsel %vm4225, %v4166, %v2635
    %v4232 = vsel %vm4225, %v4167, %v2637
    %v4233 = vsel %vm4225, %v4168, %v2639
    %v4234 = vsel %vm4225, %v4169, %v2641
    %v4235 = vsel %vm4225, %v4170, %v2643
    %v4236 = vsel %vm4225, %v4171, %v2645
    %v4237 = vsel %vm4225, %v4172, %v2647
    %v4238 = vsel %vm4225, %v4173, %v2649
    %v4239 = vsel %vm4225, %v4174, %v2651
    %v4240 = vsel %vm4225, %v4175, %v2653
    %v4241 = vsel %vm4225, %v4176, %v2655
    %v4242 = vsel %vm4225, %v4177, %v2657
    %v4243 = vsel %vm4225, %v4178, %v2659
    %v4244 = vsel %vm4225, %v4179, %v2661
    %v4245 = vsel %vm4225, %v4180, %v2663
    %v4246 = vsel %vm4225, %v4181, %v2665
    %v4247 = vsel %vm4225, %v4182, %v2667
    %v4248 = vsel %vm4225, %v4183, %v2669
    %v4249 = vsel %vm4225, %v4184, %v2671
    %v4250 = vsel %vm4225, %v4185, %v2673
    %v4251 = vsel %vm4225, %v4186, %v2675
    %v4252 = vsel %vm4225, %v4187, %v2677
    %v4253 = vsel %vm4225, %v4188, %v2679
    %v4254 = vsel %vm4225, %v4189, %v2681
    %v4255 = vsel %vm4225, %v4190, %v2683
    %v4256 = vsel %vm4225, %v4191, %v2685
    %v4257 = vsel %vm4225, %v4192, %v2687
    %v4258 = vsel %vm4225, %v4193, %v2689
    %v4259 = vsel %vm4225, %v4194, %v2691
    %v4260 = vsel %vm4225, %v4195, %v2693
    %v4261 = vsel %vm4225, %v4196, %v2695
    %v4262 = vsel %vm4225, %v4197, %v2697
    %v4263 = vsel %vm4225, %v4198, %v2699
    %v4264 = vsel %vm4225, %v4199, %v2701
    %v4265 = vsel %vm4225, %v4200, %v2703
    %v4266 = vsel %vm4225, %v4201, %v2705
    %v4267 = vsel %vm4225, %v4202, %v2707
    %v4268 = vsel %vm4225, %v4203, %v2709
    %v4269 = vsel %vm4225, %v4204, %v2711
    %v4270 = vsel %vm4225, %v4205, %v2713
    %v4271 = vsel %vm4225, %v4206, %v2715
    %v4272 = vsel %vm4225, %v4207, %v2717
    %v4273 = vsel %vm4225, %v4208, %v2719
    %v4274 = vsel %vm4225, %v4209, %v2721
    %v4275 = vsel %vm4225, %v4210, %v2723
    %v4276 = vsel %vm4225, %v4211, %v2725
    %v4277 = vsel %vm4225, %v4212, %v2727
    %v4278 = vsel %vm4225, %v4213, %v2729
    %v4279 = vsel %vm4225, %v4214, %v2731
    %v4280 = vsel %vm4225, %v4215, %v2733
    %v4281 = vsel %vm4225, %v4216, %v2735
    %v4282 = vsel %vm4225, %v4217, %v2737
    %v4283 = vsel %vm4225, %v4218, %v2739
    %v4284 = vsel %vm4225, %v4219, %v2741
    %v4285 = vsel %vm4225, %v4220, %v2743
    %v4286 = vsel %vm4225, %v4221, %v2745
    %v4287 = vsel %vm4225, %v4222, %v2747
    %v4288 = vsel %vm4225, %v4223, %v2749
    %v4289 = vsel %vm4225, %v4224, %v2751
    %vm4290 = vcmask 130048
    %v4291 = vsel %vm4290, %v4226, %v2881
    %v4292 = vsel %vm4290, %v4227, %v2883
    %v4293 = vsel %vm4290, %v4228, %v2885
    %v4294 = vsel %vm4290, %v4229, %v2887
    %v4295 = vsel %vm4290, %v4230, %v2889
    %v4296 = vsel %vm4290, %v4231, %v2891
    %v4297 = vsel %vm4290, %v4232, %v2893
    %v4298 = vsel %vm4290, %v4233, %v2895
    %v4299 = vsel %vm4290, %v4234, %v2897
    %v4300 = vsel %vm4290, %v4235, %v2899
    %v4301 = vsel %vm4290, %v4236, %v2901
    %v4302 = vsel %vm4290, %v4237, %v2903
    %v4303 = vsel %vm4290, %v4238, %v2905
    %v4304 = vsel %vm4290, %v4239, %v2907
    %v4305 = vsel %vm4290, %v4240, %v2909
    %v4306 = vsel %vm4290, %v4241, %v2911
    %v4307 = vsel %vm4290, %v4242, %v2913
    %v4308 = vsel %vm4290, %v4243, %v2915
    %v4309 = vsel %vm4290, %v4244, %v2917
    %v4310 = vsel %vm4290, %v4245, %v2919
    %v4311 = vsel %vm4290, %v4246, %v2921
    %v4312 = vsel %vm4290, %v4247, %v2923
    %v4313 = vsel %vm4290, %v4248, %v2925
    %v4314 = vsel %vm4290, %v4249, %v2927
    %v4315 = vsel %vm4290, %v4250, %v2929
    %v4316 = vsel %vm4290, %v4251, %v2931
    %v4317 = vsel %vm4290, %v4252, %v2933
    %v4318 = vsel %vm4290, %v4253, %v2935
    %v4319 = vsel %vm4290, %v4254, %v2937
    %v4320 = vsel %vm4290, %v4255, %v2939
    %v4321 = vsel %vm4290, %v4256, %v2941
    %v4322 = vsel %vm4290, %v4257, %v2943
    %v4323 = vsel %vm4290, %v4258, %v2945
    %v4324 = vsel %vm4290, %v4259, %v2947
    %v4325 = vsel %vm4290, %v4260, %v2949
    %v4326 = vsel %vm4290, %v4261, %v2951
    %v4327 = vsel %vm4290, %v4262, %v2953
    %v4328 = vsel %vm4290, %v4263, %v2955
    %v4329 = vsel %vm4290, %v4264, %v2957
    %v4330 = vsel %vm4290, %v4265, %v2959
    %v4331 = vsel %vm4290, %v4266, %v2961
    %v4332 = vsel %vm4290, %v4267, %v2963
    %v4333 = vsel %vm4290, %v4268, %v2965
    %v4334 = vsel %vm4290, %v4269, %v2967
    %v4335 = vsel %vm4290, %v4270, %v2969
    %v4336 = vsel %vm4290, %v4271, %v2971
    %v4337 = vsel %vm4290, %v4272, %v2973
    %v4338 = vsel %vm4290, %v4273, %v2975
    %v4339 = vsel %vm4290, %v4274, %v2977
    %v4340 = vsel %vm4290, %v4275, %v2979
    %v4341 = vsel %vm4290, %v4276, %v2981
    %v4342 = vsel %vm4290, %v4277, %v2983
    %v4343 = vsel %vm4290, %v4278, %v2985
    %v4344 = vsel %vm4290, %v4279, %v2987
    %v4345 = vsel %vm4290, %v4280, %v2989
    %v4346 = vsel %vm4290, %v4281, %v2991
    %v4347 = vsel %vm4290, %v4282, %v2993
    %v4348 = vsel %vm4290, %v4283, %v2995
    %v4349 = vsel %vm4290, %v4284, %v2997
    %v4350 = vsel %vm4290, %v4285, %v2999
    %v4351 = vsel %vm4290, %v4286, %v3001
    %v4352 = vsel %vm4290, %v4287, %v3003
    %v4353 = vsel %vm4290, %v4288, %v3005
    %v4354 = vsel %vm4290, %v4289, %v3007
    %vm4355 = vcmask 162816
    %v4356 = vsel %vm4355, %v4291, %v3137
    %v4357 = vsel %vm4355, %v4292, %v3139
    %v4358 = vsel %vm4355, %v4293, %v3141
    %v4359 = vsel %vm4355, %v4294, %v3143
    %v4360 = vsel %vm4355, %v4295, %v3145
    %v4361 = vsel %vm4355, %v4296, %v3147
    %v4362 = vsel %vm4355, %v4297, %v3149
    %v4363 = vsel %vm4355, %v4298, %v3151
    %v4364 = vsel %vm4355, %v4299, %v3153
    %v4365 = vsel %vm4355, %v4300, %v3155
    %v4366 = vsel %vm4355, %v4301, %v3157
    %v4367 = vsel %vm4355, %v4302, %v3159
    %v4368 = vsel %vm4355, %v4303, %v3161
    %v4369 = vsel %vm4355, %v4304, %v3163
    %v4370 = vsel %vm4355, %v4305, %v3165
    %v4371 = vsel %vm4355, %v4306, %v3167
    %v4372 = vsel %vm4355, %v4307, %v3169
    %v4373 = vsel %vm4355, %v4308, %v3171
    %v4374 = vsel %vm4355, %v4309, %v3173
    %v4375 = vsel %vm4355, %v4310, %v3175
    %v4376 = vsel %vm4355, %v4311, %v3177
    %v4377 = vsel %vm4355, %v4312, %v3179
    %v4378 = vsel %vm4355, %v4313, %v3181
    %v4379 = vsel %vm4355, %v4314, %v3183
    %v4380 = vsel %vm4355, %v4315, %v3185
    %v4381 = vsel %vm4355, %v4316, %v3187
    %v4382 = vsel %vm4355, %v4317, %v3189
    %v4383 = vsel %vm4355, %v4318, %v3191
    %v4384 = vsel %vm4355, %v4319, %v3193
    %v4385 = vsel %vm4355, %v4320, %v3195
    %v4386 = vsel %vm4355, %v4321, %v3197
    %v4387 = vsel %vm4355, %v4322, %v3199
    %v4388 = vsel %vm4355, %v4323, %v3201
    %v4389 = vsel %vm4355, %v4324, %v3203
    %v4390 = vsel %vm4355, %v4325, %v3205
    %v4391 = vsel %vm4355, %v4326, %v3207
    %v4392 = vsel %vm4355, %v4327, %v3209
    %v4393 = vsel %vm4355, %v4328, %v3211
    %v4394 = vsel %vm4355, %v4329, %v3213
    %v4395 = vsel %vm4355, %v4330, %v3215
    %v4396 = vsel %vm4355, %v4331, %v3217
    %v4397 = vsel %vm4355, %v4332, %v3219
    %v4398 = vsel %vm4355, %v4333, %v3221
    %v4399 = vsel %vm4355, %v4334, %v3223
    %v4400 = vsel %vm4355, %v4335, %v3225
    %v4401 = vsel %vm4355, %v4336, %v3227
    %v4402 = vsel %vm4355, %v4337, %v3229
    %v4403 = vsel %vm4355, %v4338, %v3231
    %v4404 = vsel %vm4355, %v4339, %v3233
    %v4405 = vsel %vm4355, %v4340, %v3235
    %v4406 = vsel %vm4355, %v4341, %v3237
    %v4407 = vsel %vm4355, %v4342, %v3239
    %v4408 = vsel %vm4355, %v4343, %v3241
    %v4409 = vsel %vm4355, %v4344, %v3243
    %v4410 = vsel %vm4355, %v4345, %v3245
    %v4411 = vsel %vm4355, %v4346, %v3247
    %v4412 = vsel %vm4355, %v4347, %v3249
    %v4413 = vsel %vm4355, %v4348, %v3251
    %v4414 = vsel %vm4355, %v4349, %v3253
    %v4415 = vsel %vm4355, %v4350, %v3255
    %v4416 = vsel %vm4355, %v4351, %v3257
    %v4417 = vsel %vm4355, %v4352, %v3259
    %v4418 = vsel %vm4355, %v4353, %v3261
    %v4419 = vsel %vm4355, %v4354, %v3263
    %vm4420 = vcmask 195584
    %v4421 = vsel %vm4420, %v4356, %v3393
    %v4422 = vsel %vm4420, %v4357, %v3395
    %v4423 = vsel %vm4420, %v4358, %v3397
    %v4424 = vsel %vm4420, %v4359, %v3399
    %v4425 = vsel %vm4420, %v4360, %v3401
    %v4426 = vsel %vm4420, %v4361, %v3403
    %v4427 = vsel %vm4420, %v4362, %v3405
    %v4428 = vsel %vm4420, %v4363, %v3407
    %v4429 = vsel %vm4420, %v4364, %v3409
    %v4430 = vsel %vm4420, %v4365, %v3411
    %v4431 = vsel %vm4420, %v4366, %v3413
    %v4432 = vsel %vm4420, %v4367, %v3415
    %v4433 = vsel %vm4420, %v4368, %v3417
    %v4434 = vsel %vm4420, %v4369, %v3419
    %v4435 = vsel %vm4420, %v4370, %v3421
    %v4436 = vsel %vm4420, %v4371, %v3423
    %v4437 = vsel %vm4420, %v4372, %v3425
    %v4438 = vsel %vm4420, %v4373, %v3427
    %v4439 = vsel %vm4420, %v4374, %v3429
    %v4440 = vsel %vm4420, %v4375, %v3431
    %v4441 = vsel %vm4420, %v4376, %v3433
    %v4442 = vsel %vm4420, %v4377, %v3435
    %v4443 = vsel %vm4420, %v4378, %v3437
    %v4444 = vsel %vm4420, %v4379, %v3439
    %v4445 = vsel %vm4420, %v4380, %v3441
    %v4446 = vsel %vm4420, %v4381, %v3443
    %v4447 = vsel %vm4420, %v4382, %v3445
    %v4448 = vsel %vm4420, %v4383, %v3447
    %v4449 = vsel %vm4420, %v4384, %v3449
    %v4450 = vsel %vm4420, %v4385, %v3451
    %v4451 = vsel %vm4420, %v4386, %v3453
    %v4452 = vsel %vm4420, %v4387, %v3455
    %v4453 = vsel %vm4420, %v4388, %v3457
    %v4454 = vsel %vm4420, %v4389, %v3459
    %v4455 = vsel %vm4420, %v4390, %v3461
    %v4456 = vsel %vm4420, %v4391, %v3463
    %v4457 = vsel %vm4420, %v4392, %v3465
    %v4458 = vsel %vm4420, %v4393, %v3467
    %v4459 = vsel %vm4420, %v4394, %v3469
    %v4460 = vsel %vm4420, %v4395, %v3471
    %v4461 = vsel %vm4420, %v4396, %v3473
    %v4462 = vsel %vm4420, %v4397, %v3475
    %v4463 = vsel %vm4420, %v4398, %v3477
    %v4464 = vsel %vm4420, %v4399, %v3479
    %v4465 = vsel %vm4420, %v4400, %v3481
    %v4466 = vsel %vm4420, %v4401, %v3483
    %v4467 = vsel %vm4420, %v4402, %v3485
    %v4468 = vsel %vm4420, %v4403, %v3487
    %v4469 = vsel %vm4420, %v4404, %v3489
    %v4470 = vsel %vm4420, %v4405, %v3491
    %v4471 = vsel %vm4420, %v4406, %v3493
    %v4472 = vsel %vm4420, %v4407, %v3495
    %v4473 = vsel %vm4420, %v4408, %v3497
    %v4474 = vsel %vm4420, %v4409, %v3499
    %v4475 = vsel %vm4420, %v4410, %v3501
    %v4476 = vsel %vm4420, %v4411, %v3503
    %v4477 = vsel %vm4420, %v4412, %v3505
    %v4478 = vsel %vm4420, %v4413, %v3507
    %v4479 = vsel %vm4420, %v4414, %v3509
    %v4480 = vsel %vm4420, %v4415, %v3511
    %v4481 = vsel %vm4420, %v4416, %v3513
    %v4482 = vsel %vm4420, %v4417, %v3515
    %v4483 = vsel %vm4420, %v4418, %v3517
    %v4484 = vsel %vm4420, %v4419, %v3519
    %vm4485 = vcmask 228352
    %v4486 = vsel %vm4485, %v4421, %v3649
    %v4487 = vsel %vm4485, %v4422, %v3651
    %v4488 = vsel %vm4485, %v4423, %v3653
    %v4489 = vsel %vm4485, %v4424, %v3655
    %v4490 = vsel %vm4485, %v4425, %v3657
    %v4491 = vsel %vm4485, %v4426, %v3659
    %v4492 = vsel %vm4485, %v4427, %v3661
    %v4493 = vsel %vm4485, %v4428, %v3663
    %v4494 = vsel %vm4485, %v4429, %v3665
    %v4495 = vsel %vm4485, %v4430, %v3667
    %v4496 = vsel %vm4485, %v4431, %v3669
    %v4497 = vsel %vm4485, %v4432, %v3671
    %v4498 = vsel %vm4485, %v4433, %v3673
    %v4499 = vsel %vm4485, %v4434, %v3675
    %v4500 = vsel %vm4485, %v4435, %v3677
    %v4501 = vsel %vm4485, %v4436, %v3679
    %v4502 = vsel %vm4485, %v4437, %v3681
    %v4503 = vsel %vm4485, %v4438, %v3683
    %v4504 = vsel %vm4485, %v4439, %v3685
    %v4505 = vsel %vm4485, %v4440, %v3687
    %v4506 = vsel %vm4485, %v4441, %v3689
    %v4507 = vsel %vm4485, %v4442, %v3691
    %v4508 = vsel %vm4485, %v4443, %v3693
    %v4509 = vsel %vm4485, %v4444, %v3695
    %v4510 = vsel %vm4485, %v4445, %v3697
    %v4511 = vsel %vm4485, %v4446, %v3699
    %v4512 = vsel %vm4485, %v4447, %v3701
    %v4513 = vsel %vm4485, %v4448, %v3703
    %v4514 = vsel %vm4485, %v4449, %v3705
    %v4515 = vsel %vm4485, %v4450, %v3707
    %v4516 = vsel %vm4485, %v4451, %v3709
    %v4517 = vsel %vm4485, %v4452, %v3711
    %v4518 = vsel %vm4485, %v4453, %v3713
    %v4519 = vsel %vm4485, %v4454, %v3715
    %v4520 = vsel %vm4485, %v4455, %v3717
    %v4521 = vsel %vm4485, %v4456, %v3719
    %v4522 = vsel %vm4485, %v4457, %v3721
    %v4523 = vsel %vm4485, %v4458, %v3723
    %v4524 = vsel %vm4485, %v4459, %v3725
    %v4525 = vsel %vm4485, %v4460, %v3727
    %v4526 = vsel %vm4485, %v4461, %v3729
    %v4527 = vsel %vm4485, %v4462, %v3731
    %v4528 = vsel %vm4485, %v4463, %v3733
    %v4529 = vsel %vm4485, %v4464, %v3735
    %v4530 = vsel %vm4485, %v4465, %v3737
    %v4531 = vsel %vm4485, %v4466, %v3739
    %v4532 = vsel %vm4485, %v4467, %v3741
    %v4533 = vsel %vm4485, %v4468, %v3743
    %v4534 = vsel %vm4485, %v4469, %v3745
    %v4535 = vsel %vm4485, %v4470, %v3747
    %v4536 = vsel %vm4485, %v4471, %v3749
    %v4537 = vsel %vm4485, %v4472, %v3751
    %v4538 = vsel %vm4485, %v4473, %v3753
    %v4539 = vsel %vm4485, %v4474, %v3755
    %v4540 = vsel %vm4485, %v4475, %v3757
    %v4541 = vsel %vm4485, %v4476, %v3759
    %v4542 = vsel %vm4485, %v4477, %v3761
    %v4543 = vsel %vm4485, %v4478, %v3763
    %v4544 = vsel %vm4485, %v4479, %v3765
    %v4545 = vsel %vm4485, %v4480, %v3767
    %v4546 = vsel %vm4485, %v4481, %v3769
    %v4547 = vsel %vm4485, %v4482, %v3771
    %v4548 = vsel %vm4485, %v4483, %v3773
    %v4549 = vsel %vm4485, %v4484, %v3775
    %vm4550 = vcmask 261120
    %v4551 = vsel %vm4550, %v4486, %v3905
    %v4552 = vsel %vm4550, %v4487, %v3907
    %v4553 = vsel %vm4550, %v4488, %v3909
    %v4554 = vsel %vm4550, %v4489, %v3911
    %v4555 = vsel %vm4550, %v4490, %v3913
    %v4556 = vsel %vm4550, %v4491, %v3915
    %v4557 = vsel %vm4550, %v4492, %v3917
    %v4558 = vsel %vm4550, %v4493, %v3919
    %v4559 = vsel %vm4550, %v4494, %v3921
    %v4560 = vsel %vm4550, %v4495, %v3923
    %v4561 = vsel %vm4550, %v4496, %v3925
    %v4562 = vsel %vm4550, %v4497, %v3927
    %v4563 = vsel %vm4550, %v4498, %v3929
    %v4564 = vsel %vm4550, %v4499, %v3931
    %v4565 = vsel %vm4550, %v4500, %v3933
    %v4566 = vsel %vm4550, %v4501, %v3935
    %v4567 = vsel %vm4550, %v4502, %v3937
    %v4568 = vsel %vm4550, %v4503, %v3939
    %v4569 = vsel %vm4550, %v4504, %v3941
    %v4570 = vsel %vm4550, %v4505, %v3943
    %v4571 = vsel %vm4550, %v4506, %v3945
    %v4572 = vsel %vm4550, %v4507, %v3947
    %v4573 = vsel %vm4550, %v4508, %v3949
    %v4574 = vsel %vm4550, %v4509, %v3951
    %v4575 = vsel %vm4550, %v4510, %v3953
    %v4576 = vsel %vm4550, %v4511, %v3955
    %v4577 = vsel %vm4550, %v4512, %v3957
    %v4578 = vsel %vm4550, %v4513, %v3959
    %v4579 = vsel %vm4550, %v4514, %v3961
    %v4580 = vsel %vm4550, %v4515, %v3963
    %v4581 = vsel %vm4550, %v4516, %v3965
    %v4582 = vsel %vm4550, %v4517, %v3967
    %v4583 = vsel %vm4550, %v4518, %v3969
    %v4584 = vsel %vm4550, %v4519, %v3971
    %v4585 = vsel %vm4550, %v4520, %v3973
    %v4586 = vsel %vm4550, %v4521, %v3975
    %v4587 = vsel %vm4550, %v4522, %v3977
    %v4588 = vsel %vm4550, %v4523, %v3979
    %v4589 = vsel %vm4550, %v4524, %v3981
    %v4590 = vsel %vm4550, %v4525, %v3983
    %v4591 = vsel %vm4550, %v4526, %v3985
    %v4592 = vsel %vm4550, %v4527, %v3987
    %v4593 = vsel %vm4550, %v4528, %v3989
    %v4594 = vsel %vm4550, %v4529, %v3991
    %v4595 = vsel %vm4550, %v4530, %v3993
    %v4596 = vsel %vm4550, %v4531, %v3995
    %v4597 = vsel %vm4550, %v4532, %v3997
    %v4598 = vsel %vm4550, %v4533, %v3999
    %v4599 = vsel %vm4550, %v4534, %v4001
    %v4600 = vsel %vm4550, %v4535, %v4003
    %v4601 = vsel %vm4550, %v4536, %v4005
    %v4602 = vsel %vm4550, %v4537, %v4007
    %v4603 = vsel %vm4550, %v4538, %v4009
    %v4604 = vsel %vm4550, %v4539, %v4011
    %v4605 = vsel %vm4550, %v4540, %v4013
    %v4606 = vsel %vm4550, %v4541, %v4015
    %v4607 = vsel %vm4550, %v4542, %v4017
    %v4608 = vsel %vm4550, %v4543, %v4019
    %v4609 = vsel %vm4550, %v4544, %v4021
    %v4610 = vsel %vm4550, %v4545, %v4023
    %v4611 = vsel %vm4550, %v4546, %v4025
    %v4612 = vsel %vm4550, %v4547, %v4027
    %v4613 = vsel %vm4550, %v4548, %v4029
    %v4614 = vsel %vm4550, %v4549, %v4031
    %v4615 = vld [vmem:[%s4] sm:$0xf]
    %v4616 = vld [vmem:[%s4 + $0x4] sm:$0xf]
    %v4617 = vld [vmem:[%s4 + $0x8] sm:$0xf]
    %v4618 = vld [vmem:[%s4 + $0xc] sm:$0xf]
    %v4619 = vld [vmem:[%s4 + $0x10] sm:$0xf]
    %v4620 = vld [vmem:[%s4 + $0x14] sm:$0xf]
    %v4621 = vld [vmem:[%s4 + $0x18] sm:$0xf]
    %v4622 = vld [vmem:[%s4 + $0x1c] sm:$0xf]
    %v4623 = vld [vmem:[%s4 + $0x20] sm:$0xf]
    %v4633 = vcombine.low %v4615, %v4616
    %v4634 = vcombine.low %v4617, %v4618
    %v4635 = vcombine.low %v4619, %v4620
    %v4636 = vcombine.low %v4621, %v4622
    %vm4641 = vcmask 293888
    %v4643 = vsel %vm4641, %v4551, 0
    %v4646 = vsel %vm4641, %v4552, 0
    %v4649 = vsel %vm4641, %v4553, 0
    %v4652 = vsel %vm4641, %v4554, 0
    %v4655 = vsel %vm4641, %v4555, 0
    %v4658 = vsel %vm4641, %v4556, 0
    %v4661 = vsel %vm4641, %v4557, 0
    %v4664 = vsel %vm4641, %v4558, 0
    %v4667 = vsel %vm4641, %v4559, 0
    %v4670 = vsel %vm4641, %v4560, 0
    %v4673 = vsel %vm4641, %v4561, 0
    %v4676 = vsel %vm4641, %v4562, 0
    %v4679 = vsel %vm4641, %v4563, 0
    %v4682 = vsel %vm4641, %v4564, 0
    %v4685 = vsel %vm4641, %v4565, 0
    %v4688 = vsel %vm4641, %v4566, 0
    %v4691 = vsel %vm4641, %v4567, 0
    %v4694 = vsel %vm4641, %v4568, 0
    %v4697 = vsel %vm4641, %v4569, 0
    %v4700 = vsel %vm4641, %v4570, 0
    %v4703 = vsel %vm4641, %v4571, 0
    %v4706 = vsel %vm4641, %v4572, 0
    %v4709 = vsel %vm4641, %v4573, 0
    %v4712 = vsel %vm4641, %v4574, 0
    %v4715 = vsel %vm4641, %v4575, 0
    %v4718 = vsel %vm4641, %v4576, 0
    %v4721 = vsel %vm4641, %v4577, 0
    %v4724 = vsel %vm4641, %v4578, 0
    %v4727 = vsel %vm4641, %v4579, 0
    %v4730 = vsel %vm4641, %v4580, 0
    %v4733 = vsel %vm4641, %v4581, 0
    %v4736 = vsel %vm4641, %v4582, 0
    %v4739 = vsel %vm4641, %v4583, 0
    %v4742 = vsel %vm4641, %v4584, 0
    %v4745 = vsel %vm4641, %v4585, 0
    %v4748 = vsel %vm4641, %v4586, 0
    %v4751 = vsel %vm4641, %v4587, 0
    %v4754 = vsel %vm4641, %v4588, 0
    %v4757 = vsel %vm4641, %v4589, 0
    %v4760 = vsel %vm4641, %v4590, 0
    %v4763 = vsel %vm4641, %v4591, 0
    %v4766 = vsel %vm4641, %v4592, 0
    %v4769 = vsel %vm4641, %v4593, 0
    %v4772 = vsel %vm4641, %v4594, 0
    %v4775 = vsel %vm4641, %v4595, 0
    %v4778 = vsel %vm4641, %v4596, 0
    %v4781 = vsel %vm4641, %v4597, 0
    %v4784 = vsel %vm4641, %v4598, 0
    %v4787 = vsel %vm4641, %v4599, 0
    %v4790 = vsel %vm4641, %v4600, 0
    %v4793 = vsel %vm4641, %v4601, 0
    %v4796 = vsel %vm4641, %v4602, 0
    %v4799 = vsel %vm4641, %v4603, 0
    %v4802 = vsel %vm4641, %v4604, 0
    %v4805 = vsel %vm4641, %v4605, 0
    %v4808 = vsel %vm4641, %v4606, 0
    %v4811 = vsel %vm4641, %v4607, 0
    %v4814 = vsel %vm4641, %v4608, 0
    %v4817 = vsel %vm4641, %v4609, 0
    %v4820 = vsel %vm4641, %v4610, 0
    %v4823 = vsel %vm4641, %v4611, 0
    %v4826 = vsel %vm4641, %v4612, 0
    %v4829 = vsel %vm4641, %v4613, 0
    %v4832 = vsel %vm4641, %v4614, 0
    %v4834 = vsel %vm303, %v4623, 0
    %4836 = vmatprep.subr.mxu0 0.0
    %4837 = vmatpush1.msra.mxu0 %v4633
    %4838 = vmatprep.subr.mxu0 0.0
    %4839 = vmatpush1.msra.mxu0 %v4634
    %4840 = vmatprep.subr.mxu0 0.0
    %4841 = vmatpush1.msra.mxu0 %v4635
    %4842 = vmatprep.subr.mxu0 0.0
    %4843 = vmatpush1.msra.mxu0 %v4636
    %4844 = vmatprep.subr.mxu0 0.0
    %4845 = vmatpush1.msra.mxu0 %v4834
    %4846 = vmatprep.subr.mxu0 0.0
    %4847 = vmatpush1.msra.mxu0 0.0
    %4848 = vmatprep.subr.mxu0 0.0
    %4849 = vmatpush1.msra.mxu0 0.0
    %4850 = vmatprep.subr.mxu0 0.0
    %4851 = vmatpush1.msra.mxu0 0.0
    %4852 = vmatprep.subr.mxu0 0.0
    %4853 = vmatpush1.msra.mxu0 0.0
    %4854 = vmatprep.subr.mxu0 0.0
    %4855 = vmatpush1.msra.mxu0 0.0
    %4856 = vmatprep.subr.mxu0 0.0
    %4857 = vmatpush1.msra.mxu0 0.0
    %4858 = vmatprep.subr.mxu0 0.0
    %4859 = vmatpush1.msra.mxu0 0.0
    %4860 = vmatprep.subr.mxu0 0.0
    %4861 = vmatpush1.msra.mxu0 0.0
    %4862 = vmatprep.subr.mxu0 0.0
    %4863 = vmatpush1.msra.mxu0 0.0
    %4864 = vmatprep.subr.mxu0 0.0
    %4865 = vmatpush1.msra.mxu0 0.0
    %4866 = vmatprep.subr.mxu0 0.0
    %4867 = vmatpush1.msra.mxu0 0.0
    %4868 = vmatprep.subr.mxu0 0.0
    %4869 = vmatpush1.msra.mxu0 0.0
    %4870 = vmatprep.subr.mxu0 0.0
    %4871 = vmatpush1.msra.mxu0 0.0
    %4872 = vmatprep.subr.mxu0 0.0
    %4873 = vmatpush1.msra.mxu0 0.0
    %4874 = vmatprep.subr.mxu0 0.0
    %4875 = vmatpush1.msra.mxu0 0.0
    %4876 = vmatprep.subr.mxu0 0.0
    %4877 = vmatpush1.msra.mxu0 0.0
    %4878 = vmatprep.subr.mxu0 0.0
    %4879 = vmatpush1.msra.mxu0 0.0
    %4880 = vmatprep.subr.mxu0 0.0
    %4881 = vmatpush1.msra.mxu0 0.0
    %4882 = vmatprep.subr.mxu0 0.0
    %4883 = vmatpush1.msra.mxu0 0.0
    %4884 = vmatprep.subr.mxu0 0.0
    %4885 = vmatpush1.msra.mxu0 0.0
    %4886 = vmatprep.subr.mxu0 0.0
    %4887 = vmatpush1.msra.mxu0 0.0
    %4888 = vmatprep.subr.mxu0 0.0
    %4889 = vmatpush1.msra.mxu0 0.0
    %4890 = vmatprep.subr.mxu0 0.0
    %4891 = vmatpush1.msra.mxu0 0.0
    %4892 = vmatprep.subr.mxu0 0.0
    %4893 = vmatpush1.msra.mxu0 0.0
    %4894 = vmatprep.subr.mxu0 0.0
    %4895 = vmatpush1.msra.mxu0 0.0
    %4896 = vmatprep.subr.mxu0 0.0
    %4897 = vmatpush1.msra.mxu0 0.0
    %4898 = vmatprep.subr.mxu0 0.0
    %4899 = vmatpush1.msra.mxu0 0.0
    %4900 = vmatprep.mubr.f32.mxu0 0.0
    %4901 = vmatmul.mubr.f32.gmra.mrb[0].mxu0 %v4643
    %v4902 = vpop.f32.mrb[0].mxu0
    %v4903 = vadd.f32 0.0, %v4902
    %v4904 = vpop.f32.mrb[0].mxu0
    %4905 = vmatprep.mubr.f32.mxu0 0.0
    %4906 = vmatmul.mubr.f32.gmra.mrb[0].mxu0 %v4646
    %v4907 = vpop.f32.mrb[0].mxu0
    %v4908 = vadd.f32 0.0, %v4907
    %v4909 = vpop.f32.mrb[0].mxu0
    %4910 = vmatprep.mubr.f32.mxu0 0.0
    %4911 = vmatmul.mubr.f32.gmra.mrb[0].mxu0 %v4649
    %v4912 = vpop.f32.mrb[0].mxu0
    %v4913 = vadd.f32 0.0, %v4912
    %v4914 = vpop.f32.mrb[0].mxu0
    %4915 = vmatprep.mubr.f32.mxu0 0.0
    %4916 = vmatmul.mubr.f32.gmra.mrb[0].mxu0 %v4652
    %v4917 = vpop.f32.mrb[0].mxu0
    %v4918 = vadd.f32 0.0, %v4917
    %v4919 = vpop.f32.mrb[0].mxu0
    %4920 = vmatprep.mubr.f32.mxu0 0.0
    %4921 = vmatmul.mubr.f32.gmra.mrb[0].mxu0 %v4655
    %v4922 = vpop.f32.mrb[0].mxu0
    %v4923 = vadd.f32 0.0, %v4922
    %v4924 = vpop.f32.mrb[0].mxu0
    %4925 = vmatprep.mubr.f32.mxu0 0.0
    %4926 = vmatmul.mubr.f32.gmra.mrb[0].mxu0 %v4658
    %v4927 = vpop.f32.mrb[0].mxu0
    %v4928 = vadd.f32 0.0, %v4927
    %v4929 = vpop.f32.mrb[0].mxu0
    %4930 = vmatprep.mubr.f32.mxu0 0.0
    %4931 = vmatmul.mubr.f32.gmra.mrb[0].mxu0 %v4661
    %v4932 = vpop.f32.mrb[0].mxu0
    %v4933 = vadd.f32 0.0, %v4932
    %v4934 = vpop.f32.mrb[0].mxu0
    %4935 = vmatprep.mubr.f32.mxu0 0.0
    %4936 = vmatmul.mubr.f32.gmra.mrb[0].mxu0 %v4664
    %v4937 = vpop.f32.mrb[0].mxu0
    %v4938 = vadd.f32 0.0, %v4937
    %v4939 = vpop.f32.mrb[0].mxu0
    %4940 = vmatprep.mubr.f32.mxu0 0.0
    %4941 = vmatmul.mubr.f32.gmra.mrb[0].mxu0 %v4667
    %v4942 = vpop.f32.mrb[0].mxu0
    %v4943 = vadd.f32 0.0, %v4942
    %v4944 = vpop.f32.mrb[0].mxu0
    %4945 = vmatprep.mubr.f32.mxu0 0.0
    %4946 = vmatmul.mubr.f32.gmra.mrb[0].mxu0 %v4670
    %v4947 = vpop.f32.mrb[0].mxu0
    %v4948 = vadd.f32 0.0, %v4947
    %v4949 = vpop.f32.mrb[0].mxu0
    %4950 = vmatprep.mubr.f32.mxu0 0.0
    %4951 = vmatmul.mubr.f32.gmra.mrb[0].mxu0 %v4673
    %v4952 = vpop.f32.mrb[0].mxu0
    %v4953 = vadd.f32 0.0, %v4952
    %v4954 = vpop.f32.mrb[0].mxu0
    %4955 = vmatprep.mubr.f32.mxu0 0.0
    %4956 = vmatmul.mubr.f32.gmra.mrb[0].mxu0 %v4676
    %v4957 = vpop.f32.mrb[0].mxu0
    %v4958 = vadd.f32 0.0, %v4957
    %v4959 = vpop.f32.mrb[0].mxu0
    %4960 = vmatprep.mubr.f32.mxu0 0.0
    %4961 = vmatmul.mubr.f32.gmra.mrb[0].mxu0 %v4679
    %v4962 = vpop.f32.mrb[0].mxu0
    %v4963 = vadd.f32 0.0, %v4962
    %v4964 = vpop.f32.mrb[0].mxu0
    %4965 = vmatprep.mubr.f32.mxu0 0.0
    %4966 = vmatmul.mubr.f32.gmra.mrb[0].mxu0 %v4682
    %v4967 = vpop.f32.mrb[0].mxu0
    %v4968 = vadd.f32 0.0, %v4967
    %v4969 = vpop.f32.mrb[0].mxu0
    %4970 = vmatprep.mubr.f32.mxu0 0.0
    %4971 = vmatmul.mubr.f32.gmra.mrb[0].mxu0 %v4685
    %v4972 = vpop.f32.mrb[0].mxu0
    %v4973 = vadd.f32 0.0, %v4972
    %v4974 = vpop.f32.mrb[0].mxu0
    %4975 = vmatprep.mubr.f32.mxu0 0.0
    %4976 = vmatmul.mubr.f32.gmra.mrb[0].mxu0 %v4688
    %v4977 = vpop.f32.mrb[0].mxu0
    %v4978 = vadd.f32 0.0, %v4977
    %v4979 = vpop.f32.mrb[0].mxu0
    %4980 = vmatprep.mubr.f32.mxu0 0.0
    %4981 = vmatmul.mubr.f32.gmra.mrb[0].mxu0 %v4691
    %v4982 = vpop.f32.mrb[0].mxu0
    %v4983 = vadd.f32 0.0, %v4982
    %v4984 = vpop.f32.mrb[0].mxu0
    %4985 = vmatprep.mubr.f32.mxu0 0.0
    %4986 = vmatmul.mubr.f32.gmra.mrb[0].mxu0 %v4694
    %v4987 = vpop.f32.mrb[0].mxu0
    %v4988 = vadd.f32 0.0, %v4987
    %v4989 = vpop.f32.mrb[0].mxu0
    %4990 = vmatprep.mubr.f32.mxu0 0.0
    %4991 = vmatmul.mubr.f32.gmra.mrb[0].mxu0 %v4697
    %v4992 = vpop.f32.mrb[0].mxu0
    %v4993 = vadd.f32 0.0, %v4992
    %v4994 = vpop.f32.mrb[0].mxu0
    %4995 = vmatprep.mubr.f32.mxu0 0.0
    %4996 = vmatmul.mubr.f32.gmra.mrb[0].mxu0 %v4700
    %v4997 = vpop.f32.mrb[0].mxu0
    %v4998 = vadd.f32 0.0, %v4997
    %v4999 = vpop.f32.mrb[0].mxu0
    %5000 = vmatprep.mubr.f32.mxu0 0.0
    %5001 = vmatmul.mubr.f32.gmra.mrb[0].mxu0 %v4703
    %v5002 = vpop.f32.mrb[0].mxu0
    %v5003 = vadd.f32 0.0, %v5002
    %v5004 = vpop.f32.mrb[0].mxu0
    %5005 = vmatprep.mubr.f32.mxu0 0.0
    %5006 = vmatmul.mubr.f32.gmra.mrb[0].mxu0 %v4706
    %v5007 = vpop.f32.mrb[0].mxu0
    %v5008 = vadd.f32 0.0, %v5007
    %v5009 = vpop.f32.mrb[0].mxu0
    %5010 = vmatprep.mubr.f32.mxu0 0.0
    %5011 = vmatmul.mubr.f32.gmra.mrb[0].mxu0 %v4709
    %v5012 = vpop.f32.mrb[0].mxu0
    %v5013 = vadd.f32 0.0, %v5012
    %v5014 = vpop.f32.mrb[0].mxu0
    %5015 = vmatprep.mubr.f32.mxu0 0.0
    %5016 = vmatmul.mubr.f32.gmra.mrb[0].mxu0 %v4712
    %v5017 = vpop.f32.mrb[0].mxu0
    %v5018 = vadd.f32 0.0, %v5017
    %v5019 = vpop.f32.mrb[0].mxu0
    %5020 = vmatprep.mubr.f32.mxu0 0.0
    %5021 = vmatmul.mubr.f32.gmra.mrb[0].mxu0 %v4715
    %v5022 = vpop.f32.mrb[0].mxu0
    %v5023 = vadd.f32 0.0, %v5022
    %v5024 = vpop.f32.mrb[0].mxu0
    %5025 = vmatprep.mubr.f32.mxu0 0.0
    %5026 = vmatmul.mubr.f32.gmra.mrb[0].mxu0 %v4718
    %v5027 = vpop.f32.mrb[0].mxu0
    %v5028 = vadd.f32 0.0, %v5027
    %v5029 = vpop.f32.mrb[0].mxu0
    %5030 = vmatprep.mubr.f32.mxu0 0.0
    %5031 = vmatmul.mubr.f32.gmra.mrb[0].mxu0 %v4721
    %v5032 = vpop.f32.mrb[0].mxu0
    %v5033 = vadd.f32 0.0, %v5032
    %v5034 = vpop.f32.mrb[0].mxu0
    %5035 = vmatprep.mubr.f32.mxu0 0.0
    %5036 = vmatmul.mubr.f32.gmra.mrb[0].mxu0 %v4724
    %v5037 = vpop.f32.mrb[0].mxu0
    %v5038 = vadd.f32 0.0, %v5037
    %v5039 = vpop.f32.mrb[0].mxu0
    %5040 = vmatprep.mubr.f32.mxu0 0.0
    %5041 = vmatmul.mubr.f32.gmra.mrb[0].mxu0 %v4727
    %v5042 = vpop.f32.mrb[0].mxu0
    %v5043 = vadd.f32 0.0, %v5042
    %v5044 = vpop.f32.mrb[0].mxu0
    %5045 = vmatprep.mubr.f32.mxu0 0.0
    %5046 = vmatmul.mubr.f32.gmra.mrb[0].mxu0 %v4730
    %v5047 = vpop.f32.mrb[0].mxu0
    %v5048 = vadd.f32 0.0, %v5047
    %v5049 = vpop.f32.mrb[0].mxu0
    %5050 = vmatprep.mubr.f32.mxu0 0.0
    %5051 = vmatmul.mubr.f32.gmra.mrb[0].mxu0 %v4733
    %v5052 = vpop.f32.mrb[0].mxu0
    %v5053 = vadd.f32 0.0, %v5052
    %v5054 = vpop.f32.mrb[0].mxu0
    %5055 = vmatprep.mubr.f32.mxu0 0.0
    %5056 = vmatmul.mubr.f32.gmra.mrb[0].mxu0 %v4736
    %v5057 = vpop.f32.mrb[0].mxu0
    %v5058 = vadd.f32 0.0, %v5057
    %v5059 = vpop.f32.mrb[0].mxu0
    %5060 = vmatprep.mubr.f32.mxu0 0.0
    %5061 = vmatmul.mubr.f32.gmra.mrb[0].mxu0 %v4739
    %v5062 = vpop.f32.mrb[0].mxu0
    %v5063 = vadd.f32 0.0, %v5062
    %v5064 = vpop.f32.mrb[0].mxu0
    %5065 = vmatprep.mubr.f32.mxu0 0.0
    %5066 = vmatmul.mubr.f32.gmra.mrb[0].mxu0 %v4742
    %v5067 = vpop.f32.mrb[0].mxu0
    %v5068 = vadd.f32 0.0, %v5067
    %v5069 = vpop.f32.mrb[0].mxu0
    %5070 = vmatprep.mubr.f32.mxu0 0.0
    %5071 = vmatmul.mubr.f32.gmra.mrb[0].mxu0 %v4745
    %v5072 = vpop.f32.mrb[0].mxu0
    %v5073 = vadd.f32 0.0, %v5072
    %v5074 = vpop.f32.mrb[0].mxu0
    %5075 = vmatprep.mubr.f32.mxu0 0.0
    %5076 = vmatmul.mubr.f32.gmra.mrb[0].mxu0 %v4748
    %v5077 = vpop.f32.mrb[0].mxu0
    %v5078 = vadd.f32 0.0, %v5077
    %v5079 = vpop.f32.mrb[0].mxu0
    %5080 = vmatprep.mubr.f32.mxu0 0.0
    %5081 = vmatmul.mubr.f32.gmra.mrb[0].mxu0 %v4751
    %v5082 = vpop.f32.mrb[0].mxu0
    %v5083 = vadd.f32 0.0, %v5082
    %v5084 = vpop.f32.mrb[0].mxu0
    %5085 = vmatprep.mubr.f32.mxu0 0.0
    %5086 = vmatmul.mubr.f32.gmra.mrb[0].mxu0 %v4754
    %v5087 = vpop.f32.mrb[0].mxu0
    %v5088 = vadd.f32 0.0, %v5087
    %v5089 = vpop.f32.mrb[0].mxu0
    %5090 = vmatprep.mubr.f32.mxu0 0.0
    %5091 = vmatmul.mubr.f32.gmra.mrb[0].mxu0 %v4757
    %v5092 = vpop.f32.mrb[0].mxu0
    %v5093 = vadd.f32 0.0, %v5092
    %v5094 = vpop.f32.mrb[0].mxu0
    %5095 = vmatprep.mubr.f32.mxu0 0.0
    %5096 = vmatmul.mubr.f32.gmra.mrb[0].mxu0 %v4760
    %v5097 = vpop.f32.mrb[0].mxu0
    %v5098 = vadd.f32 0.0, %v5097
    %v5099 = vpop.f32.mrb[0].mxu0
    %5100 = vmatprep.mubr.f32.mxu0 0.0
    %5101 = vmatmul.mubr.f32.gmra.mrb[0].mxu0 %v4763
    %v5102 = vpop.f32.mrb[0].mxu0
    %v5103 = vadd.f32 0.0, %v5102
    %v5104 = vpop.f32.mrb[0].mxu0
    %5105 = vmatprep.mubr.f32.mxu0 0.0
    %5106 = vmatmul.mubr.f32.gmra.mrb[0].mxu0 %v4766
    %v5107 = vpop.f32.mrb[0].mxu0
    %v5108 = vadd.f32 0.0, %v5107
    %v5109 = vpop.f32.mrb[0].mxu0
    %5110 = vmatprep.mubr.f32.mxu0 0.0
    %5111 = vmatmul.mubr.f32.gmra.mrb[0].mxu0 %v4769
    %v5112 = vpop.f32.mrb[0].mxu0
    %v5113 = vadd.f32 0.0, %v5112
    %v5114 = vpop.f32.mrb[0].mxu0
    %5115 = vmatprep.mubr.f32.mxu0 0.0
    %5116 = vmatmul.mubr.f32.gmra.mrb[0].mxu0 %v4772
    %v5117 = vpop.f32.mrb[0].mxu0
    %v5118 = vadd.f32 0.0, %v5117
    %v5119 = vpop.f32.mrb[0].mxu0
    %5120 = vmatprep.mubr.f32.mxu0 0.0
    %5121 = vmatmul.mubr.f32.gmra.mrb[0].mxu0 %v4775
    %v5122 = vpop.f32.mrb[0].mxu0
    %v5123 = vadd.f32 0.0, %v5122
    %v5124 = vpop.f32.mrb[0].mxu0
    %5125 = vmatprep.mubr.f32.mxu0 0.0
    %5126 = vmatmul.mubr.f32.gmra.mrb[0].mxu0 %v4778
    %v5127 = vpop.f32.mrb[0].mxu0
    %v5128 = vadd.f32 0.0, %v5127
    %v5129 = vpop.f32.mrb[0].mxu0
    %5130 = vmatprep.mubr.f32.mxu0 0.0
    %5131 = vmatmul.mubr.f32.gmra.mrb[0].mxu0 %v4781
    %v5132 = vpop.f32.mrb[0].mxu0
    %v5133 = vadd.f32 0.0, %v5132
    %v5134 = vpop.f32.mrb[0].mxu0
    %5135 = vmatprep.mubr.f32.mxu0 0.0
    %5136 = vmatmul.mubr.f32.gmra.mrb[0].mxu0 %v4784
    %v5137 = vpop.f32.mrb[0].mxu0
    %v5138 = vadd.f32 0.0, %v5137
    %v5139 = vpop.f32.mrb[0].mxu0
    %5140 = vmatprep.mubr.f32.mxu0 0.0
    %5141 = vmatmul.mubr.f32.gmra.mrb[0].mxu0 %v4787
    %v5142 = vpop.f32.mrb[0].mxu0
    %v5143 = vadd.f32 0.0, %v5142
    %v5144 = vpop.f32.mrb[0].mxu0
    %5145 = vmatprep.mubr.f32.mxu0 0.0
    %5146 = vmatmul.mubr.f32.gmra.mrb[0].mxu0 %v4790
    %v5147 = vpop.f32.mrb[0].mxu0
    %v5148 = vadd.f32 0.0, %v5147
    %v5149 = vpop.f32.mrb[0].mxu0
    %5150 = vmatprep.mubr.f32.mxu0 0.0
    %5151 = vmatmul.mubr.f32.gmra.mrb[0].mxu0 %v4793
    %v5152 = vpop.f32.mrb[0].mxu0
    %v5153 = vadd.f32 0.0, %v5152
    %v5154 = vpop.f32.mrb[0].mxu0
    %5155 = vmatprep.mubr.f32.mxu0 0.0
    %5156 = vmatmul.mubr.f32.gmra.mrb[0].mxu0 %v4796
    %v5157 = vpop.f32.mrb[0].mxu0
    %v5158 = vadd.f32 0.0, %v5157
    %v5159 = vpop.f32.mrb[0].mxu0
    %5160 = vmatprep.mubr.f32.mxu0 0.0
    %5161 = vmatmul.mubr.f32.gmra.mrb[0].mxu0 %v4799
    %v5162 = vpop.f32.mrb[0].mxu0
    %v5163 = vadd.f32 0.0, %v5162
    %v5164 = vpop.f32.mrb[0].mxu0
    %5165 = vmatprep.mubr.f32.mxu0 0.0
    %5166 = vmatmul.mubr.f32.gmra.mrb[0].mxu0 %v4802
    %v5167 = vpop.f32.mrb[0].mxu0
    %v5168 = vadd.f32 0.0, %v5167
    %v5169 = vpop.f32.mrb[0].mxu0
    %5170 = vmatprep.mubr.f32.mxu0 0.0
    %5171 = vmatmul.mubr.f32.gmra.mrb[0].mxu0 %v4805
    %v5172 = vpop.f32.mrb[0].mxu0
    %v5173 = vadd.f32 0.0, %v5172
    %v5174 = vpop.f32.mrb[0].mxu0
    %5175 = vmatprep.mubr.f32.mxu0 0.0
    %5176 = vmatmul.mubr.f32.gmra.mrb[0].mxu0 %v4808
    %v5177 = vpop.f32.mrb[0].mxu0
    %v5178 = vadd.f32 0.0, %v5177
    %v5179 = vpop.f32.mrb[0].mxu0
    %5180 = vmatprep.mubr.f32.mxu0 0.0
    %5181 = vmatmul.mubr.f32.gmra.mrb[0].mxu0 %v4811
    %v5182 = vpop.f32.mrb[0].mxu0
    %v5183 = vadd.f32 0.0, %v5182
    %v5184 = vpop.f32.mrb[0].mxu0
    %5185 = vmatprep.mubr.f32.mxu0 0.0
    %5186 = vmatmul.mubr.f32.gmra.mrb[0].mxu0 %v4814
    %v5187 = vpop.f32.mrb[0].mxu0
    %v5188 = vadd.f32 0.0, %v5187
    %v5189 = vpop.f32.mrb[0].mxu0
    %5190 = vmatprep.mubr.f32.mxu0 0.0
    %5191 = vmatmul.mubr.f32.gmra.mrb[0].mxu0 %v4817
    %v5192 = vpop.f32.mrb[0].mxu0
    %v5193 = vadd.f32 0.0, %v5192
    %v5194 = vpop.f32.mrb[0].mxu0
    %5195 = vmatprep.mubr.f32.mxu0 0.0
    %5196 = vmatmul.mubr.f32.gmra.mrb[0].mxu0 %v4820
    %v5197 = vpop.f32.mrb[0].mxu0
    %v5198 = vadd.f32 0.0, %v5197
    %v5199 = vpop.f32.mrb[0].mxu0
    %5200 = vmatprep.mubr.f32.mxu0 0.0
    %5201 = vmatmul.mubr.f32.gmra.mrb[0].mxu0 %v4823
    %v5202 = vpop.f32.mrb[0].mxu0
    %v5203 = vadd.f32 0.0, %v5202
    %v5204 = vpop.f32.mrb[0].mxu0
    %5205 = vmatprep.mubr.f32.mxu0 0.0
    %5206 = vmatmul.mubr.f32.gmra.mrb[0].mxu0 %v4826
    %v5207 = vpop.f32.mrb[0].mxu0
    %v5208 = vadd.f32 0.0, %v5207
    %v5209 = vpop.f32.mrb[0].mxu0
    %5210 = vmatprep.mubr.f32.mxu0 0.0
    %5211 = vmatmul.mubr.f32.gmra.mrb[0].mxu0 %v4829
    %v5212 = vpop.f32.mrb[0].mxu0
    %v5213 = vadd.f32 0.0, %v5212
    %v5214 = vpop.f32.mrb[0].mxu0
    %5215 = vmatprep.mubr.f32.mxu0 0.0
    %5216 = vmatmul.mubr.f32.gmra.mrb[0].mxu0 %v4832
    %v5217 = vpop.f32.mrb[0].mxu0
    %v5218 = vadd.f32 0.0, %v5217
    %v5219 = vpop.f32.mrb[0].mxu0
    %5220 = vdwg.mxu0
    %v5221 = vld [vmem:[%s5] sm:$0x1]
    %v5222 = vld [vmem:[%s6] sm:$0x1]
    %v5223 = vsel %vm110, %v4903, 0.0
    %v5224 = vsel %vm110, %v4908, 0.0
    %v5225 = vadd.f32 %v5223, %v5224
    %v5226 = vsel %vm110, %v4913, 0.0
    %v5227 = vadd.f32 %v5225, %v5226
    %v5228 = vsel %vm110, %v4918, 0.0
    %v5229 = vadd.f32 %v5227, %v5228
    %v5230 = vsel %vm110, %v4923, 0.0
    %v5231 = vadd.f32 %v5229, %v5230
    %v5232 = vsel %vm110, %v4928, 0.0
    %v5233 = vadd.f32 %v5231, %v5232
    %v5234 = vsel %vm110, %v4933, 0.0
    %v5235 = vadd.f32 %v5233, %v5234
    %v5236 = vsel %vm110, %v4938, 0.0
    %v5237 = vadd.f32 %v5235, %v5236
    %v5238 = vsel %vm110, %v4943, 0.0
    %v5239 = vadd.f32 %v5237, %v5238
    %v5240 = vsel %vm110, %v4948, 0.0
    %v5241 = vadd.f32 %v5239, %v5240
    %v5242 = vsel %vm110, %v4953, 0.0
    %v5243 = vadd.f32 %v5241, %v5242
    %v5244 = vsel %vm110, %v4958, 0.0
    %v5245 = vadd.f32 %v5243, %v5244
    %v5246 = vsel %vm110, %v4963, 0.0
    %v5247 = vadd.f32 %v5245, %v5246
    %v5248 = vsel %vm110, %v4968, 0.0
    %v5249 = vadd.f32 %v5247, %v5248
    %v5250 = vsel %vm110, %v4973, 0.0
    %v5251 = vadd.f32 %v5249, %v5250
    %v5252 = vsel %vm110, %v4978, 0.0
    %v5253 = vadd.f32 %v5251, %v5252
    %v5254 = vsel %vm110, %v4983, 0.0
    %v5255 = vadd.f32 %v5253, %v5254
    %v5256 = vsel %vm110, %v4988, 0.0
    %v5257 = vadd.f32 %v5255, %v5256
    %v5258 = vsel %vm110, %v4993, 0.0
    %v5259 = vadd.f32 %v5257, %v5258
    %v5260 = vsel %vm110, %v4998, 0.0
    %v5261 = vadd.f32 %v5259, %v5260
    %v5262 = vsel %vm110, %v5003, 0.0
    %v5263 = vadd.f32 %v5261, %v5262
    %v5264 = vsel %vm110, %v5008, 0.0
    %v5265 = vadd.f32 %v5263, %v5264
    %v5266 = vsel %vm110, %v5013, 0.0
    %v5267 = vadd.f32 %v5265, %v5266
    %v5268 = vsel %vm110, %v5018, 0.0
    %v5269 = vadd.f32 %v5267, %v5268
    %v5270 = vsel %vm110, %v5023, 0.0
    %v5271 = vadd.f32 %v5269, %v5270
    %v5272 = vsel %vm110, %v5028, 0.0
    %v5273 = vadd.f32 %v5271, %v5272
    %v5274 = vsel %vm110, %v5033, 0.0
    %v5275 = vadd.f32 %v5273, %v5274
    %v5276 = vsel %vm110, %v5038, 0.0
    %v5277 = vadd.f32 %v5275, %v5276
    %v5278 = vsel %vm110, %v5043, 0.0
    %v5279 = vadd.f32 %v5277, %v5278
    %v5280 = vsel %vm110, %v5048, 0.0
    %v5281 = vadd.f32 %v5279, %v5280
    %v5282 = vsel %vm110, %v5053, 0.0
    %v5283 = vadd.f32 %v5281, %v5282
    %v5284 = vsel %vm110, %v5058, 0.0
    %v5285 = vadd.f32 %v5283, %v5284
    %v5286 = vsel %vm110, %v5063, 0.0
    %v5287 = vadd.f32 %v5285, %v5286
    %v5288 = vsel %vm110, %v5068, 0.0
    %v5289 = vadd.f32 %v5287, %v5288
    %v5290 = vsel %vm110, %v5073, 0.0
    %v5291 = vadd.f32 %v5289, %v5290
    %v5292 = vsel %vm110, %v5078, 0.0
    %v5293 = vadd.f32 %v5291, %v5292
    %v5294 = vsel %vm110, %v5083, 0.0
    %v5295 = vadd.f32 %v5293, %v5294
    %v5296 = vsel %vm110, %v5088, 0.0
    %v5297 = vadd.f32 %v5295, %v5296
    %v5298 = vsel %vm110, %v5093, 0.0
    %v5299 = vadd.f32 %v5297, %v5298
    %v5300 = vsel %vm110, %v5098, 0.0
    %v5301 = vadd.f32 %v5299, %v5300
    %v5302 = vsel %vm110, %v5103, 0.0
    %v5303 = vadd.f32 %v5301, %v5302
    %v5304 = vsel %vm110, %v5108, 0.0
    %v5305 = vadd.f32 %v5303, %v5304
    %v5306 = vsel %vm110, %v5113, 0.0
    %v5307 = vadd.f32 %v5305, %v5306
    %v5308 = vsel %vm110, %v5118, 0.0
    %v5309 = vadd.f32 %v5307, %v5308
    %v5310 = vsel %vm110, %v5123, 0.0
    %v5311 = vadd.f32 %v5309, %v5310
    %v5312 = vsel %vm110, %v5128, 0.0
    %v5313 = vadd.f32 %v5311, %v5312
    %v5314 = vsel %vm110, %v5133, 0.0
    %v5315 = vadd.f32 %v5313, %v5314
    %v5316 = vsel %vm110, %v5138, 0.0
    %v5317 = vadd.f32 %v5315, %v5316
    %v5318 = vsel %vm110, %v5143, 0.0
    %v5319 = vadd.f32 %v5317, %v5318
    %v5320 = vsel %vm110, %v5148, 0.0
    %v5321 = vadd.f32 %v5319, %v5320
    %v5322 = vsel %vm110, %v5153, 0.0
    %v5323 = vadd.f32 %v5321, %v5322
    %v5324 = vsel %vm110, %v5158, 0.0
    %v5325 = vadd.f32 %v5323, %v5324
    %v5326 = vsel %vm110, %v5163, 0.0
    %v5327 = vadd.f32 %v5325, %v5326
    %v5328 = vsel %vm110, %v5168, 0.0
    %v5329 = vadd.f32 %v5327, %v5328
    %v5330 = vsel %vm110, %v5173, 0.0
    %v5331 = vadd.f32 %v5329, %v5330
    %v5332 = vsel %vm110, %v5178, 0.0
    %v5333 = vadd.f32 %v5331, %v5332
    %v5334 = vsel %vm110, %v5183, 0.0
    %v5335 = vadd.f32 %v5333, %v5334
    %v5336 = vsel %vm110, %v5188, 0.0
    %v5337 = vadd.f32 %v5335, %v5336
    %v5338 = vsel %vm110, %v5193, 0.0
    %v5339 = vadd.f32 %v5337, %v5338
    %v5340 = vsel %vm110, %v5198, 0.0
    %v5341 = vadd.f32 %v5339, %v5340
    %v5342 = vsel %vm110, %v5203, 0.0
    %v5343 = vadd.f32 %v5341, %v5342
    %v5344 = vsel %vm110, %v5208, 0.0
    %v5345 = vadd.f32 %v5343, %v5344
    %v5346 = vsel %vm110, %v5213, 0.0
    %v5347 = vadd.f32 %v5345, %v5346
    %v5348 = vsel %vm110, %v5218, 0.0
    %v5349 = vadd.f32 %v5347, %v5348
    %v5350 = vrot.slane %v5349, 4
    %v5351 = vadd.f32 %v5349, %v5350
    %v5352 = vrot.slane %v5351, 2
    %v5353 = vadd.f32 %v5351, %v5352
    %v5354 = vrot.slane %v5353, 1
    %v5355 = vadd.f32 %v5353, %v5354
    %v5356 = vmul.f32 %v5355, 0.001953125
    %v5357 = vsub.f32 %v4903, %v5356
    %v5358 = vsub.f32 %v4908, %v5356
    %v5359 = vsub.f32 %v4913, %v5356
    %v5360 = vsub.f32 %v4918, %v5356
    %v5361 = vsub.f32 %v4923, %v5356
    %v5362 = vsub.f32 %v4928, %v5356
    %v5363 = vsub.f32 %v4933, %v5356
    %v5364 = vsub.f32 %v4938, %v5356
    %v5365 = vsub.f32 %v4943, %v5356
    %v5366 = vsub.f32 %v4948, %v5356
    %v5367 = vsub.f32 %v4953, %v5356
    %v5368 = vsub.f32 %v4958, %v5356
    %v5369 = vsub.f32 %v4963, %v5356
    %v5370 = vsub.f32 %v4968, %v5356
    %v5371 = vsub.f32 %v4973, %v5356
    %v5372 = vsub.f32 %v4978, %v5356
    %v5373 = vsub.f32 %v4983, %v5356
    %v5374 = vsub.f32 %v4988, %v5356
    %v5375 = vsub.f32 %v4993, %v5356
    %v5376 = vsub.f32 %v4998, %v5356
    %v5377 = vsub.f32 %v5003, %v5356
    %v5378 = vsub.f32 %v5008, %v5356
    %v5379 = vsub.f32 %v5013, %v5356
    %v5380 = vsub.f32 %v5018, %v5356
    %v5381 = vsub.f32 %v5023, %v5356
    %v5382 = vsub.f32 %v5028, %v5356
    %v5383 = vsub.f32 %v5033, %v5356
    %v5384 = vsub.f32 %v5038, %v5356
    %v5385 = vsub.f32 %v5043, %v5356
    %v5386 = vsub.f32 %v5048, %v5356
    %v5387 = vsub.f32 %v5053, %v5356
    %v5388 = vsub.f32 %v5058, %v5356
    %v5389 = vsub.f32 %v5063, %v5356
    %v5390 = vsub.f32 %v5068, %v5356
    %v5391 = vsub.f32 %v5073, %v5356
    %v5392 = vsub.f32 %v5078, %v5356
    %v5393 = vsub.f32 %v5083, %v5356
    %v5394 = vsub.f32 %v5088, %v5356
    %v5395 = vsub.f32 %v5093, %v5356
    %v5396 = vsub.f32 %v5098, %v5356
    %v5397 = vsub.f32 %v5103, %v5356
    %v5398 = vsub.f32 %v5108, %v5356
    %v5399 = vsub.f32 %v5113, %v5356
    %v5400 = vsub.f32 %v5118, %v5356
    %v5401 = vsub.f32 %v5123, %v5356
    %v5402 = vsub.f32 %v5128, %v5356
    %v5403 = vsub.f32 %v5133, %v5356
    %v5404 = vsub.f32 %v5138, %v5356
    %v5405 = vsub.f32 %v5143, %v5356
    %v5406 = vsub.f32 %v5148, %v5356
    %v5407 = vsub.f32 %v5153, %v5356
    %v5408 = vsub.f32 %v5158, %v5356
    %v5409 = vsub.f32 %v5163, %v5356
    %v5410 = vsub.f32 %v5168, %v5356
    %v5411 = vsub.f32 %v5173, %v5356
    %v5412 = vsub.f32 %v5178, %v5356
    %v5413 = vsub.f32 %v5183, %v5356
    %v5414 = vsub.f32 %v5188, %v5356
    %v5415 = vsub.f32 %v5193, %v5356
    %v5416 = vsub.f32 %v5198, %v5356
    %v5417 = vsub.f32 %v5203, %v5356
    %v5418 = vsub.f32 %v5208, %v5356
    %v5419 = vsub.f32 %v5213, %v5356
    %v5420 = vsub.f32 %v5218, %v5356
    %v5421 = vmul.f32 %v5357, %v5357
    %v5422 = vmul.f32 %v5358, %v5358
    %v5423 = vmul.f32 %v5359, %v5359
    %v5424 = vmul.f32 %v5360, %v5360
    %v5425 = vmul.f32 %v5361, %v5361
    %v5426 = vmul.f32 %v5362, %v5362
    %v5427 = vmul.f32 %v5363, %v5363
    %v5428 = vmul.f32 %v5364, %v5364
    %v5429 = vmul.f32 %v5365, %v5365
    %v5430 = vmul.f32 %v5366, %v5366
    %v5431 = vmul.f32 %v5367, %v5367
    %v5432 = vmul.f32 %v5368, %v5368
    %v5433 = vmul.f32 %v5369, %v5369
    %v5434 = vmul.f32 %v5370, %v5370
    %v5435 = vmul.f32 %v5371, %v5371
    %v5436 = vmul.f32 %v5372, %v5372
    %v5437 = vmul.f32 %v5373, %v5373
    %v5438 = vmul.f32 %v5374, %v5374
    %v5439 = vmul.f32 %v5375, %v5375
    %v5440 = vmul.f32 %v5376, %v5376
    %v5441 = vmul.f32 %v5377, %v5377
    %v5442 = vmul.f32 %v5378, %v5378
    %v5443 = vmul.f32 %v5379, %v5379
    %v5444 = vmul.f32 %v5380, %v5380
    %v5445 = vmul.f32 %v5381, %v5381
    %v5446 = vmul.f32 %v5382, %v5382
    %v5447 = vmul.f32 %v5383, %v5383
    %v5448 = vmul.f32 %v5384, %v5384
    %v5449 = vmul.f32 %v5385, %v5385
    %v5450 = vmul.f32 %v5386, %v5386
    %v5451 = vmul.f32 %v5387, %v5387
    %v5452 = vmul.f32 %v5388, %v5388
    %v5453 = vmul.f32 %v5389, %v5389
    %v5454 = vmul.f32 %v5390, %v5390
    %v5455 = vmul.f32 %v5391, %v5391
    %v5456 = vmul.f32 %v5392, %v5392
    %v5457 = vmul.f32 %v5393, %v5393
    %v5458 = vmul.f32 %v5394, %v5394
    %v5459 = vmul.f32 %v5395, %v5395
    %v5460 = vmul.f32 %v5396, %v5396
    %v5461 = vmul.f32 %v5397, %v5397
    %v5462 = vmul.f32 %v5398, %v5398
    %v5463 = vmul.f32 %v5399, %v5399
    %v5464 = vmul.f32 %v5400, %v5400
    %v5465 = vmul.f32 %v5401, %v5401
    %v5466 = vmul.f32 %v5402, %v5402
    %v5467 = vmul.f32 %v5403, %v5403
    %v5468 = vmul.f32 %v5404, %v5404
    %v5469 = vmul.f32 %v5405, %v5405
    %v5470 = vmul.f32 %v5406, %v5406
    %v5471 = vmul.f32 %v5407, %v5407
    %v5472 = vmul.f32 %v5408, %v5408
    %v5473 = vmul.f32 %v5409, %v5409
    %v5474 = vmul.f32 %v5410, %v5410
    %v5475 = vmul.f32 %v5411, %v5411
    %v5476 = vmul.f32 %v5412, %v5412
    %v5477 = vmul.f32 %v5413, %v5413
    %v5478 = vmul.f32 %v5414, %v5414
    %v5479 = vmul.f32 %v5415, %v5415
    %v5480 = vmul.f32 %v5416, %v5416
    %v5481 = vmul.f32 %v5417, %v5417
    %v5482 = vmul.f32 %v5418, %v5418
    %v5483 = vmul.f32 %v5419, %v5419
    %v5484 = vmul.f32 %v5420, %v5420
    %v5485 = vsel %vm110, %v5421, 0.0
    %v5486 = vsel %vm110, %v5422, 0.0
    %v5487 = vadd.f32 %v5485, %v5486
    %v5488 = vsel %vm110, %v5423, 0.0
    %v5489 = vadd.f32 %v5487, %v5488
    %v5490 = vsel %vm110, %v5424, 0.0
    %v5491 = vadd.f32 %v5489, %v5490
    %v5492 = vsel %vm110, %v5425, 0.0
    %v5493 = vadd.f32 %v5491, %v5492
    %v5494 = vsel %vm110, %v5426, 0.0
    %v5495 = vadd.f32 %v5493, %v5494
    %v5496 = vsel %vm110, %v5427, 0.0
    %v5497 = vadd.f32 %v5495, %v5496
    %v5498 = vsel %vm110, %v5428, 0.0
    %v5499 = vadd.f32 %v5497, %v5498
    %v5500 = vsel %vm110, %v5429, 0.0
    %v5501 = vadd.f32 %v5499, %v5500
    %v5502 = vsel %vm110, %v5430, 0.0
    %v5503 = vadd.f32 %v5501, %v5502
    %v5504 = vsel %vm110, %v5431, 0.0
    %v5505 = vadd.f32 %v5503, %v5504
    %v5506 = vsel %vm110, %v5432, 0.0
    %v5507 = vadd.f32 %v5505, %v5506
    %v5508 = vsel %vm110, %v5433, 0.0
    %v5509 = vadd.f32 %v5507, %v5508
    %v5510 = vsel %vm110, %v5434, 0.0
    %v5511 = vadd.f32 %v5509, %v5510
    %v5512 = vsel %vm110, %v5435, 0.0
    %v5513 = vadd.f32 %v5511, %v5512
    %v5514 = vsel %vm110, %v5436, 0.0
    %v5515 = vadd.f32 %v5513, %v5514
    %v5516 = vsel %vm110, %v5437, 0.0
    %v5517 = vadd.f32 %v5515, %v5516
    %v5518 = vsel %vm110, %v5438, 0.0
    %v5519 = vadd.f32 %v5517, %v5518
    %v5520 = vsel %vm110, %v5439, 0.0
    %v5521 = vadd.f32 %v5519, %v5520
    %v5522 = vsel %vm110, %v5440, 0.0
    %v5523 = vadd.f32 %v5521, %v5522
    %v5524 = vsel %vm110, %v5441, 0.0
    %v5525 = vadd.f32 %v5523, %v5524
    %v5526 = vsel %vm110, %v5442, 0.0
    %v5527 = vadd.f32 %v5525, %v5526
    %v5528 = vsel %vm110, %v5443, 0.0
    %v5529 = vadd.f32 %v5527, %v5528
    %v5530 = vsel %vm110, %v5444, 0.0
    %v5531 = vadd.f32 %v5529, %v5530
    %v5532 = vsel %vm110, %v5445, 0.0
    %v5533 = vadd.f32 %v5531, %v5532
    %v5534 = vsel %vm110, %v5446, 0.0
    %v5535 = vadd.f32 %v5533, %v5534
    %v5536 = vsel %vm110, %v5447, 0.0
    %v5537 = vadd.f32 %v5535, %v5536
    %v5538 = vsel %vm110, %v5448, 0.0
    %v5539 = vadd.f32 %v5537, %v5538
    %v5540 = vsel %vm110, %v5449, 0.0
    %v5541 = vadd.f32 %v5539, %v5540
    %v5542 = vsel %vm110, %v5450, 0.0
    %v5543 = vadd.f32 %v5541, %v5542
    %v5544 = vsel %vm110, %v5451, 0.0
    %v5545 = vadd.f32 %v5543, %v5544
    %v5546 = vsel %vm110, %v5452, 0.0
    %v5547 = vadd.f32 %v5545, %v5546
    %v5548 = vsel %vm110, %v5453, 0.0
    %v5549 = vadd.f32 %v5547, %v5548
    %v5550 = vsel %vm110, %v5454, 0.0
    %v5551 = vadd.f32 %v5549, %v5550
    %v5552 = vsel %vm110, %v5455, 0.0
    %v5553 = vadd.f32 %v5551, %v5552
    %v5554 = vsel %vm110, %v5456, 0.0
    %v5555 = vadd.f32 %v5553, %v5554
    %v5556 = vsel %vm110, %v5457, 0.0
    %v5557 = vadd.f32 %v5555, %v5556
    %v5558 = vsel %vm110, %v5458, 0.0
    %v5559 = vadd.f32 %v5557, %v5558
    %v5560 = vsel %vm110, %v5459, 0.0
    %v5561 = vadd.f32 %v5559, %v5560
    %v5562 = vsel %vm110, %v5460, 0.0
    %v5563 = vadd.f32 %v5561, %v5562
    %v5564 = vsel %vm110, %v5461, 0.0
    %v5565 = vadd.f32 %v5563, %v5564
    %v5566 = vsel %vm110, %v5462, 0.0
    %v5567 = vadd.f32 %v5565, %v5566
    %v5568 = vsel %vm110, %v5463, 0.0
    %v5569 = vadd.f32 %v5567, %v5568
    %v5570 = vsel %vm110, %v5464, 0.0
    %v5571 = vadd.f32 %v5569, %v5570
    %v5572 = vsel %vm110, %v5465, 0.0
    %v5573 = vadd.f32 %v5571, %v5572
    %v5574 = vsel %vm110, %v5466, 0.0
    %v5575 = vadd.f32 %v5573, %v5574
    %v5576 = vsel %vm110, %v5467, 0.0
    %v5577 = vadd.f32 %v5575, %v5576
    %v5578 = vsel %vm110, %v5468, 0.0
    %v5579 = vadd.f32 %v5577, %v5578
    %v5580 = vsel %vm110, %v5469, 0.0
    %v5581 = vadd.f32 %v5579, %v5580
    %v5582 = vsel %vm110, %v5470, 0.0
    %v5583 = vadd.f32 %v5581, %v5582
    %v5584 = vsel %vm110, %v5471, 0.0
    %v5585 = vadd.f32 %v5583, %v5584
    %v5586 = vsel %vm110, %v5472, 0.0
    %v5587 = vadd.f32 %v5585, %v5586
    %v5588 = vsel %vm110, %v5473, 0.0
    %v5589 = vadd.f32 %v5587, %v5588
    %v5590 = vsel %vm110, %v5474, 0.0
    %v5591 = vadd.f32 %v5589, %v5590
    %v5592 = vsel %vm110, %v5475, 0.0
    %v5593 = vadd.f32 %v5591, %v5592
    %v5594 = vsel %vm110, %v5476, 0.0
    %v5595 = vadd.f32 %v5593, %v5594
    %v5596 = vsel %vm110, %v5477, 0.0
    %v5597 = vadd.f32 %v5595, %v5596
    %v5598 = vsel %vm110, %v5478, 0.0
    %v5599 = vadd.f32 %v5597, %v5598
    %v5600 = vsel %vm110, %v5479, 0.0
    %v5601 = vadd.f32 %v5599, %v5600
    %v5602 = vsel %vm110, %v5480, 0.0
    %v5603 = vadd.f32 %v5601, %v5602
    %v5604 = vsel %vm110, %v5481, 0.0
    %v5605 = vadd.f32 %v5603, %v5604
    %v5606 = vsel %vm110, %v5482, 0.0
    %v5607 = vadd.f32 %v5605, %v5606
    %v5608 = vsel %vm110, %v5483, 0.0
    %v5609 = vadd.f32 %v5607, %v5608
    %v5610 = vsel %vm110, %v5484, 0.0
    %v5611 = vadd.f32 %v5609, %v5610
    %v5612 = vrot.slane %v5611, 4
    %v5613 = vadd.f32 %v5611, %v5612
    %v5614 = vrot.slane %v5613, 2
    %v5615 = vadd.f32 %v5613, %v5614
    %v5616 = vrot.slane %v5615, 1
    %v5617 = vadd.f32 %v5615, %v5616
    %v5618 = vmul.f32 %v5617, 0.001953125
    %v5619 = vadd.f32 %v5618, 1e-05
    %v5620 = vrsqrt.pop %v5619
    %v5621 = vmul.f32 %v5221, %v5620
    %v5623 = vlaneseq
    %v5624 = vshrl.u32 %v5623, 7
    %v5625 = vsub.s32 0, %v5624
    %v5626 = vrot.slane %v5621, %v5625
    %v5628 = vmul.f32 %v5357, %v5626
    %v5629 = vmul.f32 %v5358, %v5626
    %v5630 = vmul.f32 %v5359, %v5626
    %v5631 = vmul.f32 %v5360, %v5626
    %v5632 = vmul.f32 %v5361, %v5626
    %v5633 = vmul.f32 %v5362, %v5626
    %v5634 = vmul.f32 %v5363, %v5626
    %v5635 = vmul.f32 %v5364, %v5626
    %v5636 = vmul.f32 %v5365, %v5626
    %v5637 = vmul.f32 %v5366, %v5626
    %v5638 = vmul.f32 %v5367, %v5626
    %v5639 = vmul.f32 %v5368, %v5626
    %v5640 = vmul.f32 %v5369, %v5626
    %v5641 = vmul.f32 %v5370, %v5626
    %v5642 = vmul.f32 %v5371, %v5626
    %v5643 = vmul.f32 %v5372, %v5626
    %v5644 = vmul.f32 %v5373, %v5626
    %v5645 = vmul.f32 %v5374, %v5626
    %v5646 = vmul.f32 %v5375, %v5626
    %v5647 = vmul.f32 %v5376, %v5626
    %v5648 = vmul.f32 %v5377, %v5626
    %v5649 = vmul.f32 %v5378, %v5626
    %v5650 = vmul.f32 %v5379, %v5626
    %v5651 = vmul.f32 %v5380, %v5626
    %v5652 = vmul.f32 %v5381, %v5626
    %v5653 = vmul.f32 %v5382, %v5626
    %v5654 = vmul.f32 %v5383, %v5626
    %v5655 = vmul.f32 %v5384, %v5626
    %v5656 = vmul.f32 %v5385, %v5626
    %v5657 = vmul.f32 %v5386, %v5626
    %v5658 = vmul.f32 %v5387, %v5626
    %v5659 = vmul.f32 %v5388, %v5626
    %v5660 = vmul.f32 %v5389, %v5626
    %v5661 = vmul.f32 %v5390, %v5626
    %v5662 = vmul.f32 %v5391, %v5626
    %v5663 = vmul.f32 %v5392, %v5626
    %v5664 = vmul.f32 %v5393, %v5626
    %v5665 = vmul.f32 %v5394, %v5626
    %v5666 = vmul.f32 %v5395, %v5626
    %v5667 = vmul.f32 %v5396, %v5626
    %v5668 = vmul.f32 %v5397, %v5626
    %v5669 = vmul.f32 %v5398, %v5626
    %v5670 = vmul.f32 %v5399, %v5626
    %v5671 = vmul.f32 %v5400, %v5626
    %v5672 = vmul.f32 %v5401, %v5626
    %v5673 = vmul.f32 %v5402, %v5626
    %v5674 = vmul.f32 %v5403, %v5626
    %v5675 = vmul.f32 %v5404, %v5626
    %v5676 = vmul.f32 %v5405, %v5626
    %v5677 = vmul.f32 %v5406, %v5626
    %v5678 = vmul.f32 %v5407, %v5626
    %v5679 = vmul.f32 %v5408, %v5626
    %v5680 = vmul.f32 %v5409, %v5626
    %v5681 = vmul.f32 %v5410, %v5626
    %v5682 = vmul.f32 %v5411, %v5626
    %v5683 = vmul.f32 %v5412, %v5626
    %v5684 = vmul.f32 %v5413, %v5626
    %v5685 = vmul.f32 %v5414, %v5626
    %v5686 = vmul.f32 %v5415, %v5626
    %v5687 = vmul.f32 %v5416, %v5626
    %v5688 = vmul.f32 %v5417, %v5626
    %v5689 = vmul.f32 %v5418, %v5626
    %v5690 = vmul.f32 %v5419, %v5626
    %v5691 = vmul.f32 %v5420, %v5626
    %v5693 = vlaneseq
    %v5694 = vshrl.u32 %v5693, 7
    %v5695 = vsub.s32 0, %v5694
    %v5696 = vrot.slane %v5222, %v5695
    %v5698 = vadd.f32 %v5628, %v5696
    %v5699 = vadd.f32 %v5629, %v5696
    %v5700 = vadd.f32 %v5630, %v5696
    %v5701 = vadd.f32 %v5631, %v5696
    %v5702 = vadd.f32 %v5632, %v5696
    %v5703 = vadd.f32 %v5633, %v5696
    %v5704 = vadd.f32 %v5634, %v5696
    %v5705 = vadd.f32 %v5635, %v5696
    %v5706 = vadd.f32 %v5636, %v5696
    %v5707 = vadd.f32 %v5637, %v5696
    %v5708 = vadd.f32 %v5638, %v5696
    %v5709 = vadd.f32 %v5639, %v5696
    %v5710 = vadd.f32 %v5640, %v5696
    %v5711 = vadd.f32 %v5641, %v5696
    %v5712 = vadd.f32 %v5642, %v5696
    %v5713 = vadd.f32 %v5643, %v5696
    %v5714 = vadd.f32 %v5644, %v5696
    %v5715 = vadd.f32 %v5645, %v5696
    %v5716 = vadd.f32 %v5646, %v5696
    %v5717 = vadd.f32 %v5647, %v5696
    %v5718 = vadd.f32 %v5648, %v5696
    %v5719 = vadd.f32 %v5649, %v5696
    %v5720 = vadd.f32 %v5650, %v5696
    %v5721 = vadd.f32 %v5651, %v5696
    %v5722 = vadd.f32 %v5652, %v5696
    %v5723 = vadd.f32 %v5653, %v5696
    %v5724 = vadd.f32 %v5654, %v5696
    %v5725 = vadd.f32 %v5655, %v5696
    %v5726 = vadd.f32 %v5656, %v5696
    %v5727 = vadd.f32 %v5657, %v5696
    %v5728 = vadd.f32 %v5658, %v5696
    %v5729 = vadd.f32 %v5659, %v5696
    %v5730 = vadd.f32 %v5660, %v5696
    %v5731 = vadd.f32 %v5661, %v5696
    %v5732 = vadd.f32 %v5662, %v5696
    %v5733 = vadd.f32 %v5663, %v5696
    %v5734 = vadd.f32 %v5664, %v5696
    %v5735 = vadd.f32 %v5665, %v5696
    %v5736 = vadd.f32 %v5666, %v5696
    %v5737 = vadd.f32 %v5667, %v5696
    %v5738 = vadd.f32 %v5668, %v5696
    %v5739 = vadd.f32 %v5669, %v5696
    %v5740 = vadd.f32 %v5670, %v5696
    %v5741 = vadd.f32 %v5671, %v5696
    %v5742 = vadd.f32 %v5672, %v5696
    %v5743 = vadd.f32 %v5673, %v5696
    %v5744 = vadd.f32 %v5674, %v5696
    %v5745 = vadd.f32 %v5675, %v5696
    %v5746 = vadd.f32 %v5676, %v5696
    %v5747 = vadd.f32 %v5677, %v5696
    %v5748 = vadd.f32 %v5678, %v5696
    %v5749 = vadd.f32 %v5679, %v5696
    %v5750 = vadd.f32 %v5680, %v5696
    %v5751 = vadd.f32 %v5681, %v5696
    %v5752 = vadd.f32 %v5682, %v5696
    %v5753 = vadd.f32 %v5683, %v5696
    %v5754 = vadd.f32 %v5684, %v5696
    %v5755 = vadd.f32 %v5685, %v5696
    %v5756 = vadd.f32 %v5686, %v5696
    %v5757 = vadd.f32 %v5687, %v5696
    %v5758 = vadd.f32 %v5688, %v5696
    %v5759 = vadd.f32 %v5689, %v5696
    %v5760 = vadd.f32 %v5690, %v5696
    %v5761 = vadd.f32 %v5691, %v5696
    %v5762 = vmax.f32 %v5698, 0.0
    %v5763 = vmax.f32 %v5699, 0.0
    %v5764 = vmax.f32 %v5700, 0.0
    %v5765 = vmax.f32 %v5701, 0.0
    %v5766 = vmax.f32 %v5702, 0.0
    %v5767 = vmax.f32 %v5703, 0.0
    %v5768 = vmax.f32 %v5704, 0.0
    %v5769 = vmax.f32 %v5705, 0.0
    %v5770 = vmax.f32 %v5706, 0.0
    %v5771 = vmax.f32 %v5707, 0.0
    %v5772 = vmax.f32 %v5708, 0.0
    %v5773 = vmax.f32 %v5709, 0.0
    %v5774 = vmax.f32 %v5710, 0.0
    %v5775 = vmax.f32 %v5711, 0.0
    %v5776 = vmax.f32 %v5712, 0.0
    %v5777 = vmax.f32 %v5713, 0.0
    %v5778 = vmax.f32 %v5714, 0.0
    %v5779 = vmax.f32 %v5715, 0.0
    %v5780 = vmax.f32 %v5716, 0.0
    %v5781 = vmax.f32 %v5717, 0.0
    %v5782 = vmax.f32 %v5718, 0.0
    %v5783 = vmax.f32 %v5719, 0.0
    %v5784 = vmax.f32 %v5720, 0.0
    %v5785 = vmax.f32 %v5721, 0.0
    %v5786 = vmax.f32 %v5722, 0.0
    %v5787 = vmax.f32 %v5723, 0.0
    %v5788 = vmax.f32 %v5724, 0.0
    %v5789 = vmax.f32 %v5725, 0.0
    %v5790 = vmax.f32 %v5726, 0.0
    %v5791 = vmax.f32 %v5727, 0.0
    %v5792 = vmax.f32 %v5728, 0.0
    %v5793 = vmax.f32 %v5729, 0.0
    %v5794 = vmax.f32 %v5730, 0.0
    %v5795 = vmax.f32 %v5731, 0.0
    %v5796 = vmax.f32 %v5732, 0.0
    %v5797 = vmax.f32 %v5733, 0.0
    %v5798 = vmax.f32 %v5734, 0.0
    %v5799 = vmax.f32 %v5735, 0.0
    %v5800 = vmax.f32 %v5736, 0.0
    %v5801 = vmax.f32 %v5737, 0.0
    %v5802 = vmax.f32 %v5738, 0.0
    %v5803 = vmax.f32 %v5739, 0.0
    %v5804 = vmax.f32 %v5740, 0.0
    %v5805 = vmax.f32 %v5741, 0.0
    %v5806 = vmax.f32 %v5742, 0.0
    %v5807 = vmax.f32 %v5743, 0.0
    %v5808 = vmax.f32 %v5744, 0.0
    %v5809 = vmax.f32 %v5745, 0.0
    %v5810 = vmax.f32 %v5746, 0.0
    %v5811 = vmax.f32 %v5747, 0.0
    %v5812 = vmax.f32 %v5748, 0.0
    %v5813 = vmax.f32 %v5749, 0.0
    %v5814 = vmax.f32 %v5750, 0.0
    %v5815 = vmax.f32 %v5751, 0.0
    %v5816 = vmax.f32 %v5752, 0.0
    %v5817 = vmax.f32 %v5753, 0.0
    %v5818 = vmax.f32 %v5754, 0.0
    %v5819 = vmax.f32 %v5755, 0.0
    %v5820 = vmax.f32 %v5756, 0.0
    %v5821 = vmax.f32 %v5757, 0.0
    %v5822 = vmax.f32 %v5758, 0.0
    %v5823 = vmax.f32 %v5759, 0.0
    %v5824 = vmax.f32 %v5760, 0.0
    %v5825 = vmax.f32 %v5761, 0.0
    %v5826 = vld [vmem:[%s7] sm:$0xf]
    %v5828 = vsel %vm110, %v5762, 0
    %v5831 = vsel %vm110, %v5763, 0
    %v5834 = vsel %vm110, %v5764, 0
    %v5837 = vsel %vm110, %v5765, 0
    %v5840 = vsel %vm110, %v5766, 0
    %v5843 = vsel %vm110, %v5767, 0
    %v5846 = vsel %vm110, %v5768, 0
    %v5849 = vsel %vm110, %v5769, 0
    %v5852 = vsel %vm110, %v5770, 0
    %v5855 = vsel %vm110, %v5771, 0
    %v5858 = vsel %vm110, %v5772, 0
    %v5861 = vsel %vm110, %v5773, 0
    %v5864 = vsel %vm110, %v5774, 0
    %v5867 = vsel %vm110, %v5775, 0
    %v5870 = vsel %vm110, %v5776, 0
    %v5873 = vsel %vm110, %v5777, 0
    %v5876 = vsel %vm110, %v5778, 0
    %v5879 = vsel %vm110, %v5779, 0
    %v5882 = vsel %vm110, %v5780, 0
    %v5885 = vsel %vm110, %v5781, 0
    %v5888 = vsel %vm110, %v5782, 0
    %v5891 = vsel %vm110, %v5783, 0
    %v5894 = vsel %vm110, %v5784, 0
    %v5897 = vsel %vm110, %v5785, 0
    %v5900 = vsel %vm110, %v5786, 0
    %v5903 = vsel %vm110, %v5787, 0
    %v5906 = vsel %vm110, %v5788, 0
    %v5909 = vsel %vm110, %v5789, 0
    %v5912 = vsel %vm110, %v5790, 0
    %v5915 = vsel %vm110, %v5791, 0
    %v5918 = vsel %vm110, %v5792, 0
    %v5921 = vsel %vm110, %v5793, 0
    %v5924 = vsel %vm110, %v5794, 0
    %v5927 = vsel %vm110, %v5795, 0
    %v5930 = vsel %vm110, %v5796, 0
    %v5933 = vsel %vm110, %v5797, 0
    %v5936 = vsel %vm110, %v5798, 0
    %v5939 = vsel %vm110, %v5799, 0
    %v5942 = vsel %vm110, %v5800, 0
    %v5945 = vsel %vm110, %v5801, 0
    %v5948 = vsel %vm110, %v5802, 0
    %v5951 = vsel %vm110, %v5803, 0
    %v5954 = vsel %vm110, %v5804, 0
    %v5957 = vsel %vm110, %v5805, 0
    %v5960 = vsel %vm110, %v5806, 0
    %v5963 = vsel %vm110, %v5807, 0
    %v5966 = vsel %vm110, %v5808, 0
    %v5969 = vsel %vm110, %v5809, 0
    %v5972 = vsel %vm110, %v5810, 0
    %v5975 = vsel %vm110, %v5811, 0
    %v5978 = vsel %vm110, %v5812, 0
    %v5981 = vsel %vm110, %v5813, 0
    %v5984 = vsel %vm110, %v5814, 0
    %v5987 = vsel %vm110, %v5815, 0
    %v5990 = vsel %vm110, %v5816, 0
    %v5993 = vsel %vm110, %v5817, 0
    %v5996 = vsel %vm110, %v5818, 0
    %v5999 = vsel %vm110, %v5819, 0
    %v6002 = vsel %vm110, %v5820, 0
    %v6005 = vsel %vm110, %v5821, 0
    %v6008 = vsel %vm110, %v5822, 0
    %v6011 = vsel %vm110, %v5823, 0
    %v6014 = vsel %vm110, %v5824, 0
    %v6017 = vsel %vm110, %v5825, 0
    %v6020 = vsel %vm303, %v5826, 0
    %6022 = vmatprep.subr.mxu0 0.0
    %6023 = vmatpush1.msra.mxu0 %v6020
    %6024 = vmatprep.subr.mxu0 0.0
    %6025 = vmatpush1.msra.mxu0 0.0
    %6026 = vmatprep.subr.mxu0 0.0
    %6027 = vmatpush1.msra.mxu0 0.0
    %6028 = vmatprep.subr.mxu0 0.0
    %6029 = vmatpush1.msra.mxu0 0.0
    %6030 = vmatprep.subr.mxu0 0.0
    %6031 = vmatpush1.msra.mxu0 0.0
    %6032 = vmatprep.subr.mxu0 0.0
    %6033 = vmatpush1.msra.mxu0 0.0
    %6034 = vmatprep.subr.mxu0 0.0
    %6035 = vmatpush1.msra.mxu0 0.0
    %6036 = vmatprep.subr.mxu0 0.0
    %6037 = vmatpush1.msra.mxu0 0.0
    %6038 = vmatprep.subr.mxu0 0.0
    %6039 = vmatpush1.msra.mxu0 0.0
    %6040 = vmatprep.subr.mxu0 0.0
    %6041 = vmatpush1.msra.mxu0 0.0
    %6042 = vmatprep.subr.mxu0 0.0
    %6043 = vmatpush1.msra.mxu0 0.0
    %6044 = vmatprep.subr.mxu0 0.0
    %6045 = vmatpush1.msra.mxu0 0.0
    %6046 = vmatprep.subr.mxu0 0.0
    %6047 = vmatpush1.msra.mxu0 0.0
    %6048 = vmatprep.subr.mxu0 0.0
    %6049 = vmatpush1.msra.mxu0 0.0
    %6050 = vmatprep.subr.mxu0 0.0
    %6051 = vmatpush1.msra.mxu0 0.0
    %6052 = vmatprep.subr.mxu0 0.0
    %6053 = vmatpush1.msra.mxu0 0.0
    %6054 = vmatprep.subr.mxu0 0.0
    %6055 = vmatpush1.msra.mxu0 0.0
    %6056 = vmatprep.subr.mxu0 0.0
    %6057 = vmatpush1.msra.mxu0 0.0
    %6058 = vmatprep.subr.mxu0 0.0
    %6059 = vmatpush1.msra.mxu0 0.0
    %6060 = vmatprep.subr.mxu0 0.0
    %6061 = vmatpush1.msra.mxu0 0.0
    %6062 = vmatprep.subr.mxu0 0.0
    %6063 = vmatpush1.msra.mxu0 0.0
    %6064 = vmatprep.subr.mxu0 0.0
    %6065 = vmatpush1.msra.mxu0 0.0
    %6066 = vmatprep.subr.mxu0 0.0
    %6067 = vmatpush1.msra.mxu0 0.0
    %6068 = vmatprep.subr.mxu0 0.0
    %6069 = vmatpush1.msra.mxu0 0.0
    %6070 = vmatprep.subr.mxu0 0.0
    %6071 = vmatpush1.msra.mxu0 0.0
    %6072 = vmatprep.subr.mxu0 0.0
    %6073 = vmatpush1.msra.mxu0 0.0
    %6074 = vmatprep.subr.mxu0 0.0
    %6075 = vmatpush1.msra.mxu0 0.0
    %6076 = vmatprep.subr.mxu0 0.0
    %6077 = vmatpush1.msra.mxu0 0.0
    %6078 = vmatprep.subr.mxu0 0.0
    %6079 = vmatpush1.msra.mxu0 0.0
    %6080 = vmatprep.subr.mxu0 0.0
    %6081 = vmatpush1.msra.mxu0 0.0
    %6082 = vmatprep.subr.mxu0 0.0
    %6083 = vmatpush1.msra.mxu0 0.0
    %6084 = vmatprep.subr.mxu0 0.0
    %6085 = vmatpush1.msra.mxu0 0.0
    %6086 = vmatprep.mubr.f32.mxu0 0.0
    %6087 = vmatmul.mubr.f32.gmra.mrb[0].mxu0 %v5828
    %v6088 = vpop.f32.mrb[0].mxu0
    %v6089 = vadd.f32 0.0, %v6088
    %v6090 = vpop.f32.mrb[0].mxu0
    %6091 = vmatprep.mubr.f32.mxu0 0.0
    %6092 = vmatmul.mubr.f32.gmra.mrb[0].mxu0 %v5831
    %v6093 = vpop.f32.mrb[0].mxu0
    %v6094 = vadd.f32 0.0, %v6093
    %v6095 = vpop.f32.mrb[0].mxu0
    %6096 = vmatprep.mubr.f32.mxu0 0.0
    %6097 = vmatmul.mubr.f32.gmra.mrb[0].mxu0 %v5834
    %v6098 = vpop.f32.mrb[0].mxu0
    %v6099 = vadd.f32 0.0, %v6098
    %v6100 = vpop.f32.mrb[0].mxu0
    %6101 = vmatprep.mubr.f32.mxu0 0.0
    %6102 = vmatmul.mubr.f32.gmra.mrb[0].mxu0 %v5837
    %v6103 = vpop.f32.mrb[0].mxu0
    %v6104 = vadd.f32 0.0, %v6103
    %v6105 = vpop.f32.mrb[0].mxu0
    %6106 = vmatprep.mubr.f32.mxu0 0.0
    %6107 = vmatmul.mubr.f32.gmra.mrb[0].mxu0 %v5840
    %v6108 = vpop.f32.mrb[0].mxu0
    %v6109 = vadd.f32 0.0, %v6108
    %v6110 = vpop.f32.mrb[0].mxu0
    %6111 = vmatprep.mubr.f32.mxu0 0.0
    %6112 = vmatmul.mubr.f32.gmra.mrb[0].mxu0 %v5843
    %v6113 = vpop.f32.mrb[0].mxu0
    %v6114 = vadd.f32 0.0, %v6113
    %v6115 = vpop.f32.mrb[0].mxu0
    %6116 = vmatprep.mubr.f32.mxu0 0.0
    %6117 = vmatmul.mubr.f32.gmra.mrb[0].mxu0 %v5846
    %v6118 = vpop.f32.mrb[0].mxu0
    %v6119 = vadd.f32 0.0, %v6118
    %v6120 = vpop.f32.mrb[0].mxu0
    %6121 = vmatprep.mubr.f32.mxu0 0.0
    %6122 = vmatmul.mubr.f32.gmra.mrb[0].mxu0 %v5849
    %v6123 = vpop.f32.mrb[0].mxu0
    %v6124 = vadd.f32 0.0, %v6123
    %v6125 = vpop.f32.mrb[0].mxu0
    %6126 = vmatprep.mubr.f32.mxu0 0.0
    %6127 = vmatmul.mubr.f32.gmra.mrb[0].mxu0 %v5852
    %v6128 = vpop.f32.mrb[0].mxu0
    %v6129 = vadd.f32 0.0, %v6128
    %v6130 = vpop.f32.mrb[0].mxu0
    %6131 = vmatprep.mubr.f32.mxu0 0.0
    %6132 = vmatmul.mubr.f32.gmra.mrb[0].mxu0 %v5855
    %v6133 = vpop.f32.mrb[0].mxu0
    %v6134 = vadd.f32 0.0, %v6133
    %v6135 = vpop.f32.mrb[0].mxu0
    %6136 = vmatprep.mubr.f32.mxu0 0.0
    %6137 = vmatmul.mubr.f32.gmra.mrb[0].mxu0 %v5858
    %v6138 = vpop.f32.mrb[0].mxu0
    %v6139 = vadd.f32 0.0, %v6138
    %v6140 = vpop.f32.mrb[0].mxu0
    %6141 = vmatprep.mubr.f32.mxu0 0.0
    %6142 = vmatmul.mubr.f32.gmra.mrb[0].mxu0 %v5861
    %v6143 = vpop.f32.mrb[0].mxu0
    %v6144 = vadd.f32 0.0, %v6143
    %v6145 = vpop.f32.mrb[0].mxu0
    %6146 = vmatprep.mubr.f32.mxu0 0.0
    %6147 = vmatmul.mubr.f32.gmra.mrb[0].mxu0 %v5864
    %v6148 = vpop.f32.mrb[0].mxu0
    %v6149 = vadd.f32 0.0, %v6148
    %v6150 = vpop.f32.mrb[0].mxu0
    %6151 = vmatprep.mubr.f32.mxu0 0.0
    %6152 = vmatmul.mubr.f32.gmra.mrb[0].mxu0 %v5867
    %v6153 = vpop.f32.mrb[0].mxu0
    %v6154 = vadd.f32 0.0, %v6153
    %v6155 = vpop.f32.mrb[0].mxu0
    %6156 = vmatprep.mubr.f32.mxu0 0.0
    %6157 = vmatmul.mubr.f32.gmra.mrb[0].mxu0 %v5870
    %v6158 = vpop.f32.mrb[0].mxu0
    %v6159 = vadd.f32 0.0, %v6158
    %v6160 = vpop.f32.mrb[0].mxu0
    %6161 = vmatprep.mubr.f32.mxu0 0.0
    %6162 = vmatmul.mubr.f32.gmra.mrb[0].mxu0 %v5873
    %v6163 = vpop.f32.mrb[0].mxu0
    %v6164 = vadd.f32 0.0, %v6163
    %v6165 = vpop.f32.mrb[0].mxu0
    %6166 = vmatprep.mubr.f32.mxu0 0.0
    %6167 = vmatmul.mubr.f32.gmra.mrb[0].mxu0 %v5876
    %v6168 = vpop.f32.mrb[0].mxu0
    %v6169 = vadd.f32 0.0, %v6168
    %v6170 = vpop.f32.mrb[0].mxu0
    %6171 = vmatprep.mubr.f32.mxu0 0.0
    %6172 = vmatmul.mubr.f32.gmra.mrb[0].mxu0 %v5879
    %v6173 = vpop.f32.mrb[0].mxu0
    %v6174 = vadd.f32 0.0, %v6173
    %v6175 = vpop.f32.mrb[0].mxu0
    %6176 = vmatprep.mubr.f32.mxu0 0.0
    %6177 = vmatmul.mubr.f32.gmra.mrb[0].mxu0 %v5882
    %v6178 = vpop.f32.mrb[0].mxu0
    %v6179 = vadd.f32 0.0, %v6178
    %v6180 = vpop.f32.mrb[0].mxu0
    %6181 = vmatprep.mubr.f32.mxu0 0.0
    %6182 = vmatmul.mubr.f32.gmra.mrb[0].mxu0 %v5885
    %v6183 = vpop.f32.mrb[0].mxu0
    %v6184 = vadd.f32 0.0, %v6183
    %v6185 = vpop.f32.mrb[0].mxu0
    %6186 = vmatprep.mubr.f32.mxu0 0.0
    %6187 = vmatmul.mubr.f32.gmra.mrb[0].mxu0 %v5888
    %v6188 = vpop.f32.mrb[0].mxu0
    %v6189 = vadd.f32 0.0, %v6188
    %v6190 = vpop.f32.mrb[0].mxu0
    %6191 = vmatprep.mubr.f32.mxu0 0.0
    %6192 = vmatmul.mubr.f32.gmra.mrb[0].mxu0 %v5891
    %v6193 = vpop.f32.mrb[0].mxu0
    %v6194 = vadd.f32 0.0, %v6193
    %v6195 = vpop.f32.mrb[0].mxu0
    %6196 = vmatprep.mubr.f32.mxu0 0.0
    %6197 = vmatmul.mubr.f32.gmra.mrb[0].mxu0 %v5894
    %v6198 = vpop.f32.mrb[0].mxu0
    %v6199 = vadd.f32 0.0, %v6198
    %v6200 = vpop.f32.mrb[0].mxu0
    %6201 = vmatprep.mubr.f32.mxu0 0.0
    %6202 = vmatmul.mubr.f32.gmra.mrb[0].mxu0 %v5897
    %v6203 = vpop.f32.mrb[0].mxu0
    %v6204 = vadd.f32 0.0, %v6203
    %v6205 = vpop.f32.mrb[0].mxu0
    %6206 = vmatprep.mubr.f32.mxu0 0.0
    %6207 = vmatmul.mubr.f32.gmra.mrb[0].mxu0 %v5900
    %v6208 = vpop.f32.mrb[0].mxu0
    %v6209 = vadd.f32 0.0, %v6208
    %v6210 = vpop.f32.mrb[0].mxu0
    %6211 = vmatprep.mubr.f32.mxu0 0.0
    %6212 = vmatmul.mubr.f32.gmra.mrb[0].mxu0 %v5903
    %v6213 = vpop.f32.mrb[0].mxu0
    %v6214 = vadd.f32 0.0, %v6213
    %v6215 = vpop.f32.mrb[0].mxu0
    %6216 = vmatprep.mubr.f32.mxu0 0.0
    %6217 = vmatmul.mubr.f32.gmra.mrb[0].mxu0 %v5906
    %v6218 = vpop.f32.mrb[0].mxu0
    %v6219 = vadd.f32 0.0, %v6218
    %v6220 = vpop.f32.mrb[0].mxu0
    %6221 = vmatprep.mubr.f32.mxu0 0.0
    %6222 = vmatmul.mubr.f32.gmra.mrb[0].mxu0 %v5909
    %v6223 = vpop.f32.mrb[0].mxu0
    %v6224 = vadd.f32 0.0, %v6223
    %v6225 = vpop.f32.mrb[0].mxu0
    %6226 = vmatprep.mubr.f32.mxu0 0.0
    %6227 = vmatmul.mubr.f32.gmra.mrb[0].mxu0 %v5912
    %v6228 = vpop.f32.mrb[0].mxu0
    %v6229 = vadd.f32 0.0, %v6228
    %v6230 = vpop.f32.mrb[0].mxu0
    %6231 = vmatprep.mubr.f32.mxu0 0.0
    %6232 = vmatmul.mubr.f32.gmra.mrb[0].mxu0 %v5915
    %v6233 = vpop.f32.mrb[0].mxu0
    %v6234 = vadd.f32 0.0, %v6233
    %v6235 = vpop.f32.mrb[0].mxu0
    %6236 = vmatprep.mubr.f32.mxu0 0.0
    %6237 = vmatmul.mubr.f32.gmra.mrb[0].mxu0 %v5918
    %v6238 = vpop.f32.mrb[0].mxu0
    %v6239 = vadd.f32 0.0, %v6238
    %v6240 = vpop.f32.mrb[0].mxu0
    %6241 = vmatprep.mubr.f32.mxu0 0.0
    %6242 = vmatmul.mubr.f32.gmra.mrb[0].mxu0 %v5921
    %v6243 = vpop.f32.mrb[0].mxu0
    %v6244 = vadd.f32 0.0, %v6243
    %v6245 = vpop.f32.mrb[0].mxu0
    %6246 = vmatprep.mubr.f32.mxu0 0.0
    %6247 = vmatmul.mubr.f32.gmra.mrb[0].mxu0 %v5924
    %v6248 = vpop.f32.mrb[0].mxu0
    %v6249 = vadd.f32 0.0, %v6248
    %v6250 = vpop.f32.mrb[0].mxu0
    %6251 = vmatprep.mubr.f32.mxu0 0.0
    %6252 = vmatmul.mubr.f32.gmra.mrb[0].mxu0 %v5927
    %v6253 = vpop.f32.mrb[0].mxu0
    %v6254 = vadd.f32 0.0, %v6253
    %v6255 = vpop.f32.mrb[0].mxu0
    %6256 = vmatprep.mubr.f32.mxu0 0.0
    %6257 = vmatmul.mubr.f32.gmra.mrb[0].mxu0 %v5930
    %v6258 = vpop.f32.mrb[0].mxu0
    %v6259 = vadd.f32 0.0, %v6258
    %v6260 = vpop.f32.mrb[0].mxu0
    %6261 = vmatprep.mubr.f32.mxu0 0.0
    %6262 = vmatmul.mubr.f32.gmra.mrb[0].mxu0 %v5933
    %v6263 = vpop.f32.mrb[0].mxu0
    %v6264 = vadd.f32 0.0, %v6263
    %v6265 = vpop.f32.mrb[0].mxu0
    %6266 = vmatprep.mubr.f32.mxu0 0.0
    %6267 = vmatmul.mubr.f32.gmra.mrb[0].mxu0 %v5936
    %v6268 = vpop.f32.mrb[0].mxu0
    %v6269 = vadd.f32 0.0, %v6268
    %v6270 = vpop.f32.mrb[0].mxu0
    %6271 = vmatprep.mubr.f32.mxu0 0.0
    %6272 = vmatmul.mubr.f32.gmra.mrb[0].mxu0 %v5939
    %v6273 = vpop.f32.mrb[0].mxu0
    %v6274 = vadd.f32 0.0, %v6273
    %v6275 = vpop.f32.mrb[0].mxu0
    %6276 = vmatprep.mubr.f32.mxu0 0.0
    %6277 = vmatmul.mubr.f32.gmra.mrb[0].mxu0 %v5942
    %v6278 = vpop.f32.mrb[0].mxu0
    %v6279 = vadd.f32 0.0, %v6278
    %v6280 = vpop.f32.mrb[0].mxu0
    %6281 = vmatprep.mubr.f32.mxu0 0.0
    %6282 = vmatmul.mubr.f32.gmra.mrb[0].mxu0 %v5945
    %v6283 = vpop.f32.mrb[0].mxu0
    %v6284 = vadd.f32 0.0, %v6283
    %v6285 = vpop.f32.mrb[0].mxu0
    %6286 = vmatprep.mubr.f32.mxu0 0.0
    %6287 = vmatmul.mubr.f32.gmra.mrb[0].mxu0 %v5948
    %v6288 = vpop.f32.mrb[0].mxu0
    %v6289 = vadd.f32 0.0, %v6288
    %v6290 = vpop.f32.mrb[0].mxu0
    %6291 = vmatprep.mubr.f32.mxu0 0.0
    %6292 = vmatmul.mubr.f32.gmra.mrb[0].mxu0 %v5951
    %v6293 = vpop.f32.mrb[0].mxu0
    %v6294 = vadd.f32 0.0, %v6293
    %v6295 = vpop.f32.mrb[0].mxu0
    %6296 = vmatprep.mubr.f32.mxu0 0.0
    %6297 = vmatmul.mubr.f32.gmra.mrb[0].mxu0 %v5954
    %v6298 = vpop.f32.mrb[0].mxu0
    %v6299 = vadd.f32 0.0, %v6298
    %v6300 = vpop.f32.mrb[0].mxu0
    %6301 = vmatprep.mubr.f32.mxu0 0.0
    %6302 = vmatmul.mubr.f32.gmra.mrb[0].mxu0 %v5957
    %v6303 = vpop.f32.mrb[0].mxu0
    %v6304 = vadd.f32 0.0, %v6303
    %v6305 = vpop.f32.mrb[0].mxu0
    %6306 = vmatprep.mubr.f32.mxu0 0.0
    %6307 = vmatmul.mubr.f32.gmra.mrb[0].mxu0 %v5960
    %v6308 = vpop.f32.mrb[0].mxu0
    %v6309 = vadd.f32 0.0, %v6308
    %v6310 = vpop.f32.mrb[0].mxu0
    %6311 = vmatprep.mubr.f32.mxu0 0.0
    %6312 = vmatmul.mubr.f32.gmra.mrb[0].mxu0 %v5963
    %v6313 = vpop.f32.mrb[0].mxu0
    %v6314 = vadd.f32 0.0, %v6313
    %v6315 = vpop.f32.mrb[0].mxu0
    %6316 = vmatprep.mubr.f32.mxu0 0.0
    %6317 = vmatmul.mubr.f32.gmra.mrb[0].mxu0 %v5966
    %v6318 = vpop.f32.mrb[0].mxu0
    %v6319 = vadd.f32 0.0, %v6318
    %v6320 = vpop.f32.mrb[0].mxu0
    %6321 = vmatprep.mubr.f32.mxu0 0.0
    %6322 = vmatmul.mubr.f32.gmra.mrb[0].mxu0 %v5969
    %v6323 = vpop.f32.mrb[0].mxu0
    %v6324 = vadd.f32 0.0, %v6323
    %v6325 = vpop.f32.mrb[0].mxu0
    %6326 = vmatprep.mubr.f32.mxu0 0.0
    %6327 = vmatmul.mubr.f32.gmra.mrb[0].mxu0 %v5972
    %v6328 = vpop.f32.mrb[0].mxu0
    %v6329 = vadd.f32 0.0, %v6328
    %v6330 = vpop.f32.mrb[0].mxu0
    %6331 = vmatprep.mubr.f32.mxu0 0.0
    %6332 = vmatmul.mubr.f32.gmra.mrb[0].mxu0 %v5975
    %v6333 = vpop.f32.mrb[0].mxu0
    %v6334 = vadd.f32 0.0, %v6333
    %v6335 = vpop.f32.mrb[0].mxu0
    %6336 = vmatprep.mubr.f32.mxu0 0.0
    %6337 = vmatmul.mubr.f32.gmra.mrb[0].mxu0 %v5978
    %v6338 = vpop.f32.mrb[0].mxu0
    %v6339 = vadd.f32 0.0, %v6338
    %v6340 = vpop.f32.mrb[0].mxu0
    %6341 = vmatprep.mubr.f32.mxu0 0.0
    %6342 = vmatmul.mubr.f32.gmra.mrb[0].mxu0 %v5981
    %v6343 = vpop.f32.mrb[0].mxu0
    %v6344 = vadd.f32 0.0, %v6343
    %v6345 = vpop.f32.mrb[0].mxu0
    %6346 = vmatprep.mubr.f32.mxu0 0.0
    %6347 = vmatmul.mubr.f32.gmra.mrb[0].mxu0 %v5984
    %v6348 = vpop.f32.mrb[0].mxu0
    %v6349 = vadd.f32 0.0, %v6348
    %v6350 = vpop.f32.mrb[0].mxu0
    %6351 = vmatprep.mubr.f32.mxu0 0.0
    %6352 = vmatmul.mubr.f32.gmra.mrb[0].mxu0 %v5987
    %v6353 = vpop.f32.mrb[0].mxu0
    %v6354 = vadd.f32 0.0, %v6353
    %v6355 = vpop.f32.mrb[0].mxu0
    %6356 = vmatprep.mubr.f32.mxu0 0.0
    %6357 = vmatmul.mubr.f32.gmra.mrb[0].mxu0 %v5990
    %v6358 = vpop.f32.mrb[0].mxu0
    %v6359 = vadd.f32 0.0, %v6358
    %v6360 = vpop.f32.mrb[0].mxu0
    %6361 = vmatprep.mubr.f32.mxu0 0.0
    %6362 = vmatmul.mubr.f32.gmra.mrb[0].mxu0 %v5993
    %v6363 = vpop.f32.mrb[0].mxu0
    %v6364 = vadd.f32 0.0, %v6363
    %v6365 = vpop.f32.mrb[0].mxu0
    %6366 = vmatprep.mubr.f32.mxu0 0.0
    %6367 = vmatmul.mubr.f32.gmra.mrb[0].mxu0 %v5996
    %v6368 = vpop.f32.mrb[0].mxu0
    %v6369 = vadd.f32 0.0, %v6368
    %v6370 = vpop.f32.mrb[0].mxu0
    %6371 = vmatprep.mubr.f32.mxu0 0.0
    %6372 = vmatmul.mubr.f32.gmra.mrb[0].mxu0 %v5999
    %v6373 = vpop.f32.mrb[0].mxu0
    %v6374 = vadd.f32 0.0, %v6373
    %v6375 = vpop.f32.mrb[0].mxu0
    %6376 = vmatprep.mubr.f32.mxu0 0.0
    %6377 = vmatmul.mubr.f32.gmra.mrb[0].mxu0 %v6002
    %v6378 = vpop.f32.mrb[0].mxu0
    %v6379 = vadd.f32 0.0, %v6378
    %v6380 = vpop.f32.mrb[0].mxu0
    %6381 = vmatprep.mubr.f32.mxu0 0.0
    %6382 = vmatmul.mubr.f32.gmra.mrb[0].mxu0 %v6005
    %v6383 = vpop.f32.mrb[0].mxu0
    %v6384 = vadd.f32 0.0, %v6383
    %v6385 = vpop.f32.mrb[0].mxu0
    %6386 = vmatprep.mubr.f32.mxu0 0.0
    %6387 = vmatmul.mubr.f32.gmra.mrb[0].mxu0 %v6008
    %v6388 = vpop.f32.mrb[0].mxu0
    %v6389 = vadd.f32 0.0, %v6388
    %v6390 = vpop.f32.mrb[0].mxu0
    %6391 = vmatprep.mubr.f32.mxu0 0.0
    %6392 = vmatmul.mubr.f32.gmra.mrb[0].mxu0 %v6011
    %v6393 = vpop.f32.mrb[0].mxu0
    %v6394 = vadd.f32 0.0, %v6393
    %v6395 = vpop.f32.mrb[0].mxu0
    %6396 = vmatprep.mubr.f32.mxu0 0.0
    %6397 = vmatmul.mubr.f32.gmra.mrb[0].mxu0 %v6014
    %v6398 = vpop.f32.mrb[0].mxu0
    %v6399 = vadd.f32 0.0, %v6398
    %v6400 = vpop.f32.mrb[0].mxu0
    %6401 = vmatprep.mubr.f32.mxu0 0.0
    %6402 = vmatmul.mubr.f32.gmra.mrb[0].mxu0 %v6017
    %v6403 = vpop.f32.mrb[0].mxu0
    %v6404 = vadd.f32 0.0, %v6403
    %v6405 = vpop.f32.mrb[0].mxu0
    %6406 = vdwg.mxu0
    %v6407 = vld [vmem:[%s8] sm:$0x1]
    %v6408 = vld [vmem:[%s9] sm:$0x1]
    %v6409 = vsel %vm4290, %v6089, 0.0
    %v6410 = vsel %vm4290, %v6094, 0.0
    %v6411 = vadd.f32 %v6409, %v6410
    %v6412 = vsel %vm4290, %v6099, 0.0
    %v6413 = vadd.f32 %v6411, %v6412
    %v6414 = vsel %vm4290, %v6104, 0.0
    %v6415 = vadd.f32 %v6413, %v6414
    %v6416 = vsel %vm4290, %v6109, 0.0
    %v6417 = vadd.f32 %v6415, %v6416
    %v6418 = vsel %vm4290, %v6114, 0.0
    %v6419 = vadd.f32 %v6417, %v6418
    %v6420 = vsel %vm4290, %v6119, 0.0
    %v6421 = vadd.f32 %v6419, %v6420
    %v6422 = vsel %vm4290, %v6124, 0.0
    %v6423 = vadd.f32 %v6421, %v6422
    %v6424 = vsel %vm4290, %v6129, 0.0
    %v6425 = vadd.f32 %v6423, %v6424
    %v6426 = vsel %vm4290, %v6134, 0.0
    %v6427 = vadd.f32 %v6425, %v6426
    %v6428 = vsel %vm4290, %v6139, 0.0
    %v6429 = vadd.f32 %v6427, %v6428
    %v6430 = vsel %vm4290, %v6144, 0.0
    %v6431 = vadd.f32 %v6429, %v6430
    %v6432 = vsel %vm4290, %v6149, 0.0
    %v6433 = vadd.f32 %v6431, %v6432
    %v6434 = vsel %vm4290, %v6154, 0.0
    %v6435 = vadd.f32 %v6433, %v6434
    %v6436 = vsel %vm4290, %v6159, 0.0
    %v6437 = vadd.f32 %v6435, %v6436
    %v6438 = vsel %vm4290, %v6164, 0.0
    %v6439 = vadd.f32 %v6437, %v6438
    %v6440 = vsel %vm4290, %v6169, 0.0
    %v6441 = vadd.f32 %v6439, %v6440
    %v6442 = vsel %vm4290, %v6174, 0.0
    %v6443 = vadd.f32 %v6441, %v6442
    %v6444 = vsel %vm4290, %v6179, 0.0
    %v6445 = vadd.f32 %v6443, %v6444
    %v6446 = vsel %vm4290, %v6184, 0.0
    %v6447 = vadd.f32 %v6445, %v6446
    %v6448 = vsel %vm4290, %v6189, 0.0
    %v6449 = vadd.f32 %v6447, %v6448
    %v6450 = vsel %vm4290, %v6194, 0.0
    %v6451 = vadd.f32 %v6449, %v6450
    %v6452 = vsel %vm4290, %v6199, 0.0
    %v6453 = vadd.f32 %v6451, %v6452
    %v6454 = vsel %vm4290, %v6204, 0.0
    %v6455 = vadd.f32 %v6453, %v6454
    %v6456 = vsel %vm4290, %v6209, 0.0
    %v6457 = vadd.f32 %v6455, %v6456
    %v6458 = vsel %vm4290, %v6214, 0.0
    %v6459 = vadd.f32 %v6457, %v6458
    %v6460 = vsel %vm4290, %v6219, 0.0
    %v6461 = vadd.f32 %v6459, %v6460
    %v6462 = vsel %vm4290, %v6224, 0.0
    %v6463 = vadd.f32 %v6461, %v6462
    %v6464 = vsel %vm4290, %v6229, 0.0
    %v6465 = vadd.f32 %v6463, %v6464
    %v6466 = vsel %vm4290, %v6234, 0.0
    %v6467 = vadd.f32 %v6465, %v6466
    %v6468 = vsel %vm4290, %v6239, 0.0
    %v6469 = vadd.f32 %v6467, %v6468
    %v6470 = vsel %vm4290, %v6244, 0.0
    %v6471 = vadd.f32 %v6469, %v6470
    %v6472 = vsel %vm4290, %v6249, 0.0
    %v6473 = vadd.f32 %v6471, %v6472
    %v6474 = vsel %vm4290, %v6254, 0.0
    %v6475 = vadd.f32 %v6473, %v6474
    %v6476 = vsel %vm4290, %v6259, 0.0
    %v6477 = vadd.f32 %v6475, %v6476
    %v6478 = vsel %vm4290, %v6264, 0.0
    %v6479 = vadd.f32 %v6477, %v6478
    %v6480 = vsel %vm4290, %v6269, 0.0
    %v6481 = vadd.f32 %v6479, %v6480
    %v6482 = vsel %vm4290, %v6274, 0.0
    %v6483 = vadd.f32 %v6481, %v6482
    %v6484 = vsel %vm4290, %v6279, 0.0
    %v6485 = vadd.f32 %v6483, %v6484
    %v6486 = vsel %vm4290, %v6284, 0.0
    %v6487 = vadd.f32 %v6485, %v6486
    %v6488 = vsel %vm4290, %v6289, 0.0
    %v6489 = vadd.f32 %v6487, %v6488
    %v6490 = vsel %vm4290, %v6294, 0.0
    %v6491 = vadd.f32 %v6489, %v6490
    %v6492 = vsel %vm4290, %v6299, 0.0
    %v6493 = vadd.f32 %v6491, %v6492
    %v6494 = vsel %vm4290, %v6304, 0.0
    %v6495 = vadd.f32 %v6493, %v6494
    %v6496 = vsel %vm4290, %v6309, 0.0
    %v6497 = vadd.f32 %v6495, %v6496
    %v6498 = vsel %vm4290, %v6314, 0.0
    %v6499 = vadd.f32 %v6497, %v6498
    %v6500 = vsel %vm4290, %v6319, 0.0
    %v6501 = vadd.f32 %v6499, %v6500
    %v6502 = vsel %vm4290, %v6324, 0.0
    %v6503 = vadd.f32 %v6501, %v6502
    %v6504 = vsel %vm4290, %v6329, 0.0
    %v6505 = vadd.f32 %v6503, %v6504
    %v6506 = vsel %vm4290, %v6334, 0.0
    %v6507 = vadd.f32 %v6505, %v6506
    %v6508 = vsel %vm4290, %v6339, 0.0
    %v6509 = vadd.f32 %v6507, %v6508
    %v6510 = vsel %vm4290, %v6344, 0.0
    %v6511 = vadd.f32 %v6509, %v6510
    %v6512 = vsel %vm4290, %v6349, 0.0
    %v6513 = vadd.f32 %v6511, %v6512
    %v6514 = vsel %vm4290, %v6354, 0.0
    %v6515 = vadd.f32 %v6513, %v6514
    %v6516 = vsel %vm4290, %v6359, 0.0
    %v6517 = vadd.f32 %v6515, %v6516
    %v6518 = vsel %vm4290, %v6364, 0.0
    %v6519 = vadd.f32 %v6517, %v6518
    %v6520 = vsel %vm4290, %v6369, 0.0
    %v6521 = vadd.f32 %v6519, %v6520
    %v6522 = vsel %vm4290, %v6374, 0.0
    %v6523 = vadd.f32 %v6521, %v6522
    %v6524 = vsel %vm4290, %v6379, 0.0
    %v6525 = vadd.f32 %v6523, %v6524
    %v6526 = vsel %vm4290, %v6384, 0.0
    %v6527 = vadd.f32 %v6525, %v6526
    %v6528 = vsel %vm4290, %v6389, 0.0
    %v6529 = vadd.f32 %v6527, %v6528
    %v6530 = vsel %vm4290, %v6394, 0.0
    %v6531 = vadd.f32 %v6529, %v6530
    %v6532 = vsel %vm4290, %v6399, 0.0
    %v6533 = vadd.f32 %v6531, %v6532
    %v6534 = vsel %vm4290, %v6404, 0.0
    %v6535 = vadd.f32 %v6533, %v6534
    %v6536 = vrot.slane %v6535, 4
    %v6537 = vadd.f32 %v6535, %v6536
    %v6538 = vrot.slane %v6537, 2
    %v6539 = vadd.f32 %v6537, %v6538
    %v6540 = vrot.slane %v6539, 1
    %v6541 = vadd.f32 %v6539, %v6540
    %v6542 = vmul.f32 %v6541, 0.001953125
    %v6543 = vsub.f32 %v6089, %v6542
    %v6544 = vsub.f32 %v6094, %v6542
    %v6545 = vsub.f32 %v6099, %v6542
    %v6546 = vsub.f32 %v6104, %v6542
    %v6547 = vsub.f32 %v6109, %v6542
    %v6548 = vsub.f32 %v6114, %v6542
    %v6549 = vsub.f32 %v6119, %v6542
    %v6550 = vsub.f32 %v6124, %v6542
    %v6551 = vsub.f32 %v6129, %v6542
    %v6552 = vsub.f32 %v6134, %v6542
    %v6553 = vsub.f32 %v6139, %v6542
    %v6554 = vsub.f32 %v6144, %v6542
    %v6555 = vsub.f32 %v6149, %v6542
    %v6556 = vsub.f32 %v6154, %v6542
    %v6557 = vsub.f32 %v6159, %v6542
    %v6558 = vsub.f32 %v6164, %v6542
    %v6559 = vsub.f32 %v6169, %v6542
    %v6560 = vsub.f32 %v6174, %v6542
    %v6561 = vsub.f32 %v6179, %v6542
    %v6562 = vsub.f32 %v6184, %v6542
    %v6563 = vsub.f32 %v6189, %v6542
    %v6564 = vsub.f32 %v6194, %v6542
    %v6565 = vsub.f32 %v6199, %v6542
    %v6566 = vsub.f32 %v6204, %v6542
    %v6567 = vsub.f32 %v6209, %v6542
    %v6568 = vsub.f32 %v6214, %v6542
    %v6569 = vsub.f32 %v6219, %v6542
    %v6570 = vsub.f32 %v6224, %v6542
    %v6571 = vsub.f32 %v6229, %v6542
    %v6572 = vsub.f32 %v6234, %v6542
    %v6573 = vsub.f32 %v6239, %v6542
    %v6574 = vsub.f32 %v6244, %v6542
    %v6575 = vsub.f32 %v6249, %v6542
    %v6576 = vsub.f32 %v6254, %v6542
    %v6577 = vsub.f32 %v6259, %v6542
    %v6578 = vsub.f32 %v6264, %v6542
    %v6579 = vsub.f32 %v6269, %v6542
    %v6580 = vsub.f32 %v6274, %v6542
    %v6581 = vsub.f32 %v6279, %v6542
    %v6582 = vsub.f32 %v6284, %v6542
    %v6583 = vsub.f32 %v6289, %v6542
    %v6584 = vsub.f32 %v6294, %v6542
    %v6585 = vsub.f32 %v6299, %v6542
    %v6586 = vsub.f32 %v6304, %v6542
    %v6587 = vsub.f32 %v6309, %v6542
    %v6588 = vsub.f32 %v6314, %v6542
    %v6589 = vsub.f32 %v6319, %v6542
    %v6590 = vsub.f32 %v6324, %v6542
    %v6591 = vsub.f32 %v6329, %v6542
    %v6592 = vsub.f32 %v6334, %v6542
    %v6593 = vsub.f32 %v6339, %v6542
    %v6594 = vsub.f32 %v6344, %v6542
    %v6595 = vsub.f32 %v6349, %v6542
    %v6596 = vsub.f32 %v6354, %v6542
    %v6597 = vsub.f32 %v6359, %v6542
    %v6598 = vsub.f32 %v6364, %v6542
    %v6599 = vsub.f32 %v6369, %v6542
    %v6600 = vsub.f32 %v6374, %v6542
    %v6601 = vsub.f32 %v6379, %v6542
    %v6602 = vsub.f32 %v6384, %v6542
    %v6603 = vsub.f32 %v6389, %v6542
    %v6604 = vsub.f32 %v6394, %v6542
    %v6605 = vsub.f32 %v6399, %v6542
    %v6606 = vsub.f32 %v6404, %v6542
    %v6607 = vmul.f32 %v6543, %v6543
    %v6608 = vmul.f32 %v6544, %v6544
    %v6609 = vmul.f32 %v6545, %v6545
    %v6610 = vmul.f32 %v6546, %v6546
    %v6611 = vmul.f32 %v6547, %v6547
    %v6612 = vmul.f32 %v6548, %v6548
    %v6613 = vmul.f32 %v6549, %v6549
    %v6614 = vmul.f32 %v6550, %v6550
    %v6615 = vmul.f32 %v6551, %v6551
    %v6616 = vmul.f32 %v6552, %v6552
    %v6617 = vmul.f32 %v6553, %v6553
    %v6618 = vmul.f32 %v6554, %v6554
    %v6619 = vmul.f32 %v6555, %v6555
    %v6620 = vmul.f32 %v6556, %v6556
    %v6621 = vmul.f32 %v6557, %v6557
    %v6622 = vmul.f32 %v6558, %v6558
    %v6623 = vmul.f32 %v6559, %v6559
    %v6624 = vmul.f32 %v6560, %v6560
    %v6625 = vmul.f32 %v6561, %v6561
    %v6626 = vmul.f32 %v6562, %v6562
    %v6627 = vmul.f32 %v6563, %v6563
    %v6628 = vmul.f32 %v6564, %v6564
    %v6629 = vmul.f32 %v6565, %v6565
    %v6630 = vmul.f32 %v6566, %v6566
    %v6631 = vmul.f32 %v6567, %v6567
    %v6632 = vmul.f32 %v6568, %v6568
    %v6633 = vmul.f32 %v6569, %v6569
    %v6634 = vmul.f32 %v6570, %v6570
    %v6635 = vmul.f32 %v6571, %v6571
    %v6636 = vmul.f32 %v6572, %v6572
    %v6637 = vmul.f32 %v6573, %v6573
    %v6638 = vmul.f32 %v6574, %v6574
    %v6639 = vmul.f32 %v6575, %v6575
    %v6640 = vmul.f32 %v6576, %v6576
    %v6641 = vmul.f32 %v6577, %v6577
    %v6642 = vmul.f32 %v6578, %v6578
    %v6643 = vmul.f32 %v6579, %v6579
    %v6644 = vmul.f32 %v6580, %v6580
    %v6645 = vmul.f32 %v6581, %v6581
    %v6646 = vmul.f32 %v6582, %v6582
    %v6647 = vmul.f32 %v6583, %v6583
    %v6648 = vmul.f32 %v6584, %v6584
    %v6649 = vmul.f32 %v6585, %v6585
    %v6650 = vmul.f32 %v6586, %v6586
    %v6651 = vmul.f32 %v6587, %v6587
    %v6652 = vmul.f32 %v6588, %v6588
    %v6653 = vmul.f32 %v6589, %v6589
    %v6654 = vmul.f32 %v6590, %v6590
    %v6655 = vmul.f32 %v6591, %v6591
    %v6656 = vmul.f32 %v6592, %v6592
    %v6657 = vmul.f32 %v6593, %v6593
    %v6658 = vmul.f32 %v6594, %v6594
    %v6659 = vmul.f32 %v6595, %v6595
    %v6660 = vmul.f32 %v6596, %v6596
    %v6661 = vmul.f32 %v6597, %v6597
    %v6662 = vmul.f32 %v6598, %v6598
    %v6663 = vmul.f32 %v6599, %v6599
    %v6664 = vmul.f32 %v6600, %v6600
    %v6665 = vmul.f32 %v6601, %v6601
    %v6666 = vmul.f32 %v6602, %v6602
    %v6667 = vmul.f32 %v6603, %v6603
    %v6668 = vmul.f32 %v6604, %v6604
    %v6669 = vmul.f32 %v6605, %v6605
    %v6670 = vmul.f32 %v6606, %v6606
    %v6671 = vsel %vm4290, %v6607, 0.0
    %v6672 = vsel %vm4290, %v6608, 0.0
    %v6673 = vadd.f32 %v6671, %v6672
    %v6674 = vsel %vm4290, %v6609, 0.0
    %v6675 = vadd.f32 %v6673, %v6674
    %v6676 = vsel %vm4290, %v6610, 0.0
    %v6677 = vadd.f32 %v6675, %v6676
    %v6678 = vsel %vm4290, %v6611, 0.0
    %v6679 = vadd.f32 %v6677, %v6678
    %v6680 = vsel %vm4290, %v6612, 0.0
    %v6681 = vadd.f32 %v6679, %v6680
    %v6682 = vsel %vm4290, %v6613, 0.0
    %v6683 = vadd.f32 %v6681, %v6682
    %v6684 = vsel %vm4290, %v6614, 0.0
    %v6685 = vadd.f32 %v6683, %v6684
    %v6686 = vsel %vm4290, %v6615, 0.0
    %v6687 = vadd.f32 %v6685, %v6686
    %v6688 = vsel %vm4290, %v6616, 0.0
    %v6689 = vadd.f32 %v6687, %v6688
    %v6690 = vsel %vm4290, %v6617, 0.0
    %v6691 = vadd.f32 %v6689, %v6690
    %v6692 = vsel %vm4290, %v6618, 0.0
    %v6693 = vadd.f32 %v6691, %v6692
    %v6694 = vsel %vm4290, %v6619, 0.0
    %v6695 = vadd.f32 %v6693, %v6694
    %v6696 = vsel %vm4290, %v6620, 0.0
    %v6697 = vadd.f32 %v6695, %v6696
    %v6698 = vsel %vm4290, %v6621, 0.0
    %v6699 = vadd.f32 %v6697, %v6698
    %v6700 = vsel %vm4290, %v6622, 0.0
    %v6701 = vadd.f32 %v6699, %v6700
    %v6702 = vsel %vm4290, %v6623, 0.0
    %v6703 = vadd.f32 %v6701, %v6702
    %v6704 = vsel %vm4290, %v6624, 0.0
    %v6705 = vadd.f32 %v6703, %v6704
    %v6706 = vsel %vm4290, %v6625, 0.0
    %v6707 = vadd.f32 %v6705, %v6706
    %v6708 = vsel %vm4290, %v6626, 0.0
    %v6709 = vadd.f32 %v6707, %v6708
    %v6710 = vsel %vm4290, %v6627, 0.0
    %v6711 = vadd.f32 %v6709, %v6710
    %v6712 = vsel %vm4290, %v6628, 0.0
    %v6713 = vadd.f32 %v6711, %v6712
    %v6714 = vsel %vm4290, %v6629, 0.0
    %v6715 = vadd.f32 %v6713, %v6714
    %v6716 = vsel %vm4290, %v6630, 0.0
    %v6717 = vadd.f32 %v6715, %v6716
    %v6718 = vsel %vm4290, %v6631, 0.0
    %v6719 = vadd.f32 %v6717, %v6718
    %v6720 = vsel %vm4290, %v6632, 0.0
    %v6721 = vadd.f32 %v6719, %v6720
    %v6722 = vsel %vm4290, %v6633, 0.0
    %v6723 = vadd.f32 %v6721, %v6722
    %v6724 = vsel %vm4290, %v6634, 0.0
    %v6725 = vadd.f32 %v6723, %v6724
    %v6726 = vsel %vm4290, %v6635, 0.0
    %v6727 = vadd.f32 %v6725, %v6726
    %v6728 = vsel %vm4290, %v6636, 0.0
    %v6729 = vadd.f32 %v6727, %v6728
    %v6730 = vsel %vm4290, %v6637, 0.0
    %v6731 = vadd.f32 %v6729, %v6730
    %v6732 = vsel %vm4290, %v6638, 0.0
    %v6733 = vadd.f32 %v6731, %v6732
    %v6734 = vsel %vm4290, %v6639, 0.0
    %v6735 = vadd.f32 %v6733, %v6734
    %v6736 = vsel %vm4290, %v6640, 0.0
    %v6737 = vadd.f32 %v6735, %v6736
    %v6738 = vsel %vm4290, %v6641, 0.0
    %v6739 = vadd.f32 %v6737, %v6738
    %v6740 = vsel %vm4290, %v6642, 0.0
    %v6741 = vadd.f32 %v6739, %v6740
    %v6742 = vsel %vm4290, %v6643, 0.0
    %v6743 = vadd.f32 %v6741, %v6742
    %v6744 = vsel %vm4290, %v6644, 0.0
    %v6745 = vadd.f32 %v6743, %v6744
    %v6746 = vsel %vm4290, %v6645, 0.0
    %v6747 = vadd.f32 %v6745, %v6746
    %v6748 = vsel %vm4290, %v6646, 0.0
    %v6749 = vadd.f32 %v6747, %v6748
    %v6750 = vsel %vm4290, %v6647, 0.0
    %v6751 = vadd.f32 %v6749, %v6750
    %v6752 = vsel %vm4290, %v6648, 0.0
    %v6753 = vadd.f32 %v6751, %v6752
    %v6754 = vsel %vm4290, %v6649, 0.0
    %v6755 = vadd.f32 %v6753, %v6754
    %v6756 = vsel %vm4290, %v6650, 0.0
    %v6757 = vadd.f32 %v6755, %v6756
    %v6758 = vsel %vm4290, %v6651, 0.0
    %v6759 = vadd.f32 %v6757, %v6758
    %v6760 = vsel %vm4290, %v6652, 0.0
    %v6761 = vadd.f32 %v6759, %v6760
    %v6762 = vsel %vm4290, %v6653, 0.0
    %v6763 = vadd.f32 %v6761, %v6762
    %v6764 = vsel %vm4290, %v6654, 0.0
    %v6765 = vadd.f32 %v6763, %v6764
    %v6766 = vsel %vm4290, %v6655, 0.0
    %v6767 = vadd.f32 %v6765, %v6766
    %v6768 = vsel %vm4290, %v6656, 0.0
    %v6769 = vadd.f32 %v6767, %v6768
    %v6770 = vsel %vm4290, %v6657, 0.0
    %v6771 = vadd.f32 %v6769, %v6770
    %v6772 = vsel %vm4290, %v6658, 0.0
    %v6773 = vadd.f32 %v6771, %v6772
    %v6774 = vsel %vm4290, %v6659, 0.0
    %v6775 = vadd.f32 %v6773, %v6774
    %v6776 = vsel %vm4290, %v6660, 0.0
    %v6777 = vadd.f32 %v6775, %v6776
    %v6778 = vsel %vm4290, %v6661, 0.0
    %v6779 = vadd.f32 %v6777, %v6778
    %v6780 = vsel %vm4290, %v6662, 0.0
    %v6781 = vadd.f32 %v6779, %v6780
    %v6782 = vsel %vm4290, %v6663, 0.0
    %v6783 = vadd.f32 %v6781, %v6782
    %v6784 = vsel %vm4290, %v6664, 0.0
    %v6785 = vadd.f32 %v6783, %v6784
    %v6786 = vsel %vm4290, %v6665, 0.0
    %v6787 = vadd.f32 %v6785, %v6786
    %v6788 = vsel %vm4290, %v6666, 0.0
    %v6789 = vadd.f32 %v6787, %v6788
    %v6790 = vsel %vm4290, %v6667, 0.0
    %v6791 = vadd.f32 %v6789, %v6790
    %v6792 = vsel %vm4290, %v6668, 0.0
    %v6793 = vadd.f32 %v6791, %v6792
    %v6794 = vsel %vm4290, %v6669, 0.0
    %v6795 = vadd.f32 %v6793, %v6794
    %v6796 = vsel %vm4290, %v6670, 0.0
    %v6797 = vadd.f32 %v6795, %v6796
    %v6798 = vrot.slane %v6797, 4
    %v6799 = vadd.f32 %v6797, %v6798
    %v6800 = vrot.slane %v6799, 2
    %v6801 = vadd.f32 %v6799, %v6800
    %v6802 = vrot.slane %v6801, 1
    %v6803 = vadd.f32 %v6801, %v6802
    %v6804 = vmul.f32 %v6803, 0.001953125
    %v6805 = vadd.f32 %v6804, 1e-05
    %v6806 = vrsqrt.pop %v6805
    %v6807 = vmul.f32 %v6407, %v6806
    %v6809 = vlaneseq
    %v6810 = vshrl.u32 %v6809, 7
    %v6811 = vsub.s32 0, %v6810
    %v6812 = vrot.slane %v6807, %v6811
    %v6814 = vmul.f32 %v6543, %v6812
    %v6815 = vmul.f32 %v6544, %v6812
    %v6816 = vmul.f32 %v6545, %v6812
    %v6817 = vmul.f32 %v6546, %v6812
    %v6818 = vmul.f32 %v6547, %v6812
    %v6819 = vmul.f32 %v6548, %v6812
    %v6820 = vmul.f32 %v6549, %v6812
    %v6821 = vmul.f32 %v6550, %v6812
    %v6822 = vmul.f32 %v6551, %v6812
    %v6823 = vmul.f32 %v6552, %v6812
    %v6824 = vmul.f32 %v6553, %v6812
    %v6825 = vmul.f32 %v6554, %v6812
    %v6826 = vmul.f32 %v6555, %v6812
    %v6827 = vmul.f32 %v6556, %v6812
    %v6828 = vmul.f32 %v6557, %v6812
    %v6829 = vmul.f32 %v6558, %v6812
    %v6830 = vmul.f32 %v6559, %v6812
    %v6831 = vmul.f32 %v6560, %v6812
    %v6832 = vmul.f32 %v6561, %v6812
    %v6833 = vmul.f32 %v6562, %v6812
    %v6834 = vmul.f32 %v6563, %v6812
    %v6835 = vmul.f32 %v6564, %v6812
    %v6836 = vmul.f32 %v6565, %v6812
    %v6837 = vmul.f32 %v6566, %v6812
    %v6838 = vmul.f32 %v6567, %v6812
    %v6839 = vmul.f32 %v6568, %v6812
    %v6840 = vmul.f32 %v6569, %v6812
    %v6841 = vmul.f32 %v6570, %v6812
    %v6842 = vmul.f32 %v6571, %v6812
    %v6843 = vmul.f32 %v6572, %v6812
    %v6844 = vmul.f32 %v6573, %v6812
    %v6845 = vmul.f32 %v6574, %v6812
    %v6846 = vmul.f32 %v6575, %v6812
    %v6847 = vmul.f32 %v6576, %v6812
    %v6848 = vmul.f32 %v6577, %v6812
    %v6849 = vmul.f32 %v6578, %v6812
    %v6850 = vmul.f32 %v6579, %v6812
    %v6851 = vmul.f32 %v6580, %v6812
    %v6852 = vmul.f32 %v6581, %v6812
    %v6853 = vmul.f32 %v6582, %v6812
    %v6854 = vmul.f32 %v6583, %v6812
    %v6855 = vmul.f32 %v6584, %v6812
    %v6856 = vmul.f32 %v6585, %v6812
    %v6857 = vmul.f32 %v6586, %v6812
    %v6858 = vmul.f32 %v6587, %v6812
    %v6859 = vmul.f32 %v6588, %v6812
    %v6860 = vmul.f32 %v6589, %v6812
    %v6861 = vmul.f32 %v6590, %v6812
    %v6862 = vmul.f32 %v6591, %v6812
    %v6863 = vmul.f32 %v6592, %v6812
    %v6864 = vmul.f32 %v6593, %v6812
    %v6865 = vmul.f32 %v6594, %v6812
    %v6866 = vmul.f32 %v6595, %v6812
    %v6867 = vmul.f32 %v6596, %v6812
    %v6868 = vmul.f32 %v6597, %v6812
    %v6869 = vmul.f32 %v6598, %v6812
    %v6870 = vmul.f32 %v6599, %v6812
    %v6871 = vmul.f32 %v6600, %v6812
    %v6872 = vmul.f32 %v6601, %v6812
    %v6873 = vmul.f32 %v6602, %v6812
    %v6874 = vmul.f32 %v6603, %v6812
    %v6875 = vmul.f32 %v6604, %v6812
    %v6876 = vmul.f32 %v6605, %v6812
    %v6877 = vmul.f32 %v6606, %v6812
    %v6879 = vlaneseq
    %v6880 = vshrl.u32 %v6879, 7
    %v6881 = vsub.s32 0, %v6880
    %v6882 = vrot.slane %v6408, %v6881
    %v6884 = vadd.f32 %v6814, %v6882
    %v6885 = vadd.f32 %v6815, %v6882
    %v6886 = vadd.f32 %v6816, %v6882
    %v6887 = vadd.f32 %v6817, %v6882
    %v6888 = vadd.f32 %v6818, %v6882
    %v6889 = vadd.f32 %v6819, %v6882
    %v6890 = vadd.f32 %v6820, %v6882
    %v6891 = vadd.f32 %v6821, %v6882
    %v6892 = vadd.f32 %v6822, %v6882
    %v6893 = vadd.f32 %v6823, %v6882
    %v6894 = vadd.f32 %v6824, %v6882
    %v6895 = vadd.f32 %v6825, %v6882
    %v6896 = vadd.f32 %v6826, %v6882
    %v6897 = vadd.f32 %v6827, %v6882
    %v6898 = vadd.f32 %v6828, %v6882
    %v6899 = vadd.f32 %v6829, %v6882
    %v6900 = vadd.f32 %v6830, %v6882
    %v6901 = vadd.f32 %v6831, %v6882
    %v6902 = vadd.f32 %v6832, %v6882
    %v6903 = vadd.f32 %v6833, %v6882
    %v6904 = vadd.f32 %v6834, %v6882
    %v6905 = vadd.f32 %v6835, %v6882
    %v6906 = vadd.f32 %v6836, %v6882
    %v6907 = vadd.f32 %v6837, %v6882
    %v6908 = vadd.f32 %v6838, %v6882
    %v6909 = vadd.f32 %v6839, %v6882
    %v6910 = vadd.f32 %v6840, %v6882
    %v6911 = vadd.f32 %v6841, %v6882
    %v6912 = vadd.f32 %v6842, %v6882
    %v6913 = vadd.f32 %v6843, %v6882
    %v6914 = vadd.f32 %v6844, %v6882
    %v6915 = vadd.f32 %v6845, %v6882
    %v6916 = vadd.f32 %v6846, %v6882
    %v6917 = vadd.f32 %v6847, %v6882
    %v6918 = vadd.f32 %v6848, %v6882
    %v6919 = vadd.f32 %v6849, %v6882
    %v6920 = vadd.f32 %v6850, %v6882
    %v6921 = vadd.f32 %v6851, %v6882
    %v6922 = vadd.f32 %v6852, %v6882
    %v6923 = vadd.f32 %v6853, %v6882
    %v6924 = vadd.f32 %v6854, %v6882
    %v6925 = vadd.f32 %v6855, %v6882
    %v6926 = vadd.f32 %v6856, %v6882
    %v6927 = vadd.f32 %v6857, %v6882
    %v6928 = vadd.f32 %v6858, %v6882
    %v6929 = vadd.f32 %v6859, %v6882
    %v6930 = vadd.f32 %v6860, %v6882
    %v6931 = vadd.f32 %v6861, %v6882
    %v6932 = vadd.f32 %v6862, %v6882
    %v6933 = vadd.f32 %v6863, %v6882
    %v6934 = vadd.f32 %v6864, %v6882
    %v6935 = vadd.f32 %v6865, %v6882
    %v6936 = vadd.f32 %v6866, %v6882
    %v6937 = vadd.f32 %v6867, %v6882
    %v6938 = vadd.f32 %v6868, %v6882
    %v6939 = vadd.f32 %v6869, %v6882
    %v6940 = vadd.f32 %v6870, %v6882
    %v6941 = vadd.f32 %v6871, %v6882
    %v6942 = vadd.f32 %v6872, %v6882
    %v6943 = vadd.f32 %v6873, %v6882
    %v6944 = vadd.f32 %v6874, %v6882
    %v6945 = vadd.f32 %v6875, %v6882
    %v6946 = vadd.f32 %v6876, %v6882
    %v6947 = vadd.f32 %v6877, %v6882
    %v6948 = vld [vmem:[%s10] sm:$0xf]
    %v6950 = vsel %vm303, %v6948, 0
    %6952 = vmatprep.subr.mxu0 0.0
    %6953 = vmatpush1.msra.mxu0 %v6950
    %6954 = vmatprep.subr.mxu0 0.0
    %6955 = vmatpush1.msra.mxu0 0.0
    %6956 = vmatprep.subr.mxu0 0.0
    %6957 = vmatpush1.msra.mxu0 0.0
    %6958 = vmatprep.subr.mxu0 0.0
    %6959 = vmatpush1.msra.mxu0 0.0
    %6960 = vmatprep.subr.mxu0 0.0
    %6961 = vmatpush1.msra.mxu0 0.0
    %6962 = vmatprep.subr.mxu0 0.0
    %6963 = vmatpush1.msra.mxu0 0.0
    %6964 = vmatprep.subr.mxu0 0.0
    %6965 = vmatpush1.msra.mxu0 0.0
    %6966 = vmatprep.subr.mxu0 0.0
    %6967 = vmatpush1.msra.mxu0 0.0
    %6968 = vmatprep.subr.mxu0 0.0
    %6969 = vmatpush1.msra.mxu0 0.0
    %6970 = vmatprep.subr.mxu0 0.0
    %6971 = vmatpush1.msra.mxu0 0.0
    %6972 = vmatprep.subr.mxu0 0.0
    %6973 = vmatpush1.msra.mxu0 0.0
    %6974 = vmatprep.subr.mxu0 0.0
    %6975 = vmatpush1.msra.mxu0 0.0
    %6976 = vmatprep.subr.mxu0 0.0
    %6977 = vmatpush1.msra.mxu0 0.0
    %6978 = vmatprep.subr.mxu0 0.0
    %6979 = vmatpush1.msra.mxu0 0.0
    %6980 = vmatprep.subr.mxu0 0.0
    %6981 = vmatpush1.msra.mxu0 0.0
    %6982 = vmatprep.subr.mxu0 0.0
    %6983 = vmatpush1.msra.mxu0 0.0
    %6984 = vmatprep.subr.mxu0 0.0
    %6985 = vmatpush1.msra.mxu0 0.0
    %6986 = vmatprep.subr.mxu0 0.0
    %6987 = vmatpush1.msra.mxu0 0.0
    %6988 = vmatprep.subr.mxu0 0.0
    %6989 = vmatpush1.msra.mxu0 0.0
    %6990 = vmatprep.subr.mxu0 0.0
    %6991 = vmatpush1.msra.mxu0 0.0
    %6992 = vmatprep.subr.mxu0 0.0
    %6993 = vmatpush1.msra.mxu0 0.0
    %6994 = vmatprep.subr.mxu0 0.0
    %6995 = vmatpush1.msra.mxu0 0.0
    %6996 = vmatprep.subr.mxu0 0.0
    %6997 = vmatpush1.msra.mxu0 0.0
    %6998 = vmatprep.subr.mxu0 0.0
    %6999 = vmatpush1.msra.mxu0 0.0
    %7000 = vmatprep.subr.mxu0 0.0
    %7001 = vmatpush1.msra.mxu0 0.0
    %7002 = vmatprep.subr.mxu0 0.0
    %7003 = vmatpush1.msra.mxu0 0.0
    %7004 = vmatprep.subr.mxu0 0.0
    %7005 = vmatpush1.msra.mxu0 0.0
    %7006 = vmatprep.subr.mxu0 0.0
    %7007 = vmatpush1.msra.mxu0 0.0
    %7008 = vmatprep.subr.mxu0 0.0
    %7009 = vmatpush1.msra.mxu0 0.0
    %7010 = vmatprep.subr.mxu0 0.0
    %7011 = vmatpush1.msra.mxu0 0.0
    %7012 = vmatprep.subr.mxu0 0.0
    %7013 = vmatpush1.msra.mxu0 0.0
    %7014 = vmatprep.subr.mxu0 0.0
    %7015 = vmatpush1.msra.mxu0 0.0
    %7016 = vmatprep.mubr.f32.mxu0 0.0
    %7017 = vmatmul.mubr.f32.gmra.mrb[0].mxu0 %v112
    %v7018 = vpop.f32.mrb[0].mxu0
    %v7019 = vadd.f32 0.0, %v7018
    %v7020 = vpop.f32.mrb[0].mxu0
    %7021 = vmatprep.mubr.f32.mxu0 0.0
    %7022 = vmatmul.mubr.f32.gmra.mrb[0].mxu0 %v115
    %v7023 = vpop.f32.mrb[0].mxu0
    %v7024 = vadd.f32 0.0, %v7023
    %v7025 = vpop.f32.mrb[0].mxu0
    %7026 = vmatprep.mubr.f32.mxu0 0.0
    %7027 = vmatmul.mubr.f32.gmra.mrb[0].mxu0 %v118
    %v7028 = vpop.f32.mrb[0].mxu0
    %v7029 = vadd.f32 0.0, %v7028
    %v7030 = vpop.f32.mrb[0].mxu0
    %7031 = vmatprep.mubr.f32.mxu0 0.0
    %7032 = vmatmul.mubr.f32.gmra.mrb[0].mxu0 %v121
    %v7033 = vpop.f32.mrb[0].mxu0
    %v7034 = vadd.f32 0.0, %v7033
    %v7035 = vpop.f32.mrb[0].mxu0
    %7036 = vmatprep.mubr.f32.mxu0 0.0
    %7037 = vmatmul.mubr.f32.gmra.mrb[0].mxu0 %v124
    %v7038 = vpop.f32.mrb[0].mxu0
    %v7039 = vadd.f32 0.0, %v7038
    %v7040 = vpop.f32.mrb[0].mxu0
    %7041 = vmatprep.mubr.f32.mxu0 0.0
    %7042 = vmatmul.mubr.f32.gmra.mrb[0].mxu0 %v127
    %v7043 = vpop.f32.mrb[0].mxu0
    %v7044 = vadd.f32 0.0, %v7043
    %v7045 = vpop.f32.mrb[0].mxu0
    %7046 = vmatprep.mubr.f32.mxu0 0.0
    %7047 = vmatmul.mubr.f32.gmra.mrb[0].mxu0 %v130
    %v7048 = vpop.f32.mrb[0].mxu0
    %v7049 = vadd.f32 0.0, %v7048
    %v7050 = vpop.f32.mrb[0].mxu0
    %7051 = vmatprep.mubr.f32.mxu0 0.0
    %7052 = vmatmul.mubr.f32.gmra.mrb[0].mxu0 %v133
    %v7053 = vpop.f32.mrb[0].mxu0
    %v7054 = vadd.f32 0.0, %v7053
    %v7055 = vpop.f32.mrb[0].mxu0
    %7056 = vmatprep.mubr.f32.mxu0 0.0
    %7057 = vmatmul.mubr.f32.gmra.mrb[0].mxu0 %v136
    %v7058 = vpop.f32.mrb[0].mxu0
    %v7059 = vadd.f32 0.0, %v7058
    %v7060 = vpop.f32.mrb[0].mxu0
    %7061 = vmatprep.mubr.f32.mxu0 0.0
    %7062 = vmatmul.mubr.f32.gmra.mrb[0].mxu0 %v139
    %v7063 = vpop.f32.mrb[0].mxu0
    %v7064 = vadd.f32 0.0, %v7063
    %v7065 = vpop.f32.mrb[0].mxu0
    %7066 = vmatprep.mubr.f32.mxu0 0.0
    %7067 = vmatmul.mubr.f32.gmra.mrb[0].mxu0 %v142
    %v7068 = vpop.f32.mrb[0].mxu0
    %v7069 = vadd.f32 0.0, %v7068
    %v7070 = vpop.f32.mrb[0].mxu0
    %7071 = vmatprep.mubr.f32.mxu0 0.0
    %7072 = vmatmul.mubr.f32.gmra.mrb[0].mxu0 %v145
    %v7073 = vpop.f32.mrb[0].mxu0
    %v7074 = vadd.f32 0.0, %v7073
    %v7075 = vpop.f32.mrb[0].mxu0
    %7076 = vmatprep.mubr.f32.mxu0 0.0
    %7077 = vmatmul.mubr.f32.gmra.mrb[0].mxu0 %v148
    %v7078 = vpop.f32.mrb[0].mxu0
    %v7079 = vadd.f32 0.0, %v7078
    %v7080 = vpop.f32.mrb[0].mxu0
    %7081 = vmatprep.mubr.f32.mxu0 0.0
    %7082 = vmatmul.mubr.f32.gmra.mrb[0].mxu0 %v151
    %v7083 = vpop.f32.mrb[0].mxu0
    %v7084 = vadd.f32 0.0, %v7083
    %v7085 = vpop.f32.mrb[0].mxu0
    %7086 = vmatprep.mubr.f32.mxu0 0.0
    %7087 = vmatmul.mubr.f32.gmra.mrb[0].mxu0 %v154
    %v7088 = vpop.f32.mrb[0].mxu0
    %v7089 = vadd.f32 0.0, %v7088
    %v7090 = vpop.f32.mrb[0].mxu0
    %7091 = vmatprep.mubr.f32.mxu0 0.0
    %7092 = vmatmul.mubr.f32.gmra.mrb[0].mxu0 %v157
    %v7093 = vpop.f32.mrb[0].mxu0
    %v7094 = vadd.f32 0.0, %v7093
    %v7095 = vpop.f32.mrb[0].mxu0
    %7096 = vmatprep.mubr.f32.mxu0 0.0
    %7097 = vmatmul.mubr.f32.gmra.mrb[0].mxu0 %v160
    %v7098 = vpop.f32.mrb[0].mxu0
    %v7099 = vadd.f32 0.0, %v7098
    %v7100 = vpop.f32.mrb[0].mxu0
    %7101 = vmatprep.mubr.f32.mxu0 0.0
    %7102 = vmatmul.mubr.f32.gmra.mrb[0].mxu0 %v163
    %v7103 = vpop.f32.mrb[0].mxu0
    %v7104 = vadd.f32 0.0, %v7103
    %v7105 = vpop.f32.mrb[0].mxu0
    %7106 = vmatprep.mubr.f32.mxu0 0.0
    %7107 = vmatmul.mubr.f32.gmra.mrb[0].mxu0 %v166
    %v7108 = vpop.f32.mrb[0].mxu0
    %v7109 = vadd.f32 0.0, %v7108
    %v7110 = vpop.f32.mrb[0].mxu0
    %7111 = vmatprep.mubr.f32.mxu0 0.0
    %7112 = vmatmul.mubr.f32.gmra.mrb[0].mxu0 %v169
    %v7113 = vpop.f32.mrb[0].mxu0
    %v7114 = vadd.f32 0.0, %v7113
    %v7115 = vpop.f32.mrb[0].mxu0
    %7116 = vmatprep.mubr.f32.mxu0 0.0
    %7117 = vmatmul.mubr.f32.gmra.mrb[0].mxu0 %v172
    %v7118 = vpop.f32.mrb[0].mxu0
    %v7119 = vadd.f32 0.0, %v7118
    %v7120 = vpop.f32.mrb[0].mxu0
    %7121 = vmatprep.mubr.f32.mxu0 0.0
    %7122 = vmatmul.mubr.f32.gmra.mrb[0].mxu0 %v175
    %v7123 = vpop.f32.mrb[0].mxu0
    %v7124 = vadd.f32 0.0, %v7123
    %v7125 = vpop.f32.mrb[0].mxu0
    %7126 = vmatprep.mubr.f32.mxu0 0.0
    %7127 = vmatmul.mubr.f32.gmra.mrb[0].mxu0 %v178
    %v7128 = vpop.f32.mrb[0].mxu0
    %v7129 = vadd.f32 0.0, %v7128
    %v7130 = vpop.f32.mrb[0].mxu0
    %7131 = vmatprep.mubr.f32.mxu0 0.0
    %7132 = vmatmul.mubr.f32.gmra.mrb[0].mxu0 %v181
    %v7133 = vpop.f32.mrb[0].mxu0
    %v7134 = vadd.f32 0.0, %v7133
    %v7135 = vpop.f32.mrb[0].mxu0
    %7136 = vmatprep.mubr.f32.mxu0 0.0
    %7137 = vmatmul.mubr.f32.gmra.mrb[0].mxu0 %v184
    %v7138 = vpop.f32.mrb[0].mxu0
    %v7139 = vadd.f32 0.0, %v7138
    %v7140 = vpop.f32.mrb[0].mxu0
    %7141 = vmatprep.mubr.f32.mxu0 0.0
    %7142 = vmatmul.mubr.f32.gmra.mrb[0].mxu0 %v187
    %v7143 = vpop.f32.mrb[0].mxu0
    %v7144 = vadd.f32 0.0, %v7143
    %v7145 = vpop.f32.mrb[0].mxu0
    %7146 = vmatprep.mubr.f32.mxu0 0.0
    %7147 = vmatmul.mubr.f32.gmra.mrb[0].mxu0 %v190
    %v7148 = vpop.f32.mrb[0].mxu0
    %v7149 = vadd.f32 0.0, %v7148
    %v7150 = vpop.f32.mrb[0].mxu0
    %7151 = vmatprep.mubr.f32.mxu0 0.0
    %7152 = vmatmul.mubr.f32.gmra.mrb[0].mxu0 %v193
    %v7153 = vpop.f32.mrb[0].mxu0
    %v7154 = vadd.f32 0.0, %v7153
    %v7155 = vpop.f32.mrb[0].mxu0
    %7156 = vmatprep.mubr.f32.mxu0 0.0
    %7157 = vmatmul.mubr.f32.gmra.mrb[0].mxu0 %v196
    %v7158 = vpop.f32.mrb[0].mxu0
    %v7159 = vadd.f32 0.0, %v7158
    %v7160 = vpop.f32.mrb[0].mxu0
    %7161 = vmatprep.mubr.f32.mxu0 0.0
    %7162 = vmatmul.mubr.f32.gmra.mrb[0].mxu0 %v199
    %v7163 = vpop.f32.mrb[0].mxu0
    %v7164 = vadd.f32 0.0, %v7163
    %v7165 = vpop.f32.mrb[0].mxu0
    %7166 = vmatprep.mubr.f32.mxu0 0.0
    %7167 = vmatmul.mubr.f32.gmra.mrb[0].mxu0 %v202
    %v7168 = vpop.f32.mrb[0].mxu0
    %v7169 = vadd.f32 0.0, %v7168
    %v7170 = vpop.f32.mrb[0].mxu0
    %7171 = vmatprep.mubr.f32.mxu0 0.0
    %7172 = vmatmul.mubr.f32.gmra.mrb[0].mxu0 %v205
    %v7173 = vpop.f32.mrb[0].mxu0
    %v7174 = vadd.f32 0.0, %v7173
    %v7175 = vpop.f32.mrb[0].mxu0
    %7176 = vmatprep.mubr.f32.mxu0 0.0
    %7177 = vmatmul.mubr.f32.gmra.mrb[0].mxu0 %v208
    %v7178 = vpop.f32.mrb[0].mxu0
    %v7179 = vadd.f32 0.0, %v7178
    %v7180 = vpop.f32.mrb[0].mxu0
    %7181 = vmatprep.mubr.f32.mxu0 0.0
    %7182 = vmatmul.mubr.f32.gmra.mrb[0].mxu0 %v211
    %v7183 = vpop.f32.mrb[0].mxu0
    %v7184 = vadd.f32 0.0, %v7183
    %v7185 = vpop.f32.mrb[0].mxu0
    %7186 = vmatprep.mubr.f32.mxu0 0.0
    %7187 = vmatmul.mubr.f32.gmra.mrb[0].mxu0 %v214
    %v7188 = vpop.f32.mrb[0].mxu0
    %v7189 = vadd.f32 0.0, %v7188
    %v7190 = vpop.f32.mrb[0].mxu0
    %7191 = vmatprep.mubr.f32.mxu0 0.0
    %7192 = vmatmul.mubr.f32.gmra.mrb[0].mxu0 %v217
    %v7193 = vpop.f32.mrb[0].mxu0
    %v7194 = vadd.f32 0.0, %v7193
    %v7195 = vpop.f32.mrb[0].mxu0
    %7196 = vmatprep.mubr.f32.mxu0 0.0
    %7197 = vmatmul.mubr.f32.gmra.mrb[0].mxu0 %v220
    %v7198 = vpop.f32.mrb[0].mxu0
    %v7199 = vadd.f32 0.0, %v7198
    %v7200 = vpop.f32.mrb[0].mxu0
    %7201 = vmatprep.mubr.f32.mxu0 0.0
    %7202 = vmatmul.mubr.f32.gmra.mrb[0].mxu0 %v223
    %v7203 = vpop.f32.mrb[0].mxu0
    %v7204 = vadd.f32 0.0, %v7203
    %v7205 = vpop.f32.mrb[0].mxu0
    %7206 = vmatprep.mubr.f32.mxu0 0.0
    %7207 = vmatmul.mubr.f32.gmra.mrb[0].mxu0 %v226
    %v7208 = vpop.f32.mrb[0].mxu0
    %v7209 = vadd.f32 0.0, %v7208
    %v7210 = vpop.f32.mrb[0].mxu0
    %7211 = vmatprep.mubr.f32.mxu0 0.0
    %7212 = vmatmul.mubr.f32.gmra.mrb[0].mxu0 %v229
    %v7213 = vpop.f32.mrb[0].mxu0
    %v7214 = vadd.f32 0.0, %v7213
    %v7215 = vpop.f32.mrb[0].mxu0
    %7216 = vmatprep.mubr.f32.mxu0 0.0
    %7217 = vmatmul.mubr.f32.gmra.mrb[0].mxu0 %v232
    %v7218 = vpop.f32.mrb[0].mxu0
    %v7219 = vadd.f32 0.0, %v7218
    %v7220 = vpop.f32.mrb[0].mxu0
    %7221 = vmatprep.mubr.f32.mxu0 0.0
    %7222 = vmatmul.mubr.f32.gmra.mrb[0].mxu0 %v235
    %v7223 = vpop.f32.mrb[0].mxu0
    %v7224 = vadd.f32 0.0, %v7223
    %v7225 = vpop.f32.mrb[0].mxu0
    %7226 = vmatprep.mubr.f32.mxu0 0.0
    %7227 = vmatmul.mubr.f32.gmra.mrb[0].mxu0 %v238
    %v7228 = vpop.f32.mrb[0].mxu0
    %v7229 = vadd.f32 0.0, %v7228
    %v7230 = vpop.f32.mrb[0].mxu0
    %7231 = vmatprep.mubr.f32.mxu0 0.0
    %7232 = vmatmul.mubr.f32.gmra.mrb[0].mxu0 %v241
    %v7233 = vpop.f32.mrb[0].mxu0
    %v7234 = vadd.f32 0.0, %v7233
    %v7235 = vpop.f32.mrb[0].mxu0
    %7236 = vmatprep.mubr.f32.mxu0 0.0
    %7237 = vmatmul.mubr.f32.gmra.mrb[0].mxu0 %v244
    %v7238 = vpop.f32.mrb[0].mxu0
    %v7239 = vadd.f32 0.0, %v7238
    %v7240 = vpop.f32.mrb[0].mxu0
    %7241 = vmatprep.mubr.f32.mxu0 0.0
    %7242 = vmatmul.mubr.f32.gmra.mrb[0].mxu0 %v247
    %v7243 = vpop.f32.mrb[0].mxu0
    %v7244 = vadd.f32 0.0, %v7243
    %v7245 = vpop.f32.mrb[0].mxu0
    %7246 = vmatprep.mubr.f32.mxu0 0.0
    %7247 = vmatmul.mubr.f32.gmra.mrb[0].mxu0 %v250
    %v7248 = vpop.f32.mrb[0].mxu0
    %v7249 = vadd.f32 0.0, %v7248
    %v7250 = vpop.f32.mrb[0].mxu0
    %7251 = vmatprep.mubr.f32.mxu0 0.0
    %7252 = vmatmul.mubr.f32.gmra.mrb[0].mxu0 %v253
    %v7253 = vpop.f32.mrb[0].mxu0
    %v7254 = vadd.f32 0.0, %v7253
    %v7255 = vpop.f32.mrb[0].mxu0
    %7256 = vmatprep.mubr.f32.mxu0 0.0
    %7257 = vmatmul.mubr.f32.gmra.mrb[0].mxu0 %v256
    %v7258 = vpop.f32.mrb[0].mxu0
    %v7259 = vadd.f32 0.0, %v7258
    %v7260 = vpop.f32.mrb[0].mxu0
    %7261 = vmatprep.mubr.f32.mxu0 0.0
    %7262 = vmatmul.mubr.f32.gmra.mrb[0].mxu0 %v259
    %v7263 = vpop.f32.mrb[0].mxu0
    %v7264 = vadd.f32 0.0, %v7263
    %v7265 = vpop.f32.mrb[0].mxu0
    %7266 = vmatprep.mubr.f32.mxu0 0.0
    %7267 = vmatmul.mubr.f32.gmra.mrb[0].mxu0 %v262
    %v7268 = vpop.f32.mrb[0].mxu0
    %v7269 = vadd.f32 0.0, %v7268
    %v7270 = vpop.f32.mrb[0].mxu0
    %7271 = vmatprep.mubr.f32.mxu0 0.0
    %7272 = vmatmul.mubr.f32.gmra.mrb[0].mxu0 %v265
    %v7273 = vpop.f32.mrb[0].mxu0
    %v7274 = vadd.f32 0.0, %v7273
    %v7275 = vpop.f32.mrb[0].mxu0
    %7276 = vmatprep.mubr.f32.mxu0 0.0
    %7277 = vmatmul.mubr.f32.gmra.mrb[0].mxu0 %v268
    %v7278 = vpop.f32.mrb[0].mxu0
    %v7279 = vadd.f32 0.0, %v7278
    %v7280 = vpop.f32.mrb[0].mxu0
    %7281 = vmatprep.mubr.f32.mxu0 0.0
    %7282 = vmatmul.mubr.f32.gmra.mrb[0].mxu0 %v271
    %v7283 = vpop.f32.mrb[0].mxu0
    %v7284 = vadd.f32 0.0, %v7283
    %v7285 = vpop.f32.mrb[0].mxu0
    %7286 = vmatprep.mubr.f32.mxu0 0.0
    %7287 = vmatmul.mubr.f32.gmra.mrb[0].mxu0 %v274
    %v7288 = vpop.f32.mrb[0].mxu0
    %v7289 = vadd.f32 0.0, %v7288
    %v7290 = vpop.f32.mrb[0].mxu0
    %7291 = vmatprep.mubr.f32.mxu0 0.0
    %7292 = vmatmul.mubr.f32.gmra.mrb[0].mxu0 %v277
    %v7293 = vpop.f32.mrb[0].mxu0
    %v7294 = vadd.f32 0.0, %v7293
    %v7295 = vpop.f32.mrb[0].mxu0
    %7296 = vmatprep.mubr.f32.mxu0 0.0
    %7297 = vmatmul.mubr.f32.gmra.mrb[0].mxu0 %v280
    %v7298 = vpop.f32.mrb[0].mxu0
    %v7299 = vadd.f32 0.0, %v7298
    %v7300 = vpop.f32.mrb[0].mxu0
    %7301 = vmatprep.mubr.f32.mxu0 0.0
    %7302 = vmatmul.mubr.f32.gmra.mrb[0].mxu0 %v283
    %v7303 = vpop.f32.mrb[0].mxu0
    %v7304 = vadd.f32 0.0, %v7303
    %v7305 = vpop.f32.mrb[0].mxu0
    %7306 = vmatprep.mubr.f32.mxu0 0.0
    %7307 = vmatmul.mubr.f32.gmra.mrb[0].mxu0 %v286
    %v7308 = vpop.f32.mrb[0].mxu0
    %v7309 = vadd.f32 0.0, %v7308
    %v7310 = vpop.f32.mrb[0].mxu0
    %7311 = vmatprep.mubr.f32.mxu0 0.0
    %7312 = vmatmul.mubr.f32.gmra.mrb[0].mxu0 %v289
    %v7313 = vpop.f32.mrb[0].mxu0
    %v7314 = vadd.f32 0.0, %v7313
    %v7315 = vpop.f32.mrb[0].mxu0
    %7316 = vmatprep.mubr.f32.mxu0 0.0
    %7317 = vmatmul.mubr.f32.gmra.mrb[0].mxu0 %v292
    %v7318 = vpop.f32.mrb[0].mxu0
    %v7319 = vadd.f32 0.0, %v7318
    %v7320 = vpop.f32.mrb[0].mxu0
    %7321 = vmatprep.mubr.f32.mxu0 0.0
    %7322 = vmatmul.mubr.f32.gmra.mrb[0].mxu0 %v295
    %v7323 = vpop.f32.mrb[0].mxu0
    %v7324 = vadd.f32 0.0, %v7323
    %v7325 = vpop.f32.mrb[0].mxu0
    %7326 = vmatprep.mubr.f32.mxu0 0.0
    %7327 = vmatmul.mubr.f32.gmra.mrb[0].mxu0 %v298
    %v7328 = vpop.f32.mrb[0].mxu0
    %v7329 = vadd.f32 0.0, %v7328
    %v7330 = vpop.f32.mrb[0].mxu0
    %7331 = vmatprep.mubr.f32.mxu0 0.0
    %7332 = vmatmul.mubr.f32.gmra.mrb[0].mxu0 %v301
    %v7333 = vpop.f32.mrb[0].mxu0
    %v7334 = vadd.f32 0.0, %v7333
    %v7335 = vpop.f32.mrb[0].mxu0
    %7336 = vdwg.mxu0
    %v7337 = vld [vmem:[%s11] sm:$0x1]
    %v7338 = vld [vmem:[%s12] sm:$0x1]
    %v7339 = vsel %vm4290, %v7019, 0.0
    %v7340 = vsel %vm4290, %v7024, 0.0
    %v7341 = vadd.f32 %v7339, %v7340
    %v7342 = vsel %vm4290, %v7029, 0.0
    %v7343 = vadd.f32 %v7341, %v7342
    %v7344 = vsel %vm4290, %v7034, 0.0
    %v7345 = vadd.f32 %v7343, %v7344
    %v7346 = vsel %vm4290, %v7039, 0.0
    %v7347 = vadd.f32 %v7345, %v7346
    %v7348 = vsel %vm4290, %v7044, 0.0
    %v7349 = vadd.f32 %v7347, %v7348
    %v7350 = vsel %vm4290, %v7049, 0.0
    %v7351 = vadd.f32 %v7349, %v7350
    %v7352 = vsel %vm4290, %v7054, 0.0
    %v7353 = vadd.f32 %v7351, %v7352
    %v7354 = vsel %vm4290, %v7059, 0.0
    %v7355 = vadd.f32 %v7353, %v7354
    %v7356 = vsel %vm4290, %v7064, 0.0
    %v7357 = vadd.f32 %v7355, %v7356
    %v7358 = vsel %vm4290, %v7069, 0.0
    %v7359 = vadd.f32 %v7357, %v7358
    %v7360 = vsel %vm4290, %v7074, 0.0
    %v7361 = vadd.f32 %v7359, %v7360
    %v7362 = vsel %vm4290, %v7079, 0.0
    %v7363 = vadd.f32 %v7361, %v7362
    %v7364 = vsel %vm4290, %v7084, 0.0
    %v7365 = vadd.f32 %v7363, %v7364
    %v7366 = vsel %vm4290, %v7089, 0.0
    %v7367 = vadd.f32 %v7365, %v7366
    %v7368 = vsel %vm4290, %v7094, 0.0
    %v7369 = vadd.f32 %v7367, %v7368
    %v7370 = vsel %vm4290, %v7099, 0.0
    %v7371 = vadd.f32 %v7369, %v7370
    %v7372 = vsel %vm4290, %v7104, 0.0
    %v7373 = vadd.f32 %v7371, %v7372
    %v7374 = vsel %vm4290, %v7109, 0.0
    %v7375 = vadd.f32 %v7373, %v7374
    %v7376 = vsel %vm4290, %v7114, 0.0
    %v7377 = vadd.f32 %v7375, %v7376
    %v7378 = vsel %vm4290, %v7119, 0.0
    %v7379 = vadd.f32 %v7377, %v7378
    %v7380 = vsel %vm4290, %v7124, 0.0
    %v7381 = vadd.f32 %v7379, %v7380
    %v7382 = vsel %vm4290, %v7129, 0.0
    %v7383 = vadd.f32 %v7381, %v7382
    %v7384 = vsel %vm4290, %v7134, 0.0
    %v7385 = vadd.f32 %v7383, %v7384
    %v7386 = vsel %vm4290, %v7139, 0.0
    %v7387 = vadd.f32 %v7385, %v7386
    %v7388 = vsel %vm4290, %v7144, 0.0
    %v7389 = vadd.f32 %v7387, %v7388
    %v7390 = vsel %vm4290, %v7149, 0.0
    %v7391 = vadd.f32 %v7389, %v7390
    %v7392 = vsel %vm4290, %v7154, 0.0
    %v7393 = vadd.f32 %v7391, %v7392
    %v7394 = vsel %vm4290, %v7159, 0.0
    %v7395 = vadd.f32 %v7393, %v7394
    %v7396 = vsel %vm4290, %v7164, 0.0
    %v7397 = vadd.f32 %v7395, %v7396
    %v7398 = vsel %vm4290, %v7169, 0.0
    %v7399 = vadd.f32 %v7397, %v7398
    %v7400 = vsel %vm4290, %v7174, 0.0
    %v7401 = vadd.f32 %v7399, %v7400
    %v7402 = vsel %vm4290, %v7179, 0.0
    %v7403 = vadd.f32 %v7401, %v7402
    %v7404 = vsel %vm4290, %v7184, 0.0
    %v7405 = vadd.f32 %v7403, %v7404
    %v7406 = vsel %vm4290, %v7189, 0.0
    %v7407 = vadd.f32 %v7405, %v7406
    %v7408 = vsel %vm4290, %v7194, 0.0
    %v7409 = vadd.f32 %v7407, %v7408
    %v7410 = vsel %vm4290, %v7199, 0.0
    %v7411 = vadd.f32 %v7409, %v7410
    %v7412 = vsel %vm4290, %v7204, 0.0
    %v7413 = vadd.f32 %v7411, %v7412
    %v7414 = vsel %vm4290, %v7209, 0.0
    %v7415 = vadd.f32 %v7413, %v7414
    %v7416 = vsel %vm4290, %v7214, 0.0
    %v7417 = vadd.f32 %v7415, %v7416
    %v7418 = vsel %vm4290, %v7219, 0.0
    %v7419 = vadd.f32 %v7417, %v7418
    %v7420 = vsel %vm4290, %v7224, 0.0
    %v7421 = vadd.f32 %v7419, %v7420
    %v7422 = vsel %vm4290, %v7229, 0.0
    %v7423 = vadd.f32 %v7421, %v7422
    %v7424 = vsel %vm4290, %v7234, 0.0
    %v7425 = vadd.f32 %v7423, %v7424
    %v7426 = vsel %vm4290, %v7239, 0.0
    %v7427 = vadd.f32 %v7425, %v7426
    %v7428 = vsel %vm4290, %v7244, 0.0
    %v7429 = vadd.f32 %v7427, %v7428
    %v7430 = vsel %vm4290, %v7249, 0.0
    %v7431 = vadd.f32 %v7429, %v7430
    %v7432 = vsel %vm4290, %v7254, 0.0
    %v7433 = vadd.f32 %v7431, %v7432
    %v7434 = vsel %vm4290, %v7259, 0.0
    %v7435 = vadd.f32 %v7433, %v7434
    %v7436 = vsel %vm4290, %v7264, 0.0
    %v7437 = vadd.f32 %v7435, %v7436
    %v7438 = vsel %vm4290, %v7269, 0.0
    %v7439 = vadd.f32 %v7437, %v7438
    %v7440 = vsel %vm4290, %v7274, 0.0
    %v7441 = vadd.f32 %v7439, %v7440
    %v7442 = vsel %vm4290, %v7279, 0.0
    %v7443 = vadd.f32 %v7441, %v7442
    %v7444 = vsel %vm4290, %v7284, 0.0
    %v7445 = vadd.f32 %v7443, %v7444
    %v7446 = vsel %vm4290, %v7289, 0.0
    %v7447 = vadd.f32 %v7445, %v7446
    %v7448 = vsel %vm4290, %v7294, 0.0
    %v7449 = vadd.f32 %v7447, %v7448
    %v7450 = vsel %vm4290, %v7299, 0.0
    %v7451 = vadd.f32 %v7449, %v7450
    %v7452 = vsel %vm4290, %v7304, 0.0
    %v7453 = vadd.f32 %v7451, %v7452
    %v7454 = vsel %vm4290, %v7309, 0.0
    %v7455 = vadd.f32 %v7453, %v7454
    %v7456 = vsel %vm4290, %v7314, 0.0
    %v7457 = vadd.f32 %v7455, %v7456
    %v7458 = vsel %vm4290, %v7319, 0.0
    %v7459 = vadd.f32 %v7457, %v7458
    %v7460 = vsel %vm4290, %v7324, 0.0
    %v7461 = vadd.f32 %v7459, %v7460
    %v7462 = vsel %vm4290, %v7329, 0.0
    %v7463 = vadd.f32 %v7461, %v7462
    %v7464 = vsel %vm4290, %v7334, 0.0
    %v7465 = vadd.f32 %v7463, %v7464
    %v7466 = vrot.slane %v7465, 4
    %v7467 = vadd.f32 %v7465, %v7466
    %v7468 = vrot.slane %v7467, 2
    %v7469 = vadd.f32 %v7467, %v7468
    %v7470 = vrot.slane %v7469, 1
    %v7471 = vadd.f32 %v7469, %v7470
    %v7472 = vmul.f32 %v7471, 0.001953125
    %v7473 = vsub.f32 %v7019, %v7472
    %v7474 = vsub.f32 %v7024, %v7472
    %v7475 = vsub.f32 %v7029, %v7472
    %v7476 = vsub.f32 %v7034, %v7472
    %v7477 = vsub.f32 %v7039, %v7472
    %v7478 = vsub.f32 %v7044, %v7472
    %v7479 = vsub.f32 %v7049, %v7472
    %v7480 = vsub.f32 %v7054, %v7472
    %v7481 = vsub.f32 %v7059, %v7472
    %v7482 = vsub.f32 %v7064, %v7472
    %v7483 = vsub.f32 %v7069, %v7472
    %v7484 = vsub.f32 %v7074, %v7472
    %v7485 = vsub.f32 %v7079, %v7472
    %v7486 = vsub.f32 %v7084, %v7472
    %v7487 = vsub.f32 %v7089, %v7472
    %v7488 = vsub.f32 %v7094, %v7472
    %v7489 = vsub.f32 %v7099, %v7472
    %v7490 = vsub.f32 %v7104, %v7472
    %v7491 = vsub.f32 %v7109, %v7472
    %v7492 = vsub.f32 %v7114, %v7472
    %v7493 = vsub.f32 %v7119, %v7472
    %v7494 = vsub.f32 %v7124, %v7472
    %v7495 = vsub.f32 %v7129, %v7472
    %v7496 = vsub.f32 %v7134, %v7472
    %v7497 = vsub.f32 %v7139, %v7472
    %v7498 = vsub.f32 %v7144, %v7472
    %v7499 = vsub.f32 %v7149, %v7472
    %v7500 = vsub.f32 %v7154, %v7472
    %v7501 = vsub.f32 %v7159, %v7472
    %v7502 = vsub.f32 %v7164, %v7472
    %v7503 = vsub.f32 %v7169, %v7472
    %v7504 = vsub.f32 %v7174, %v7472
    %v7505 = vsub.f32 %v7179, %v7472
    %v7506 = vsub.f32 %v7184, %v7472
    %v7507 = vsub.f32 %v7189, %v7472
    %v7508 = vsub.f32 %v7194, %v7472
    %v7509 = vsub.f32 %v7199, %v7472
    %v7510 = vsub.f32 %v7204, %v7472
    %v7511 = vsub.f32 %v7209, %v7472
    %v7512 = vsub.f32 %v7214, %v7472
    %v7513 = vsub.f32 %v7219, %v7472
    %v7514 = vsub.f32 %v7224, %v7472
    %v7515 = vsub.f32 %v7229, %v7472
    %v7516 = vsub.f32 %v7234, %v7472
    %v7517 = vsub.f32 %v7239, %v7472
    %v7518 = vsub.f32 %v7244, %v7472
    %v7519 = vsub.f32 %v7249, %v7472
    %v7520 = vsub.f32 %v7254, %v7472
    %v7521 = vsub.f32 %v7259, %v7472
    %v7522 = vsub.f32 %v7264, %v7472
    %v7523 = vsub.f32 %v7269, %v7472
    %v7524 = vsub.f32 %v7274, %v7472
    %v7525 = vsub.f32 %v7279, %v7472
    %v7526 = vsub.f32 %v7284, %v7472
    %v7527 = vsub.f32 %v7289, %v7472
    %v7528 = vsub.f32 %v7294, %v7472
    %v7529 = vsub.f32 %v7299, %v7472
    %v7530 = vsub.f32 %v7304, %v7472
    %v7531 = vsub.f32 %v7309, %v7472
    %v7532 = vsub.f32 %v7314, %v7472
    %v7533 = vsub.f32 %v7319, %v7472
    %v7534 = vsub.f32 %v7324, %v7472
    %v7535 = vsub.f32 %v7329, %v7472
    %v7536 = vsub.f32 %v7334, %v7472
    %v7537 = vmul.f32 %v7473, %v7473
    %v7538 = vmul.f32 %v7474, %v7474
    %v7539 = vmul.f32 %v7475, %v7475
    %v7540 = vmul.f32 %v7476, %v7476
    %v7541 = vmul.f32 %v7477, %v7477
    %v7542 = vmul.f32 %v7478, %v7478
    %v7543 = vmul.f32 %v7479, %v7479
    %v7544 = vmul.f32 %v7480, %v7480
    %v7545 = vmul.f32 %v7481, %v7481
    %v7546 = vmul.f32 %v7482, %v7482
    %v7547 = vmul.f32 %v7483, %v7483
    %v7548 = vmul.f32 %v7484, %v7484
    %v7549 = vmul.f32 %v7485, %v7485
    %v7550 = vmul.f32 %v7486, %v7486
    %v7551 = vmul.f32 %v7487, %v7487
    %v7552 = vmul.f32 %v7488, %v7488
    %v7553 = vmul.f32 %v7489, %v7489
    %v7554 = vmul.f32 %v7490, %v7490
    %v7555 = vmul.f32 %v7491, %v7491
    %v7556 = vmul.f32 %v7492, %v7492
    %v7557 = vmul.f32 %v7493, %v7493
    %v7558 = vmul.f32 %v7494, %v7494
    %v7559 = vmul.f32 %v7495, %v7495
    %v7560 = vmul.f32 %v7496, %v7496
    %v7561 = vmul.f32 %v7497, %v7497
    %v7562 = vmul.f32 %v7498, %v7498
    %v7563 = vmul.f32 %v7499, %v7499
    %v7564 = vmul.f32 %v7500, %v7500
    %v7565 = vmul.f32 %v7501, %v7501
    %v7566 = vmul.f32 %v7502, %v7502
    %v7567 = vmul.f32 %v7503, %v7503
    %v7568 = vmul.f32 %v7504, %v7504
    %v7569 = vmul.f32 %v7505, %v7505
    %v7570 = vmul.f32 %v7506, %v7506
    %v7571 = vmul.f32 %v7507, %v7507
    %v7572 = vmul.f32 %v7508, %v7508
    %v7573 = vmul.f32 %v7509, %v7509
    %v7574 = vmul.f32 %v7510, %v7510
    %v7575 = vmul.f32 %v7511, %v7511
    %v7576 = vmul.f32 %v7512, %v7512
    %v7577 = vmul.f32 %v7513, %v7513
    %v7578 = vmul.f32 %v7514, %v7514
    %v7579 = vmul.f32 %v7515, %v7515
    %v7580 = vmul.f32 %v7516, %v7516
    %v7581 = vmul.f32 %v7517, %v7517
    %v7582 = vmul.f32 %v7518, %v7518
    %v7583 = vmul.f32 %v7519, %v7519
    %v7584 = vmul.f32 %v7520, %v7520
    %v7585 = vmul.f32 %v7521, %v7521
    %v7586 = vmul.f32 %v7522, %v7522
    %v7587 = vmul.f32 %v7523, %v7523
    %v7588 = vmul.f32 %v7524, %v7524
    %v7589 = vmul.f32 %v7525, %v7525
    %v7590 = vmul.f32 %v7526, %v7526
    %v7591 = vmul.f32 %v7527, %v7527
    %v7592 = vmul.f32 %v7528, %v7528
    %v7593 = vmul.f32 %v7529, %v7529
    %v7594 = vmul.f32 %v7530, %v7530
    %v7595 = vmul.f32 %v7531, %v7531
    %v7596 = vmul.f32 %v7532, %v7532
    %v7597 = vmul.f32 %v7533, %v7533
    %v7598 = vmul.f32 %v7534, %v7534
    %v7599 = vmul.f32 %v7535, %v7535
    %v7600 = vmul.f32 %v7536, %v7536
    %v7601 = vsel %vm4290, %v7537, 0.0
    %v7602 = vsel %vm4290, %v7538, 0.0
    %v7603 = vadd.f32 %v7601, %v7602
    %v7604 = vsel %vm4290, %v7539, 0.0
    %v7605 = vadd.f32 %v7603, %v7604
    %v7606 = vsel %vm4290, %v7540, 0.0
    %v7607 = vadd.f32 %v7605, %v7606
    %v7608 = vsel %vm4290, %v7541, 0.0
    %v7609 = vadd.f32 %v7607, %v7608
    %v7610 = vsel %vm4290, %v7542, 0.0
    %v7611 = vadd.f32 %v7609, %v7610
    %v7612 = vsel %vm4290, %v7543, 0.0
    %v7613 = vadd.f32 %v7611, %v7612
    %v7614 = vsel %vm4290, %v7544, 0.0
    %v7615 = vadd.f32 %v7613, %v7614
    %v7616 = vsel %vm4290, %v7545, 0.0
    %v7617 = vadd.f32 %v7615, %v7616
    %v7618 = vsel %vm4290, %v7546, 0.0
    %v7619 = vadd.f32 %v7617, %v7618
    %v7620 = vsel %vm4290, %v7547, 0.0
    %v7621 = vadd.f32 %v7619, %v7620
    %v7622 = vsel %vm4290, %v7548, 0.0
    %v7623 = vadd.f32 %v7621, %v7622
    %v7624 = vsel %vm4290, %v7549, 0.0
    %v7625 = vadd.f32 %v7623, %v7624
    %v7626 = vsel %vm4290, %v7550, 0.0
    %v7627 = vadd.f32 %v7625, %v7626
    %v7628 = vsel %vm4290, %v7551, 0.0
    %v7629 = vadd.f32 %v7627, %v7628
    %v7630 = vsel %vm4290, %v7552, 0.0
    %v7631 = vadd.f32 %v7629, %v7630
    %v7632 = vsel %vm4290, %v7553, 0.0
    %v7633 = vadd.f32 %v7631, %v7632
    %v7634 = vsel %vm4290, %v7554, 0.0
    %v7635 = vadd.f32 %v7633, %v7634
    %v7636 = vsel %vm4290, %v7555, 0.0
    %v7637 = vadd.f32 %v7635, %v7636
    %v7638 = vsel %vm4290, %v7556, 0.0
    %v7639 = vadd.f32 %v7637, %v7638
    %v7640 = vsel %vm4290, %v7557, 0.0
    %v7641 = vadd.f32 %v7639, %v7640
    %v7642 = vsel %vm4290, %v7558, 0.0
    %v7643 = vadd.f32 %v7641, %v7642
    %v7644 = vsel %vm4290, %v7559, 0.0
    %v7645 = vadd.f32 %v7643, %v7644
    %v7646 = vsel %vm4290, %v7560, 0.0
    %v7647 = vadd.f32 %v7645, %v7646
    %v7648 = vsel %vm4290, %v7561, 0.0
    %v7649 = vadd.f32 %v7647, %v7648
    %v7650 = vsel %vm4290, %v7562, 0.0
    %v7651 = vadd.f32 %v7649, %v7650
    %v7652 = vsel %vm4290, %v7563, 0.0
    %v7653 = vadd.f32 %v7651, %v7652
    %v7654 = vsel %vm4290, %v7564, 0.0
    %v7655 = vadd.f32 %v7653, %v7654
    %v7656 = vsel %vm4290, %v7565, 0.0
    %v7657 = vadd.f32 %v7655, %v7656
    %v7658 = vsel %vm4290, %v7566, 0.0
    %v7659 = vadd.f32 %v7657, %v7658
    %v7660 = vsel %vm4290, %v7567, 0.0
    %v7661 = vadd.f32 %v7659, %v7660
    %v7662 = vsel %vm4290, %v7568, 0.0
    %v7663 = vadd.f32 %v7661, %v7662
    %v7664 = vsel %vm4290, %v7569, 0.0
    %v7665 = vadd.f32 %v7663, %v7664
    %v7666 = vsel %vm4290, %v7570, 0.0
    %v7667 = vadd.f32 %v7665, %v7666
    %v7668 = vsel %vm4290, %v7571, 0.0
    %v7669 = vadd.f32 %v7667, %v7668
    %v7670 = vsel %vm4290, %v7572, 0.0
    %v7671 = vadd.f32 %v7669, %v7670
    %v7672 = vsel %vm4290, %v7573, 0.0
    %v7673 = vadd.f32 %v7671, %v7672
    %v7674 = vsel %vm4290, %v7574, 0.0
    %v7675 = vadd.f32 %v7673, %v7674
    %v7676 = vsel %vm4290, %v7575, 0.0
    %v7677 = vadd.f32 %v7675, %v7676
    %v7678 = vsel %vm4290, %v7576, 0.0
    %v7679 = vadd.f32 %v7677, %v7678
    %v7680 = vsel %vm4290, %v7577, 0.0
    %v7681 = vadd.f32 %v7679, %v7680
    %v7682 = vsel %vm4290, %v7578, 0.0
    %v7683 = vadd.f32 %v7681, %v7682
    %v7684 = vsel %vm4290, %v7579, 0.0
    %v7685 = vadd.f32 %v7683, %v7684
    %v7686 = vsel %vm4290, %v7580, 0.0
    %v7687 = vadd.f32 %v7685, %v7686
    %v7688 = vsel %vm4290, %v7581, 0.0
    %v7689 = vadd.f32 %v7687, %v7688
    %v7690 = vsel %vm4290, %v7582, 0.0
    %v7691 = vadd.f32 %v7689, %v7690
    %v7692 = vsel %vm4290, %v7583, 0.0
    %v7693 = vadd.f32 %v7691, %v7692
    %v7694 = vsel %vm4290, %v7584, 0.0
    %v7695 = vadd.f32 %v7693, %v7694
    %v7696 = vsel %vm4290, %v7585, 0.0
    %v7697 = vadd.f32 %v7695, %v7696
    %v7698 = vsel %vm4290, %v7586, 0.0
    %v7699 = vadd.f32 %v7697, %v7698
    %v7700 = vsel %vm4290, %v7587, 0.0
    %v7701 = vadd.f32 %v7699, %v7700
    %v7702 = vsel %vm4290, %v7588, 0.0
    %v7703 = vadd.f32 %v7701, %v7702
    %v7704 = vsel %vm4290, %v7589, 0.0
    %v7705 = vadd.f32 %v7703, %v7704
    %v7706 = vsel %vm4290, %v7590, 0.0
    %v7707 = vadd.f32 %v7705, %v7706
    %v7708 = vsel %vm4290, %v7591, 0.0
    %v7709 = vadd.f32 %v7707, %v7708
    %v7710 = vsel %vm4290, %v7592, 0.0
    %v7711 = vadd.f32 %v7709, %v7710
    %v7712 = vsel %vm4290, %v7593, 0.0
    %v7713 = vadd.f32 %v7711, %v7712
    %v7714 = vsel %vm4290, %v7594, 0.0
    %v7715 = vadd.f32 %v7713, %v7714
    %v7716 = vsel %vm4290, %v7595, 0.0
    %v7717 = vadd.f32 %v7715, %v7716
    %v7718 = vsel %vm4290, %v7596, 0.0
    %v7719 = vadd.f32 %v7717, %v7718
    %v7720 = vsel %vm4290, %v7597, 0.0
    %v7721 = vadd.f32 %v7719, %v7720
    %v7722 = vsel %vm4290, %v7598, 0.0
    %v7723 = vadd.f32 %v7721, %v7722
    %v7724 = vsel %vm4290, %v7599, 0.0
    %v7725 = vadd.f32 %v7723, %v7724
    %v7726 = vsel %vm4290, %v7600, 0.0
    %v7727 = vadd.f32 %v7725, %v7726
    %v7728 = vrot.slane %v7727, 4
    %v7729 = vadd.f32 %v7727, %v7728
    %v7730 = vrot.slane %v7729, 2
    %v7731 = vadd.f32 %v7729, %v7730
    %v7732 = vrot.slane %v7731, 1
    %v7733 = vadd.f32 %v7731, %v7732
    %v7734 = vmul.f32 %v7733, 0.001953125
    %v7735 = vadd.f32 %v7734, 1e-05
    %v7736 = vrsqrt.pop %v7735
    %v7737 = vmul.f32 %v7337, %v7736
    %v7739 = vlaneseq
    %v7740 = vshrl.u32 %v7739, 7
    %v7741 = vsub.s32 0, %v7740
    %v7742 = vrot.slane %v7737, %v7741
    %v7744 = vmul.f32 %v7473, %v7742
    %v7745 = vmul.f32 %v7474, %v7742
    %v7746 = vmul.f32 %v7475, %v7742
    %v7747 = vmul.f32 %v7476, %v7742
    %v7748 = vmul.f32 %v7477, %v7742
    %v7749 = vmul.f32 %v7478, %v7742
    %v7750 = vmul.f32 %v7479, %v7742
    %v7751 = vmul.f32 %v7480, %v7742
    %v7752 = vmul.f32 %v7481, %v7742
    %v7753 = vmul.f32 %v7482, %v7742
    %v7754 = vmul.f32 %v7483, %v7742
    %v7755 = vmul.f32 %v7484, %v7742
    %v7756 = vmul.f32 %v7485, %v7742
    %v7757 = vmul.f32 %v7486, %v7742
    %v7758 = vmul.f32 %v7487, %v7742
    %v7759 = vmul.f32 %v7488, %v7742
    %v7760 = vmul.f32 %v7489, %v7742
    %v7761 = vmul.f32 %v7490, %v7742
    %v7762 = vmul.f32 %v7491, %v7742
    %v7763 = vmul.f32 %v7492, %v7742
    %v7764 = vmul.f32 %v7493, %v7742
    %v7765 = vmul.f32 %v7494, %v7742
    %v7766 = vmul.f32 %v7495, %v7742
    %v7767 = vmul.f32 %v7496, %v7742
    %v7768 = vmul.f32 %v7497, %v7742
    %v7769 = vmul.f32 %v7498, %v7742
    %v7770 = vmul.f32 %v7499, %v7742
    %v7771 = vmul.f32 %v7500, %v7742
    %v7772 = vmul.f32 %v7501, %v7742
    %v7773 = vmul.f32 %v7502, %v7742
    %v7774 = vmul.f32 %v7503, %v7742
    %v7775 = vmul.f32 %v7504, %v7742
    %v7776 = vmul.f32 %v7505, %v7742
    %v7777 = vmul.f32 %v7506, %v7742
    %v7778 = vmul.f32 %v7507, %v7742
    %v7779 = vmul.f32 %v7508, %v7742
    %v7780 = vmul.f32 %v7509, %v7742
    %v7781 = vmul.f32 %v7510, %v7742
    %v7782 = vmul.f32 %v7511, %v7742
    %v7783 = vmul.f32 %v7512, %v7742
    %v7784 = vmul.f32 %v7513, %v7742
    %v7785 = vmul.f32 %v7514, %v7742
    %v7786 = vmul.f32 %v7515, %v7742
    %v7787 = vmul.f32 %v7516, %v7742
    %v7788 = vmul.f32 %v7517, %v7742
    %v7789 = vmul.f32 %v7518, %v7742
    %v7790 = vmul.f32 %v7519, %v7742
    %v7791 = vmul.f32 %v7520, %v7742
    %v7792 = vmul.f32 %v7521, %v7742
    %v7793 = vmul.f32 %v7522, %v7742
    %v7794 = vmul.f32 %v7523, %v7742
    %v7795 = vmul.f32 %v7524, %v7742
    %v7796 = vmul.f32 %v7525, %v7742
    %v7797 = vmul.f32 %v7526, %v7742
    %v7798 = vmul.f32 %v7527, %v7742
    %v7799 = vmul.f32 %v7528, %v7742
    %v7800 = vmul.f32 %v7529, %v7742
    %v7801 = vmul.f32 %v7530, %v7742
    %v7802 = vmul.f32 %v7531, %v7742
    %v7803 = vmul.f32 %v7532, %v7742
    %v7804 = vmul.f32 %v7533, %v7742
    %v7805 = vmul.f32 %v7534, %v7742
    %v7806 = vmul.f32 %v7535, %v7742
    %v7807 = vmul.f32 %v7536, %v7742
    %v7809 = vlaneseq
    %v7810 = vshrl.u32 %v7809, 7
    %v7811 = vsub.s32 0, %v7810
    %v7812 = vrot.slane %v7338, %v7811
    %v7814 = vadd.f32 %v7744, %v7812
    %v7815 = vadd.f32 %v7745, %v7812
    %v7816 = vadd.f32 %v7746, %v7812
    %v7817 = vadd.f32 %v7747, %v7812
    %v7818 = vadd.f32 %v7748, %v7812
    %v7819 = vadd.f32 %v7749, %v7812
    %v7820 = vadd.f32 %v7750, %v7812
    %v7821 = vadd.f32 %v7751, %v7812
    %v7822 = vadd.f32 %v7752, %v7812
    %v7823 = vadd.f32 %v7753, %v7812
    %v7824 = vadd.f32 %v7754, %v7812
    %v7825 = vadd.f32 %v7755, %v7812
    %v7826 = vadd.f32 %v7756, %v7812
    %v7827 = vadd.f32 %v7757, %v7812
    %v7828 = vadd.f32 %v7758, %v7812
    %v7829 = vadd.f32 %v7759, %v7812
    %v7830 = vadd.f32 %v7760, %v7812
    %v7831 = vadd.f32 %v7761, %v7812
    %v7832 = vadd.f32 %v7762, %v7812
    %v7833 = vadd.f32 %v7763, %v7812
    %v7834 = vadd.f32 %v7764, %v7812
    %v7835 = vadd.f32 %v7765, %v7812
    %v7836 = vadd.f32 %v7766, %v7812
    %v7837 = vadd.f32 %v7767, %v7812
    %v7838 = vadd.f32 %v7768, %v7812
    %v7839 = vadd.f32 %v7769, %v7812
    %v7840 = vadd.f32 %v7770, %v7812
    %v7841 = vadd.f32 %v7771, %v7812
    %v7842 = vadd.f32 %v7772, %v7812
    %v7843 = vadd.f32 %v7773, %v7812
    %v7844 = vadd.f32 %v7774, %v7812
    %v7845 = vadd.f32 %v7775, %v7812
    %v7846 = vadd.f32 %v7776, %v7812
    %v7847 = vadd.f32 %v7777, %v7812
    %v7848 = vadd.f32 %v7778, %v7812
    %v7849 = vadd.f32 %v7779, %v7812
    %v7850 = vadd.f32 %v7780, %v7812
    %v7851 = vadd.f32 %v7781, %v7812
    %v7852 = vadd.f32 %v7782, %v7812
    %v7853 = vadd.f32 %v7783, %v7812
    %v7854 = vadd.f32 %v7784, %v7812
    %v7855 = vadd.f32 %v7785, %v7812
    %v7856 = vadd.f32 %v7786, %v7812
    %v7857 = vadd.f32 %v7787, %v7812
    %v7858 = vadd.f32 %v7788, %v7812
    %v7859 = vadd.f32 %v7789, %v7812
    %v7860 = vadd.f32 %v7790, %v7812
    %v7861 = vadd.f32 %v7791, %v7812
    %v7862 = vadd.f32 %v7792, %v7812
    %v7863 = vadd.f32 %v7793, %v7812
    %v7864 = vadd.f32 %v7794, %v7812
    %v7865 = vadd.f32 %v7795, %v7812
    %v7866 = vadd.f32 %v7796, %v7812
    %v7867 = vadd.f32 %v7797, %v7812
    %v7868 = vadd.f32 %v7798, %v7812
    %v7869 = vadd.f32 %v7799, %v7812
    %v7870 = vadd.f32 %v7800, %v7812
    %v7871 = vadd.f32 %v7801, %v7812
    %v7872 = vadd.f32 %v7802, %v7812
    %v7873 = vadd.f32 %v7803, %v7812
    %v7874 = vadd.f32 %v7804, %v7812
    %v7875 = vadd.f32 %v7805, %v7812
    %v7876 = vadd.f32 %v7806, %v7812
    %v7877 = vadd.f32 %v7807, %v7812
    %v7878 = vadd.f32 %v6884, %v7814
    %v7879 = vadd.f32 %v6885, %v7815
    %v7880 = vadd.f32 %v6886, %v7816
    %v7881 = vadd.f32 %v6887, %v7817
    %v7882 = vadd.f32 %v6888, %v7818
    %v7883 = vadd.f32 %v6889, %v7819
    %v7884 = vadd.f32 %v6890, %v7820
    %v7885 = vadd.f32 %v6891, %v7821
    %v7886 = vadd.f32 %v6892, %v7822
    %v7887 = vadd.f32 %v6893, %v7823
    %v7888 = vadd.f32 %v6894, %v7824
    %v7889 = vadd.f32 %v6895, %v7825
    %v7890 = vadd.f32 %v6896, %v7826
    %v7891 = vadd.f32 %v6897, %v7827
    %v7892 = vadd.f32 %v6898, %v7828
    %v7893 = vadd.f32 %v6899, %v7829
    %v7894 = vadd.f32 %v6900, %v7830
    %v7895 = vadd.f32 %v6901, %v7831
    %v7896 = vadd.f32 %v6902, %v7832
    %v7897 = vadd.f32 %v6903, %v7833
    %v7898 = vadd.f32 %v6904, %v7834
    %v7899 = vadd.f32 %v6905, %v7835
    %v7900 = vadd.f32 %v6906, %v7836
    %v7901 = vadd.f32 %v6907, %v7837
    %v7902 = vadd.f32 %v6908, %v7838
    %v7903 = vadd.f32 %v6909, %v7839
    %v7904 = vadd.f32 %v6910, %v7840
    %v7905 = vadd.f32 %v6911, %v7841
    %v7906 = vadd.f32 %v6912, %v7842
    %v7907 = vadd.f32 %v6913, %v7843
    %v7908 = vadd.f32 %v6914, %v7844
    %v7909 = vadd.f32 %v6915, %v7845
    %v7910 = vadd.f32 %v6916, %v7846
    %v7911 = vadd.f32 %v6917, %v7847
    %v7912 = vadd.f32 %v6918, %v7848
    %v7913 = vadd.f32 %v6919, %v7849
    %v7914 = vadd.f32 %v6920, %v7850
    %v7915 = vadd.f32 %v6921, %v7851
    %v7916 = vadd.f32 %v6922, %v7852
    %v7917 = vadd.f32 %v6923, %v7853
    %v7918 = vadd.f32 %v6924, %v7854
    %v7919 = vadd.f32 %v6925, %v7855
    %v7920 = vadd.f32 %v6926, %v7856
    %v7921 = vadd.f32 %v6927, %v7857
    %v7922 = vadd.f32 %v6928, %v7858
    %v7923 = vadd.f32 %v6929, %v7859
    %v7924 = vadd.f32 %v6930, %v7860
    %v7925 = vadd.f32 %v6931, %v7861
    %v7926 = vadd.f32 %v6932, %v7862
    %v7927 = vadd.f32 %v6933, %v7863
    %v7928 = vadd.f32 %v6934, %v7864
    %v7929 = vadd.f32 %v6935, %v7865
    %v7930 = vadd.f32 %v6936, %v7866
    %v7931 = vadd.f32 %v6937, %v7867
    %v7932 = vadd.f32 %v6938, %v7868
    %v7933 = vadd.f32 %v6939, %v7869
    %v7934 = vadd.f32 %v6940, %v7870
    %v7935 = vadd.f32 %v6941, %v7871
    %v7936 = vadd.f32 %v6942, %v7872
    %v7937 = vadd.f32 %v6943, %v7873
    %v7938 = vadd.f32 %v6944, %v7874
    %v7939 = vadd.f32 %v6945, %v7875
    %v7940 = vadd.f32 %v6946, %v7876
    %v7941 = vadd.f32 %v6947, %v7877
    %v7942 = vmax.f32 %v7878, 0.0
    %v7943 = vmax.f32 %v7879, 0.0
    %v7944 = vmax.f32 %v7880, 0.0
    %v7945 = vmax.f32 %v7881, 0.0
    %v7946 = vmax.f32 %v7882, 0.0
    %v7947 = vmax.f32 %v7883, 0.0
    %v7948 = vmax.f32 %v7884, 0.0
    %v7949 = vmax.f32 %v7885, 0.0
    %v7950 = vmax.f32 %v7886, 0.0
    %v7951 = vmax.f32 %v7887, 0.0
    %v7952 = vmax.f32 %v7888, 0.0
    %v7953 = vmax.f32 %v7889, 0.0
    %v7954 = vmax.f32 %v7890, 0.0
    %v7955 = vmax.f32 %v7891, 0.0
    %v7956 = vmax.f32 %v7892, 0.0
    %v7957 = vmax.f32 %v7893, 0.0
    %v7958 = vmax.f32 %v7894, 0.0
    %v7959 = vmax.f32 %v7895, 0.0
    %v7960 = vmax.f32 %v7896, 0.0
    %v7961 = vmax.f32 %v7897, 0.0
    %v7962 = vmax.f32 %v7898, 0.0
    %v7963 = vmax.f32 %v7899, 0.0
    %v7964 = vmax.f32 %v7900, 0.0
    %v7965 = vmax.f32 %v7901, 0.0
    %v7966 = vmax.f32 %v7902, 0.0
    %v7967 = vmax.f32 %v7903, 0.0
    %v7968 = vmax.f32 %v7904, 0.0
    %v7969 = vmax.f32 %v7905, 0.0
    %v7970 = vmax.f32 %v7906, 0.0
    %v7971 = vmax.f32 %v7907, 0.0
    %v7972 = vmax.f32 %v7908, 0.0
    %v7973 = vmax.f32 %v7909, 0.0
    %v7974 = vmax.f32 %v7910, 0.0
    %v7975 = vmax.f32 %v7911, 0.0
    %v7976 = vmax.f32 %v7912, 0.0
    %v7977 = vmax.f32 %v7913, 0.0
    %v7978 = vmax.f32 %v7914, 0.0
    %v7979 = vmax.f32 %v7915, 0.0
    %v7980 = vmax.f32 %v7916, 0.0
    %v7981 = vmax.f32 %v7917, 0.0
    %v7982 = vmax.f32 %v7918, 0.0
    %v7983 = vmax.f32 %v7919, 0.0
    %v7984 = vmax.f32 %v7920, 0.0
    %v7985 = vmax.f32 %v7921, 0.0
    %v7986 = vmax.f32 %v7922, 0.0
    %v7987 = vmax.f32 %v7923, 0.0
    %v7988 = vmax.f32 %v7924, 0.0
    %v7989 = vmax.f32 %v7925, 0.0
    %v7990 = vmax.f32 %v7926, 0.0
    %v7991 = vmax.f32 %v7927, 0.0
    %v7992 = vmax.f32 %v7928, 0.0
    %v7993 = vmax.f32 %v7929, 0.0
    %v7994 = vmax.f32 %v7930, 0.0
    %v7995 = vmax.f32 %v7931, 0.0
    %v7996 = vmax.f32 %v7932, 0.0
    %v7997 = vmax.f32 %v7933, 0.0
    %v7998 = vmax.f32 %v7934, 0.0
    %v7999 = vmax.f32 %v7935, 0.0
    %v8000 = vmax.f32 %v7936, 0.0
    %v8001 = vmax.f32 %v7937, 0.0
    %v8002 = vmax.f32 %v7938, 0.0
    %v8003 = vmax.f32 %v7939, 0.0
    %v8004 = vmax.f32 %v7940, 0.0
    %v8005 = vmax.f32 %v7941, 0.0
    %v8038 = vrot.slane %v7944, 7
    %vm8039 = vcmask 1041409
    %v8040 = vsel %vm8039, %v8038, %v7942
    %v8041 = vrot.slane %v7946, 6
    %vm8042 = vcmask 1042434
    %v8043 = vsel %vm8042, %v8041, %v8040
    %v8044 = vrot.slane %v7948, 5
    %vm8045 = vcmask 1043459
    %v8046 = vsel %vm8045, %v8044, %v8043
    %v8047 = vrot.slane %v7950, 4
    %vm8048 = vcmask 1044484
    %v8049 = vsel %vm8048, %v8047, %v8046
    %v8050 = vrot.slane %v7952, 3
    %vm8051 = vcmask 1045509
    %v8052 = vsel %vm8051, %v8050, %v8049
    %v8053 = vrot.slane %v7954, 2
    %vm8054 = vcmask 1046534
    %v8055 = vsel %vm8054, %v8053, %v8052
    %v8056 = vrot.slane %v7956, 1
    %vm8057 = vcmask 1047559
    %v8058 = vsel %vm8057, %v8056, %v8055
    %v8059 = vrot.slane %v7960, 7
    %v8060 = vsel %vm8039, %v8059, %v7958
    %v8061 = vrot.slane %v7962, 6
    %v8062 = vsel %vm8042, %v8061, %v8060
    %v8063 = vrot.slane %v7964, 5
    %v8064 = vsel %vm8045, %v8063, %v8062
    %v8065 = vrot.slane %v7966, 4
    %v8066 = vsel %vm8048, %v8065, %v8064
    %v8067 = vrot.slane %v7968, 3
    %v8068 = vsel %vm8051, %v8067, %v8066
    %v8069 = vrot.slane %v7970, 2
    %v8070 = vsel %vm8054, %v8069, %v8068
    %v8071 = vrot.slane %v7972, 1
    %v8072 = vsel %vm8057, %v8071, %v8070
    %v8073 = vrot.slane %v7976, 7
    %v8074 = vsel %vm8039, %v8073, %v7974
    %v8075 = vrot.slane %v7978, 6
    %v8076 = vsel %vm8042, %v8075, %v8074
    %v8077 = vrot.slane %v7980, 5
    %v8078 = vsel %vm8045, %v8077, %v8076
    %v8079 = vrot.slane %v7982, 4
    %v8080 = vsel %vm8048, %v8079, %v8078
    %v8081 = vrot.slane %v7984, 3
    %v8082 = vsel %vm8051, %v8081, %v8080
    %v8083 = vrot.slane %v7986, 2
    %v8084 = vsel %vm8054, %v8083, %v8082
    %v8085 = vrot.slane %v7988, 1
    %v8086 = vsel %vm8057, %v8085, %v8084
    %v8087 = vrot.slane %v7992, 7
    %v8088 = vsel %vm8039, %v8087, %v7990
    %v8089 = vrot.slane %v7994, 6
    %v8090 = vsel %vm8042, %v8089, %v8088
    %v8091 = vrot.slane %v7996, 5
    %v8092 = vsel %vm8045, %v8091, %v8090
    %v8093 = vrot.slane %v7998, 4
    %v8094 = vsel %vm8048, %v8093, %v8092
    %v8095 = vrot.slane %v8000, 3
    %v8096 = vsel %vm8051, %v8095, %v8094
    %v8097 = vrot.slane %v8002, 2
    %v8098 = vsel %vm8054, %v8097, %v8096
    %v8099 = vrot.slane %v8004, 1
    %v8100 = vsel %vm8057, %v8099, %v8098
    %v8105 = vrot.slane %v7942, 1
    %v8106 = vsel %vm8039, %v7944, %v8105
    %v8107 = vrot.slane %v7946, 7
    %v8108 = vsel %vm8042, %v8107, %v8106
    %v8109 = vrot.slane %v7948, 6
    %v8110 = vsel %vm8045, %v8109, %v8108
    %v8111 = vrot.slane %v7950, 5
    %v8112 = vsel %vm8048, %v8111, %v8110
    %v8113 = vrot.slane %v7952, 4
    %v8114 = vsel %vm8051, %v8113, %v8112
    %v8115 = vrot.slane %v7954, 3
    %v8116 = vsel %vm8054, %v8115, %v8114
    %v8117 = vrot.slane %v7956, 2
    %v8118 = vsel %vm8057, %v8117, %v8116
    %v8119 = vrot.slane %v7958, 1
    %v8120 = vsel %vm8039, %v7960, %v8119
    %v8121 = vrot.slane %v7962, 7
    %v8122 = vsel %vm8042, %v8121, %v8120
    %v8123 = vrot.slane %v7964, 6
    %v8124 = vsel %vm8045, %v8123, %v8122
    %v8125 = vrot.slane %v7966, 5
    %v8126 = vsel %vm8048, %v8125, %v8124
    %v8127 = vrot.slane %v7968, 4
    %v8128 = vsel %vm8051, %v8127, %v8126
    %v8129 = vrot.slane %v7970, 3
    %v8130 = vsel %vm8054, %v8129, %v8128
    %v8131 = vrot.slane %v7972, 2
    %v8132 = vsel %vm8057, %v8131, %v8130
    %v8133 = vrot.slane %v7974, 1
    %v8134 = vsel %vm8039, %v7976, %v8133
    %v8135 = vrot.slane %v7978, 7
    %v8136 = vsel %vm8042, %v8135, %v8134
    %v8137 = vrot.slane %v7980, 6
    %v8138 = vsel %vm8045, %v8137, %v8136
    %v8139 = vrot.slane %v7982, 5
    %v8140 = vsel %vm8048, %v8139, %v8138
    %v8141 = vrot.slane %v7984, 4
    %v8142 = vsel %vm8051, %v8141, %v8140
    %v8143 = vrot.slane %v7986, 3
    %v8144 = vsel %vm8054, %v8143, %v8142
    %v8145 = vrot.slane %v7988, 2
    %v8146 = vsel %vm8057, %v8145, %v8144
    %v8147 = vrot.slane %v7990, 1
    %v8148 = vsel %vm8039, %v7992, %v8147
    %v8149 = vrot.slane %v7994, 7
    %v8150 = vsel %vm8042, %v8149, %v8148
    %v8151 = vrot.slane %v7996, 6
    %v8152 = vsel %vm8045, %v8151, %v8150
    %v8153 = vrot.slane %v7998, 5
    %v8154 = vsel %vm8048, %v8153, %v8152
    %v8155 = vrot.slane %v8000, 4
    %v8156 = vsel %vm8051, %v8155, %v8154
    %v8157 = vrot.slane %v8002, 3
    %v8158 = vsel %vm8054, %v8157, %v8156
    %v8159 = vrot.slane %v8004, 2
    %v8160 = vsel %vm8057, %v8159, %v8158
    %8161 = vrot.lane.b32.xlu0 %v8118, 16
    %v8162 = vpop.permute.xlu0 %8161
    %8163 = vrot.lane.b32.xlu0 %v8132, 16
    %v8164 = vpop.permute.xlu0 %8163
    %8165 = vrot.lane.b32.xlu0 %v8146, 16
    %v8166 = vpop.permute.xlu0 %8165
    %8167 = vrot.lane.b32.xlu0 %v8160, 16
    %v8168 = vpop.permute.xlu0 %8167
    %v8173 = vrot.slane %v7942, 2
    %v8174 = vrot.slane %v7944, 1
    %v8175 = vsel %vm8039, %v8174, %v8173
    %v8176 = vsel %vm8042, %v7946, %v8175
    %v8177 = vrot.slane %v7948, 7
    %v8178 = vsel %vm8045, %v8177, %v8176
    %v8179 = vrot.slane %v7950, 6
    %v8180 = vsel %vm8048, %v8179, %v8178
    %v8181 = vrot.slane %v7952, 5
    %v8182 = vsel %vm8051, %v8181, %v8180
    %v8183 = vrot.slane %v7954, 4
    %v8184 = vsel %vm8054, %v8183, %v8182
    %v8185 = vrot.slane %v7956, 3
    %v8186 = vsel %vm8057, %v8185, %v8184
    %v8187 = vrot.slane %v7958, 2
    %v8188 = vrot.slane %v7960, 1
    %v8189 = vsel %vm8039, %v8188, %v8187
    %v8190 = vsel %vm8042, %v7962, %v8189
    %v8191 = vrot.slane %v7964, 7
    %v8192 = vsel %vm8045, %v8191, %v8190
    %v8193 = vrot.slane %v7966, 6
    %v8194 = vsel %vm8048, %v8193, %v8192
    %v8195 = vrot.slane %v7968, 5
    %v8196 = vsel %vm8051, %v8195, %v8194
    %v8197 = vrot.slane %v7970, 4
    %v8198 = vsel %vm8054, %v8197, %v8196
    %v8199 = vrot.slane %v7972, 3
    %v8200 = vsel %vm8057, %v8199, %v8198
    %v8201 = vrot.slane %v7974, 2
    %v8202 = vrot.slane %v7976, 1
    %v8203 = vsel %vm8039, %v8202, %v8201
    %v8204 = vsel %vm8042, %v7978, %v8203
    %v8205 = vrot.slane %v7980, 7
    %v8206 = vsel %vm8045, %v8205, %v8204
    %v8207 = vrot.slane %v7982, 6
    %v8208 = vsel %vm8048, %v8207, %v8206
    %v8209 = vrot.slane %v7984, 5
    %v8210 = vsel %vm8051, %v8209, %v8208
    %v8211 = vrot.slane %v7986, 4
    %v8212 = vsel %vm8054, %v8211, %v8210
    %v8213 = vrot.slane %v7988, 3
    %v8214 = vsel %vm8057, %v8213, %v8212
    %v8215 = vrot.slane %v7990, 2
    %v8216 = vrot.slane %v7992, 1
    %v8217 = vsel %vm8039, %v8216, %v8215
    %v8218 = vsel %vm8042, %v7994, %v8217
    %v8219 = vrot.slane %v7996, 7
    %v8220 = vsel %vm8045, %v8219, %v8218
    %v8221 = vrot.slane %v7998, 6
    %v8222 = vsel %vm8048, %v8221, %v8220
    %v8223 = vrot.slane %v8000, 5
    %v8224 = vsel %vm8051, %v8223, %v8222
    %v8225 = vrot.slane %v8002, 4
    %v8226 = vsel %vm8054, %v8225, %v8224
    %v8227 = vrot.slane %v8004, 3
    %v8228 = vsel %vm8057, %v8227, %v8226
    %8229 = vrot.lane.b32.xlu0 %v8186, 32
    %v8230 = vpop.permute.xlu0 %8229
    %8231 = vrot.lane.b32.xlu0 %v8200, 32
    %v8232 = vpop.permute.xlu0 %8231
    %8233 = vrot.lane.b32.xlu0 %v8214, 32
    %v8234 = vpop.permute.xlu0 %8233
    %8235 = vrot.lane.b32.xlu0 %v8228, 32
    %v8236 = vpop.permute.xlu0 %8235
    %v8241 = vrot.slane %v7942, 3
    %v8242 = vrot.slane %v7944, 2
    %v8243 = vsel %vm8039, %v8242, %v8241
    %v8244 = vrot.slane %v7946, 1
    %v8245 = vsel %vm8042, %v8244, %v8243
    %v8246 = vsel %vm8045, %v7948, %v8245
    %v8247 = vrot.slane %v7950, 7
    %v8248 = vsel %vm8048, %v8247, %v8246
    %v8249 = vrot.slane %v7952, 6
    %v8250 = vsel %vm8051, %v8249, %v8248
    %v8251 = vrot.slane %v7954, 5
    %v8252 = vsel %vm8054, %v8251, %v8250
    %v8253 = vrot.slane %v7956, 4
    %v8254 = vsel %vm8057, %v8253, %v8252
    %v8255 = vrot.slane %v7958, 3
    %v8256 = vrot.slane %v7960, 2
    %v8257 = vsel %vm8039, %v8256, %v8255
    %v8258 = vrot.slane %v7962, 1
    %v8259 = vsel %vm8042, %v8258, %v8257
    %v8260 = vsel %vm8045, %v7964, %v8259
    %v8261 = vrot.slane %v7966, 7
    %v8262 = vsel %vm8048, %v8261, %v8260
    %v8263 = vrot.slane %v7968, 6
    %v8264 = vsel %vm8051, %v8263, %v8262
    %v8265 = vrot.slane %v7970, 5
    %v8266 = vsel %vm8054, %v8265, %v8264
    %v8267 = vrot.slane %v7972, 4
    %v8268 = vsel %vm8057, %v8267, %v8266
    %v8269 = vrot.slane %v7974, 3
    %v8270 = vrot.slane %v7976, 2
    %v8271 = vsel %vm8039, %v8270, %v8269
    %v8272 = vrot.slane %v7978, 1
    %v8273 = vsel %vm8042, %v8272, %v8271
    %v8274 = vsel %vm8045, %v7980, %v8273
    %v8275 = vrot.slane %v7982, 7
    %v8276 = vsel %vm8048, %v8275, %v8274
    %v8277 = vrot.slane %v7984, 6
    %v8278 = vsel %vm8051, %v8277, %v8276
    %v8279 = vrot.slane %v7986, 5
    %v8280 = vsel %vm8054, %v8279, %v8278
    %v8281 = vrot.slane %v7988, 4
    %v8282 = vsel %vm8057, %v8281, %v8280
    %v8283 = vrot.slane %v7990, 3
    %v8284 = vrot.slane %v7992, 2
    %v8285 = vsel %vm8039, %v8284, %v8283
    %v8286 = vrot.slane %v7994, 1
    %v8287 = vsel %vm8042, %v8286, %v8285
    %v8288 = vsel %vm8045, %v7996, %v8287
    %v8289 = vrot.slane %v7998, 7
    %v8290 = vsel %vm8048, %v8289, %v8288
    %v8291 = vrot.slane %v8000, 6
    %v8292 = vsel %vm8051, %v8291, %v8290
    %v8293 = vrot.slane %v8002, 5
    %v8294 = vsel %vm8054, %v8293, %v8292
    %v8295 = vrot.slane %v8004, 4
    %v8296 = vsel %vm8057, %v8295, %v8294
    %8297 = vrot.lane.b32.xlu0 %v8254, 48
    %v8298 = vpop.permute.xlu0 %8297
    %8299 = vrot.lane.b32.xlu0 %v8268, 48
    %v8300 = vpop.permute.xlu0 %8299
    %8301 = vrot.lane.b32.xlu0 %v8282, 48
    %v8302 = vpop.permute.xlu0 %8301
    %8303 = vrot.lane.b32.xlu0 %v8296, 48
    %v8304 = vpop.permute.xlu0 %8303
    %v8309 = vrot.slane %v7942, 4
    %v8310 = vrot.slane %v7944, 3
    %v8311 = vsel %vm8039, %v8310, %v8309
    %v8312 = vrot.slane %v7946, 2
    %v8313 = vsel %vm8042, %v8312, %v8311
    %v8314 = vrot.slane %v7948, 1
    %v8315 = vsel %vm8045, %v8314, %v8313
    %v8316 = vsel %vm8048, %v7950, %v8315
    %v8317 = vrot.slane %v7952, 7
    %v8318 = vsel %vm8051, %v8317, %v8316
    %v8319 = vrot.slane %v7954, 6
    %v8320 = vsel %vm8054, %v8319, %v8318
    %v8321 = vrot.slane %v7956, 5
    %v8322 = vsel %vm8057, %v8321, %v8320
    %v8323 = vrot.slane %v7958, 4
    %v8324 = vrot.slane %v7960, 3
    %v8325 = vsel %vm8039, %v8324, %v8323
    %v8326 = vrot.slane %v7962, 2
    %v8327 = vsel %vm8042, %v8326, %v8325
    %v8328 = vrot.slane %v7964, 1
    %v8329 = vsel %vm8045, %v8328, %v8327
    %v8330 = vsel %vm8048, %v7966, %v8329
    %v8331 = vrot.slane %v7968, 7
    %v8332 = vsel %vm8051, %v8331, %v8330
    %v8333 = vrot.slane %v7970, 6
    %v8334 = vsel %vm8054, %v8333, %v8332
    %v8335 = vrot.slane %v7972, 5
    %v8336 = vsel %vm8057, %v8335, %v8334
    %v8337 = vrot.slane %v7974, 4
    %v8338 = vrot.slane %v7976, 3
    %v8339 = vsel %vm8039, %v8338, %v8337
    %v8340 = vrot.slane %v7978, 2
    %v8341 = vsel %vm8042, %v8340, %v8339
    %v8342 = vrot.slane %v7980, 1
    %v8343 = vsel %vm8045, %v8342, %v8341
    %v8344 = vsel %vm8048, %v7982, %v8343
    %v8345 = vrot.slane %v7984, 7
    %v8346 = vsel %vm8051, %v8345, %v8344
    %v8347 = vrot.slane %v7986, 6
    %v8348 = vsel %vm8054, %v8347, %v8346
    %v8349 = vrot.slane %v7988, 5
    %v8350 = vsel %vm8057, %v8349, %v8348
    %v8351 = vrot.slane %v7990, 4
    %v8352 = vrot.slane %v7992, 3
    %v8353 = vsel %vm8039, %v8352, %v8351
    %v8354 = vrot.slane %v7994, 2
    %v8355 = vsel %vm8042, %v8354, %v8353
    %v8356 = vrot.slane %v7996, 1
    %v8357 = vsel %vm8045, %v8356, %v8355
    %v8358 = vsel %vm8048, %v7998, %v8357
    %v8359 = vrot.slane %v8000, 7
    %v8360 = vsel %vm8051, %v8359, %v8358
    %v8361 = vrot.slane %v8002, 6
    %v8362 = vsel %vm8054, %v8361, %v8360
    %v8363 = vrot.slane %v8004, 5
    %v8364 = vsel %vm8057, %v8363, %v8362
    %8365 = vrot.lane.b32.xlu0 %v8322, 64
    %v8366 = vpop.permute.xlu0 %8365
    %8367 = vrot.lane.b32.xlu0 %v8336, 64
    %v8368 = vpop.permute.xlu0 %8367
    %8369 = vrot.lane.b32.xlu0 %v8350, 64
    %v8370 = vpop.permute.xlu0 %8369
    %8371 = vrot.lane.b32.xlu0 %v8364, 64
    %v8372 = vpop.permute.xlu0 %8371
    %v8377 = vrot.slane %v7942, 5
    %v8378 = vrot.slane %v7944, 4
    %v8379 = vsel %vm8039, %v8378, %v8377
    %v8380 = vrot.slane %v7946, 3
    %v8381 = vsel %vm8042, %v8380, %v8379
    %v8382 = vrot.slane %v7948, 2
    %v8383 = vsel %vm8045, %v8382, %v8381
    %v8384 = vrot.slane %v7950, 1
    %v8385 = vsel %vm8048, %v8384, %v8383
    %v8386 = vsel %vm8051, %v7952, %v8385
    %v8387 = vrot.slane %v7954, 7
    %v8388 = vsel %vm8054, %v8387, %v8386
    %v8389 = vrot.slane %v7956, 6
    %v8390 = vsel %vm8057, %v8389, %v8388
    %v8391 = vrot.slane %v7958, 5
    %v8392 = vrot.slane %v7960, 4
    %v8393 = vsel %vm8039, %v8392, %v8391
    %v8394 = vrot.slane %v7962, 3
    %v8395 = vsel %vm8042, %v8394, %v8393
    %v8396 = vrot.slane %v7964, 2
    %v8397 = vsel %vm8045, %v8396, %v8395
    %v8398 = vrot.slane %v7966, 1
    %v8399 = vsel %vm8048, %v8398, %v8397
    %v8400 = vsel %vm8051, %v7968, %v8399
    %v8401 = vrot.slane %v7970, 7
    %v8402 = vsel %vm8054, %v8401, %v8400
    %v8403 = vrot.slane %v7972, 6
    %v8404 = vsel %vm8057, %v8403, %v8402
    %v8405 = vrot.slane %v7974, 5
    %v8406 = vrot.slane %v7976, 4
    %v8407 = vsel %vm8039, %v8406, %v8405
    %v8408 = vrot.slane %v7978, 3
    %v8409 = vsel %vm8042, %v8408, %v8407
    %v8410 = vrot.slane %v7980, 2
    %v8411 = vsel %vm8045, %v8410, %v8409
    %v8412 = vrot.slane %v7982, 1
    %v8413 = vsel %vm8048, %v8412, %v8411
    %v8414 = vsel %vm8051, %v7984, %v8413
    %v8415 = vrot.slane %v7986, 7
    %v8416 = vsel %vm8054, %v8415, %v8414
    %v8417 = vrot.slane %v7988, 6
    %v8418 = vsel %vm8057, %v8417, %v8416
    %v8419 = vrot.slane %v7990, 5
    %v8420 = vrot.slane %v7992, 4
    %v8421 = vsel %vm8039, %v8420, %v8419
    %v8422 = vrot.slane %v7994, 3
    %v8423 = vsel %vm8042, %v8422, %v8421
    %v8424 = vrot.slane %v7996, 2
    %v8425 = vsel %vm8045, %v8424, %v8423
    %v8426 = vrot.slane %v7998, 1
    %v8427 = vsel %vm8048, %v8426, %v8425
    %v8428 = vsel %vm8051, %v8000, %v8427
    %v8429 = vrot.slane %v8002, 7
    %v8430 = vsel %vm8054, %v8429, %v8428
    %v8431 = vrot.slane %v8004, 6
    %v8432 = vsel %vm8057, %v8431, %v8430
    %8433 = vrot.lane.b32.xlu0 %v8390, 80
    %v8434 = vpop.permute.xlu0 %8433
    %8435 = vrot.lane.b32.xlu0 %v8404, 80
    %v8436 = vpop.permute.xlu0 %8435
    %8437 = vrot.lane.b32.xlu0 %v8418, 80
    %v8438 = vpop.permute.xlu0 %8437
    %8439 = vrot.lane.b32.xlu0 %v8432, 80
    %v8440 = vpop.permute.xlu0 %8439
    %v8445 = vrot.slane %v7942, 6
    %v8446 = vrot.slane %v7944, 5
    %v8447 = vsel %vm8039, %v8446, %v8445
    %v8448 = vrot.slane %v7946, 4
    %v8449 = vsel %vm8042, %v8448, %v8447
    %v8450 = vrot.slane %v7948, 3
    %v8451 = vsel %vm8045, %v8450, %v8449
    %v8452 = vrot.slane %v7950, 2
    %v8453 = vsel %vm8048, %v8452, %v8451
    %v8454 = vrot.slane %v7952, 1
    %v8455 = vsel %vm8051, %v8454, %v8453
    %v8456 = vsel %vm8054, %v7954, %v8455
    %v8457 = vrot.slane %v7956, 7
    %v8458 = vsel %vm8057, %v8457, %v8456
    %v8459 = vrot.slane %v7958, 6
    %v8460 = vrot.slane %v7960, 5
    %v8461 = vsel %vm8039, %v8460, %v8459
    %v8462 = vrot.slane %v7962, 4
    %v8463 = vsel %vm8042, %v8462, %v8461
    %v8464 = vrot.slane %v7964, 3
    %v8465 = vsel %vm8045, %v8464, %v8463
    %v8466 = vrot.slane %v7966, 2
    %v8467 = vsel %vm8048, %v8466, %v8465
    %v8468 = vrot.slane %v7968, 1
    %v8469 = vsel %vm8051, %v8468, %v8467
    %v8470 = vsel %vm8054, %v7970, %v8469
    %v8471 = vrot.slane %v7972, 7
    %v8472 = vsel %vm8057, %v8471, %v8470
    %v8473 = vrot.slane %v7974, 6
    %v8474 = vrot.slane %v7976, 5
    %v8475 = vsel %vm8039, %v8474, %v8473
    %v8476 = vrot.slane %v7978, 4
    %v8477 = vsel %vm8042, %v8476, %v8475
    %v8478 = vrot.slane %v7980, 3
    %v8479 = vsel %vm8045, %v8478, %v8477
    %v8480 = vrot.slane %v7982, 2
    %v8481 = vsel %vm8048, %v8480, %v8479
    %v8482 = vrot.slane %v7984, 1
    %v8483 = vsel %vm8051, %v8482, %v8481
    %v8484 = vsel %vm8054, %v7986, %v8483
    %v8485 = vrot.slane %v7988, 7
    %v8486 = vsel %vm8057, %v8485, %v8484
    %v8487 = vrot.slane %v7990, 6
    %v8488 = vrot.slane %v7992, 5
    %v8489 = vsel %vm8039, %v8488, %v8487
    %v8490 = vrot.slane %v7994, 4
    %v8491 = vsel %vm8042, %v8490, %v8489
    %v8492 = vrot.slane %v7996, 3
    %v8493 = vsel %vm8045, %v8492, %v8491
    %v8494 = vrot.slane %v7998, 2
    %v8495 = vsel %vm8048, %v8494, %v8493
    %v8496 = vrot.slane %v8000, 1
    %v8497 = vsel %vm8051, %v8496, %v8495
    %v8498 = vsel %vm8054, %v8002, %v8497
    %v8499 = vrot.slane %v8004, 7
    %v8500 = vsel %vm8057, %v8499, %v8498
    %8501 = vrot.lane.b32.xlu0 %v8458, 96
    %v8502 = vpop.permute.xlu0 %8501
    %8503 = vrot.lane.b32.xlu0 %v8472, 96
    %v8504 = vpop.permute.xlu0 %8503
    %8505 = vrot.lane.b32.xlu0 %v8486, 96
    %v8506 = vpop.permute.xlu0 %8505
    %8507 = vrot.lane.b32.xlu0 %v8500, 96
    %v8508 = vpop.permute.xlu0 %8507
    %v8513 = vrot.slane %v7942, 7
    %v8514 = vrot.slane %v7944, 6
    %v8515 = vsel %vm8039, %v8514, %v8513
    %v8516 = vrot.slane %v7946, 5
    %v8517 = vsel %vm8042, %v8516, %v8515
    %v8518 = vrot.slane %v7948, 4
    %v8519 = vsel %vm8045, %v8518, %v8517
    %v8520 = vrot.slane %v7950, 3
    %v8521 = vsel %vm8048, %v8520, %v8519
    %v8522 = vrot.slane %v7952, 2
    %v8523 = vsel %vm8051, %v8522, %v8521
    %v8524 = vrot.slane %v7954, 1
    %v8525 = vsel %vm8054, %v8524, %v8523
    %v8526 = vsel %vm8057, %v7956, %v8525
    %v8527 = vrot.slane %v7958, 7
    %v8528 = vrot.slane %v7960, 6
    %v8529 = vsel %vm8039, %v8528, %v8527
    %v8530 = vrot.slane %v7962, 5
    %v8531 = vsel %vm8042, %v8530, %v8529
    %v8532 = vrot.slane %v7964, 4
    %v8533 = vsel %vm8045, %v8532, %v8531
    %v8534 = vrot.slane %v7966, 3
    %v8535 = vsel %vm8048, %v8534, %v8533
    %v8536 = vrot.slane %v7968, 2
    %v8537 = vsel %vm8051, %v8536, %v8535
    %v8538 = vrot.slane %v7970, 1
    %v8539 = vsel %vm8054, %v8538, %v8537
    %v8540 = vsel %vm8057, %v7972, %v8539
    %v8541 = vrot.slane %v7974, 7
    %v8542 = vrot.slane %v7976, 6
    %v8543 = vsel %vm8039, %v8542, %v8541
    %v8544 = vrot.slane %v7978, 5
    %v8545 = vsel %vm8042, %v8544, %v8543
    %v8546 = vrot.slane %v7980, 4
    %v8547 = vsel %vm8045, %v8546, %v8545
    %v8548 = vrot.slane %v7982, 3
    %v8549 = vsel %vm8048, %v8548, %v8547
    %v8550 = vrot.slane %v7984, 2
    %v8551 = vsel %vm8051, %v8550, %v8549
    %v8552 = vrot.slane %v7986, 1
    %v8553 = vsel %vm8054, %v8552, %v8551
    %v8554 = vsel %vm8057, %v7988, %v8553
    %v8555 = vrot.slane %v7990, 7
    %v8556 = vrot.slane %v7992, 6
    %v8557 = vsel %vm8039, %v8556, %v8555
    %v8558 = vrot.slane %v7994, 5
    %v8559 = vsel %vm8042, %v8558, %v8557
    %v8560 = vrot.slane %v7996, 4
    %v8561 = vsel %vm8045, %v8560, %v8559
    %v8562 = vrot.slane %v7998, 3
    %v8563 = vsel %vm8048, %v8562, %v8561
    %v8564 = vrot.slane %v8000, 2
    %v8565 = vsel %vm8051, %v8564, %v8563
    %v8566 = vrot.slane %v8002, 1
    %v8567 = vsel %vm8054, %v8566, %v8565
    %v8568 = vsel %vm8057, %v8004, %v8567
    %8569 = vrot.lane.b32.xlu0 %v8526, 112
    %v8570 = vpop.permute.xlu0 %8569
    %8571 = vrot.lane.b32.xlu0 %v8540, 112
    %v8572 = vpop.permute.xlu0 %8571
    %8573 = vrot.lane.b32.xlu0 %v8554, 112
    %v8574 = vpop.permute.xlu0 %8573
    %8575 = vrot.lane.b32.xlu0 %v8568, 112
    %v8576 = vpop.permute.xlu0 %8575
    %v8613 = vrot.slane %v7945, 7
    %v8614 = vsel %vm8039, %v8613, %v7943
    %v8615 = vrot.slane %v7947, 6
    %v8616 = vsel %vm8042, %v8615, %v8614
    %v8617 = vrot.slane %v7949, 5
    %v8618 = vsel %vm8045, %v8617, %v8616
    %v8619 = vrot.slane %v7951, 4
    %v8620 = vsel %vm8048, %v8619, %v8618
    %v8621 = vrot.slane %v7953, 3
    %v8622 = vsel %vm8051, %v8621, %v8620
    %v8623 = vrot.slane %v7955, 2
    %v8624 = vsel %vm8054, %v8623, %v8622
    %v8625 = vrot.slane %v7957, 1
    %v8626 = vsel %vm8057, %v8625, %v8624
    %v8627 = vrot.slane %v7961, 7
    %v8628 = vsel %vm8039, %v8627, %v7959
    %v8629 = vrot.slane %v7963, 6
    %v8630 = vsel %vm8042, %v8629, %v8628
    %v8631 = vrot.slane %v7965, 5
    %v8632 = vsel %vm8045, %v8631, %v8630
    %v8633 = vrot.slane %v7967, 4
    %v8634 = vsel %vm8048, %v8633, %v8632
    %v8635 = vrot.slane %v7969, 3
    %v8636 = vsel %vm8051, %v8635, %v8634
    %v8637 = vrot.slane %v7971, 2
    %v8638 = vsel %vm8054, %v8637, %v8636
    %v8639 = vrot.slane %v7973, 1
    %v8640 = vsel %vm8057, %v8639, %v8638
    %v8641 = vrot.slane %v7977, 7
    %v8642 = vsel %vm8039, %v8641, %v7975
    %v8643 = vrot.slane %v7979, 6
    %v8644 = vsel %vm8042, %v8643, %v8642
    %v8645 = vrot.slane %v7981, 5
    %v8646 = vsel %vm8045, %v8645, %v8644
    %v8647 = vrot.slane %v7983, 4
    %v8648 = vsel %vm8048, %v8647, %v8646
    %v8649 = vrot.slane %v7985, 3
    %v8650 = vsel %vm8051, %v8649, %v8648
    %v8651 = vrot.slane %v7987, 2
    %v8652 = vsel %vm8054, %v8651, %v8650
    %v8653 = vrot.slane %v7989, 1
    %v8654 = vsel %vm8057, %v8653, %v8652
    %v8655 = vrot.slane %v7993, 7
    %v8656 = vsel %vm8039, %v8655, %v7991
    %v8657 = vrot.slane %v7995, 6
    %v8658 = vsel %vm8042, %v8657, %v8656
    %v8659 = vrot.slane %v7997, 5
    %v8660 = vsel %vm8045, %v8659, %v8658
    %v8661 = vrot.slane %v7999, 4
    %v8662 = vsel %vm8048, %v8661, %v8660
    %v8663 = vrot.slane %v8001, 3
    %v8664 = vsel %vm8051, %v8663, %v8662
    %v8665 = vrot.slane %v8003, 2
    %v8666 = vsel %vm8054, %v8665, %v8664
    %v8667 = vrot.slane %v8005, 1
    %v8668 = vsel %vm8057, %v8667, %v8666
    %v8673 = vrot.slane %v7943, 1
    %v8674 = vsel %vm8039, %v7945, %v8673
    %v8675 = vrot.slane %v7947, 7
    %v8676 = vsel %vm8042, %v8675, %v8674
    %v8677 = vrot.slane %v7949, 6
    %v8678 = vsel %vm8045, %v8677, %v8676
    %v8679 = vrot.slane %v7951, 5
    %v8680 = vsel %vm8048, %v8679, %v8678
    %v8681 = vrot.slane %v7953, 4
    %v8682 = vsel %vm8051, %v8681, %v8680
    %v8683 = vrot.slane %v7955, 3
    %v8684 = vsel %vm8054, %v8683, %v8682
    %v8685 = vrot.slane %v7957, 2
    %v8686 = vsel %vm8057, %v8685, %v8684
    %v8687 = vrot.slane %v7959, 1
    %v8688 = vsel %vm8039, %v7961, %v8687
    %v8689 = vrot.slane %v7963, 7
    %v8690 = vsel %vm8042, %v8689, %v8688
    %v8691 = vrot.slane %v7965, 6
    %v8692 = vsel %vm8045, %v8691, %v8690
    %v8693 = vrot.slane %v7967, 5
    %v8694 = vsel %vm8048, %v8693, %v8692
    %v8695 = vrot.slane %v7969, 4
    %v8696 = vsel %vm8051, %v8695, %v8694
    %v8697 = vrot.slane %v7971, 3
    %v8698 = vsel %vm8054, %v8697, %v8696
    %v8699 = vrot.slane %v7973, 2
    %v8700 = vsel %vm8057, %v8699, %v8698
    %v8701 = vrot.slane %v7975, 1
    %v8702 = vsel %vm8039, %v7977, %v8701
    %v8703 = vrot.slane %v7979, 7
    %v8704 = vsel %vm8042, %v8703, %v8702
    %v8705 = vrot.slane %v7981, 6
    %v8706 = vsel %vm8045, %v8705, %v8704
    %v8707 = vrot.slane %v7983, 5
    %v8708 = vsel %vm8048, %v8707, %v8706
    %v8709 = vrot.slane %v7985, 4
    %v8710 = vsel %vm8051, %v8709, %v8708
    %v8711 = vrot.slane %v7987, 3
    %v8712 = vsel %vm8054, %v8711, %v8710
    %v8713 = vrot.slane %v7989, 2
    %v8714 = vsel %vm8057, %v8713, %v8712
    %v8715 = vrot.slane %v7991, 1
    %v8716 = vsel %vm8039, %v7993, %v8715
    %v8717 = vrot.slane %v7995, 7
    %v8718 = vsel %vm8042, %v8717, %v8716
    %v8719 = vrot.slane %v7997, 6
    %v8720 = vsel %vm8045, %v8719, %v8718
    %v8721 = vrot.slane %v7999, 5
    %v8722 = vsel %vm8048, %v8721, %v8720
    %v8723 = vrot.slane %v8001, 4
    %v8724 = vsel %vm8051, %v8723, %v8722
    %v8725 = vrot.slane %v8003, 3
    %v8726 = vsel %vm8054, %v8725, %v8724
    %v8727 = vrot.slane %v8005, 2
    %v8728 = vsel %vm8057, %v8727, %v8726
    %8729 = vrot.lane.b32.xlu0 %v8686, 16
    %v8730 = vpop.permute.xlu0 %8729
    %8731 = vrot.lane.b32.xlu0 %v8700, 16
    %v8732 = vpop.permute.xlu0 %8731
    %8733 = vrot.lane.b32.xlu0 %v8714, 16
    %v8734 = vpop.permute.xlu0 %8733
    %8735 = vrot.lane.b32.xlu0 %v8728, 16
    %v8736 = vpop.permute.xlu0 %8735
    %v8741 = vrot.slane %v7943, 2
    %v8742 = vrot.slane %v7945, 1
    %v8743 = vsel %vm8039, %v8742, %v8741
    %v8744 = vsel %vm8042, %v7947, %v8743
    %v8745 = vrot.slane %v7949, 7
    %v8746 = vsel %vm8045, %v8745, %v8744
    %v8747 = vrot.slane %v7951, 6
    %v8748 = vsel %vm8048, %v8747, %v8746
    %v8749 = vrot.slane %v7953, 5
    %v8750 = vsel %vm8051, %v8749, %v8748
    %v8751 = vrot.slane %v7955, 4
    %v8752 = vsel %vm8054, %v8751, %v8750
    %v8753 = vrot.slane %v7957, 3
    %v8754 = vsel %vm8057, %v8753, %v8752
    %v8755 = vrot.slane %v7959, 2
    %v8756 = vrot.slane %v7961, 1
    %v8757 = vsel %vm8039, %v8756, %v8755
    %v8758 = vsel %vm8042, %v7963, %v8757
    %v8759 = vrot.slane %v7965, 7
    %v8760 = vsel %vm8045, %v8759, %v8758
    %v8761 = vrot.slane %v7967, 6
    %v8762 = vsel %vm8048, %v8761, %v8760
    %v8763 = vrot.slane %v7969, 5
    %v8764 = vsel %vm8051, %v8763, %v8762
    %v8765 = vrot.slane %v7971, 4
    %v8766 = vsel %vm8054, %v8765, %v8764
    %v8767 = vrot.slane %v7973, 3
    %v8768 = vsel %vm8057, %v8767, %v8766
    %v8769 = vrot.slane %v7975, 2
    %v8770 = vrot.slane %v7977, 1
    %v8771 = vsel %vm8039, %v8770, %v8769
    %v8772 = vsel %vm8042, %v7979, %v8771
    %v8773 = vrot.slane %v7981, 7
    %v8774 = vsel %vm8045, %v8773, %v8772
    %v8775 = vrot.slane %v7983, 6
    %v8776 = vsel %vm8048, %v8775, %v8774
    %v8777 = vrot.slane %v7985, 5
    %v8778 = vsel %vm8051, %v8777, %v8776
    %v8779 = vrot.slane %v7987, 4
    %v8780 = vsel %vm8054, %v8779, %v8778
    %v8781 = vrot.slane %v7989, 3
    %v8782 = vsel %vm8057, %v8781, %v8780
    %v8783 = vrot.slane %v7991, 2
    %v8784 = vrot.slane %v7993, 1
    %v8785 = vsel %vm8039, %v8784, %v8783
    %v8786 = vsel %vm8042, %v7995, %v8785
    %v8787 = vrot.slane %v7997, 7
    %v8788 = vsel %vm8045, %v8787, %v8786
    %v8789 = vrot.slane %v7999, 6
    %v8790 = vsel %vm8048, %v8789, %v8788
    %v8791 = vrot.slane %v8001, 5
    %v8792 = vsel %vm8051, %v8791, %v8790
    %v8793 = vrot.slane %v8003, 4
    %v8794 = vsel %vm8054, %v8793, %v8792
    %v8795 = vrot.slane %v8005, 3
    %v8796 = vsel %vm8057, %v8795, %v8794
    %8797 = vrot.lane.b32.xlu0 %v8754, 32
    %v8798 = vpop.permute.xlu0 %8797
    %8799 = vrot.lane.b32.xlu0 %v8768, 32
    %v8800 = vpop.permute.xlu0 %8799
    %8801 = vrot.lane.b32.xlu0 %v8782, 32
    %v8802 = vpop.permute.xlu0 %8801
    %8803 = vrot.lane.b32.xlu0 %v8796, 32
    %v8804 = vpop.permute.xlu0 %8803
    %v8809 = vrot.slane %v7943, 3
    %v8810 = vrot.slane %v7945, 2
    %v8811 = vsel %vm8039, %v8810, %v8809
    %v8812 = vrot.slane %v7947, 1
    %v8813 = vsel %vm8042, %v8812, %v8811
    %v8814 = vsel %vm8045, %v7949, %v8813
    %v8815 = vrot.slane %v7951, 7
    %v8816 = vsel %vm8048, %v8815, %v8814
    %v8817 = vrot.slane %v7953, 6
    %v8818 = vsel %vm8051, %v8817, %v8816
    %v8819 = vrot.slane %v7955, 5
    %v8820 = vsel %vm8054, %v8819, %v8818
    %v8821 = vrot.slane %v7957, 4
    %v8822 = vsel %vm8057, %v8821, %v8820
    %v8823 = vrot.slane %v7959, 3
    %v8824 = vrot.slane %v7961, 2
    %v8825 = vsel %vm8039, %v8824, %v8823
    %v8826 = vrot.slane %v7963, 1
    %v8827 = vsel %vm8042, %v8826, %v8825
    %v8828 = vsel %vm8045, %v7965, %v8827
    %v8829 = vrot.slane %v7967, 7
    %v8830 = vsel %vm8048, %v8829, %v8828
    %v8831 = vrot.slane %v7969, 6
    %v8832 = vsel %vm8051, %v8831, %v8830
    %v8833 = vrot.slane %v7971, 5
    %v8834 = vsel %vm8054, %v8833, %v8832
    %v8835 = vrot.slane %v7973, 4
    %v8836 = vsel %vm8057, %v8835, %v8834
    %v8837 = vrot.slane %v7975, 3
    %v8838 = vrot.slane %v7977, 2
    %v8839 = vsel %vm8039, %v8838, %v8837
    %v8840 = vrot.slane %v7979, 1
    %v8841 = vsel %vm8042, %v8840, %v8839
    %v8842 = vsel %vm8045, %v7981, %v8841
    %v8843 = vrot.slane %v7983, 7
    %v8844 = vsel %vm8048, %v8843, %v8842
    %v8845 = vrot.slane %v7985, 6
    %v8846 = vsel %vm8051, %v8845, %v8844
    %v8847 = vrot.slane %v7987, 5
    %v8848 = vsel %vm8054, %v8847, %v8846
    %v8849 = vrot.slane %v7989, 4
    %v8850 = vsel %vm8057, %v8849, %v8848
    %v8851 = vrot.slane %v7991, 3
    %v8852 = vrot.slane %v7993, 2
    %v8853 = vsel %vm8039, %v8852, %v8851
    %v8854 = vrot.slane %v7995, 1
    %v8855 = vsel %vm8042, %v8854, %v8853
    %v8856 = vsel %vm8045, %v7997, %v8855
    %v8857 = vrot.slane %v7999, 7
    %v8858 = vsel %vm8048, %v8857, %v8856
    %v8859 = vrot.slane %v8001, 6
    %v8860 = vsel %vm8051, %v8859, %v8858
    %v8861 = vrot.slane %v8003, 5
    %v8862 = vsel %vm8054, %v8861, %v8860
    %v8863 = vrot.slane %v8005, 4
    %v8864 = vsel %vm8057, %v8863, %v8862
    %8865 = vrot.lane.b32.xlu0 %v8822, 48
    %v8866 = vpop.permute.xlu0 %8865
    %8867 = vrot.lane.b32.xlu0 %v8836, 48
    %v8868 = vpop.permute.xlu0 %8867
    %8869 = vrot.lane.b32.xlu0 %v8850, 48
    %v8870 = vpop.permute.xlu0 %8869
    %8871 = vrot.lane.b32.xlu0 %v8864, 48
    %v8872 = vpop.permute.xlu0 %8871
    %v8877 = vrot.slane %v7943, 4
    %v8878 = vrot.slane %v7945, 3
    %v8879 = vsel %vm8039, %v8878, %v8877
    %v8880 = vrot.slane %v7947, 2
    %v8881 = vsel %vm8042, %v8880, %v8879
    %v8882 = vrot.slane %v7949, 1
    %v8883 = vsel %vm8045, %v8882, %v8881
    %v8884 = vsel %vm8048, %v7951, %v8883
    %v8885 = vrot.slane %v7953, 7
    %v8886 = vsel %vm8051, %v8885, %v8884
    %v8887 = vrot.slane %v7955, 6
    %v8888 = vsel %vm8054, %v8887, %v8886
    %v8889 = vrot.slane %v7957, 5
    %v8890 = vsel %vm8057, %v8889, %v8888
    %v8891 = vrot.slane %v7959, 4
    %v8892 = vrot.slane %v7961, 3
    %v8893 = vsel %vm8039, %v8892, %v8891
    %v8894 = vrot.slane %v7963, 2
    %v8895 = vsel %vm8042, %v8894, %v8893
    %v8896 = vrot.slane %v7965, 1
    %v8897 = vsel %vm8045, %v8896, %v8895
    %v8898 = vsel %vm8048, %v7967, %v8897
    %v8899 = vrot.slane %v7969, 7
    %v8900 = vsel %vm8051, %v8899, %v8898
    %v8901 = vrot.slane %v7971, 6
    %v8902 = vsel %vm8054, %v8901, %v8900
    %v8903 = vrot.slane %v7973, 5
    %v8904 = vsel %vm8057, %v8903, %v8902
    %v8905 = vrot.slane %v7975, 4
    %v8906 = vrot.slane %v7977, 3
    %v8907 = vsel %vm8039, %v8906, %v8905
    %v8908 = vrot.slane %v7979, 2
    %v8909 = vsel %vm8042, %v8908, %v8907
    %v8910 = vrot.slane %v7981, 1
    %v8911 = vsel %vm8045, %v8910, %v8909
    %v8912 = vsel %vm8048, %v7983, %v8911
    %v8913 = vrot.slane %v7985, 7
    %v8914 = vsel %vm8051, %v8913, %v8912
    %v8915 = vrot.slane %v7987, 6
    %v8916 = vsel %vm8054, %v8915, %v8914
    %v8917 = vrot.slane %v7989, 5
    %v8918 = vsel %vm8057, %v8917, %v8916
    %v8919 = vrot.slane %v7991, 4
    %v8920 = vrot.slane %v7993, 3
    %v8921 = vsel %vm8039, %v8920, %v8919
    %v8922 = vrot.slane %v7995, 2
    %v8923 = vsel %vm8042, %v8922, %v8921
    %v8924 = vrot.slane %v7997, 1
    %v8925 = vsel %vm8045, %v8924, %v8923
    %v8926 = vsel %vm8048, %v7999, %v8925
    %v8927 = vrot.slane %v8001, 7
    %v8928 = vsel %vm8051, %v8927, %v8926
    %v8929 = vrot.slane %v8003, 6
    %v8930 = vsel %vm8054, %v8929, %v8928
    %v8931 = vrot.slane %v8005, 5
    %v8932 = vsel %vm8057, %v8931, %v8930
    %8933 = vrot.lane.b32.xlu0 %v8890, 64
    %v8934 = vpop.permute.xlu0 %8933
    %8935 = vrot.lane.b32.xlu0 %v8904, 64
    %v8936 = vpop.permute.xlu0 %8935
    %8937 = vrot.lane.b32.xlu0 %v8918, 64
    %v8938 = vpop.permute.xlu0 %8937
    %8939 = vrot.lane.b32.xlu0 %v8932, 64
    %v8940 = vpop.permute.xlu0 %8939
    %v8945 = vrot.slane %v7943, 5
    %v8946 = vrot.slane %v7945, 4
    %v8947 = vsel %vm8039, %v8946, %v8945
    %v8948 = vrot.slane %v7947, 3
    %v8949 = vsel %vm8042, %v8948, %v8947
    %v8950 = vrot.slane %v7949, 2
    %v8951 = vsel %vm8045, %v8950, %v8949
    %v8952 = vrot.slane %v7951, 1
    %v8953 = vsel %vm8048, %v8952, %v8951
    %v8954 = vsel %vm8051, %v7953, %v8953
    %v8955 = vrot.slane %v7955, 7
    %v8956 = vsel %vm8054, %v8955, %v8954
    %v8957 = vrot.slane %v7957, 6
    %v8958 = vsel %vm8057, %v8957, %v8956
    %v8959 = vrot.slane %v7959, 5
    %v8960 = vrot.slane %v7961, 4
    %v8961 = vsel %vm8039, %v8960, %v8959
    %v8962 = vrot.slane %v7963, 3
    %v8963 = vsel %vm8042, %v8962, %v8961
    %v8964 = vrot.slane %v7965, 2
    %v8965 = vsel %vm8045, %v8964, %v8963
    %v8966 = vrot.slane %v7967, 1
    %v8967 = vsel %vm8048, %v8966, %v8965
    %v8968 = vsel %vm8051, %v7969, %v8967
    %v8969 = vrot.slane %v7971, 7
    %v8970 = vsel %vm8054, %v8969, %v8968
    %v8971 = vrot.slane %v7973, 6
    %v8972 = vsel %vm8057, %v8971, %v8970
    %v8973 = vrot.slane %v7975, 5
    %v8974 = vrot.slane %v7977, 4
    %v8975 = vsel %vm8039, %v8974, %v8973
    %v8976 = vrot.slane %v7979, 3
    %v8977 = vsel %vm8042, %v8976, %v8975
    %v8978 = vrot.slane %v7981, 2
    %v8979 = vsel %vm8045, %v8978, %v8977
    %v8980 = vrot.slane %v7983, 1
    %v8981 = vsel %vm8048, %v8980, %v8979
    %v8982 = vsel %vm8051, %v7985, %v8981
    %v8983 = vrot.slane %v7987, 7
    %v8984 = vsel %vm8054, %v8983, %v8982
    %v8985 = vrot.slane %v7989, 6
    %v8986 = vsel %vm8057, %v8985, %v8984
    %v8987 = vrot.slane %v7991, 5
    %v8988 = vrot.slane %v7993, 4
    %v8989 = vsel %vm8039, %v8988, %v8987
    %v8990 = vrot.slane %v7995, 3
    %v8991 = vsel %vm8042, %v8990, %v8989
    %v8992 = vrot.slane %v7997, 2
    %v8993 = vsel %vm8045, %v8992, %v8991
    %v8994 = vrot.slane %v7999, 1
    %v8995 = vsel %vm8048, %v8994, %v8993
    %v8996 = vsel %vm8051, %v8001, %v8995
    %v8997 = vrot.slane %v8003, 7
    %v8998 = vsel %vm8054, %v8997, %v8996
    %v8999 = vrot.slane %v8005, 6
    %v9000 = vsel %vm8057, %v8999, %v8998
    %9001 = vrot.lane.b32.xlu0 %v8958, 80
    %v9002 = vpop.permute.xlu0 %9001
    %9003 = vrot.lane.b32.xlu0 %v8972, 80
    %v9004 = vpop.permute.xlu0 %9003
    %9005 = vrot.lane.b32.xlu0 %v8986, 80
    %v9006 = vpop.permute.xlu0 %9005
    %9007 = vrot.lane.b32.xlu0 %v9000, 80
    %v9008 = vpop.permute.xlu0 %9007
    %v9013 = vrot.slane %v7943, 6
    %v9014 = vrot.slane %v7945, 5
    %v9015 = vsel %vm8039, %v9014, %v9013
    %v9016 = vrot.slane %v7947, 4
    %v9017 = vsel %vm8042, %v9016, %v9015
    %v9018 = vrot.slane %v7949, 3
    %v9019 = vsel %vm8045, %v9018, %v9017
    %v9020 = vrot.slane %v7951, 2
    %v9021 = vsel %vm8048, %v9020, %v9019
    %v9022 = vrot.slane %v7953, 1
    %v9023 = vsel %vm8051, %v9022, %v9021
    %v9024 = vsel %vm8054, %v7955, %v9023
    %v9025 = vrot.slane %v7957, 7
    %v9026 = vsel %vm8057, %v9025, %v9024
    %v9027 = vrot.slane %v7959, 6
    %v9028 = vrot.slane %v7961, 5
    %v9029 = vsel %vm8039, %v9028, %v9027
    %v9030 = vrot.slane %v7963, 4
    %v9031 = vsel %vm8042, %v9030, %v9029
    %v9032 = vrot.slane %v7965, 3
    %v9033 = vsel %vm8045, %v9032, %v9031
    %v9034 = vrot.slane %v7967, 2
    %v9035 = vsel %vm8048, %v9034, %v9033
    %v9036 = vrot.slane %v7969, 1
    %v9037 = vsel %vm8051, %v9036, %v9035
    %v9038 = vsel %vm8054, %v7971, %v9037
    %v9039 = vrot.slane %v7973, 7
    %v9040 = vsel %vm8057, %v9039, %v9038
    %v9041 = vrot.slane %v7975, 6
    %v9042 = vrot.slane %v7977, 5
    %v9043 = vsel %vm8039, %v9042, %v9041
    %v9044 = vrot.slane %v7979, 4
    %v9045 = vsel %vm8042, %v9044, %v9043
    %v9046 = vrot.slane %v7981, 3
    %v9047 = vsel %vm8045, %v9046, %v9045
    %v9048 = vrot.slane %v7983, 2
    %v9049 = vsel %vm8048, %v9048, %v9047
    %v9050 = vrot.slane %v7985, 1
    %v9051 = vsel %vm8051, %v9050, %v9049
    %v9052 = vsel %vm8054, %v7987, %v9051
    %v9053 = vrot.slane %v7989, 7
    %v9054 = vsel %vm8057, %v9053, %v9052
    %v9055 = vrot.slane %v7991, 6
    %v9056 = vrot.slane %v7993, 5
    %v9057 = vsel %vm8039, %v9056, %v9055
    %v9058 = vrot.slane %v7995, 4
    %v9059 = vsel %vm8042, %v9058, %v9057
    %v9060 = vrot.slane %v7997, 3
    %v9061 = vsel %vm8045, %v9060, %v9059
    %v9062 = vrot.slane %v7999, 2
    %v9063 = vsel %vm8048, %v9062, %v9061
    %v9064 = vrot.slane %v8001, 1
    %v9065 = vsel %vm8051, %v9064, %v9063
    %v9066 = vsel %vm8054, %v8003, %v9065
    %v9067 = vrot.slane %v8005, 7
    %v9068 = vsel %vm8057, %v9067, %v9066
    %9069 = vrot.lane.b32.xlu0 %v9026, 96
    %v9070 = vpop.permute.xlu0 %9069
    %9071 = vrot.lane.b32.xlu0 %v9040, 96
    %v9072 = vpop.permute.xlu0 %9071
    %9073 = vrot.lane.b32.xlu0 %v9054, 96
    %v9074 = vpop.permute.xlu0 %9073
    %9075 = vrot.lane.b32.xlu0 %v9068, 96
    %v9076 = vpop.permute.xlu0 %9075
    %v9081 = vrot.slane %v7943, 7
    %v9082 = vrot.slane %v7945, 6
    %v9083 = vsel %vm8039, %v9082, %v9081
    %v9084 = vrot.slane %v7947, 5
    %v9085 = vsel %vm8042, %v9084, %v9083
    %v9086 = vrot.slane %v7949, 4
    %v9087 = vsel %vm8045, %v9086, %v9085
    %v9088 = vrot.slane %v7951, 3
    %v9089 = vsel %vm8048, %v9088, %v9087
    %v9090 = vrot.slane %v7953, 2
    %v9091 = vsel %vm8051, %v9090, %v9089
    %v9092 = vrot.slane %v7955, 1
    %v9093 = vsel %vm8054, %v9092, %v9091
    %v9094 = vsel %vm8057, %v7957, %v9093
    %v9095 = vrot.slane %v7959, 7
    %v9096 = vrot.slane %v7961, 6
    %v9097 = vsel %vm8039, %v9096, %v9095
    %v9098 = vrot.slane %v7963, 5
    %v9099 = vsel %vm8042, %v9098, %v9097
    %v9100 = vrot.slane %v7965, 4
    %v9101 = vsel %vm8045, %v9100, %v9099
    %v9102 = vrot.slane %v7967, 3
    %v9103 = vsel %vm8048, %v9102, %v9101
    %v9104 = vrot.slane %v7969, 2
    %v9105 = vsel %vm8051, %v9104, %v9103
    %v9106 = vrot.slane %v7971, 1
    %v9107 = vsel %vm8054, %v9106, %v9105
    %v9108 = vsel %vm8057, %v7973, %v9107
    %v9109 = vrot.slane %v7975, 7
    %v9110 = vrot.slane %v7977, 6
    %v9111 = vsel %vm8039, %v9110, %v9109
    %v9112 = vrot.slane %v7979, 5
    %v9113 = vsel %vm8042, %v9112, %v9111
    %v9114 = vrot.slane %v7981, 4
    %v9115 = vsel %vm8045, %v9114, %v9113
    %v9116 = vrot.slane %v7983, 3
    %v9117 = vsel %vm8048, %v9116, %v9115
    %v9118 = vrot.slane %v7985, 2
    %v9119 = vsel %vm8051, %v9118, %v9117
    %v9120 = vrot.slane %v7987, 1
    %v9121 = vsel %vm8054, %v9120, %v9119
    %v9122 = vsel %vm8057, %v7989, %v9121
    %v9123 = vrot.slane %v7991, 7
    %v9124 = vrot.slane %v7993, 6
    %v9125 = vsel %vm8039, %v9124, %v9123
    %v9126 = vrot.slane %v7995, 5
    %v9127 = vsel %vm8042, %v9126, %v9125
    %v9128 = vrot.slane %v7997, 4
    %v9129 = vsel %vm8045, %v9128, %v9127
    %v9130 = vrot.slane %v7999, 3
    %v9131 = vsel %vm8048, %v9130, %v9129
    %v9132 = vrot.slane %v8001, 2
    %v9133 = vsel %vm8051, %v9132, %v9131
    %v9134 = vrot.slane %v8003, 1
    %v9135 = vsel %vm8054, %v9134, %v9133
    %v9136 = vsel %vm8057, %v8005, %v9135
    %9137 = vrot.lane.b32.xlu0 %v9094, 112
    %v9138 = vpop.permute.xlu0 %9137
    %9139 = vrot.lane.b32.xlu0 %v9108, 112
    %v9140 = vpop.permute.xlu0 %9139
    %9141 = vrot.lane.b32.xlu0 %v9122, 112
    %v9142 = vpop.permute.xlu0 %9141
    %9143 = vrot.lane.b32.xlu0 %v9136, 112
    %v9144 = vpop.permute.xlu0 %9143
    %v9149 = vsel %vm4290, %v8058, %v8162
    %v9150 = vsel %vm4290, %v8072, %v8164
    %v9151 = vsel %vm4290, %v8086, %v8166
    %v9152 = vsel %vm4290, %v8100, %v8168
    %v9153 = vsel %vm4550, %v9149, %v8230
    %v9154 = vsel %vm4550, %v9150, %v8232
    %v9155 = vsel %vm4550, %v9151, %v8234
    %v9156 = vsel %vm4550, %v9152, %v8236
    %vm9157 = vcmask 392192
    %v9158 = vsel %vm9157, %v9153, %v8298
    %v9159 = vsel %vm9157, %v9154, %v8300
    %v9160 = vsel %vm9157, %v9155, %v8302
    %v9161 = vsel %vm9157, %v9156, %v8304
    %vm9162 = vcmask 523264
    %v9163 = vsel %vm9162, %v9158, %v8366
    %v9164 = vsel %vm9162, %v9159, %v8368
    %v9165 = vsel %vm9162, %v9160, %v8370
    %v9166 = vsel %vm9162, %v9161, %v8372
    %vm9167 = vcmask 654336
    %v9168 = vsel %vm9167, %v9163, %v8434
    %v9169 = vsel %vm9167, %v9164, %v8436
    %v9170 = vsel %vm9167, %v9165, %v8438
    %v9171 = vsel %vm9167, %v9166, %v8440
    %vm9172 = vcmask 785408
    %v9173 = vsel %vm9172, %v9168, %v8502
    %v9174 = vsel %vm9172, %v9169, %v8504
    %v9175 = vsel %vm9172, %v9170, %v8506
    %v9176 = vsel %vm9172, %v9171, %v8508
    %vm9177 = vcmask 916480
    %v9178 = vsel %vm9177, %v9173, %v8570
    %v9179 = vsel %vm9177, %v9174, %v8572
    %v9180 = vsel %vm9177, %v9175, %v8574
    %v9181 = vsel %vm9177, %v9176, %v8576
    %v9182 = vsel %vm4290, %v8626, %v8730
    %v9183 = vsel %vm4290, %v8640, %v8732
    %v9184 = vsel %vm4290, %v8654, %v8734
    %v9185 = vsel %vm4290, %v8668, %v8736
    %v9186 = vsel %vm4550, %v9182, %v8798
    %v9187 = vsel %vm4550, %v9183, %v8800
    %v9188 = vsel %vm4550, %v9184, %v8802
    %v9189 = vsel %vm4550, %v9185, %v8804
    %v9190 = vsel %vm9157, %v9186, %v8866
    %v9191 = vsel %vm9157, %v9187, %v8868
    %v9192 = vsel %vm9157, %v9188, %v8870
    %v9193 = vsel %vm9157, %v9189, %v8872
    %v9194 = vsel %vm9162, %v9190, %v8934
    %v9195 = vsel %vm9162, %v9191, %v8936
    %v9196 = vsel %vm9162, %v9192, %v8938
    %v9197 = vsel %vm9162, %v9193, %v8940
    %v9198 = vsel %vm9167, %v9194, %v9002
    %v9199 = vsel %vm9167, %v9195, %v9004
    %v9200 = vsel %vm9167, %v9196, %v9006
    %v9201 = vsel %vm9167, %v9197, %v9008
    %v9202 = vsel %vm9172, %v9198, %v9070
    %v9203 = vsel %vm9172, %v9199, %v9072
    %v9204 = vsel %vm9172, %v9200, %v9074
    %v9205 = vsel %vm9172, %v9201, %v9076
    %v9206 = vsel %vm9177, %v9202, %v9138
    %v9207 = vsel %vm9177, %v9203, %v9140
    %v9208 = vsel %vm9177, %v9204, %v9142
    %v9209 = vsel %vm9177, %v9205, %v9144
    %9210 = vst [vmem:[#allocation3] sm:$0xff] %v9178
    %9211 = vst [vmem:[#allocation3 + $0x8] sm:$0xff] %v9206
    %9212 = vst [vmem:[#allocation3 + $0x10] sm:$0xff] %v9179
    %9213 = vst [vmem:[#allocation3 + $0x18] sm:$0xff] %v9207
    %9214 = vst [vmem:[#allocation3 + $0x20] sm:$0xff] %v9180
    %9215 = vst [vmem:[#allocation3 + $0x28] sm:$0xff] %v9208
    %9216 = vst [vmem:[#allocation3 + $0x30] sm:$0xff] %v9181
    %9217 = vst [vmem:[#allocation3 + $0x38] sm:$0xff] %v9209
    // Predicated region
    $region54: #{tpu_custom_call.1} parent=1 // pred_check
      _
    $region55: #{tpu_custom_call.1} parent=1 // pred_check_branch
      %9219 = sbr.rel (0) target = $region57
    $region56: #{tpu_custom_call.1} parent=1 // pred_region
      %s9221 = ssub.s32 1024, 1024
      %9222 = vsyncadd [#allocation4], %s9221
      %s9223 = sshll.u32 [#allocation3], 4
      %s9224 = int_to_ptr.vmem [resolvable:$true] %s9223
      %9229 = dma.vmem_to_hbm [thread:$0]  %s9224, 1024, %s13, [#allocation4], 256, 256, 16
    $region57: #{tpu_custom_call.1} parent=1 // pred_fallthru
      _
    // Predicated region
    $region58: #{tpu_custom_call.1} parent=1 // pred_check
      _
    $region59: #{tpu_custom_call.1} parent=1 // pred_check_branch
      %9231 = sbr.rel (0) target = $region61
    $region60: #{tpu_custom_call.1} parent=1 // pred_region
      %9232 = dma.done [#allocation4], 1024
    $region61: #{tpu_custom_call.1} parent=1 // pred_fallthru
      _
    %9233 = vsyncpa [#allocation4], 1

</llo_original>
